<compile_context>
chip_gen: v7x
topology: tpu7x:2x2x1
jax: 0.10.0
libtpu: 0.0.40
codegen_flags: <defaults>
</compile_context>

<pallas_src>
import math
import numpy as np
import jax
import jax.numpy as jnp
from jax import lax
from jax.experimental import pallas as pl
from jax.experimental.pallas import tpu as pltpu

EPS_LN = 1e-6
MASK_FILL = -1000000000.0     # masked_fill value of the reference (in-block, group-masked)
OFF_BLOCK = -2.0e9            # cross-s entries of the flattened attention (weight -> 0)

# rows of the packed (11, H) vector-parameter slab
LN1_A, LN1_B, BQ, BK, BV, BO, LN2_A, LN2_B, B2R, LNF_A, LNF_B = range(11)


def _full_spec(shape):
    n = len(shape)
    return pl.BlockSpec(shape, lambda i, _n=n: (0,) * _n)


# --------------------------------------------------------------------------------
# Host-side (numpy) group-mask construction — faithful port of src_to_mask /
# group_mask / GroupAttention.get_mask.  This is CPU/numpy glue in the original
# PyTorch module too (data-dependent integer preprocessing), so it stays host-side.
# --------------------------------------------------------------------------------
def src_to_mask_np(src, word2index):
    batch_data_mask_tok = []
    for encode_sen_idx in src:
        token = 1
        mask = [0] * len(encode_sen_idx)
        for num in range(len(encode_sen_idx)):
            mask[num] = token
            if (encode_sen_idx[num] == word2index['．'] or
                    encode_sen_idx[num] == word2index['，']) and num != len(encode_sen_idx) - 1:
                token += 1
            if encode_sen_idx[num] == 0:
                mask[num] = 0
        for num in range(len(encode_sen_idx)):
            if mask[num] == token and token != 1:
                mask[num] = 1000
        batch_data_mask_tok.append(mask)
    return np.array(batch_data_mask_tok)


def group_mask_np(batch, type='self', pad=0):
    length = batch.shape[1]
    lis = []
    for tok in batch:
        mask = np.zeros(tok.shape)
        mask = np.expand_dims(mask, -1)
        for ele in tok:
            if ele == pad:
                copy = np.zeros(length)
            else:
                if type == 'self':
                    copy = tok.copy()
                    if ele != 1000:
                        copy[copy == 1000] = 0
                    copy[copy != ele] = 0
                    copy[copy == ele] = 1
                elif type == 'between':
                    copy = tok.copy()
                    copy[copy == 1000] = 0
                    copy[copy == ele] = 0
                    copy[copy != 0] = 1
                elif type == 'question':
                    copy = tok.copy()
                    copy[copy != 1000] = 0
                    copy[copy == 1000] = 1
                    if ele == 1000:
                        copy[copy == 0] = -1
                        copy[copy == 1] = 0
                        copy[copy == -1] = 1
                else:
                    raise ValueError('error')
            copy = np.expand_dims(copy, -1)
            mask = np.concatenate((mask, copy), axis=1)
        mask = mask[:, 1:]
        mask = mask.transpose()
        mask = np.expand_dims(mask, 0)
        lis.append(mask)
    return np.concatenate(tuple(lis))


def build_src_mask(src_np, word2index, pad=0):
    """Reproduces GroupAttention.get_mask: cat(between, self, global, question), dim=1."""
    m = src_to_mask_np(src_np, word2index)
    self_m = group_mask_np(m, 'self', pad)[:, None]          # (S,1,B,B)
    between_m = group_mask_np(m, 'between', pad)[:, None]    # (S,1,B,B)
    question_m = group_mask_np(m, 'question', pad)[:, None]  # (S,1,B,B)
    glob = (np.asarray(src_np) != pad).astype(np.float64)    # (S,B)
    glob = glob[:, None, None, :]                            # (S,1,1,B)
    glob = np.broadcast_to(glob, self_m.shape)
    final = np.concatenate([between_m, self_m, glob, question_m], axis=1)  # (S,4,B,B)
    return final.astype(np.float32)


def build_mask_codes(src_np, word2index, pad=0):
    """int8 codes on the flattened (T=S*B, T) score matrix, per mask channel:
       2 = attend (keep score), 1 = same s but group-masked (score := -1e9),
       0 = different s (score := -2e9, softmax weight underflows to 0)."""
    m4 = build_src_mask(src_np, word2index, pad)             # (S,4,B,B)
    S, nm, B, _ = m4.shape
    T = S * B
    codes = np.zeros((nm, T, T), dtype=np.int8)
    for s in range(S):
        blk = m4[s]                                          # (4,B,B)
        codes[:, s * B:(s + 1) * B, s * B:(s + 1) * B] = np.where(blk != 0, 2, 1)
    return codes


# --------------------------------------------------------------------------------
# Pallas kernel 1: one bidirectional GRU layer, both directions fused in one body.
# gi = x @ W_ih + b_ih is precomputed outside (one fat XLA einsum per layer), shipped
# pre-split by gate: (2, S, 3, B, H).  Packed-sequence semantics via a per-step
# (t < length) compare: hidden frozen and output 0 at padded steps.
# --------------------------------------------------------------------------------
def _gru_bidir_kernel(gi_ref, len_ref, whh_ref, bhh_ref, out_ref):
    _, S, _, B, H = gi_ref.shape
    lengths = len_ref[...]                                   # (B, 1) int32

    def mm(a, w):
        return lax.dot_general(a, w, (((1,), (0,)), ((), ())),
                               preferred_element_type=jnp.float32)

    # 2 (directions) x 3 (gates) recurrent weights / biases, loaded once (hoisted).
    whh = [[whh_ref[d, g] for g in range(3)] for d in range(2)]
    bhh = [[bhh_ref[d, g] for g in range(3)] for d in range(2)]

    def cell(d, t, h):
        # PyTorch GRU: r,z = sigmoid(gi + gh); n = tanh(gi_n + r * gh_n); h' = (1-z)n + z h
        r = jax.nn.sigmoid(gi_ref[d, t, 0] + mm(h, whh[d][0]) + bhh[d][0])
        z = jax.nn.sigmoid(gi_ref[d, t, 1] + mm(h, whh[d][1]) + bhh[d][1])
        n = jnp.tanh(gi_ref[d, t, 2] + r * (mm(h, whh[d][2]) + bhh[d][2]))
        return (1.0 - z) * n + z * h

    hf = jnp.zeros((B, H), jnp.float32)
    hb = jnp.zeros((B, H), jnp.float32)
    # Fully unrolled time loop (S small & static): static gi loads / output stores,
    # fwd and bwd recurrences interleaved in the same straight-line schedule.
    for i in range(S):
        tf, tb = i, S - 1 - i
        mf = (lengths > tf).astype(jnp.float32)              # (B,1): 1 while t < length
        hf = mf * cell(0, tf, hf) + (1.0 - mf) * hf          # frozen at padded steps
        out_ref[0, tf] = mf * hf                             # padded positions emit 0
        mb = (lengths > tb).astype(jnp.float32)
        hb = mb * cell(1, tb, hb) + (1.0 - mb) * hb
        out_ref[1, tb] = mb * hb


def gru_layer(gi, lengths_b1, whh, bhh):
    """gi: (2,S,3,B,H) precomputed input projections per direction/gate -> (2,S,B,H)."""
    _, S, _, B, H = gi.shape
    return pl.pallas_call(
        _gru_bidir_kernel,
        out_shape=jax.ShapeDtypeStruct((2, S, B, H), jnp.float32),
        grid=(1,),
        in_specs=[
            _full_spec((2, S, 3, B, H)),
            _full_spec((B, 1)),
            _full_spec((2, 3, H, H)),
            _full_spec((2, 3, 1, H)),
        ],
        out_specs=_full_spec((2, S, B, H)),
        compiler_params=pltpu.CompilerParams(dimension_semantics=("arbitrary",)),
    )(gi, lengths_b1, whh, bhh)


# --------------------------------------------------------------------------------
# Pallas kernel 2: whole Encoder (N=1 EncoderLayer + final LayerNorm), fused:
#   y1  = x + MHA(LN1(x))     (8-head group attention, masked_fill(mask==0,-1e9))
#   y2  = y1 + FFN(LN2(y1))   (relu MLP)
#   out = LNf(y2)
# All per-token work runs on the flattened (T=S*B, H) slab.  Heads are handled with
# 0/1 column-selector broadcasts (no lane slices / concat); per-s block structure +
# group masks live in the int8 code tensor.
# --------------------------------------------------------------------------------
def _encoder_kernel(x_ref, mk_ref, vec_ref, wqkv_ref, wo_ref,
                    w1_ref, b1_ref, w2_ref, hm_ref, out_ref):
    T, H = x_ref.shape
    n_mask = mk_ref.shape[0]       # 4 mask channels; heads 4..7 reuse them (cat(mask,mask))
    nh = hm_ref.shape[0]           # 8 heads

    def mm(a, w):
        return lax.dot_general(a, w, (((1,), (0,)), ((), ())),
                               preferred_element_type=jnp.float32)

    def mm_t(a, b):                # a @ b.T
        return lax.dot_general(a, b, (((1,), (1,)), ((), ())),
                               preferred_element_type=jnp.float32)

    def row(i):                    # (1, H) row of the packed vector-parameter slab
        return vec_ref[pl.ds(i, 1), :]

    def layer_norm(v, ia, ib):     # reference LayerNorm: unbiased std, eps added to std
        mean = jnp.mean(v, axis=-1, keepdims=True)
        var = jnp.sum((v - mean) ** 2, axis=-1, keepdims=True) * (1.0 / (H - 1))
        return row(ia) * (v - mean) / (jnp.sqrt(var) + EPS_LN) + row(ib)

    x = x_ref[...]                                   # (T, H) flattened token slab
    xn = layer_norm(x, LN1_A, LN1_B)
    q = mm(xn, wqkv_ref[0]) + row(BQ)                # 1/sqrt(dk) pre-folded into wq, bq
    k = mm(xn, wqkv_ref[1]) + row(BK)
    v = mm(xn, wqkv_ref[2]) + row(BV)

    ctx = jnp.zeros((T, H), jnp.float32)
    for h in range(nh):                              # static unroll over heads
        hm = hm_ref[h]                               # (1, H) 0/1 selector of head-h columns
        sc = mm_t(q * hm, k)                         # (T, T); only head-h dims contribute
        mk = mk_ref[h % n_mask]                      # (T, T) int8 codes {0,1,2}
        sc = jnp.where(mk == 2, sc,
                       jnp.where(mk == 1, MASK_FILL, OFF_BLOCK))
        sc_max = jnp.max(sc, axis=-1, keepdims=True)
        e = jnp.exp(sc - sc_max)
        p = e * pl.reciprocal(jnp.sum(e, axis=-1, keepdims=True), approx=True)
        ctx = ctx + mm(p, v) * hm                    # keep head-h value columns only

    attn = mm(ctx, wo_ref[...]) + row(BO)            # single (T,H)x(H,H) out projection
    y1 = x + attn                                    # residual 1 (dropout = id in eval)
    y1n = layer_norm(y1, LN2_A, LN2_B)
    hid = jnp.maximum(mm(y1n, w1_ref[...]) + b1_ref[...], 0.0)
    y2 = y1 + mm(hid, w2_ref[...]) + row(B2R)        # residual 2
    out_ref[...] = layer_norm(y2, LNF_A, LNF_B)


def encoder_call(x_flat, mk_codes, p):
    T, H = x_flat.shape
    nm = mk_codes.shape[0]
    dff = p["w1"].shape[1]
    nh = p["hm"].shape[0]
    return pl.pallas_call(
        _encoder_kernel,
        out_shape=jax.ShapeDtypeStruct((T, H), jnp.float32),
        grid=(1,),
        in_specs=[
            _full_spec((T, H)),
            _full_spec((nm, T, T)),
            _full_spec((11, H)),
            _full_spec((3, H, H)),
            _full_spec((H, H)),
            _full_spec((H, dff)),
            _full_spec((1, dff)),
            _full_spec((dff, H)),
            _full_spec((nh, 1, H)),
        ],
        out_specs=_full_spec((T, H)),
        compiler_params=pltpu.CompilerParams(dimension_semantics=("arbitrary",)),
    )(x_flat, mk_codes, p["vecs"], p["wqkv"], p["wo"],
      p["w1"], p["b1"], p["w2"], p["hm"])


# --------------------------------------------------------------------------------
# Parameter init (deterministic, synthetic — shapes from the module __init__).
# GRU weights stored pre-split by (direction, gate) = (2, 3, ., .), gate order r,z,n.
# --------------------------------------------------------------------------------
def init_params(key, vocab, E, H, dff, n_heads=8):
    ks = jax.random.split(key, 40)
    it = iter(ks)

    def nrm(shape, scale=0.1):
        return scale * jax.random.normal(next(it), shape, dtype=jnp.float32)

    dk = H // n_heads
    params = {"hidden": H, "n_heads": n_heads}
    emb = nrm((vocab, E), 0.5)
    params["embedding"] = emb.at[0].set(0.0)        # padding_idx = 0

    gru = []
    in_dims = [E, 2 * H]
    for layer in range(2):                          # n_layers = 2, bidirectional
        D = in_dims[layer]
        gru.append(dict(
            wih=nrm((2, 3, D, H)),                  # (dir, gate r/z/n, D, H)
            whh=nrm((2, 3, H, H)),
            bih=nrm((2, 3, 1, H)),
            bhh=nrm((2, 3, 1, H)),
        ))
    params["gru"] = gru

    # Group attention: fused (H,H) projections, 1/sqrt(dk) folded into wq & bq.
    scale = 1.0 / math.sqrt(dk)
    wq, bq = nrm((H, H)), nrm((1, H))
    wk, bk = nrm((H, H)), nrm((1, H))
    wv, bv = nrm((H, H)), nrm((1, H))
    params["wqkv"] = jnp.stack([wq * scale, wk, wv], axis=0)       # (3, H, H)
    params["wo"], bo = nrm((H, H)), nrm((1, H))
    params["w1"], params["b1"] = nrm((H, dff)), nrm((1, dff))      # PositionwiseFeedForward
    params["w2"], b2 = nrm((dff, H)), nrm((1, H))

    ln1_a, ln1_b = jnp.ones((1, H), jnp.float32), jnp.zeros((1, H), jnp.float32)
    ln2_a, ln2_b = jnp.ones((1, H), jnp.float32), jnp.zeros((1, H), jnp.float32)
    lnf_a, lnf_b = jnp.ones((1, H), jnp.float32), jnp.zeros((1, H), jnp.float32)
    # packed (11, H) slab; row order must match the LN1_A.. constants
    params["vecs"] = jnp.concatenate(
        [ln1_a, ln1_b, bq * scale, bk, bv, bo, ln2_a, ln2_b, b2, lnf_a, lnf_b], axis=0)

    hm = np.zeros((n_heads, 1, H), np.float32)      # head-h column selector
    for h in range(n_heads):
        hm[h, 0, h * dk:(h + 1) * dk] = 1.0
    params["hm"] = jnp.asarray(hm)
    return params


# --------------------------------------------------------------------------------
# Full EncoderGroupATT forward.
# --------------------------------------------------------------------------------
def encoder_group_att_forward(params, input_var, input_lengths, word2index):
    S, B = input_var.shape
    H = params["hidden"]

    # embedding (+ em_dropout == identity in eval)
    embedded = jnp.take(params["embedding"], input_var, axis=0)        # (S, B, E)
    lengths_b1 = input_lengths.astype(jnp.int32).reshape(B, 1)

    # 2-layer bidirectional GRU (inter-layer dropout == identity in eval).
    # Input projections hoisted out of the recurrence: one fat einsum per layer.
    layer_in = embedded
    dir_out = None
    for lp in params["gru"]:
        gi = jnp.einsum('sbd,zgdh->zsgbh', layer_in, lp["wih"]) + lp["bih"][:, None]
        dir_out = gru_layer(gi, lengths_b1, lp["whh"], lp["bhh"])      # (2, S, B, H)
        layer_in = jnp.concatenate([dir_out[0], dir_out[1]], axis=-1)  # (S, B, 2H)

    fwd, bwd = dir_out[0], dir_out[1]
    problem_outputs = fwd[-1] + bwd[0]                                 # (B, H)
    outputs = fwd + bwd                                                # (S, B, H)

    # group attention masks (host-side numpy preprocessing, as in the reference code;
    # forces a host sync — keep this function un-jitted)
    mk_codes = jnp.asarray(build_mask_codes(np.asarray(input_var), word2index, pad=0))

    enc_flat = encoder_call(outputs.reshape(S * B, H), mk_codes, params)   # (S*B, H)
    return enc_flat.reshape(S, B, H), problem_outputs


if __name__ == "__main__":
    key = jax.random.PRNGKey(0)
    S, B = 10, 4
    vocab, E, H, dff = 20, 16, 32, 64        # hidden 32, 8 heads -> d_k = 4
    k_tok, k_par = jax.random.split(key)

    params = init_params(k_par, vocab, E, H, dff)

    lengths = jnp.array([10, 8, 7, 5], dtype=jnp.int32)   # sorted (enforce_sorted)
    tokens = jax.random.randint(k_tok, (S, B), 1, vocab, dtype=jnp.int32)
    # make group separators ('．'=5, '，'=6) show up inside the valid region
    tokens = tokens.at[2, 1].set(5).at[4, 2].set(6).at[3, 0].set(5)
    pad_mask = jnp.arange(S)[:, None] < lengths[None, :]
    input_var = jnp.where(pad_mask, tokens, 0).astype(jnp.int32)       # (S, B)

    word2index = {'．': 5, '，': 6}                                    # dummy input_lang
    group_out, problem_out = encoder_group_att_forward(params, input_var, lengths, word2index)
    group_out = jax.block_until_ready(group_out)
    problem_out = jax.block_until_ready(problem_out)

    assert group_out.shape == (S, B, H)
    assert problem_out.shape == (B, H)
    assert bool(jnp.all(jnp.isfinite(group_out))) and bool(jnp.all(jnp.isfinite(problem_out)))
    print("KERNEL_OK")
</pallas_src>

<mosaic_0001>
module attributes {stable_mosaic.version = 11 : i64} {
  func.func @_gru_bidir_kernel(%arg0: i32, %arg1: memref<2x10x3x4x32xf32, #tpu.memory_space<vmem>>, %arg2: memref<4x1xi32, #tpu.memory_space<vmem>>, %arg3: memref<2x3x32x32xf32, #tpu.memory_space<vmem>>, %arg4: memref<2x3x1x32xf32, #tpu.memory_space<vmem>>, %arg5: memref<2x10x4x32xf32, #tpu.memory_space<vmem>>) attributes {dimension_semantics = [#tpu.dimension_semantics<arbitrary>], iteration_bounds = array<i64: 1>, scalar_prefetch = 0 : i64, scratch_operands = 0 : i64, tpu.core_type = #tpu.core_type<tc>, window_params = [{pipeline_mode = #tpu.pipeline_mode<synchronous>, transform_indices = @transform_0, window_bounds = array<i64: 2, 10, 3, 4, 32>}, {pipeline_mode = #tpu.pipeline_mode<synchronous>, transform_indices = @transform_1, window_bounds = array<i64: 4, 1>}, {pipeline_mode = #tpu.pipeline_mode<synchronous>, transform_indices = @transform_2, window_bounds = array<i64: 2, 3, 32, 32>}, {pipeline_mode = #tpu.pipeline_mode<synchronous>, transform_indices = @transform_3, window_bounds = array<i64: 2, 3, 1, 32>}, {pipeline_mode = #tpu.pipeline_mode<synchronous>, transform_indices = @transform_4, window_bounds = array<i64: 2, 10, 4, 32>}]} {
    %c0 = arith.constant 0 : index
    %c0_0 = arith.constant 0 : index
    %0 = vector.load %arg2[%c0, %c0_0] : memref<4x1xi32, #tpu.memory_space<vmem>>, vector<4x1xi32>
    %c0_1 = arith.constant 0 : index
    %c0_2 = arith.constant 0 : index
    %c0_3 = arith.constant 0 : index
    %c0_4 = arith.constant 0 : index
    %1 = vector.load %arg3[%c0_1, %c0_2, %c0_3, %c0_4] : memref<2x3x32x32xf32, #tpu.memory_space<vmem>>, vector<1x1x32x32xf32>
    %2 = vector.shape_cast %1 : vector<1x1x32x32xf32> to vector<32x32xf32>
    %c0_5 = arith.constant 0 : index
    %c1 = arith.constant 1 : index
    %c0_6 = arith.constant 0 : index
    %c0_7 = arith.constant 0 : index
    %3 = vector.load %arg3[%c0_5, %c1, %c0_6, %c0_7] : memref<2x3x32x32xf32, #tpu.memory_space<vmem>>, vector<1x1x32x32xf32>
    %4 = vector.shape_cast %3 : vector<1x1x32x32xf32> to vector<32x32xf32>
    %c0_8 = arith.constant 0 : index
    %c2 = arith.constant 2 : index
    %c0_9 = arith.constant 0 : index
    %c0_10 = arith.constant 0 : index
    %5 = vector.load %arg3[%c0_8, %c2, %c0_9, %c0_10] : memref<2x3x32x32xf32, #tpu.memory_space<vmem>>, vector<1x1x32x32xf32>
    %6 = vector.shape_cast %5 : vector<1x1x32x32xf32> to vector<32x32xf32>
    %c1_11 = arith.constant 1 : index
    %c0_12 = arith.constant 0 : index
    %c0_13 = arith.constant 0 : index
    %c0_14 = arith.constant 0 : index
    %7 = vector.load %arg3[%c1_11, %c0_12, %c0_13, %c0_14] : memref<2x3x32x32xf32, #tpu.memory_space<vmem>>, vector<1x1x32x32xf32>
    %8 = vector.shape_cast %7 : vector<1x1x32x32xf32> to vector<32x32xf32>
    %c1_15 = arith.constant 1 : index
    %c1_16 = arith.constant 1 : index
    %c0_17 = arith.constant 0 : index
    %c0_18 = arith.constant 0 : index
    %9 = vector.load %arg3[%c1_15, %c1_16, %c0_17, %c0_18] : memref<2x3x32x32xf32, #tpu.memory_space<vmem>>, vector<1x1x32x32xf32>
    %10 = vector.shape_cast %9 : vector<1x1x32x32xf32> to vector<32x32xf32>
    %c1_19 = arith.constant 1 : index
    %c2_20 = arith.constant 2 : index
    %c0_21 = arith.constant 0 : index
    %c0_22 = arith.constant 0 : index
    %11 = vector.load %arg3[%c1_19, %c2_20, %c0_21, %c0_22] : memref<2x3x32x32xf32, #tpu.memory_space<vmem>>, vector<1x1x32x32xf32>
    %12 = vector.shape_cast %11 : vector<1x1x32x32xf32> to vector<32x32xf32>
    %c0_23 = arith.constant 0 : index
    %c0_24 = arith.constant 0 : index
    %c0_25 = arith.constant 0 : index
    %c0_26 = arith.constant 0 : index
    %13 = vector.load %arg4[%c0_23, %c0_24, %c0_25, %c0_26] : memref<2x3x1x32xf32, #tpu.memory_space<vmem>>, vector<1x1x1x32xf32>
    %14 = vector.shape_cast %13 : vector<1x1x1x32xf32> to vector<1x32xf32>
    %c0_27 = arith.constant 0 : index
    %c1_28 = arith.constant 1 : index
    %c0_29 = arith.constant 0 : index
    %c0_30 = arith.constant 0 : index
    %15 = vector.load %arg4[%c0_27, %c1_28, %c0_29, %c0_30] : memref<2x3x1x32xf32, #tpu.memory_space<vmem>>, vector<1x1x1x32xf32>
    %16 = vector.shape_cast %15 : vector<1x1x1x32xf32> to vector<1x32xf32>
    %c0_31 = arith.constant 0 : index
    %c2_32 = arith.constant 2 : index
    %c0_33 = arith.constant 0 : index
    %c0_34 = arith.constant 0 : index
    %17 = vector.load %arg4[%c0_31, %c2_32, %c0_33, %c0_34] : memref<2x3x1x32xf32, #tpu.memory_space<vmem>>, vector<1x1x1x32xf32>
    %18 = vector.shape_cast %17 : vector<1x1x1x32xf32> to vector<1x32xf32>
    %c1_35 = arith.constant 1 : index
    %c0_36 = arith.constant 0 : index
    %c0_37 = arith.constant 0 : index
    %c0_38 = arith.constant 0 : index
    %19 = vector.load %arg4[%c1_35, %c0_36, %c0_37, %c0_38] : memref<2x3x1x32xf32, #tpu.memory_space<vmem>>, vector<1x1x1x32xf32>
    %20 = vector.shape_cast %19 : vector<1x1x1x32xf32> to vector<1x32xf32>
    %c1_39 = arith.constant 1 : index
    %c1_40 = arith.constant 1 : index
    %c0_41 = arith.constant 0 : index
    %c0_42 = arith.constant 0 : index
    %21 = vector.load %arg4[%c1_39, %c1_40, %c0_41, %c0_42] : memref<2x3x1x32xf32, #tpu.memory_space<vmem>>, vector<1x1x1x32xf32>
    %22 = vector.shape_cast %21 : vector<1x1x1x32xf32> to vector<1x32xf32>
    %c1_43 = arith.constant 1 : index
    %c2_44 = arith.constant 2 : index
    %c0_45 = arith.constant 0 : index
    %c0_46 = arith.constant 0 : index
    %23 = vector.load %arg4[%c1_43, %c2_44, %c0_45, %c0_46] : memref<2x3x1x32xf32, #tpu.memory_space<vmem>>, vector<1x1x1x32xf32>
    %24 = vector.shape_cast %23 : vector<1x1x1x32xf32> to vector<1x32xf32>
    %cst = arith.constant 0.000000e+00 : f32
    %25 = vector.broadcast %cst : f32 to vector<4x32xf32>
    %cst_47 = arith.constant 0.000000e+00 : f32
    %26 = vector.broadcast %cst_47 : f32 to vector<4x32xf32>
    %c0_i32 = arith.constant 0 : i32
    %27 = vector.broadcast %c0_i32 : i32 to vector<4x1xi32>
    %28 = arith.cmpi sgt, %0, %27 : vector<4x1xi32>
    %29 = arith.extui %28 : vector<4x1xi1> to vector<4x1xi32>
    %30 = arith.sitofp %29 : vector<4x1xi32> to vector<4x1xf32>
    %c0_48 = arith.constant 0 : index
    %c0_49 = arith.constant 0 : index
    %c0_50 = arith.constant 0 : index
    %c0_51 = arith.constant 0 : index
    %c0_52 = arith.constant 0 : index
    %31 = vector.load %arg1[%c0_48, %c0_49, %c0_50, %c0_51, %c0_52] : memref<2x10x3x4x32xf32, #tpu.memory_space<vmem>>, vector<1x1x1x4x32xf32>
    %32 = vector.shape_cast %31 : vector<1x1x1x4x32xf32> to vector<4x32xf32>
    %cst_53 = arith.constant dense<0.000000e+00> : vector<4x32xf32>
    %33 = tpu.matmul %25, %2, %cst_53 {dimension_numbers = #tpu.dot_dimension_numbers<[1], [0], [0], [1], [0, 0, 1, 1], [], []>} : vector<4x32xf32>, vector<32x32xf32>, vector<4x32xf32> -> vector<4x32xf32>
    %34 = arith.addf %32, %33 : vector<4x32xf32>
    %35 = vector.broadcast %14 : vector<1x32xf32> to vector<4x32xf32>
    %36 = arith.addf %34, %35 : vector<4x32xf32>
    %37 = arith.negf %36 : vector<4x32xf32>
    %38 = math.exp %37 : vector<4x32xf32>
    %cst_54 = arith.constant 1.000000e+00 : f32
    %39 = vector.broadcast %cst_54 : f32 to vector<4x32xf32>
    %40 = arith.addf %39, %38 : vector<4x32xf32>
    %41 = arith.divf %39, %40 : vector<4x32xf32>
    %c0_55 = arith.constant 0 : index
    %c0_56 = arith.constant 0 : index
    %c1_57 = arith.constant 1 : index
    %c0_58 = arith.constant 0 : index
    %c0_59 = arith.constant 0 : index
    %42 = vector.load %arg1[%c0_55, %c0_56, %c1_57, %c0_58, %c0_59] : memref<2x10x3x4x32xf32, #tpu.memory_space<vmem>>, vector<1x1x1x4x32xf32>
    %43 = vector.shape_cast %42 : vector<1x1x1x4x32xf32> to vector<4x32xf32>
    %cst_60 = arith.constant dense<0.000000e+00> : vector<4x32xf32>
    %44 = tpu.matmul %25, %4, %cst_60 {dimension_numbers = #tpu.dot_dimension_numbers<[1], [0], [0], [1], [0, 0, 1, 1], [], []>} : vector<4x32xf32>, vector<32x32xf32>, vector<4x32xf32> -> vector<4x32xf32>
    %45 = arith.addf %43, %44 : vector<4x32xf32>
    %46 = vector.broadcast %16 : vector<1x32xf32> to vector<4x32xf32>
    %47 = arith.addf %45, %46 : vector<4x32xf32>
    %48 = arith.negf %47 : vector<4x32xf32>
    %49 = math.exp %48 : vector<4x32xf32>
    %cst_61 = arith.constant 1.000000e+00 : f32
    %50 = vector.broadcast %cst_61 : f32 to vector<4x32xf32>
    %51 = arith.addf %50, %49 : vector<4x32xf32>
    %52 = arith.divf %50, %51 : vector<4x32xf32>
    %c0_62 = arith.constant 0 : index
    %c0_63 = arith.constant 0 : index
    %c2_64 = arith.constant 2 : index
    %c0_65 = arith.constant 0 : index
    %c0_66 = arith.constant 0 : index
    %53 = vector.load %arg1[%c0_62, %c0_63, %c2_64, %c0_65, %c0_66] : memref<2x10x3x4x32xf32, #tpu.memory_space<vmem>>, vector<1x1x1x4x32xf32>
    %54 = vector.shape_cast %53 : vector<1x1x1x4x32xf32> to vector<4x32xf32>
    %cst_67 = arith.constant dense<0.000000e+00> : vector<4x32xf32>
    %55 = tpu.matmul %25, %6, %cst_67 {dimension_numbers = #tpu.dot_dimension_numbers<[1], [0], [0], [1], [0, 0, 1, 1], [], []>} : vector<4x32xf32>, vector<32x32xf32>, vector<4x32xf32> -> vector<4x32xf32>
    %56 = vector.broadcast %18 : vector<1x32xf32> to vector<4x32xf32>
    %57 = arith.addf %55, %56 : vector<4x32xf32>
    %58 = arith.mulf %41, %57 : vector<4x32xf32>
    %59 = arith.addf %54, %58 : vector<4x32xf32>
    %60 = math.tanh %59 : vector<4x32xf32>
    %cst_68 = arith.constant 1.000000e+00 : f32
    %61 = vector.broadcast %cst_68 : f32 to vector<4x32xf32>
    %62 = arith.subf %61, %52 : vector<4x32xf32>
    %63 = arith.mulf %62, %60 : vector<4x32xf32>
    %64 = arith.mulf %52, %25 : vector<4x32xf32>
    %65 = arith.addf %63, %64 : vector<4x32xf32>
    %66 = vector.broadcast %30 : vector<4x1xf32> to vector<4x32xf32>
    %67 = arith.mulf %66, %65 : vector<4x32xf32>
    %cst_69 = arith.constant 1.000000e+00 : f32
    %68 = vector.broadcast %cst_69 : f32 to vector<4x1xf32>
    %69 = arith.subf %68, %30 : vector<4x1xf32>
    %70 = vector.broadcast %69 : vector<4x1xf32> to vector<4x32xf32>
    %71 = arith.mulf %70, %25 : vector<4x32xf32>
    %72 = arith.addf %67, %71 : vector<4x32xf32>
    %73 = vector.broadcast %30 : vector<4x1xf32> to vector<4x32xf32>
    %74 = arith.mulf %73, %72 : vector<4x32xf32>
    %c0_70 = arith.constant 0 : index
    %c0_71 = arith.constant 0 : index
    %c0_72 = arith.constant 0 : index
    %c0_73 = arith.constant 0 : index
    %75 = vector.load %arg5[%c0_70, %c0_71, %c0_72, %c0_73] : memref<2x10x4x32xf32, #tpu.memory_space<vmem>>, vector<1x1x4x32xf32>
    %76 = vector.shape_cast %75 : vector<1x1x4x32xf32> to vector<4x32xf32>
    %77 = vector.shape_cast %74 : vector<4x32xf32> to vector<1x1x4x32xf32>
    tpu.vector_store %arg5[%c0_70, %c0_71, %c0_72, %c0_73], %77 {strides = array<i32>} : memref<2x10x4x32xf32, #tpu.memory_space<vmem>>, vector<1x1x4x32xf32>,
    %c9_i32 = arith.constant 9 : i32
    %78 = vector.broadcast %c9_i32 : i32 to vector<4x1xi32>
    %79 = arith.cmpi sgt, %0, %78 : vector<4x1xi32>
    %80 = arith.extui %79 : vector<4x1xi1> to vector<4x1xi32>
    %81 = arith.sitofp %80 : vector<4x1xi32> to vector<4x1xf32>
    %c1_74 = arith.constant 1 : index
    %c9 = arith.constant 9 : index
    %c0_75 = arith.constant 0 : index
    %c0_76 = arith.constant 0 : index
    %c0_77 = arith.constant 0 : index
    %82 = vector.load %arg1[%c1_74, %c9, %c0_75, %c0_76, %c0_77] : memref<2x10x3x4x32xf32, #tpu.memory_space<vmem>>, vector<1x1x1x4x32xf32>
    %83 = vector.shape_cast %82 : vector<1x1x1x4x32xf32> to vector<4x32xf32>
    %cst_78 = arith.constant dense<0.000000e+00> : vector<4x32xf32>
    %84 = tpu.matmul %26, %8, %cst_78 {dimension_numbers = #tpu.dot_dimension_numbers<[1], [0], [0], [1], [0, 0, 1, 1], [], []>} : vector<4x32xf32>, vector<32x32xf32>, vector<4x32xf32> -> vector<4x32xf32>
    %85 = arith.addf %83, %84 : vector<4x32xf32>
    %86 = vector.broadcast %20 : vector<1x32xf32> to vector<4x32xf32>
    %87 = arith.addf %85, %86 : vector<4x32xf32>
    %88 = arith.negf %87 : vector<4x32xf32>
    %89 = math.exp %88 : vector<4x32xf32>
    %cst_79 = arith.constant 1.000000e+00 : f32
    %90 = vector.broadcast %cst_79 : f32 to vector<4x32xf32>
    %91 = arith.addf %90, %89 : vector<4x32xf32>
    %92 = arith.divf %90, %91 : vector<4x32xf32>
    %c1_80 = arith.constant 1 : index
    %c9_81 = arith.constant 9 : index
    %c1_82 = arith.constant 1 : index
    %c0_83 = arith.constant 0 : index
    %c0_84 = arith.constant 0 : index
    %93 = vector.load %arg1[%c1_80, %c9_81, %c1_82, %c0_83, %c0_84] : memref<2x10x3x4x32xf32, #tpu.memory_space<vmem>>, vector<1x1x1x4x32xf32>
    %94 = vector.shape_cast %93 : vector<1x1x1x4x32xf32> to vector<4x32xf32>
    %cst_85 = arith.constant dense<0.000000e+00> : vector<4x32xf32>
    %95 = tpu.matmul %26, %10, %cst_85 {dimension_numbers = #tpu.dot_dimension_numbers<[1], [0], [0], [1], [0, 0, 1, 1], [], []>} : vector<4x32xf32>, vector<32x32xf32>, vector<4x32xf32> -> vector<4x32xf32>
    %96 = arith.addf %94, %95 : vector<4x32xf32>
    %97 = vector.broadcast %22 : vector<1x32xf32> to vector<4x32xf32>
    %98 = arith.addf %96, %97 : vector<4x32xf32>
    %99 = arith.negf %98 : vector<4x32xf32>
    %100 = math.exp %99 : vector<4x32xf32>
    %cst_86 = arith.constant 1.000000e+00 : f32
    %101 = vector.broadcast %cst_86 : f32 to vector<4x32xf32>
    %102 = arith.addf %101, %100 : vector<4x32xf32>
    %103 = arith.divf %101, %102 : vector<4x32xf32>
    %c1_87 = arith.constant 1 : index
    %c9_88 = arith.constant 9 : index
    %c2_89 = arith.constant 2 : index
    %c0_90 = arith.constant 0 : index
    %c0_91 = arith.constant 0 : index
    %104 = vector.load %arg1[%c1_87, %c9_88, %c2_89, %c0_90, %c0_91] : memref<2x10x3x4x32xf32, #tpu.memory_space<vmem>>, vector<1x1x1x4x32xf32>
    %105 = vector.shape_cast %104 : vector<1x1x1x4x32xf32> to vector<4x32xf32>
    %cst_92 = arith.constant dense<0.000000e+00> : vector<4x32xf32>
    %106 = tpu.matmul %26, %12, %cst_92 {dimension_numbers = #tpu.dot_dimension_numbers<[1], [0], [0], [1], [0, 0, 1, 1], [], []>} : vector<4x32xf32>, vector<32x32xf32>, vector<4x32xf32> -> vector<4x32xf32>
    %107 = vector.broadcast %24 : vector<1x32xf32> to vector<4x32xf32>
    %108 = arith.addf %106, %107 : vector<4x32xf32>
    %109 = arith.mulf %92, %108 : vector<4x32xf32>
    %110 = arith.addf %105, %109 : vector<4x32xf32>
    %111 = math.tanh %110 : vector<4x32xf32>
    %cst_93 = arith.constant 1.000000e+00 : f32
    %112 = vector.broadcast %cst_93 : f32 to vector<4x32xf32>
    %113 = arith.subf %112, %103 : vector<4x32xf32>
    %114 = arith.mulf %113, %111 : vector<4x32xf32>
    %115 = arith.mulf %103, %26 : vector<4x32xf32>
    %116 = arith.addf %114, %115 : vector<4x32xf32>
    %117 = vector.broadcast %81 : vector<4x1xf32> to vector<4x32xf32>
    %118 = arith.mulf %117, %116 : vector<4x32xf32>
    %cst_94 = arith.constant 1.000000e+00 : f32
    %119 = vector.broadcast %cst_94 : f32 to vector<4x1xf32>
    %120 = arith.subf %119, %81 : vector<4x1xf32>
    %121 = vector.broadcast %120 : vector<4x1xf32> to vector<4x32xf32>
    %122 = arith.mulf %121, %26 : vector<4x32xf32>
    %123 = arith.addf %118, %122 : vector<4x32xf32>
    %124 = vector.broadcast %81 : vector<4x1xf32> to vector<4x32xf32>
    %125 = arith.mulf %124, %123 : vector<4x32xf32>
    %c1_95 = arith.constant 1 : index
    %c9_96 = arith.constant 9 : index
    %c0_97 = arith.constant 0 : index
    %c0_98 = arith.constant 0 : index
    %126 = vector.load %arg5[%c1_95, %c9_96, %c0_97, %c0_98] : memref<2x10x4x32xf32, #tpu.memory_space<vmem>>, vector<1x1x4x32xf32>
    %127 = vector.shape_cast %126 : vector<1x1x4x32xf32> to vector<4x32xf32>
    %128 = vector.shape_cast %125 : vector<4x32xf32> to vector<1x1x4x32xf32>
    tpu.vector_store %arg5[%c1_95, %c9_96, %c0_97, %c0_98], %128 {strides = array<i32>} : memref<2x10x4x32xf32, #tpu.memory_space<vmem>>, vector<1x1x4x32xf32>,
    %c1_i32 = arith.constant 1 : i32
    %129 = vector.broadcast %c1_i32 : i32 to vector<4x1xi32>
    %130 = arith.cmpi sgt, %0, %129 : vector<4x1xi32>
    %131 = arith.extui %130 : vector<4x1xi1> to vector<4x1xi32>
    %132 = arith.sitofp %131 : vector<4x1xi32> to vector<4x1xf32>
    %c0_99 = arith.constant 0 : index
    %c1_100 = arith.constant 1 : index
    %c0_101 = arith.constant 0 : index
    %c0_102 = arith.constant 0 : index
    %c0_103 = arith.constant 0 : index
    %133 = vector.load %arg1[%c0_99, %c1_100, %c0_101, %c0_102, %c0_103] : memref<2x10x3x4x32xf32, #tpu.memory_space<vmem>>, vector<1x1x1x4x32xf32>
    %134 = vector.shape_cast %133 : vector<1x1x1x4x32xf32> to vector<4x32xf32>
    %cst_104 = arith.constant dense<0.000000e+00> : vector<4x32xf32>
    %135 = tpu.matmul %72, %2, %cst_104 {dimension_numbers = #tpu.dot_dimension_numbers<[1], [0], [0], [1], [0, 0, 1, 1], [], []>} : vector<4x32xf32>, vector<32x32xf32>, vector<4x32xf32> -> vector<4x32xf32>
    %136 = arith.addf %134, %135 : vector<4x32xf32>
    %137 = vector.broadcast %14 : vector<1x32xf32> to vector<4x32xf32>
    %138 = arith.addf %136, %137 : vector<4x32xf32>
    %139 = arith.negf %138 : vector<4x32xf32>
    %140 = math.exp %139 : vector<4x32xf32>
    %cst_105 = arith.constant 1.000000e+00 : f32
    %141 = vector.broadcast %cst_105 : f32 to vector<4x32xf32>
    %142 = arith.addf %141, %140 : vector<4x32xf32>
    %143 = arith.divf %141, %142 : vector<4x32xf32>
    %c0_106 = arith.constant 0 : index
    %c1_107 = arith.constant 1 : index
    %c1_108 = arith.constant 1 : index
    %c0_109 = arith.constant 0 : index
    %c0_110 = arith.constant 0 : index
    %144 = vector.load %arg1[%c0_106, %c1_107, %c1_108, %c0_109, %c0_110] : memref<2x10x3x4x32xf32, #tpu.memory_space<vmem>>, vector<1x1x1x4x32xf32>
    %145 = vector.shape_cast %144 : vector<1x1x1x4x32xf32> to vector<4x32xf32>
    %cst_111 = arith.constant dense<0.000000e+00> : vector<4x32xf32>
    %146 = tpu.matmul %72, %4, %cst_111 {dimension_numbers = #tpu.dot_dimension_numbers<[1], [0], [0], [1], [0, 0, 1, 1], [], []>} : vector<4x32xf32>, vector<32x32xf32>, vector<4x32xf32> -> vector<4x32xf32>
    %147 = arith.addf %145, %146 : vector<4x32xf32>
    %148 = vector.broadcast %16 : vector<1x32xf32> to vector<4x32xf32>
    %149 = arith.addf %147, %148 : vector<4x32xf32>
    %150 = arith.negf %149 : vector<4x32xf32>
    %151 = math.exp %150 : vector<4x32xf32>
    %cst_112 = arith.constant 1.000000e+00 : f32
    %152 = vector.broadcast %cst_112 : f32 to vector<4x32xf32>
    %153 = arith.addf %152, %151 : vector<4x32xf32>
    %154 = arith.divf %152, %153 : vector<4x32xf32>
    %c0_113 = arith.constant 0 : index
    %c1_114 = arith.constant 1 : index
    %c2_115 = arith.constant 2 : index
    %c0_116 = arith.constant 0 : index
    %c0_117 = arith.constant 0 : index
    %155 = vector.load %arg1[%c0_113, %c1_114, %c2_115, %c0_116, %c0_117] : memref<2x10x3x4x32xf32, #tpu.memory_space<vmem>>, vector<1x1x1x4x32xf32>
    %156 = vector.shape_cast %155 : vector<1x1x1x4x32xf32> to vector<4x32xf32>
    %cst_118 = arith.constant dense<0.000000e+00> : vector<4x32xf32>
    %157 = tpu.matmul %72, %6, %cst_118 {dimension_numbers = #tpu.dot_dimension_numbers<[1], [0], [0], [1], [0, 0, 1, 1], [], []>} : vector<4x32xf32>, vector<32x32xf32>, vector<4x32xf32> -> vector<4x32xf32>
    %158 = vector.broadcast %18 : vector<1x32xf32> to vector<4x32xf32>
    %159 = arith.addf %157, %158 : vector<4x32xf32>
    %160 = arith.mulf %143, %159 : vector<4x32xf32>
    %161 = arith.addf %156, %160 : vector<4x32xf32>
    %162 = math.tanh %161 : vector<4x32xf32>
    %cst_119 = arith.constant 1.000000e+00 : f32
    %163 = vector.broadcast %cst_119 : f32 to vector<4x32xf32>
    %164 = arith.subf %163, %154 : vector<4x32xf32>
    %165 = arith.mulf %164, %162 : vector<4x32xf32>
    %166 = arith.mulf %154, %72 : vector<4x32xf32>
    %167 = arith.addf %165, %166 : vector<4x32xf32>
    %168 = vector.broadcast %132 : vector<4x1xf32> to vector<4x32xf32>
    %169 = arith.mulf %168, %167 : vector<4x32xf32>
    %cst_120 = arith.constant 1.000000e+00 : f32
    %170 = vector.broadcast %cst_120 : f32 to vector<4x1xf32>
    %171 = arith.subf %170, %132 : vector<4x1xf32>
    %172 = vector.broadcast %171 : vector<4x1xf32> to vector<4x32xf32>
    %173 = arith.mulf %172, %72 : vector<4x32xf32>
    %174 = arith.addf %169, %173 : vector<4x32xf32>
    %175 = vector.broadcast %132 : vector<4x1xf32> to vector<4x32xf32>
    %176 = arith.mulf %175, %174 : vector<4x32xf32>
    %c0_121 = arith.constant 0 : index
    %c1_122 = arith.constant 1 : index
    %c0_123 = arith.constant 0 : index
    %c0_124 = arith.constant 0 : index
    %177 = vector.load %arg5[%c0_121, %c1_122, %c0_123, %c0_124] : memref<2x10x4x32xf32, #tpu.memory_space<vmem>>, vector<1x1x4x32xf32>
    %178 = vector.shape_cast %177 : vector<1x1x4x32xf32> to vector<4x32xf32>
    %179 = vector.shape_cast %176 : vector<4x32xf32> to vector<1x1x4x32xf32>
    tpu.vector_store %arg5[%c0_121, %c1_122, %c0_123, %c0_124], %179 {strides = array<i32>} : memref<2x10x4x32xf32, #tpu.memory_space<vmem>>, vector<1x1x4x32xf32>,
    %c8_i32 = arith.constant 8 : i32
    %180 = vector.broadcast %c8_i32 : i32 to vector<4x1xi32>
    %181 = arith.cmpi sgt, %0, %180 : vector<4x1xi32>
    %182 = arith.extui %181 : vector<4x1xi1> to vector<4x1xi32>
    %183 = arith.sitofp %182 : vector<4x1xi32> to vector<4x1xf32>
    %c1_125 = arith.constant 1 : index
    %c8 = arith.constant 8 : index
    %c0_126 = arith.constant 0 : index
    %c0_127 = arith.constant 0 : index
    %c0_128 = arith.constant 0 : index
    %184 = vector.load %arg1[%c1_125, %c8, %c0_126, %c0_127, %c0_128] : memref<2x10x3x4x32xf32, #tpu.memory_space<vmem>>, vector<1x1x1x4x32xf32>
    %185 = vector.shape_cast %184 : vector<1x1x1x4x32xf32> to vector<4x32xf32>
    %cst_129 = arith.constant dense<0.000000e+00> : vector<4x32xf32>
    %186 = tpu.matmul %123, %8, %cst_129 {dimension_numbers = #tpu.dot_dimension_numbers<[1], [0], [0], [1], [0, 0, 1, 1], [], []>} : vector<4x32xf32>, vector<32x32xf32>, vector<4x32xf32> -> vector<4x32xf32>
    %187 = arith.addf %185, %186 : vector<4x32xf32>
    %188 = vector.broadcast %20 : vector<1x32xf32> to vector<4x32xf32>
    %189 = arith.addf %187, %188 : vector<4x32xf32>
    %190 = arith.negf %189 : vector<4x32xf32>
    %191 = math.exp %190 : vector<4x32xf32>
    %cst_130 = arith.constant 1.000000e+00 : f32
    %192 = vector.broadcast %cst_130 : f32 to vector<4x32xf32>
    %193 = arith.addf %192, %191 : vector<4x32xf32>
    %194 = arith.divf %192, %193 : vector<4x32xf32>
    %c1_131 = arith.constant 1 : index
    %c8_132 = arith.constant 8 : index
    %c1_133 = arith.constant 1 : index
    %c0_134 = arith.constant 0 : index
    %c0_135 = arith.constant 0 : index
    %195 = vector.load %arg1[%c1_131, %c8_132, %c1_133, %c0_134, %c0_135] : memref<2x10x3x4x32xf32, #tpu.memory_space<vmem>>, vector<1x1x1x4x32xf32>
    %196 = vector.shape_cast %195 : vector<1x1x1x4x32xf32> to vector<4x32xf32>
    %cst_136 = arith.constant dense<0.000000e+00> : vector<4x32xf32>
    %197 = tpu.matmul %123, %10, %cst_136 {dimension_numbers = #tpu.dot_dimension_numbers<[1], [0], [0], [1], [0, 0, 1, 1], [], []>} : vector<4x32xf32>, vector<32x32xf32>, vector<4x32xf32> -> vector<4x32xf32>
    %198 = arith.addf %196, %197 : vector<4x32xf32>
    %199 = vector.broadcast %22 : vector<1x32xf32> to vector<4x32xf32>
    %200 = arith.addf %198, %199 : vector<4x32xf32>
    %201 = arith.negf %200 : vector<4x32xf32>
    %202 = math.exp %201 : vector<4x32xf32>
    %cst_137 = arith.constant 1.000000e+00 : f32
    %203 = vector.broadcast %cst_137 : f32 to vector<4x32xf32>
    %204 = arith.addf %203, %202 : vector<4x32xf32>
    %205 = arith.divf %203, %204 : vector<4x32xf32>
    %c1_138 = arith.constant 1 : index
    %c8_139 = arith.constant 8 : index
    %c2_140 = arith.constant 2 : index
    %c0_141 = arith.constant 0 : index
    %c0_142 = arith.constant 0 : index
    %206 = vector.load %arg1[%c1_138, %c8_139, %c2_140, %c0_141, %c0_142] : memref<2x10x3x4x32xf32, #tpu.memory_space<vmem>>, vector<1x1x1x4x32xf32>
    %207 = vector.shape_cast %206 : vector<1x1x1x4x32xf32> to vector<4x32xf32>
    %cst_143 = arith.constant dense<0.000000e+00> : vector<4x32xf32>
    %208 = tpu.matmul %123, %12, %cst_143 {dimension_numbers = #tpu.dot_dimension_numbers<[1], [0], [0], [1], [0, 0, 1, 1], [], []>} : vector<4x32xf32>, vector<32x32xf32>, vector<4x32xf32> -> vector<4x32xf32>
    %209 = vector.broadcast %24 : vector<1x32xf32> to vector<4x32xf32>
    %210 = arith.addf %208, %209 : vector<4x32xf32>
    %211 = arith.mulf %194, %210 : vector<4x32xf32>
    %212 = arith.addf %207, %211 : vector<4x32xf32>
    %213 = math.tanh %212 : vector<4x32xf32>
    %cst_144 = arith.constant 1.000000e+00 : f32
    %214 = vector.broadcast %cst_144 : f32 to vector<4x32xf32>
    %215 = arith.subf %214, %205 : vector<4x32xf32>
    %216 = arith.mulf %215, %213 : vector<4x32xf32>
    %217 = arith.mulf %205, %123 : vector<4x32xf32>
    %218 = arith.addf %216, %217 : vector<4x32xf32>
    %219 = vector.broadcast %183 : vector<4x1xf32> to vector<4x32xf32>
    %220 = arith.mulf %219, %218 : vector<4x32xf32>
    %cst_145 = arith.constant 1.000000e+00 : f32
    %221 = vector.broadcast %cst_145 : f32 to vector<4x1xf32>
    %222 = arith.subf %221, %183 : vector<4x1xf32>
    %223 = vector.broadcast %222 : vector<4x1xf32> to vector<4x32xf32>
    %224 = arith.mulf %223, %123 : vector<4x32xf32>
    %225 = arith.addf %220, %224 : vector<4x32xf32>
    %226 = vector.broadcast %183 : vector<4x1xf32> to vector<4x32xf32>
    %227 = arith.mulf %226, %225 : vector<4x32xf32>
    %c1_146 = arith.constant 1 : index
    %c8_147 = arith.constant 8 : index
    %c0_148 = arith.constant 0 : index
    %c0_149 = arith.constant 0 : index
    %228 = vector.load %arg5[%c1_146, %c8_147, %c0_148, %c0_149] : memref<2x10x4x32xf32, #tpu.memory_space<vmem>>, vector<1x1x4x32xf32>
    %229 = vector.shape_cast %228 : vector<1x1x4x32xf32> to vector<4x32xf32>
    %230 = vector.shape_cast %227 : vector<4x32xf32> to vector<1x1x4x32xf32>
    tpu.vector_store %arg5[%c1_146, %c8_147, %c0_148, %c0_149], %230 {strides = array<i32>} : memref<2x10x4x32xf32, #tpu.memory_space<vmem>>, vector<1x1x4x32xf32>,
    %c2_i32 = arith.constant 2 : i32
    %231 = vector.broadcast %c2_i32 : i32 to vector<4x1xi32>
    %232 = arith.cmpi sgt, %0, %231 : vector<4x1xi32>
    %233 = arith.extui %232 : vector<4x1xi1> to vector<4x1xi32>
    %234 = arith.sitofp %233 : vector<4x1xi32> to vector<4x1xf32>
    %c0_150 = arith.constant 0 : index
    %c2_151 = arith.constant 2 : index
    %c0_152 = arith.constant 0 : index
    %c0_153 = arith.constant 0 : index
    %c0_154 = arith.constant 0 : index
    %235 = vector.load %arg1[%c0_150, %c2_151, %c0_152, %c0_153, %c0_154] : memref<2x10x3x4x32xf32, #tpu.memory_space<vmem>>, vector<1x1x1x4x32xf32>
    %236 = vector.shape_cast %235 : vector<1x1x1x4x32xf32> to vector<4x32xf32>
    %cst_155 = arith.constant dense<0.000000e+00> : vector<4x32xf32>
    %237 = tpu.matmul %174, %2, %cst_155 {dimension_numbers = #tpu.dot_dimension_numbers<[1], [0], [0], [1], [0, 0, 1, 1], [], []>} : vector<4x32xf32>, vector<32x32xf32>, vector<4x32xf32> -> vector<4x32xf32>
    %238 = arith.addf %236, %237 : vector<4x32xf32>
    %239 = vector.broadcast %14 : vector<1x32xf32> to vector<4x32xf32>
    %240 = arith.addf %238, %239 : vector<4x32xf32>
    %241 = arith.negf %240 : vector<4x32xf32>
    %242 = math.exp %241 : vector<4x32xf32>
    %cst_156 = arith.constant 1.000000e+00 : f32
    %243 = vector.broadcast %cst_156 : f32 to vector<4x32xf32>
    %244 = arith.addf %243, %242 : vector<4x32xf32>
    %245 = arith.divf %243, %244 : vector<4x32xf32>
    %c0_157 = arith.constant 0 : index
    %c2_158 = arith.constant 2 : index
    %c1_159 = arith.constant 1 : index
    %c0_160 = arith.constant 0 : index
    %c0_161 = arith.constant 0 : index
    %246 = vector.load %arg1[%c0_157, %c2_158, %c1_159, %c0_160, %c0_161] : memref<2x10x3x4x32xf32, #tpu.memory_space<vmem>>, vector<1x1x1x4x32xf32>
    %247 = vector.shape_cast %246 : vector<1x1x1x4x32xf32> to vector<4x32xf32>
    %cst_162 = arith.constant dense<0.000000e+00> : vector<4x32xf32>
    %248 = tpu.matmul %174, %4, %cst_162 {dimension_numbers = #tpu.dot_dimension_numbers<[1], [0], [0], [1], [0, 0, 1, 1], [], []>} : vector<4x32xf32>, vector<32x32xf32>, vector<4x32xf32> -> vector<4x32xf32>
    %249 = arith.addf %247, %248 : vector<4x32xf32>
    %250 = vector.broadcast %16 : vector<1x32xf32> to vector<4x32xf32>
    %251 = arith.addf %249, %250 : vector<4x32xf32>
    %252 = arith.negf %251 : vector<4x32xf32>
    %253 = math.exp %252 : vector<4x32xf32>
    %cst_163 = arith.constant 1.000000e+00 : f32
    %254 = vector.broadcast %cst_163 : f32 to vector<4x32xf32>
    %255 = arith.addf %254, %253 : vector<4x32xf32>
    %256 = arith.divf %254, %255 : vector<4x32xf32>
    %c0_164 = arith.constant 0 : index
    %c2_165 = arith.constant 2 : index
    %c2_166 = arith.constant 2 : index
    %c0_167 = arith.constant 0 : index
    %c0_168 = arith.constant 0 : index
    %257 = vector.load %arg1[%c0_164, %c2_165, %c2_166, %c0_167, %c0_168] : memref<2x10x3x4x32xf32, #tpu.memory_space<vmem>>, vector<1x1x1x4x32xf32>
    %258 = vector.shape_cast %257 : vector<1x1x1x4x32xf32> to vector<4x32xf32>
    %cst_169 = arith.constant dense<0.000000e+00> : vector<4x32xf32>
    %259 = tpu.matmul %174, %6, %cst_169 {dimension_numbers = #tpu.dot_dimension_numbers<[1], [0], [0], [1], [0, 0, 1, 1], [], []>} : vector<4x32xf32>, vector<32x32xf32>, vector<4x32xf32> -> vector<4x32xf32>
    %260 = vector.broadcast %18 : vector<1x32xf32> to vector<4x32xf32>
    %261 = arith.addf %259, %260 : vector<4x32xf32>
    %262 = arith.mulf %245, %261 : vector<4x32xf32>
    %263 = arith.addf %258, %262 : vector<4x32xf32>
    %264 = math.tanh %263 : vector<4x32xf32>
    %cst_170 = arith.constant 1.000000e+00 : f32
    %265 = vector.broadcast %cst_170 : f32 to vector<4x32xf32>
    %266 = arith.subf %265, %256 : vector<4x32xf32>
    %267 = arith.mulf %266, %264 : vector<4x32xf32>
    %268 = arith.mulf %256, %174 : vector<4x32xf32>
    %269 = arith.addf %267, %268 : vector<4x32xf32>
    %270 = vector.broadcast %234 : vector<4x1xf32> to vector<4x32xf32>
    %271 = arith.mulf %270, %269 : vector<4x32xf32>
    %cst_171 = arith.constant 1.000000e+00 : f32
    %272 = vector.broadcast %cst_171 : f32 to vector<4x1xf32>
    %273 = arith.subf %272, %234 : vector<4x1xf32>
    %274 = vector.broadcast %273 : vector<4x1xf32> to vector<4x32xf32>
    %275 = arith.mulf %274, %174 : vector<4x32xf32>
    %276 = arith.addf %271, %275 : vector<4x32xf32>
    %277 = vector.broadcast %234 : vector<4x1xf32> to vector<4x32xf32>
    %278 = arith.mulf %277, %276 : vector<4x32xf32>
    %c0_172 = arith.constant 0 : index
    %c2_173 = arith.constant 2 : index
    %c0_174 = arith.constant 0 : index
    %c0_175 = arith.constant 0 : index
    %279 = vector.load %arg5[%c0_172, %c2_173, %c0_174, %c0_175] : memref<2x10x4x32xf32, #tpu.memory_space<vmem>>, vector<1x1x4x32xf32>
    %280 = vector.shape_cast %279 : vector<1x1x4x32xf32> to vector<4x32xf32>
    %281 = vector.shape_cast %278 : vector<4x32xf32> to vector<1x1x4x32xf32>
    tpu.vector_store %arg5[%c0_172, %c2_173, %c0_174, %c0_175], %281 {strides = array<i32>} : memref<2x10x4x32xf32, #tpu.memory_space<vmem>>, vector<1x1x4x32xf32>,
    %c7_i32 = arith.constant 7 : i32
    %282 = vector.broadcast %c7_i32 : i32 to vector<4x1xi32>
    %283 = arith.cmpi sgt, %0, %282 : vector<4x1xi32>
    %284 = arith.extui %283 : vector<4x1xi1> to vector<4x1xi32>
    %285 = arith.sitofp %284 : vector<4x1xi32> to vector<4x1xf32>
    %c1_176 = arith.constant 1 : index
    %c7 = arith.constant 7 : index
    %c0_177 = arith.constant 0 : index
    %c0_178 = arith.constant 0 : index
    %c0_179 = arith.constant 0 : index
    %286 = vector.load %arg1[%c1_176, %c7, %c0_177, %c0_178, %c0_179] : memref<2x10x3x4x32xf32, #tpu.memory_space<vmem>>, vector<1x1x1x4x32xf32>
    %287 = vector.shape_cast %286 : vector<1x1x1x4x32xf32> to vector<4x32xf32>
    %cst_180 = arith.constant dense<0.000000e+00> : vector<4x32xf32>
    %288 = tpu.matmul %225, %8, %cst_180 {dimension_numbers = #tpu.dot_dimension_numbers<[1], [0], [0], [1], [0, 0, 1, 1], [], []>} : vector<4x32xf32>, vector<32x32xf32>, vector<4x32xf32> -> vector<4x32xf32>
    %289 = arith.addf %287, %288 : vector<4x32xf32>
    %290 = vector.broadcast %20 : vector<1x32xf32> to vector<4x32xf32>
    %291 = arith.addf %289, %290 : vector<4x32xf32>
    %292 = arith.negf %291 : vector<4x32xf32>
    %293 = math.exp %292 : vector<4x32xf32>
    %cst_181 = arith.constant 1.000000e+00 : f32
    %294 = vector.broadcast %cst_181 : f32 to vector<4x32xf32>
    %295 = arith.addf %294, %293 : vector<4x32xf32>
    %296 = arith.divf %294, %295 : vector<4x32xf32>
    %c1_182 = arith.constant 1 : index
    %c7_183 = arith.constant 7 : index
    %c1_184 = arith.constant 1 : index
    %c0_185 = arith.constant 0 : index
    %c0_186 = arith.constant 0 : index
    %297 = vector.load %arg1[%c1_182, %c7_183, %c1_184, %c0_185, %c0_186] : memref<2x10x3x4x32xf32, #tpu.memory_space<vmem>>, vector<1x1x1x4x32xf32>
    %298 = vector.shape_cast %297 : vector<1x1x1x4x32xf32> to vector<4x32xf32>
    %cst_187 = arith.constant dense<0.000000e+00> : vector<4x32xf32>
    %299 = tpu.matmul %225, %10, %cst_187 {dimension_numbers = #tpu.dot_dimension_numbers<[1], [0], [0], [1], [0, 0, 1, 1], [], []>} : vector<4x32xf32>, vector<32x32xf32>, vector<4x32xf32> -> vector<4x32xf32>
    %300 = arith.addf %298, %299 : vector<4x32xf32>
    %301 = vector.broadcast %22 : vector<1x32xf32> to vector<4x32xf32>
    %302 = arith.addf %300, %301 : vector<4x32xf32>
    %303 = arith.negf %302 : vector<4x32xf32>
    %304 = math.exp %303 : vector<4x32xf32>
    %cst_188 = arith.constant 1.000000e+00 : f32
    %305 = vector.broadcast %cst_188 : f32 to vector<4x32xf32>
    %306 = arith.addf %305, %304 : vector<4x32xf32>
    %307 = arith.divf %305, %306 : vector<4x32xf32>
    %c1_189 = arith.constant 1 : index
    %c7_190 = arith.constant 7 : index
    %c2_191 = arith.constant 2 : index
    %c0_192 = arith.constant 0 : index
    %c0_193 = arith.constant 0 : index
    %308 = vector.load %arg1[%c1_189, %c7_190, %c2_191, %c0_192, %c0_193] : memref<2x10x3x4x32xf32, #tpu.memory_space<vmem>>, vector<1x1x1x4x32xf32>
    %309 = vector.shape_cast %308 : vector<1x1x1x4x32xf32> to vector<4x32xf32>
    %cst_194 = arith.constant dense<0.000000e+00> : vector<4x32xf32>
    %310 = tpu.matmul %225, %12, %cst_194 {dimension_numbers = #tpu.dot_dimension_numbers<[1], [0], [0], [1], [0, 0, 1, 1], [], []>} : vector<4x32xf32>, vector<32x32xf32>, vector<4x32xf32> -> vector<4x32xf32>
    %311 = vector.broadcast %24 : vector<1x32xf32> to vector<4x32xf32>
    %312 = arith.addf %310, %311 : vector<4x32xf32>
    %313 = arith.mulf %296, %312 : vector<4x32xf32>
    %314 = arith.addf %309, %313 : vector<4x32xf32>
    %315 = math.tanh %314 : vector<4x32xf32>
    %cst_195 = arith.constant 1.000000e+00 : f32
    %316 = vector.broadcast %cst_195 : f32 to vector<4x32xf32>
    %317 = arith.subf %316, %307 : vector<4x32xf32>
    %318 = arith.mulf %317, %315 : vector<4x32xf32>
    %319 = arith.mulf %307, %225 : vector<4x32xf32>
    %320 = arith.addf %318, %319 : vector<4x32xf32>
    %321 = vector.broadcast %285 : vector<4x1xf32> to vector<4x32xf32>
    %322 = arith.mulf %321, %320 : vector<4x32xf32>
    %cst_196 = arith.constant 1.000000e+00 : f32
    %323 = vector.broadcast %cst_196 : f32 to vector<4x1xf32>
    %324 = arith.subf %323, %285 : vector<4x1xf32>
    %325 = vector.broadcast %324 : vector<4x1xf32> to vector<4x32xf32>
    %326 = arith.mulf %325, %225 : vector<4x32xf32>
    %327 = arith.addf %322, %326 : vector<4x32xf32>
    %328 = vector.broadcast %285 : vector<4x1xf32> to vector<4x32xf32>
    %329 = arith.mulf %328, %327 : vector<4x32xf32>
    %c1_197 = arith.constant 1 : index
    %c7_198 = arith.constant 7 : index
    %c0_199 = arith.constant 0 : index
    %c0_200 = arith.constant 0 : index
    %330 = vector.load %arg5[%c1_197, %c7_198, %c0_199, %c0_200] : memref<2x10x4x32xf32, #tpu.memory_space<vmem>>, vector<1x1x4x32xf32>
    %331 = vector.shape_cast %330 : vector<1x1x4x32xf32> to vector<4x32xf32>
    %332 = vector.shape_cast %329 : vector<4x32xf32> to vector<1x1x4x32xf32>
    tpu.vector_store %arg5[%c1_197, %c7_198, %c0_199, %c0_200], %332 {strides = array<i32>} : memref<2x10x4x32xf32, #tpu.memory_space<vmem>>, vector<1x1x4x32xf32>,
    %c3_i32 = arith.constant 3 : i32
    %333 = vector.broadcast %c3_i32 : i32 to vector<4x1xi32>
    %334 = arith.cmpi sgt, %0, %333 : vector<4x1xi32>
    %335 = arith.extui %334 : vector<4x1xi1> to vector<4x1xi32>
    %336 = arith.sitofp %335 : vector<4x1xi32> to vector<4x1xf32>
    %c0_201 = arith.constant 0 : index
    %c3 = arith.constant 3 : index
    %c0_202 = arith.constant 0 : index
    %c0_203 = arith.constant 0 : index
    %c0_204 = arith.constant 0 : index
    %337 = vector.load %arg1[%c0_201, %c3, %c0_202, %c0_203, %c0_204] : memref<2x10x3x4x32xf32, #tpu.memory_space<vmem>>, vector<1x1x1x4x32xf32>
    %338 = vector.shape_cast %337 : vector<1x1x1x4x32xf32> to vector<4x32xf32>
    %cst_205 = arith.constant dense<0.000000e+00> : vector<4x32xf32>
    %339 = tpu.matmul %276, %2, %cst_205 {dimension_numbers = #tpu.dot_dimension_numbers<[1], [0], [0], [1], [0, 0, 1, 1], [], []>} : vector<4x32xf32>, vector<32x32xf32>, vector<4x32xf32> -> vector<4x32xf32>
    %340 = arith.addf %338, %339 : vector<4x32xf32>
    %341 = vector.broadcast %14 : vector<1x32xf32> to vector<4x32xf32>
    %342 = arith.addf %340, %341 : vector<4x32xf32>
    %343 = arith.negf %342 : vector<4x32xf32>
    %344 = math.exp %343 : vector<4x32xf32>
    %cst_206 = arith.constant 1.000000e+00 : f32
    %345 = vector.broadcast %cst_206 : f32 to vector<4x32xf32>
    %346 = arith.addf %345, %344 : vector<4x32xf32>
    %347 = arith.divf %345, %346 : vector<4x32xf32>
    %c0_207 = arith.constant 0 : index
    %c3_208 = arith.constant 3 : index
    %c1_209 = arith.constant 1 : index
    %c0_210 = arith.constant 0 : index
    %c0_211 = arith.constant 0 : index
    %348 = vector.load %arg1[%c0_207, %c3_208, %c1_209, %c0_210, %c0_211] : memref<2x10x3x4x32xf32, #tpu.memory_space<vmem>>, vector<1x1x1x4x32xf32>
    %349 = vector.shape_cast %348 : vector<1x1x1x4x32xf32> to vector<4x32xf32>
    %cst_212 = arith.constant dense<0.000000e+00> : vector<4x32xf32>
    %350 = tpu.matmul %276, %4, %cst_212 {dimension_numbers = #tpu.dot_dimension_numbers<[1], [0], [0], [1], [0, 0, 1, 1], [], []>} : vector<4x32xf32>, vector<32x32xf32>, vector<4x32xf32> -> vector<4x32xf32>
    %351 = arith.addf %349, %350 : vector<4x32xf32>
    %352 = vector.broadcast %16 : vector<1x32xf32> to vector<4x32xf32>
    %353 = arith.addf %351, %352 : vector<4x32xf32>
    %354 = arith.negf %353 : vector<4x32xf32>
    %355 = math.exp %354 : vector<4x32xf32>
    %cst_213 = arith.constant 1.000000e+00 : f32
    %356 = vector.broadcast %cst_213 : f32 to vector<4x32xf32>
    %357 = arith.addf %356, %355 : vector<4x32xf32>
    %358 = arith.divf %356, %357 : vector<4x32xf32>
    %c0_214 = arith.constant 0 : index
    %c3_215 = arith.constant 3 : index
    %c2_216 = arith.constant 2 : index
    %c0_217 = arith.constant 0 : index
    %c0_218 = arith.constant 0 : index
    %359 = vector.load %arg1[%c0_214, %c3_215, %c2_216, %c0_217, %c0_218] : memref<2x10x3x4x32xf32, #tpu.memory_space<vmem>>, vector<1x1x1x4x32xf32>
    %360 = vector.shape_cast %359 : vector<1x1x1x4x32xf32> to vector<4x32xf32>
    %cst_219 = arith.constant dense<0.000000e+00> : vector<4x32xf32>
    %361 = tpu.matmul %276, %6, %cst_219 {dimension_numbers = #tpu.dot_dimension_numbers<[1], [0], [0], [1], [0, 0, 1, 1], [], []>} : vector<4x32xf32>, vector<32x32xf32>, vector<4x32xf32> -> vector<4x32xf32>
    %362 = vector.broadcast %18 : vector<1x32xf32> to vector<4x32xf32>
    %363 = arith.addf %361, %362 : vector<4x32xf32>
    %364 = arith.mulf %347, %363 : vector<4x32xf32>
    %365 = arith.addf %360, %364 : vector<4x32xf32>
    %366 = math.tanh %365 : vector<4x32xf32>
    %cst_220 = arith.constant 1.000000e+00 : f32
    %367 = vector.broadcast %cst_220 : f32 to vector<4x32xf32>
    %368 = arith.subf %367, %358 : vector<4x32xf32>
    %369 = arith.mulf %368, %366 : vector<4x32xf32>
    %370 = arith.mulf %358, %276 : vector<4x32xf32>
    %371 = arith.addf %369, %370 : vector<4x32xf32>
    %372 = vector.broadcast %336 : vector<4x1xf32> to vector<4x32xf32>
    %373 = arith.mulf %372, %371 : vector<4x32xf32>
    %cst_221 = arith.constant 1.000000e+00 : f32
    %374 = vector.broadcast %cst_221 : f32 to vector<4x1xf32>
    %375 = arith.subf %374, %336 : vector<4x1xf32>
    %376 = vector.broadcast %375 : vector<4x1xf32> to vector<4x32xf32>
    %377 = arith.mulf %376, %276 : vector<4x32xf32>
    %378 = arith.addf %373, %377 : vector<4x32xf32>
    %379 = vector.broadcast %336 : vector<4x1xf32> to vector<4x32xf32>
    %380 = arith.mulf %379, %378 : vector<4x32xf32>
    %c0_222 = arith.constant 0 : index
    %c3_223 = arith.constant 3 : index
    %c0_224 = arith.constant 0 : index
    %c0_225 = arith.constant 0 : index
    %381 = vector.load %arg5[%c0_222, %c3_223, %c0_224, %c0_225] : memref<2x10x4x32xf32, #tpu.memory_space<vmem>>, vector<1x1x4x32xf32>
    %382 = vector.shape_cast %381 : vector<1x1x4x32xf32> to vector<4x32xf32>
    %383 = vector.shape_cast %380 : vector<4x32xf32> to vector<1x1x4x32xf32>
    tpu.vector_store %arg5[%c0_222, %c3_223, %c0_224, %c0_225], %383 {strides = array<i32>} : memref<2x10x4x32xf32, #tpu.memory_space<vmem>>, vector<1x1x4x32xf32>,
    %c6_i32 = arith.constant 6 : i32
    %384 = vector.broadcast %c6_i32 : i32 to vector<4x1xi32>
    %385 = arith.cmpi sgt, %0, %384 : vector<4x1xi32>
    %386 = arith.extui %385 : vector<4x1xi1> to vector<4x1xi32>
    %387 = arith.sitofp %386 : vector<4x1xi32> to vector<4x1xf32>
    %c1_226 = arith.constant 1 : index
    %c6 = arith.constant 6 : index
    %c0_227 = arith.constant 0 : index
    %c0_228 = arith.constant 0 : index
    %c0_229 = arith.constant 0 : index
    %388 = vector.load %arg1[%c1_226, %c6, %c0_227, %c0_228, %c0_229] : memref<2x10x3x4x32xf32, #tpu.memory_space<vmem>>, vector<1x1x1x4x32xf32>
    %389 = vector.shape_cast %388 : vector<1x1x1x4x32xf32> to vector<4x32xf32>
    %cst_230 = arith.constant dense<0.000000e+00> : vector<4x32xf32>
    %390 = tpu.matmul %327, %8, %cst_230 {dimension_numbers = #tpu.dot_dimension_numbers<[1], [0], [0], [1], [0, 0, 1, 1], [], []>} : vector<4x32xf32>, vector<32x32xf32>, vector<4x32xf32> -> vector<4x32xf32>
    %391 = arith.addf %389, %390 : vector<4x32xf32>
    %392 = vector.broadcast %20 : vector<1x32xf32> to vector<4x32xf32>
    %393 = arith.addf %391, %392 : vector<4x32xf32>
    %394 = arith.negf %393 : vector<4x32xf32>
    %395 = math.exp %394 : vector<4x32xf32>
    %cst_231 = arith.constant 1.000000e+00 : f32
    %396 = vector.broadcast %cst_231 : f32 to vector<4x32xf32>
    %397 = arith.addf %396, %395 : vector<4x32xf32>
    %398 = arith.divf %396, %397 : vector<4x32xf32>
    %c1_232 = arith.constant 1 : index
    %c6_233 = arith.constant 6 : index
    %c1_234 = arith.constant 1 : index
    %c0_235 = arith.constant 0 : index
    %c0_236 = arith.constant 0 : index
    %399 = vector.load %arg1[%c1_232, %c6_233, %c1_234, %c0_235, %c0_236] : memref<2x10x3x4x32xf32, #tpu.memory_space<vmem>>, vector<1x1x1x4x32xf32>
    %400 = vector.shape_cast %399 : vector<1x1x1x4x32xf32> to vector<4x32xf32>
    %cst_237 = arith.constant dense<0.000000e+00> : vector<4x32xf32>
    %401 = tpu.matmul %327, %10, %cst_237 {dimension_numbers = #tpu.dot_dimension_numbers<[1], [0], [0], [1], [0, 0, 1, 1], [], []>} : vector<4x32xf32>, vector<32x32xf32>, vector<4x32xf32> -> vector<4x32xf32>
    %402 = arith.addf %400, %401 : vector<4x32xf32>
    %403 = vector.broadcast %22 : vector<1x32xf32> to vector<4x32xf32>
    %404 = arith.addf %402, %403 : vector<4x32xf32>
    %405 = arith.negf %404 : vector<4x32xf32>
    %406 = math.exp %405 : vector<4x32xf32>
    %cst_238 = arith.constant 1.000000e+00 : f32
    %407 = vector.broadcast %cst_238 : f32 to vector<4x32xf32>
    %408 = arith.addf %407, %406 : vector<4x32xf32>
    %409 = arith.divf %407, %408 : vector<4x32xf32>
    %c1_239 = arith.constant 1 : index
    %c6_240 = arith.constant 6 : index
    %c2_241 = arith.constant 2 : index
    %c0_242 = arith.constant 0 : index
    %c0_243 = arith.constant 0 : index
    %410 = vector.load %arg1[%c1_239, %c6_240, %c2_241, %c0_242, %c0_243] : memref<2x10x3x4x32xf32, #tpu.memory_space<vmem>>, vector<1x1x1x4x32xf32>
    %411 = vector.shape_cast %410 : vector<1x1x1x4x32xf32> to vector<4x32xf32>
    %cst_244 = arith.constant dense<0.000000e+00> : vector<4x32xf32>
    %412 = tpu.matmul %327, %12, %cst_244 {dimension_numbers = #tpu.dot_dimension_numbers<[1], [0], [0], [1], [0, 0, 1, 1], [], []>} : vector<4x32xf32>, vector<32x32xf32>, vector<4x32xf32> -> vector<4x32xf32>
    %413 = vector.broadcast %24 : vector<1x32xf32> to vector<4x32xf32>
    %414 = arith.addf %412, %413 : vector<4x32xf32>
    %415 = arith.mulf %398, %414 : vector<4x32xf32>
    %416 = arith.addf %411, %415 : vector<4x32xf32>
    %417 = math.tanh %416 : vector<4x32xf32>
    %cst_245 = arith.constant 1.000000e+00 : f32
    %418 = vector.broadcast %cst_245 : f32 to vector<4x32xf32>
    %419 = arith.subf %418, %409 : vector<4x32xf32>
    %420 = arith.mulf %419, %417 : vector<4x32xf32>
    %421 = arith.mulf %409, %327 : vector<4x32xf32>
    %422 = arith.addf %420, %421 : vector<4x32xf32>
    %423 = vector.broadcast %387 : vector<4x1xf32> to vector<4x32xf32>
    %424 = arith.mulf %423, %422 : vector<4x32xf32>
    %cst_246 = arith.constant 1.000000e+00 : f32
    %425 = vector.broadcast %cst_246 : f32 to vector<4x1xf32>
    %426 = arith.subf %425, %387 : vector<4x1xf32>
    %427 = vector.broadcast %426 : vector<4x1xf32> to vector<4x32xf32>
    %428 = arith.mulf %427, %327 : vector<4x32xf32>
    %429 = arith.addf %424, %428 : vector<4x32xf32>
    %430 = vector.broadcast %387 : vector<4x1xf32> to vector<4x32xf32>
    %431 = arith.mulf %430, %429 : vector<4x32xf32>
    %c1_247 = arith.constant 1 : index
    %c6_248 = arith.constant 6 : index
    %c0_249 = arith.constant 0 : index
    %c0_250 = arith.constant 0 : index
    %432 = vector.load %arg5[%c1_247, %c6_248, %c0_249, %c0_250] : memref<2x10x4x32xf32, #tpu.memory_space<vmem>>, vector<1x1x4x32xf32>
    %433 = vector.shape_cast %432 : vector<1x1x4x32xf32> to vector<4x32xf32>
    %434 = vector.shape_cast %431 : vector<4x32xf32> to vector<1x1x4x32xf32>
    tpu.vector_store %arg5[%c1_247, %c6_248, %c0_249, %c0_250], %434 {strides = array<i32>} : memref<2x10x4x32xf32, #tpu.memory_space<vmem>>, vector<1x1x4x32xf32>,
    %c4_i32 = arith.constant 4 : i32
    %435 = vector.broadcast %c4_i32 : i32 to vector<4x1xi32>
    %436 = arith.cmpi sgt, %0, %435 : vector<4x1xi32>
    %437 = arith.extui %436 : vector<4x1xi1> to vector<4x1xi32>
    %438 = arith.sitofp %437 : vector<4x1xi32> to vector<4x1xf32>
    %c0_251 = arith.constant 0 : index
    %c4 = arith.constant 4 : index
    %c0_252 = arith.constant 0 : index
    %c0_253 = arith.constant 0 : index
    %c0_254 = arith.constant 0 : index
    %439 = vector.load %arg1[%c0_251, %c4, %c0_252, %c0_253, %c0_254] : memref<2x10x3x4x32xf32, #tpu.memory_space<vmem>>, vector<1x1x1x4x32xf32>
    %440 = vector.shape_cast %439 : vector<1x1x1x4x32xf32> to vector<4x32xf32>
    %cst_255 = arith.constant dense<0.000000e+00> : vector<4x32xf32>
    %441 = tpu.matmul %378, %2, %cst_255 {dimension_numbers = #tpu.dot_dimension_numbers<[1], [0], [0], [1], [0, 0, 1, 1], [], []>} : vector<4x32xf32>, vector<32x32xf32>, vector<4x32xf32> -> vector<4x32xf32>
    %442 = arith.addf %440, %441 : vector<4x32xf32>
    %443 = vector.broadcast %14 : vector<1x32xf32> to vector<4x32xf32>
    %444 = arith.addf %442, %443 : vector<4x32xf32>
    %445 = arith.negf %444 : vector<4x32xf32>
    %446 = math.exp %445 : vector<4x32xf32>
    %cst_256 = arith.constant 1.000000e+00 : f32
    %447 = vector.broadcast %cst_256 : f32 to vector<4x32xf32>
    %448 = arith.addf %447, %446 : vector<4x32xf32>
    %449 = arith.divf %447, %448 : vector<4x32xf32>
    %c0_257 = arith.constant 0 : index
    %c4_258 = arith.constant 4 : index
    %c1_259 = arith.constant 1 : index
    %c0_260 = arith.constant 0 : index
    %c0_261 = arith.constant 0 : index
    %450 = vector.load %arg1[%c0_257, %c4_258, %c1_259, %c0_260, %c0_261] : memref<2x10x3x4x32xf32, #tpu.memory_space<vmem>>, vector<1x1x1x4x32xf32>
    %451 = vector.shape_cast %450 : vector<1x1x1x4x32xf32> to vector<4x32xf32>
    %cst_262 = arith.constant dense<0.000000e+00> : vector<4x32xf32>
    %452 = tpu.matmul %378, %4, %cst_262 {dimension_numbers = #tpu.dot_dimension_numbers<[1], [0], [0], [1], [0, 0, 1, 1], [], []>} : vector<4x32xf32>, vector<32x32xf32>, vector<4x32xf32> -> vector<4x32xf32>
    %453 = arith.addf %451, %452 : vector<4x32xf32>
    %454 = vector.broadcast %16 : vector<1x32xf32> to vector<4x32xf32>
    %455 = arith.addf %453, %454 : vector<4x32xf32>
    %456 = arith.negf %455 : vector<4x32xf32>
    %457 = math.exp %456 : vector<4x32xf32>
    %cst_263 = arith.constant 1.000000e+00 : f32
    %458 = vector.broadcast %cst_263 : f32 to vector<4x32xf32>
    %459 = arith.addf %458, %457 : vector<4x32xf32>
    %460 = arith.divf %458, %459 : vector<4x32xf32>
    %c0_264 = arith.constant 0 : index
    %c4_265 = arith.constant 4 : index
    %c2_266 = arith.constant 2 : index
    %c0_267 = arith.constant 0 : index
    %c0_268 = arith.constant 0 : index
    %461 = vector.load %arg1[%c0_264, %c4_265, %c2_266, %c0_267, %c0_268] : memref<2x10x3x4x32xf32, #tpu.memory_space<vmem>>, vector<1x1x1x4x32xf32>
    %462 = vector.shape_cast %461 : vector<1x1x1x4x32xf32> to vector<4x32xf32>
    %cst_269 = arith.constant dense<0.000000e+00> : vector<4x32xf32>
    %463 = tpu.matmul %378, %6, %cst_269 {dimension_numbers = #tpu.dot_dimension_numbers<[1], [0], [0], [1], [0, 0, 1, 1], [], []>} : vector<4x32xf32>, vector<32x32xf32>, vector<4x32xf32> -> vector<4x32xf32>
    %464 = vector.broadcast %18 : vector<1x32xf32> to vector<4x32xf32>
    %465 = arith.addf %463, %464 : vector<4x32xf32>
    %466 = arith.mulf %449, %465 : vector<4x32xf32>
    %467 = arith.addf %462, %466 : vector<4x32xf32>
    %468 = math.tanh %467 : vector<4x32xf32>
    %cst_270 = arith.constant 1.000000e+00 : f32
    %469 = vector.broadcast %cst_270 : f32 to vector<4x32xf32>
    %470 = arith.subf %469, %460 : vector<4x32xf32>
    %471 = arith.mulf %470, %468 : vector<4x32xf32>
    %472 = arith.mulf %460, %378 : vector<4x32xf32>
    %473 = arith.addf %471, %472 : vector<4x32xf32>
    %474 = vector.broadcast %438 : vector<4x1xf32> to vector<4x32xf32>
    %475 = arith.mulf %474, %473 : vector<4x32xf32>
    %cst_271 = arith.constant 1.000000e+00 : f32
    %476 = vector.broadcast %cst_271 : f32 to vector<4x1xf32>
    %477 = arith.subf %476, %438 : vector<4x1xf32>
    %478 = vector.broadcast %477 : vector<4x1xf32> to vector<4x32xf32>
    %479 = arith.mulf %478, %378 : vector<4x32xf32>
    %480 = arith.addf %475, %479 : vector<4x32xf32>
    %481 = vector.broadcast %438 : vector<4x1xf32> to vector<4x32xf32>
    %482 = arith.mulf %481, %480 : vector<4x32xf32>
    %c0_272 = arith.constant 0 : index
    %c4_273 = arith.constant 4 : index
    %c0_274 = arith.constant 0 : index
    %c0_275 = arith.constant 0 : index
    %483 = vector.load %arg5[%c0_272, %c4_273, %c0_274, %c0_275] : memref<2x10x4x32xf32, #tpu.memory_space<vmem>>, vector<1x1x4x32xf32>
    %484 = vector.shape_cast %483 : vector<1x1x4x32xf32> to vector<4x32xf32>
    %485 = vector.shape_cast %482 : vector<4x32xf32> to vector<1x1x4x32xf32>
    tpu.vector_store %arg5[%c0_272, %c4_273, %c0_274, %c0_275], %485 {strides = array<i32>} : memref<2x10x4x32xf32, #tpu.memory_space<vmem>>, vector<1x1x4x32xf32>,
    %c5_i32 = arith.constant 5 : i32
    %486 = vector.broadcast %c5_i32 : i32 to vector<4x1xi32>
    %487 = arith.cmpi sgt, %0, %486 : vector<4x1xi32>
    %488 = arith.extui %487 : vector<4x1xi1> to vector<4x1xi32>
    %489 = arith.sitofp %488 : vector<4x1xi32> to vector<4x1xf32>
    %c1_276 = arith.constant 1 : index
    %c5 = arith.constant 5 : index
    %c0_277 = arith.constant 0 : index
    %c0_278 = arith.constant 0 : index
    %c0_279 = arith.constant 0 : index
    %490 = vector.load %arg1[%c1_276, %c5, %c0_277, %c0_278, %c0_279] : memref<2x10x3x4x32xf32, #tpu.memory_space<vmem>>, vector<1x1x1x4x32xf32>
    %491 = vector.shape_cast %490 : vector<1x1x1x4x32xf32> to vector<4x32xf32>
    %cst_280 = arith.constant dense<0.000000e+00> : vector<4x32xf32>
    %492 = tpu.matmul %429, %8, %cst_280 {dimension_numbers = #tpu.dot_dimension_numbers<[1], [0], [0], [1], [0, 0, 1, 1], [], []>} : vector<4x32xf32>, vector<32x32xf32>, vector<4x32xf32> -> vector<4x32xf32>
    %493 = arith.addf %491, %492 : vector<4x32xf32>
    %494 = vector.broadcast %20 : vector<1x32xf32> to vector<4x32xf32>
    %495 = arith.addf %493, %494 : vector<4x32xf32>
    %496 = arith.negf %495 : vector<4x32xf32>
    %497 = math.exp %496 : vector<4x32xf32>
    %cst_281 = arith.constant 1.000000e+00 : f32
    %498 = vector.broadcast %cst_281 : f32 to vector<4x32xf32>
    %499 = arith.addf %498, %497 : vector<4x32xf32>
    %500 = arith.divf %498, %499 : vector<4x32xf32>
    %c1_282 = arith.constant 1 : index
    %c5_283 = arith.constant 5 : index
    %c1_284 = arith.constant 1 : index
    %c0_285 = arith.constant 0 : index
    %c0_286 = arith.constant 0 : index
    %501 = vector.load %arg1[%c1_282, %c5_283, %c1_284, %c0_285, %c0_286] : memref<2x10x3x4x32xf32, #tpu.memory_space<vmem>>, vector<1x1x1x4x32xf32>
    %502 = vector.shape_cast %501 : vector<1x1x1x4x32xf32> to vector<4x32xf32>
    %cst_287 = arith.constant dense<0.000000e+00> : vector<4x32xf32>
    %503 = tpu.matmul %429, %10, %cst_287 {dimension_numbers = #tpu.dot_dimension_numbers<[1], [0], [0], [1], [0, 0, 1, 1], [], []>} : vector<4x32xf32>, vector<32x32xf32>, vector<4x32xf32> -> vector<4x32xf32>
    %504 = arith.addf %502, %503 : vector<4x32xf32>
    %505 = vector.broadcast %22 : vector<1x32xf32> to vector<4x32xf32>
    %506 = arith.addf %504, %505 : vector<4x32xf32>
    %507 = arith.negf %506 : vector<4x32xf32>
    %508 = math.exp %507 : vector<4x32xf32>
    %cst_288 = arith.constant 1.000000e+00 : f32
    %509 = vector.broadcast %cst_288 : f32 to vector<4x32xf32>
    %510 = arith.addf %509, %508 : vector<4x32xf32>
    %511 = arith.divf %509, %510 : vector<4x32xf32>
    %c1_289 = arith.constant 1 : index
    %c5_290 = arith.constant 5 : index
    %c2_291 = arith.constant 2 : index
    %c0_292 = arith.constant 0 : index
    %c0_293 = arith.constant 0 : index
    %512 = vector.load %arg1[%c1_289, %c5_290, %c2_291, %c0_292, %c0_293] : memref<2x10x3x4x32xf32, #tpu.memory_space<vmem>>, vector<1x1x1x4x32xf32>
    %513 = vector.shape_cast %512 : vector<1x1x1x4x32xf32> to vector<4x32xf32>
    %cst_294 = arith.constant dense<0.000000e+00> : vector<4x32xf32>
    %514 = tpu.matmul %429, %12, %cst_294 {dimension_numbers = #tpu.dot_dimension_numbers<[1], [0], [0], [1], [0, 0, 1, 1], [], []>} : vector<4x32xf32>, vector<32x32xf32>, vector<4x32xf32> -> vector<4x32xf32>
    %515 = vector.broadcast %24 : vector<1x32xf32> to vector<4x32xf32>
    %516 = arith.addf %514, %515 : vector<4x32xf32>
    %517 = arith.mulf %500, %516 : vector<4x32xf32>
    %518 = arith.addf %513, %517 : vector<4x32xf32>
    %519 = math.tanh %518 : vector<4x32xf32>
    %cst_295 = arith.constant 1.000000e+00 : f32
    %520 = vector.broadcast %cst_295 : f32 to vector<4x32xf32>
    %521 = arith.subf %520, %511 : vector<4x32xf32>
    %522 = arith.mulf %521, %519 : vector<4x32xf32>
    %523 = arith.mulf %511, %429 : vector<4x32xf32>
    %524 = arith.addf %522, %523 : vector<4x32xf32>
    %525 = vector.broadcast %489 : vector<4x1xf32> to vector<4x32xf32>
    %526 = arith.mulf %525, %524 : vector<4x32xf32>
    %cst_296 = arith.constant 1.000000e+00 : f32
    %527 = vector.broadcast %cst_296 : f32 to vector<4x1xf32>
    %528 = arith.subf %527, %489 : vector<4x1xf32>
    %529 = vector.broadcast %528 : vector<4x1xf32> to vector<4x32xf32>
    %530 = arith.mulf %529, %429 : vector<4x32xf32>
    %531 = arith.addf %526, %530 : vector<4x32xf32>
    %532 = vector.broadcast %489 : vector<4x1xf32> to vector<4x32xf32>
    %533 = arith.mulf %532, %531 : vector<4x32xf32>
    %c1_297 = arith.constant 1 : index
    %c5_298 = arith.constant 5 : index
    %c0_299 = arith.constant 0 : index
    %c0_300 = arith.constant 0 : index
    %534 = vector.load %arg5[%c1_297, %c5_298, %c0_299, %c0_300] : memref<2x10x4x32xf32, #tpu.memory_space<vmem>>, vector<1x1x4x32xf32>
    %535 = vector.shape_cast %534 : vector<1x1x4x32xf32> to vector<4x32xf32>
    %536 = vector.shape_cast %533 : vector<4x32xf32> to vector<1x1x4x32xf32>
    tpu.vector_store %arg5[%c1_297, %c5_298, %c0_299, %c0_300], %536 {strides = array<i32>} : memref<2x10x4x32xf32, #tpu.memory_space<vmem>>, vector<1x1x4x32xf32>,
    %c5_i32_301 = arith.constant 5 : i32
    %537 = vector.broadcast %c5_i32_301 : i32 to vector<4x1xi32>
    %538 = arith.cmpi sgt, %0, %537 : vector<4x1xi32>
    %539 = arith.extui %538 : vector<4x1xi1> to vector<4x1xi32>
    %540 = arith.sitofp %539 : vector<4x1xi32> to vector<4x1xf32>
    %c0_302 = arith.constant 0 : index
    %c5_303 = arith.constant 5 : index
    %c0_304 = arith.constant 0 : index
    %c0_305 = arith.constant 0 : index
    %c0_306 = arith.constant 0 : index
    %541 = vector.load %arg1[%c0_302, %c5_303, %c0_304, %c0_305, %c0_306] : memref<2x10x3x4x32xf32, #tpu.memory_space<vmem>>, vector<1x1x1x4x32xf32>
    %542 = vector.shape_cast %541 : vector<1x1x1x4x32xf32> to vector<4x32xf32>
    %cst_307 = arith.constant dense<0.000000e+00> : vector<4x32xf32>
    %543 = tpu.matmul %480, %2, %cst_307 {dimension_numbers = #tpu.dot_dimension_numbers<[1], [0], [0], [1], [0, 0, 1, 1], [], []>} : vector<4x32xf32>, vector<32x32xf32>, vector<4x32xf32> -> vector<4x32xf32>
    %544 = arith.addf %542, %543 : vector<4x32xf32>
    %545 = vector.broadcast %14 : vector<1x32xf32> to vector<4x32xf32>
    %546 = arith.addf %544, %545 : vector<4x32xf32>
    %547 = arith.negf %546 : vector<4x32xf32>
    %548 = math.exp %547 : vector<4x32xf32>
    %cst_308 = arith.constant 1.000000e+00 : f32
    %549 = vector.broadcast %cst_308 : f32 to vector<4x32xf32>
    %550 = arith.addf %549, %548 : vector<4x32xf32>
    %551 = arith.divf %549, %550 : vector<4x32xf32>
    %c0_309 = arith.constant 0 : index
    %c5_310 = arith.constant 5 : index
    %c1_311 = arith.constant 1 : index
    %c0_312 = arith.constant 0 : index
    %c0_313 = arith.constant 0 : index
    %552 = vector.load %arg1[%c0_309, %c5_310, %c1_311, %c0_312, %c0_313] : memref<2x10x3x4x32xf32, #tpu.memory_space<vmem>>, vector<1x1x1x4x32xf32>
    %553 = vector.shape_cast %552 : vector<1x1x1x4x32xf32> to vector<4x32xf32>
    %cst_314 = arith.constant dense<0.000000e+00> : vector<4x32xf32>
    %554 = tpu.matmul %480, %4, %cst_314 {dimension_numbers = #tpu.dot_dimension_numbers<[1], [0], [0], [1], [0, 0, 1, 1], [], []>} : vector<4x32xf32>, vector<32x32xf32>, vector<4x32xf32> -> vector<4x32xf32>
    %555 = arith.addf %553, %554 : vector<4x32xf32>
    %556 = vector.broadcast %16 : vector<1x32xf32> to vector<4x32xf32>
    %557 = arith.addf %555, %556 : vector<4x32xf32>
    %558 = arith.negf %557 : vector<4x32xf32>
    %559 = math.exp %558 : vector<4x32xf32>
    %cst_315 = arith.constant 1.000000e+00 : f32
    %560 = vector.broadcast %cst_315 : f32 to vector<4x32xf32>
    %561 = arith.addf %560, %559 : vector<4x32xf32>
    %562 = arith.divf %560, %561 : vector<4x32xf32>
    %c0_316 = arith.constant 0 : index
    %c5_317 = arith.constant 5 : index
    %c2_318 = arith.constant 2 : index
    %c0_319 = arith.constant 0 : index
    %c0_320 = arith.constant 0 : index
    %563 = vector.load %arg1[%c0_316, %c5_317, %c2_318, %c0_319, %c0_320] : memref<2x10x3x4x32xf32, #tpu.memory_space<vmem>>, vector<1x1x1x4x32xf32>
    %564 = vector.shape_cast %563 : vector<1x1x1x4x32xf32> to vector<4x32xf32>
    %cst_321 = arith.constant dense<0.000000e+00> : vector<4x32xf32>
    %565 = tpu.matmul %480, %6, %cst_321 {dimension_numbers = #tpu.dot_dimension_numbers<[1], [0], [0], [1], [0, 0, 1, 1], [], []>} : vector<4x32xf32>, vector<32x32xf32>, vector<4x32xf32> -> vector<4x32xf32>
    %566 = vector.broadcast %18 : vector<1x32xf32> to vector<4x32xf32>
    %567 = arith.addf %565, %566 : vector<4x32xf32>
    %568 = arith.mulf %551, %567 : vector<4x32xf32>
    %569 = arith.addf %564, %568 : vector<4x32xf32>
    %570 = math.tanh %569 : vector<4x32xf32>
    %cst_322 = arith.constant 1.000000e+00 : f32
    %571 = vector.broadcast %cst_322 : f32 to vector<4x32xf32>
    %572 = arith.subf %571, %562 : vector<4x32xf32>
    %573 = arith.mulf %572, %570 : vector<4x32xf32>
    %574 = arith.mulf %562, %480 : vector<4x32xf32>
    %575 = arith.addf %573, %574 : vector<4x32xf32>
    %576 = vector.broadcast %540 : vector<4x1xf32> to vector<4x32xf32>
    %577 = arith.mulf %576, %575 : vector<4x32xf32>
    %cst_323 = arith.constant 1.000000e+00 : f32
    %578 = vector.broadcast %cst_323 : f32 to vector<4x1xf32>
    %579 = arith.subf %578, %540 : vector<4x1xf32>
    %580 = vector.broadcast %579 : vector<4x1xf32> to vector<4x32xf32>
    %581 = arith.mulf %580, %480 : vector<4x32xf32>
    %582 = arith.addf %577, %581 : vector<4x32xf32>
    %583 = vector.broadcast %540 : vector<4x1xf32> to vector<4x32xf32>
    %584 = arith.mulf %583, %582 : vector<4x32xf32>
    %c0_324 = arith.constant 0 : index
    %c5_325 = arith.constant 5 : index
    %c0_326 = arith.constant 0 : index
    %c0_327 = arith.constant 0 : index
    %585 = vector.load %arg5[%c0_324, %c5_325, %c0_326, %c0_327] : memref<2x10x4x32xf32, #tpu.memory_space<vmem>>, vector<1x1x4x32xf32>
    %586 = vector.shape_cast %585 : vector<1x1x4x32xf32> to vector<4x32xf32>
    %587 = vector.shape_cast %584 : vector<4x32xf32> to vector<1x1x4x32xf32>
    tpu.vector_store %arg5[%c0_324, %c5_325, %c0_326, %c0_327], %587 {strides = array<i32>} : memref<2x10x4x32xf32, #tpu.memory_space<vmem>>, vector<1x1x4x32xf32>,
    %c4_i32_328 = arith.constant 4 : i32
    %588 = vector.broadcast %c4_i32_328 : i32 to vector<4x1xi32>
    %589 = arith.cmpi sgt, %0, %588 : vector<4x1xi32>
    %590 = arith.extui %589 : vector<4x1xi1> to vector<4x1xi32>
    %591 = arith.sitofp %590 : vector<4x1xi32> to vector<4x1xf32>
    %c1_329 = arith.constant 1 : index
    %c4_330 = arith.constant 4 : index
    %c0_331 = arith.constant 0 : index
    %c0_332 = arith.constant 0 : index
    %c0_333 = arith.constant 0 : index
    %592 = vector.load %arg1[%c1_329, %c4_330, %c0_331, %c0_332, %c0_333] : memref<2x10x3x4x32xf32, #tpu.memory_space<vmem>>, vector<1x1x1x4x32xf32>
    %593 = vector.shape_cast %592 : vector<1x1x1x4x32xf32> to vector<4x32xf32>
    %cst_334 = arith.constant dense<0.000000e+00> : vector<4x32xf32>
    %594 = tpu.matmul %531, %8, %cst_334 {dimension_numbers = #tpu.dot_dimension_numbers<[1], [0], [0], [1], [0, 0, 1, 1], [], []>} : vector<4x32xf32>, vector<32x32xf32>, vector<4x32xf32> -> vector<4x32xf32>
    %595 = arith.addf %593, %594 : vector<4x32xf32>
    %596 = vector.broadcast %20 : vector<1x32xf32> to vector<4x32xf32>
    %597 = arith.addf %595, %596 : vector<4x32xf32>
    %598 = arith.negf %597 : vector<4x32xf32>
    %599 = math.exp %598 : vector<4x32xf32>
    %cst_335 = arith.constant 1.000000e+00 : f32
    %600 = vector.broadcast %cst_335 : f32 to vector<4x32xf32>
    %601 = arith.addf %600, %599 : vector<4x32xf32>
    %602 = arith.divf %600, %601 : vector<4x32xf32>
    %c1_336 = arith.constant 1 : index
    %c4_337 = arith.constant 4 : index
    %c1_338 = arith.constant 1 : index
    %c0_339 = arith.constant 0 : index
    %c0_340 = arith.constant 0 : index
    %603 = vector.load %arg1[%c1_336, %c4_337, %c1_338, %c0_339, %c0_340] : memref<2x10x3x4x32xf32, #tpu.memory_space<vmem>>, vector<1x1x1x4x32xf32>
    %604 = vector.shape_cast %603 : vector<1x1x1x4x32xf32> to vector<4x32xf32>
    %cst_341 = arith.constant dense<0.000000e+00> : vector<4x32xf32>
    %605 = tpu.matmul %531, %10, %cst_341 {dimension_numbers = #tpu.dot_dimension_numbers<[1], [0], [0], [1], [0, 0, 1, 1], [], []>} : vector<4x32xf32>, vector<32x32xf32>, vector<4x32xf32> -> vector<4x32xf32>
    %606 = arith.addf %604, %605 : vector<4x32xf32>
    %607 = vector.broadcast %22 : vector<1x32xf32> to vector<4x32xf32>
    %608 = arith.addf %606, %607 : vector<4x32xf32>
    %609 = arith.negf %608 : vector<4x32xf32>
    %610 = math.exp %609 : vector<4x32xf32>
    %cst_342 = arith.constant 1.000000e+00 : f32
    %611 = vector.broadcast %cst_342 : f32 to vector<4x32xf32>
    %612 = arith.addf %611, %610 : vector<4x32xf32>
    %613 = arith.divf %611, %612 : vector<4x32xf32>
    %c1_343 = arith.constant 1 : index
    %c4_344 = arith.constant 4 : index
    %c2_345 = arith.constant 2 : index
    %c0_346 = arith.constant 0 : index
    %c0_347 = arith.constant 0 : index
    %614 = vector.load %arg1[%c1_343, %c4_344, %c2_345, %c0_346, %c0_347] : memref<2x10x3x4x32xf32, #tpu.memory_space<vmem>>, vector<1x1x1x4x32xf32>
    %615 = vector.shape_cast %614 : vector<1x1x1x4x32xf32> to vector<4x32xf32>
    %cst_348 = arith.constant dense<0.000000e+00> : vector<4x32xf32>
    %616 = tpu.matmul %531, %12, %cst_348 {dimension_numbers = #tpu.dot_dimension_numbers<[1], [0], [0], [1], [0, 0, 1, 1], [], []>} : vector<4x32xf32>, vector<32x32xf32>, vector<4x32xf32> -> vector<4x32xf32>
    %617 = vector.broadcast %24 : vector<1x32xf32> to vector<4x32xf32>
    %618 = arith.addf %616, %617 : vector<4x32xf32>
    %619 = arith.mulf %602, %618 : vector<4x32xf32>
    %620 = arith.addf %615, %619 : vector<4x32xf32>
    %621 = math.tanh %620 : vector<4x32xf32>
    %cst_349 = arith.constant 1.000000e+00 : f32
    %622 = vector.broadcast %cst_349 : f32 to vector<4x32xf32>
    %623 = arith.subf %622, %613 : vector<4x32xf32>
    %624 = arith.mulf %623, %621 : vector<4x32xf32>
    %625 = arith.mulf %613, %531 : vector<4x32xf32>
    %626 = arith.addf %624, %625 : vector<4x32xf32>
    %627 = vector.broadcast %591 : vector<4x1xf32> to vector<4x32xf32>
    %628 = arith.mulf %627, %626 : vector<4x32xf32>
    %cst_350 = arith.constant 1.000000e+00 : f32
    %629 = vector.broadcast %cst_350 : f32 to vector<4x1xf32>
    %630 = arith.subf %629, %591 : vector<4x1xf32>
    %631 = vector.broadcast %630 : vector<4x1xf32> to vector<4x32xf32>
    %632 = arith.mulf %631, %531 : vector<4x32xf32>
    %633 = arith.addf %628, %632 : vector<4x32xf32>
    %634 = vector.broadcast %591 : vector<4x1xf32> to vector<4x32xf32>
    %635 = arith.mulf %634, %633 : vector<4x32xf32>
    %c1_351 = arith.constant 1 : index
    %c4_352 = arith.constant 4 : index
    %c0_353 = arith.constant 0 : index
    %c0_354 = arith.constant 0 : index
    %636 = vector.load %arg5[%c1_351, %c4_352, %c0_353, %c0_354] : memref<2x10x4x32xf32, #tpu.memory_space<vmem>>, vector<1x1x4x32xf32>
    %637 = vector.shape_cast %636 : vector<1x1x4x32xf32> to vector<4x32xf32>
    %638 = vector.shape_cast %635 : vector<4x32xf32> to vector<1x1x4x32xf32>
    tpu.vector_store %arg5[%c1_351, %c4_352, %c0_353, %c0_354], %638 {strides = array<i32>} : memref<2x10x4x32xf32, #tpu.memory_space<vmem>>, vector<1x1x4x32xf32>,
    %c6_i32_355 = arith.constant 6 : i32
    %639 = vector.broadcast %c6_i32_355 : i32 to vector<4x1xi32>
    %640 = arith.cmpi sgt, %0, %639 : vector<4x1xi32>
    %641 = arith.extui %640 : vector<4x1xi1> to vector<4x1xi32>
    %642 = arith.sitofp %641 : vector<4x1xi32> to vector<4x1xf32>
    %c0_356 = arith.constant 0 : index
    %c6_357 = arith.constant 6 : index
    %c0_358 = arith.constant 0 : index
    %c0_359 = arith.constant 0 : index
    %c0_360 = arith.constant 0 : index
    %643 = vector.load %arg1[%c0_356, %c6_357, %c0_358, %c0_359, %c0_360] : memref<2x10x3x4x32xf32, #tpu.memory_space<vmem>>, vector<1x1x1x4x32xf32>
    %644 = vector.shape_cast %643 : vector<1x1x1x4x32xf32> to vector<4x32xf32>
    %cst_361 = arith.constant dense<0.000000e+00> : vector<4x32xf32>
    %645 = tpu.matmul %582, %2, %cst_361 {dimension_numbers = #tpu.dot_dimension_numbers<[1], [0], [0], [1], [0, 0, 1, 1], [], []>} : vector<4x32xf32>, vector<32x32xf32>, vector<4x32xf32> -> vector<4x32xf32>
    %646 = arith.addf %644, %645 : vector<4x32xf32>
    %647 = vector.broadcast %14 : vector<1x32xf32> to vector<4x32xf32>
    %648 = arith.addf %646, %647 : vector<4x32xf32>
    %649 = arith.negf %648 : vector<4x32xf32>
    %650 = math.exp %649 : vector<4x32xf32>
    %cst_362 = arith.constant 1.000000e+00 : f32
    %651 = vector.broadcast %cst_362 : f32 to vector<4x32xf32>
    %652 = arith.addf %651, %650 : vector<4x32xf32>
    %653 = arith.divf %651, %652 : vector<4x32xf32>
    %c0_363 = arith.constant 0 : index
    %c6_364 = arith.constant 6 : index
    %c1_365 = arith.constant 1 : index
    %c0_366 = arith.constant 0 : index
    %c0_367 = arith.constant 0 : index
    %654 = vector.load %arg1[%c0_363, %c6_364, %c1_365, %c0_366, %c0_367] : memref<2x10x3x4x32xf32, #tpu.memory_space<vmem>>, vector<1x1x1x4x32xf32>
    %655 = vector.shape_cast %654 : vector<1x1x1x4x32xf32> to vector<4x32xf32>
    %cst_368 = arith.constant dense<0.000000e+00> : vector<4x32xf32>
    %656 = tpu.matmul %582, %4, %cst_368 {dimension_numbers = #tpu.dot_dimension_numbers<[1], [0], [0], [1], [0, 0, 1, 1], [], []>} : vector<4x32xf32>, vector<32x32xf32>, vector<4x32xf32> -> vector<4x32xf32>
    %657 = arith.addf %655, %656 : vector<4x32xf32>
    %658 = vector.broadcast %16 : vector<1x32xf32> to vector<4x32xf32>
    %659 = arith.addf %657, %658 : vector<4x32xf32>
    %660 = arith.negf %659 : vector<4x32xf32>
    %661 = math.exp %660 : vector<4x32xf32>
    %cst_369 = arith.constant 1.000000e+00 : f32
    %662 = vector.broadcast %cst_369 : f32 to vector<4x32xf32>
    %663 = arith.addf %662, %661 : vector<4x32xf32>
    %664 = arith.divf %662, %663 : vector<4x32xf32>
    %c0_370 = arith.constant 0 : index
    %c6_371 = arith.constant 6 : index
    %c2_372 = arith.constant 2 : index
    %c0_373 = arith.constant 0 : index
    %c0_374 = arith.constant 0 : index
    %665 = vector.load %arg1[%c0_370, %c6_371, %c2_372, %c0_373, %c0_374] : memref<2x10x3x4x32xf32, #tpu.memory_space<vmem>>, vector<1x1x1x4x32xf32>
    %666 = vector.shape_cast %665 : vector<1x1x1x4x32xf32> to vector<4x32xf32>
    %cst_375 = arith.constant dense<0.000000e+00> : vector<4x32xf32>
    %667 = tpu.matmul %582, %6, %cst_375 {dimension_numbers = #tpu.dot_dimension_numbers<[1], [0], [0], [1], [0, 0, 1, 1], [], []>} : vector<4x32xf32>, vector<32x32xf32>, vector<4x32xf32> -> vector<4x32xf32>
    %668 = vector.broadcast %18 : vector<1x32xf32> to vector<4x32xf32>
    %669 = arith.addf %667, %668 : vector<4x32xf32>
    %670 = arith.mulf %653, %669 : vector<4x32xf32>
    %671 = arith.addf %666, %670 : vector<4x32xf32>
    %672 = math.tanh %671 : vector<4x32xf32>
    %cst_376 = arith.constant 1.000000e+00 : f32
    %673 = vector.broadcast %cst_376 : f32 to vector<4x32xf32>
    %674 = arith.subf %673, %664 : vector<4x32xf32>
    %675 = arith.mulf %674, %672 : vector<4x32xf32>
    %676 = arith.mulf %664, %582 : vector<4x32xf32>
    %677 = arith.addf %675, %676 : vector<4x32xf32>
    %678 = vector.broadcast %642 : vector<4x1xf32> to vector<4x32xf32>
    %679 = arith.mulf %678, %677 : vector<4x32xf32>
    %cst_377 = arith.constant 1.000000e+00 : f32
    %680 = vector.broadcast %cst_377 : f32 to vector<4x1xf32>
    %681 = arith.subf %680, %642 : vector<4x1xf32>
    %682 = vector.broadcast %681 : vector<4x1xf32> to vector<4x32xf32>
    %683 = arith.mulf %682, %582 : vector<4x32xf32>
    %684 = arith.addf %679, %683 : vector<4x32xf32>
    %685 = vector.broadcast %642 : vector<4x1xf32> to vector<4x32xf32>
    %686 = arith.mulf %685, %684 : vector<4x32xf32>
    %c0_378 = arith.constant 0 : index
    %c6_379 = arith.constant 6 : index
    %c0_380 = arith.constant 0 : index
    %c0_381 = arith.constant 0 : index
    %687 = vector.load %arg5[%c0_378, %c6_379, %c0_380, %c0_381] : memref<2x10x4x32xf32, #tpu.memory_space<vmem>>, vector<1x1x4x32xf32>
    %688 = vector.shape_cast %687 : vector<1x1x4x32xf32> to vector<4x32xf32>
    %689 = vector.shape_cast %686 : vector<4x32xf32> to vector<1x1x4x32xf32>
    tpu.vector_store %arg5[%c0_378, %c6_379, %c0_380, %c0_381], %689 {strides = array<i32>} : memref<2x10x4x32xf32, #tpu.memory_space<vmem>>, vector<1x1x4x32xf32>,
    %c3_i32_382 = arith.constant 3 : i32
    %690 = vector.broadcast %c3_i32_382 : i32 to vector<4x1xi32>
    %691 = arith.cmpi sgt, %0, %690 : vector<4x1xi32>
    %692 = arith.extui %691 : vector<4x1xi1> to vector<4x1xi32>
    %693 = arith.sitofp %692 : vector<4x1xi32> to vector<4x1xf32>
    %c1_383 = arith.constant 1 : index
    %c3_384 = arith.constant 3 : index
    %c0_385 = arith.constant 0 : index
    %c0_386 = arith.constant 0 : index
    %c0_387 = arith.constant 0 : index
    %694 = vector.load %arg1[%c1_383, %c3_384, %c0_385, %c0_386, %c0_387] : memref<2x10x3x4x32xf32, #tpu.memory_space<vmem>>, vector<1x1x1x4x32xf32>
    %695 = vector.shape_cast %694 : vector<1x1x1x4x32xf32> to vector<4x32xf32>
    %cst_388 = arith.constant dense<0.000000e+00> : vector<4x32xf32>
    %696 = tpu.matmul %633, %8, %cst_388 {dimension_numbers = #tpu.dot_dimension_numbers<[1], [0], [0], [1], [0, 0, 1, 1], [], []>} : vector<4x32xf32>, vector<32x32xf32>, vector<4x32xf32> -> vector<4x32xf32>
    %697 = arith.addf %695, %696 : vector<4x32xf32>
    %698 = vector.broadcast %20 : vector<1x32xf32> to vector<4x32xf32>
    %699 = arith.addf %697, %698 : vector<4x32xf32>
    %700 = arith.negf %699 : vector<4x32xf32>
    %701 = math.exp %700 : vector<4x32xf32>
    %cst_389 = arith.constant 1.000000e+00 : f32
    %702 = vector.broadcast %cst_389 : f32 to vector<4x32xf32>
    %703 = arith.addf %702, %701 : vector<4x32xf32>
    %704 = arith.divf %702, %703 : vector<4x32xf32>
    %c1_390 = arith.constant 1 : index
    %c3_391 = arith.constant 3 : index
    %c1_392 = arith.constant 1 : index
    %c0_393 = arith.constant 0 : index
    %c0_394 = arith.constant 0 : index
    %705 = vector.load %arg1[%c1_390, %c3_391, %c1_392, %c0_393, %c0_394] : memref<2x10x3x4x32xf32, #tpu.memory_space<vmem>>, vector<1x1x1x4x32xf32>
    %706 = vector.shape_cast %705 : vector<1x1x1x4x32xf32> to vector<4x32xf32>
    %cst_395 = arith.constant dense<0.000000e+00> : vector<4x32xf32>
    %707 = tpu.matmul %633, %10, %cst_395 {dimension_numbers = #tpu.dot_dimension_numbers<[1], [0], [0], [1], [0, 0, 1, 1], [], []>} : vector<4x32xf32>, vector<32x32xf32>, vector<4x32xf32> -> vector<4x32xf32>
    %708 = arith.addf %706, %707 : vector<4x32xf32>
    %709 = vector.broadcast %22 : vector<1x32xf32> to vector<4x32xf32>
    %710 = arith.addf %708, %709 : vector<4x32xf32>
    %711 = arith.negf %710 : vector<4x32xf32>
    %712 = math.exp %711 : vector<4x32xf32>
    %cst_396 = arith.constant 1.000000e+00 : f32
    %713 = vector.broadcast %cst_396 : f32 to vector<4x32xf32>
    %714 = arith.addf %713, %712 : vector<4x32xf32>
    %715 = arith.divf %713, %714 : vector<4x32xf32>
    %c1_397 = arith.constant 1 : index
    %c3_398 = arith.constant 3 : index
    %c2_399 = arith.constant 2 : index
    %c0_400 = arith.constant 0 : index
    %c0_401 = arith.constant 0 : index
    %716 = vector.load %arg1[%c1_397, %c3_398, %c2_399, %c0_400, %c0_401] : memref<2x10x3x4x32xf32, #tpu.memory_space<vmem>>, vector<1x1x1x4x32xf32>
    %717 = vector.shape_cast %716 : vector<1x1x1x4x32xf32> to vector<4x32xf32>
    %cst_402 = arith.constant dense<0.000000e+00> : vector<4x32xf32>
    %718 = tpu.matmul %633, %12, %cst_402 {dimension_numbers = #tpu.dot_dimension_numbers<[1], [0], [0], [1], [0, 0, 1, 1], [], []>} : vector<4x32xf32>, vector<32x32xf32>, vector<4x32xf32> -> vector<4x32xf32>
    %719 = vector.broadcast %24 : vector<1x32xf32> to vector<4x32xf32>
    %720 = arith.addf %718, %719 : vector<4x32xf32>
    %721 = arith.mulf %704, %720 : vector<4x32xf32>
    %722 = arith.addf %717, %721 : vector<4x32xf32>
    %723 = math.tanh %722 : vector<4x32xf32>
    %cst_403 = arith.constant 1.000000e+00 : f32
    %724 = vector.broadcast %cst_403 : f32 to vector<4x32xf32>
    %725 = arith.subf %724, %715 : vector<4x32xf32>
    %726 = arith.mulf %725, %723 : vector<4x32xf32>
    %727 = arith.mulf %715, %633 : vector<4x32xf32>
    %728 = arith.addf %726, %727 : vector<4x32xf32>
    %729 = vector.broadcast %693 : vector<4x1xf32> to vector<4x32xf32>
    %730 = arith.mulf %729, %728 : vector<4x32xf32>
    %cst_404 = arith.constant 1.000000e+00 : f32
    %731 = vector.broadcast %cst_404 : f32 to vector<4x1xf32>
    %732 = arith.subf %731, %693 : vector<4x1xf32>
    %733 = vector.broadcast %732 : vector<4x1xf32> to vector<4x32xf32>
    %734 = arith.mulf %733, %633 : vector<4x32xf32>
    %735 = arith.addf %730, %734 : vector<4x32xf32>
    %736 = vector.broadcast %693 : vector<4x1xf32> to vector<4x32xf32>
    %737 = arith.mulf %736, %735 : vector<4x32xf32>
    %c1_405 = arith.constant 1 : index
    %c3_406 = arith.constant 3 : index
    %c0_407 = arith.constant 0 : index
    %c0_408 = arith.constant 0 : index
    %738 = vector.load %arg5[%c1_405, %c3_406, %c0_407, %c0_408] : memref<2x10x4x32xf32, #tpu.memory_space<vmem>>, vector<1x1x4x32xf32>
    %739 = vector.shape_cast %738 : vector<1x1x4x32xf32> to vector<4x32xf32>
    %740 = vector.shape_cast %737 : vector<4x32xf32> to vector<1x1x4x32xf32>
    tpu.vector_store %arg5[%c1_405, %c3_406, %c0_407, %c0_408], %740 {strides = array<i32>} : memref<2x10x4x32xf32, #tpu.memory_space<vmem>>, vector<1x1x4x32xf32>,
    %c7_i32_409 = arith.constant 7 : i32
    %741 = vector.broadcast %c7_i32_409 : i32 to vector<4x1xi32>
    %742 = arith.cmpi sgt, %0, %741 : vector<4x1xi32>
    %743 = arith.extui %742 : vector<4x1xi1> to vector<4x1xi32>
    %744 = arith.sitofp %743 : vector<4x1xi32> to vector<4x1xf32>
    %c0_410 = arith.constant 0 : index
    %c7_411 = arith.constant 7 : index
    %c0_412 = arith.constant 0 : index
    %c0_413 = arith.constant 0 : index
    %c0_414 = arith.constant 0 : index
    %745 = vector.load %arg1[%c0_410, %c7_411, %c0_412, %c0_413, %c0_414] : memref<2x10x3x4x32xf32, #tpu.memory_space<vmem>>, vector<1x1x1x4x32xf32>
    %746 = vector.shape_cast %745 : vector<1x1x1x4x32xf32> to vector<4x32xf32>
    %cst_415 = arith.constant dense<0.000000e+00> : vector<4x32xf32>
    %747 = tpu.matmul %684, %2, %cst_415 {dimension_numbers = #tpu.dot_dimension_numbers<[1], [0], [0], [1], [0, 0, 1, 1], [], []>} : vector<4x32xf32>, vector<32x32xf32>, vector<4x32xf32> -> vector<4x32xf32>
    %748 = arith.addf %746, %747 : vector<4x32xf32>
    %749 = vector.broadcast %14 : vector<1x32xf32> to vector<4x32xf32>
    %750 = arith.addf %748, %749 : vector<4x32xf32>
    %751 = arith.negf %750 : vector<4x32xf32>
    %752 = math.exp %751 : vector<4x32xf32>
    %cst_416 = arith.constant 1.000000e+00 : f32
    %753 = vector.broadcast %cst_416 : f32 to vector<4x32xf32>
    %754 = arith.addf %753, %752 : vector<4x32xf32>
    %755 = arith.divf %753, %754 : vector<4x32xf32>
    %c0_417 = arith.constant 0 : index
    %c7_418 = arith.constant 7 : index
    %c1_419 = arith.constant 1 : index
    %c0_420 = arith.constant 0 : index
    %c0_421 = arith.constant 0 : index
    %756 = vector.load %arg1[%c0_417, %c7_418, %c1_419, %c0_420, %c0_421] : memref<2x10x3x4x32xf32, #tpu.memory_space<vmem>>, vector<1x1x1x4x32xf32>
    %757 = vector.shape_cast %756 : vector<1x1x1x4x32xf32> to vector<4x32xf32>
    %cst_422 = arith.constant dense<0.000000e+00> : vector<4x32xf32>
    %758 = tpu.matmul %684, %4, %cst_422 {dimension_numbers = #tpu.dot_dimension_numbers<[1], [0], [0], [1], [0, 0, 1, 1], [], []>} : vector<4x32xf32>, vector<32x32xf32>, vector<4x32xf32> -> vector<4x32xf32>
    %759 = arith.addf %757, %758 : vector<4x32xf32>
    %760 = vector.broadcast %16 : vector<1x32xf32> to vector<4x32xf32>
    %761 = arith.addf %759, %760 : vector<4x32xf32>
    %762 = arith.negf %761 : vector<4x32xf32>
    %763 = math.exp %762 : vector<4x32xf32>
    %cst_423 = arith.constant 1.000000e+00 : f32
    %764 = vector.broadcast %cst_423 : f32 to vector<4x32xf32>
    %765 = arith.addf %764, %763 : vector<4x32xf32>
    %766 = arith.divf %764, %765 : vector<4x32xf32>
    %c0_424 = arith.constant 0 : index
    %c7_425 = arith.constant 7 : index
    %c2_426 = arith.constant 2 : index
    %c0_427 = arith.constant 0 : index
    %c0_428 = arith.constant 0 : index
    %767 = vector.load %arg1[%c0_424, %c7_425, %c2_426, %c0_427, %c0_428] : memref<2x10x3x4x32xf32, #tpu.memory_space<vmem>>, vector<1x1x1x4x32xf32>
    %768 = vector.shape_cast %767 : vector<1x1x1x4x32xf32> to vector<4x32xf32>
    %cst_429 = arith.constant dense<0.000000e+00> : vector<4x32xf32>
    %769 = tpu.matmul %684, %6, %cst_429 {dimension_numbers = #tpu.dot_dimension_numbers<[1], [0], [0], [1], [0, 0, 1, 1], [], []>} : vector<4x32xf32>, vector<32x32xf32>, vector<4x32xf32> -> vector<4x32xf32>
    %770 = vector.broadcast %18 : vector<1x32xf32> to vector<4x32xf32>
    %771 = arith.addf %769, %770 : vector<4x32xf32>
    %772 = arith.mulf %755, %771 : vector<4x32xf32>
    %773 = arith.addf %768, %772 : vector<4x32xf32>
    %774 = math.tanh %773 : vector<4x32xf32>
    %cst_430 = arith.constant 1.000000e+00 : f32
    %775 = vector.broadcast %cst_430 : f32 to vector<4x32xf32>
    %776 = arith.subf %775, %766 : vector<4x32xf32>
    %777 = arith.mulf %776, %774 : vector<4x32xf32>
    %778 = arith.mulf %766, %684 : vector<4x32xf32>
    %779 = arith.addf %777, %778 : vector<4x32xf32>
    %780 = vector.broadcast %744 : vector<4x1xf32> to vector<4x32xf32>
    %781 = arith.mulf %780, %779 : vector<4x32xf32>
    %cst_431 = arith.constant 1.000000e+00 : f32
    %782 = vector.broadcast %cst_431 : f32 to vector<4x1xf32>
    %783 = arith.subf %782, %744 : vector<4x1xf32>
    %784 = vector.broadcast %783 : vector<4x1xf32> to vector<4x32xf32>
    %785 = arith.mulf %784, %684 : vector<4x32xf32>
    %786 = arith.addf %781, %785 : vector<4x32xf32>
    %787 = vector.broadcast %744 : vector<4x1xf32> to vector<4x32xf32>
    %788 = arith.mulf %787, %786 : vector<4x32xf32>
    %c0_432 = arith.constant 0 : index
    %c7_433 = arith.constant 7 : index
    %c0_434 = arith.constant 0 : index
    %c0_435 = arith.constant 0 : index
    %789 = vector.load %arg5[%c0_432, %c7_433, %c0_434, %c0_435] : memref<2x10x4x32xf32, #tpu.memory_space<vmem>>, vector<1x1x4x32xf32>
    %790 = vector.shape_cast %789 : vector<1x1x4x32xf32> to vector<4x32xf32>
    %791 = vector.shape_cast %788 : vector<4x32xf32> to vector<1x1x4x32xf32>
    tpu.vector_store %arg5[%c0_432, %c7_433, %c0_434, %c0_435], %791 {strides = array<i32>} : memref<2x10x4x32xf32, #tpu.memory_space<vmem>>, vector<1x1x4x32xf32>,
    %c2_i32_436 = arith.constant 2 : i32
    %792 = vector.broadcast %c2_i32_436 : i32 to vector<4x1xi32>
    %793 = arith.cmpi sgt, %0, %792 : vector<4x1xi32>
    %794 = arith.extui %793 : vector<4x1xi1> to vector<4x1xi32>
    %795 = arith.sitofp %794 : vector<4x1xi32> to vector<4x1xf32>
    %c1_437 = arith.constant 1 : index
    %c2_438 = arith.constant 2 : index
    %c0_439 = arith.constant 0 : index
    %c0_440 = arith.constant 0 : index
    %c0_441 = arith.constant 0 : index
    %796 = vector.load %arg1[%c1_437, %c2_438, %c0_439, %c0_440, %c0_441] : memref<2x10x3x4x32xf32, #tpu.memory_space<vmem>>, vector<1x1x1x4x32xf32>
    %797 = vector.shape_cast %796 : vector<1x1x1x4x32xf32> to vector<4x32xf32>
    %cst_442 = arith.constant dense<0.000000e+00> : vector<4x32xf32>
    %798 = tpu.matmul %735, %8, %cst_442 {dimension_numbers = #tpu.dot_dimension_numbers<[1], [0], [0], [1], [0, 0, 1, 1], [], []>} : vector<4x32xf32>, vector<32x32xf32>, vector<4x32xf32> -> vector<4x32xf32>
    %799 = arith.addf %797, %798 : vector<4x32xf32>
    %800 = vector.broadcast %20 : vector<1x32xf32> to vector<4x32xf32>
    %801 = arith.addf %799, %800 : vector<4x32xf32>
    %802 = arith.negf %801 : vector<4x32xf32>
    %803 = math.exp %802 : vector<4x32xf32>
    %cst_443 = arith.constant 1.000000e+00 : f32
    %804 = vector.broadcast %cst_443 : f32 to vector<4x32xf32>
    %805 = arith.addf %804, %803 : vector<4x32xf32>
    %806 = arith.divf %804, %805 : vector<4x32xf32>
    %c1_444 = arith.constant 1 : index
    %c2_445 = arith.constant 2 : index
    %c1_446 = arith.constant 1 : index
    %c0_447 = arith.constant 0 : index
    %c0_448 = arith.constant 0 : index
    %807 = vector.load %arg1[%c1_444, %c2_445, %c1_446, %c0_447, %c0_448] : memref<2x10x3x4x32xf32, #tpu.memory_space<vmem>>, vector<1x1x1x4x32xf32>
    %808 = vector.shape_cast %807 : vector<1x1x1x4x32xf32> to vector<4x32xf32>
    %cst_449 = arith.constant dense<0.000000e+00> : vector<4x32xf32>
    %809 = tpu.matmul %735, %10, %cst_449 {dimension_numbers = #tpu.dot_dimension_numbers<[1], [0], [0], [1], [0, 0, 1, 1], [], []>} : vector<4x32xf32>, vector<32x32xf32>, vector<4x32xf32> -> vector<4x32xf32>
    %810 = arith.addf %808, %809 : vector<4x32xf32>
    %811 = vector.broadcast %22 : vector<1x32xf32> to vector<4x32xf32>
    %812 = arith.addf %810, %811 : vector<4x32xf32>
    %813 = arith.negf %812 : vector<4x32xf32>
    %814 = math.exp %813 : vector<4x32xf32>
    %cst_450 = arith.constant 1.000000e+00 : f32
    %815 = vector.broadcast %cst_450 : f32 to vector<4x32xf32>
    %816 = arith.addf %815, %814 : vector<4x32xf32>
    %817 = arith.divf %815, %816 : vector<4x32xf32>
    %c1_451 = arith.constant 1 : index
    %c2_452 = arith.constant 2 : index
    %c2_453 = arith.constant 2 : index
    %c0_454 = arith.constant 0 : index
    %c0_455 = arith.constant 0 : index
    %818 = vector.load %arg1[%c1_451, %c2_452, %c2_453, %c0_454, %c0_455] : memref<2x10x3x4x32xf32, #tpu.memory_space<vmem>>, vector<1x1x1x4x32xf32>
    %819 = vector.shape_cast %818 : vector<1x1x1x4x32xf32> to vector<4x32xf32>
    %cst_456 = arith.constant dense<0.000000e+00> : vector<4x32xf32>
    %820 = tpu.matmul %735, %12, %cst_456 {dimension_numbers = #tpu.dot_dimension_numbers<[1], [0], [0], [1], [0, 0, 1, 1], [], []>} : vector<4x32xf32>, vector<32x32xf32>, vector<4x32xf32> -> vector<4x32xf32>
    %821 = vector.broadcast %24 : vector<1x32xf32> to vector<4x32xf32>
    %822 = arith.addf %820, %821 : vector<4x32xf32>
    %823 = arith.mulf %806, %822 : vector<4x32xf32>
    %824 = arith.addf %819, %823 : vector<4x32xf32>
    %825 = math.tanh %824 : vector<4x32xf32>
    %cst_457 = arith.constant 1.000000e+00 : f32
    %826 = vector.broadcast %cst_457 : f32 to vector<4x32xf32>
    %827 = arith.subf %826, %817 : vector<4x32xf32>
    %828 = arith.mulf %827, %825 : vector<4x32xf32>
    %829 = arith.mulf %817, %735 : vector<4x32xf32>
    %830 = arith.addf %828, %829 : vector<4x32xf32>
    %831 = vector.broadcast %795 : vector<4x1xf32> to vector<4x32xf32>
    %832 = arith.mulf %831, %830 : vector<4x32xf32>
    %cst_458 = arith.constant 1.000000e+00 : f32
    %833 = vector.broadcast %cst_458 : f32 to vector<4x1xf32>
    %834 = arith.subf %833, %795 : vector<4x1xf32>
    %835 = vector.broadcast %834 : vector<4x1xf32> to vector<4x32xf32>
    %836 = arith.mulf %835, %735 : vector<4x32xf32>
    %837 = arith.addf %832, %836 : vector<4x32xf32>
    %838 = vector.broadcast %795 : vector<4x1xf32> to vector<4x32xf32>
    %839 = arith.mulf %838, %837 : vector<4x32xf32>
    %c1_459 = arith.constant 1 : index
    %c2_460 = arith.constant 2 : index
    %c0_461 = arith.constant 0 : index
    %c0_462 = arith.constant 0 : index
    %840 = vector.load %arg5[%c1_459, %c2_460, %c0_461, %c0_462] : memref<2x10x4x32xf32, #tpu.memory_space<vmem>>, vector<1x1x4x32xf32>
    %841 = vector.shape_cast %840 : vector<1x1x4x32xf32> to vector<4x32xf32>
    %842 = vector.shape_cast %839 : vector<4x32xf32> to vector<1x1x4x32xf32>
    tpu.vector_store %arg5[%c1_459, %c2_460, %c0_461, %c0_462], %842 {strides = array<i32>} : memref<2x10x4x32xf32, #tpu.memory_space<vmem>>, vector<1x1x4x32xf32>,
    %c8_i32_463 = arith.constant 8 : i32
    %843 = vector.broadcast %c8_i32_463 : i32 to vector<4x1xi32>
    %844 = arith.cmpi sgt, %0, %843 : vector<4x1xi32>
    %845 = arith.extui %844 : vector<4x1xi1> to vector<4x1xi32>
    %846 = arith.sitofp %845 : vector<4x1xi32> to vector<4x1xf32>
    %c0_464 = arith.constant 0 : index
    %c8_465 = arith.constant 8 : index
    %c0_466 = arith.constant 0 : index
    %c0_467 = arith.constant 0 : index
    %c0_468 = arith.constant 0 : index
    %847 = vector.load %arg1[%c0_464, %c8_465, %c0_466, %c0_467, %c0_468] : memref<2x10x3x4x32xf32, #tpu.memory_space<vmem>>, vector<1x1x1x4x32xf32>
    %848 = vector.shape_cast %847 : vector<1x1x1x4x32xf32> to vector<4x32xf32>
    %cst_469 = arith.constant dense<0.000000e+00> : vector<4x32xf32>
    %849 = tpu.matmul %786, %2, %cst_469 {dimension_numbers = #tpu.dot_dimension_numbers<[1], [0], [0], [1], [0, 0, 1, 1], [], []>} : vector<4x32xf32>, vector<32x32xf32>, vector<4x32xf32> -> vector<4x32xf32>
    %850 = arith.addf %848, %849 : vector<4x32xf32>
    %851 = vector.broadcast %14 : vector<1x32xf32> to vector<4x32xf32>
    %852 = arith.addf %850, %851 : vector<4x32xf32>
    %853 = arith.negf %852 : vector<4x32xf32>
    %854 = math.exp %853 : vector<4x32xf32>
    %cst_470 = arith.constant 1.000000e+00 : f32
    %855 = vector.broadcast %cst_470 : f32 to vector<4x32xf32>
    %856 = arith.addf %855, %854 : vector<4x32xf32>
    %857 = arith.divf %855, %856 : vector<4x32xf32>
    %c0_471 = arith.constant 0 : index
    %c8_472 = arith.constant 8 : index
    %c1_473 = arith.constant 1 : index
    %c0_474 = arith.constant 0 : index
    %c0_475 = arith.constant 0 : index
    %858 = vector.load %arg1[%c0_471, %c8_472, %c1_473, %c0_474, %c0_475] : memref<2x10x3x4x32xf32, #tpu.memory_space<vmem>>, vector<1x1x1x4x32xf32>
    %859 = vector.shape_cast %858 : vector<1x1x1x4x32xf32> to vector<4x32xf32>
    %cst_476 = arith.constant dense<0.000000e+00> : vector<4x32xf32>
    %860 = tpu.matmul %786, %4, %cst_476 {dimension_numbers = #tpu.dot_dimension_numbers<[1], [0], [0], [1], [0, 0, 1, 1], [], []>} : vector<4x32xf32>, vector<32x32xf32>, vector<4x32xf32> -> vector<4x32xf32>
    %861 = arith.addf %859, %860 : vector<4x32xf32>
    %862 = vector.broadcast %16 : vector<1x32xf32> to vector<4x32xf32>
    %863 = arith.addf %861, %862 : vector<4x32xf32>
    %864 = arith.negf %863 : vector<4x32xf32>
    %865 = math.exp %864 : vector<4x32xf32>
    %cst_477 = arith.constant 1.000000e+00 : f32
    %866 = vector.broadcast %cst_477 : f32 to vector<4x32xf32>
    %867 = arith.addf %866, %865 : vector<4x32xf32>
    %868 = arith.divf %866, %867 : vector<4x32xf32>
    %c0_478 = arith.constant 0 : index
    %c8_479 = arith.constant 8 : index
    %c2_480 = arith.constant 2 : index
    %c0_481 = arith.constant 0 : index
    %c0_482 = arith.constant 0 : index
    %869 = vector.load %arg1[%c0_478, %c8_479, %c2_480, %c0_481, %c0_482] : memref<2x10x3x4x32xf32, #tpu.memory_space<vmem>>, vector<1x1x1x4x32xf32>
    %870 = vector.shape_cast %869 : vector<1x1x1x4x32xf32> to vector<4x32xf32>
    %cst_483 = arith.constant dense<0.000000e+00> : vector<4x32xf32>
    %871 = tpu.matmul %786, %6, %cst_483 {dimension_numbers = #tpu.dot_dimension_numbers<[1], [0], [0], [1], [0, 0, 1, 1], [], []>} : vector<4x32xf32>, vector<32x32xf32>, vector<4x32xf32> -> vector<4x32xf32>
    %872 = vector.broadcast %18 : vector<1x32xf32> to vector<4x32xf32>
    %873 = arith.addf %871, %872 : vector<4x32xf32>
    %874 = arith.mulf %857, %873 : vector<4x32xf32>
    %875 = arith.addf %870, %874 : vector<4x32xf32>
    %876 = math.tanh %875 : vector<4x32xf32>
    %cst_484 = arith.constant 1.000000e+00 : f32
    %877 = vector.broadcast %cst_484 : f32 to vector<4x32xf32>
    %878 = arith.subf %877, %868 : vector<4x32xf32>
    %879 = arith.mulf %878, %876 : vector<4x32xf32>
    %880 = arith.mulf %868, %786 : vector<4x32xf32>
    %881 = arith.addf %879, %880 : vector<4x32xf32>
    %882 = vector.broadcast %846 : vector<4x1xf32> to vector<4x32xf32>
    %883 = arith.mulf %882, %881 : vector<4x32xf32>
    %cst_485 = arith.constant 1.000000e+00 : f32
    %884 = vector.broadcast %cst_485 : f32 to vector<4x1xf32>
    %885 = arith.subf %884, %846 : vector<4x1xf32>
    %886 = vector.broadcast %885 : vector<4x1xf32> to vector<4x32xf32>
    %887 = arith.mulf %886, %786 : vector<4x32xf32>
    %888 = arith.addf %883, %887 : vector<4x32xf32>
    %889 = vector.broadcast %846 : vector<4x1xf32> to vector<4x32xf32>
    %890 = arith.mulf %889, %888 : vector<4x32xf32>
    %c0_486 = arith.constant 0 : index
    %c8_487 = arith.constant 8 : index
    %c0_488 = arith.constant 0 : index
    %c0_489 = arith.constant 0 : index
    %891 = vector.load %arg5[%c0_486, %c8_487, %c0_488, %c0_489] : memref<2x10x4x32xf32, #tpu.memory_space<vmem>>, vector<1x1x4x32xf32>
    %892 = vector.shape_cast %891 : vector<1x1x4x32xf32> to vector<4x32xf32>
    %893 = vector.shape_cast %890 : vector<4x32xf32> to vector<1x1x4x32xf32>
    tpu.vector_store %arg5[%c0_486, %c8_487, %c0_488, %c0_489], %893 {strides = array<i32>} : memref<2x10x4x32xf32, #tpu.memory_space<vmem>>, vector<1x1x4x32xf32>,
    %c1_i32_490 = arith.constant 1 : i32
    %894 = vector.broadcast %c1_i32_490 : i32 to vector<4x1xi32>
    %895 = arith.cmpi sgt, %0, %894 : vector<4x1xi32>
    %896 = arith.extui %895 : vector<4x1xi1> to vector<4x1xi32>
    %897 = arith.sitofp %896 : vector<4x1xi32> to vector<4x1xf32>
    %c1_491 = arith.constant 1 : index
    %c1_492 = arith.constant 1 : index
    %c0_493 = arith.constant 0 : index
    %c0_494 = arith.constant 0 : index
    %c0_495 = arith.constant 0 : index
    %898 = vector.load %arg1[%c1_491, %c1_492, %c0_493, %c0_494, %c0_495] : memref<2x10x3x4x32xf32, #tpu.memory_space<vmem>>, vector<1x1x1x4x32xf32>
    %899 = vector.shape_cast %898 : vector<1x1x1x4x32xf32> to vector<4x32xf32>
    %cst_496 = arith.constant dense<0.000000e+00> : vector<4x32xf32>
    %900 = tpu.matmul %837, %8, %cst_496 {dimension_numbers = #tpu.dot_dimension_numbers<[1], [0], [0], [1], [0, 0, 1, 1], [], []>} : vector<4x32xf32>, vector<32x32xf32>, vector<4x32xf32> -> vector<4x32xf32>
    %901 = arith.addf %899, %900 : vector<4x32xf32>
    %902 = vector.broadcast %20 : vector<1x32xf32> to vector<4x32xf32>
    %903 = arith.addf %901, %902 : vector<4x32xf32>
    %904 = arith.negf %903 : vector<4x32xf32>
    %905 = math.exp %904 : vector<4x32xf32>
    %cst_497 = arith.constant 1.000000e+00 : f32
    %906 = vector.broadcast %cst_497 : f32 to vector<4x32xf32>
    %907 = arith.addf %906, %905 : vector<4x32xf32>
    %908 = arith.divf %906, %907 : vector<4x32xf32>
    %c1_498 = arith.constant 1 : index
    %c1_499 = arith.constant 1 : index
    %c1_500 = arith.constant 1 : index
    %c0_501 = arith.constant 0 : index
    %c0_502 = arith.constant 0 : index
    %909 = vector.load %arg1[%c1_498, %c1_499, %c1_500, %c0_501, %c0_502] : memref<2x10x3x4x32xf32, #tpu.memory_space<vmem>>, vector<1x1x1x4x32xf32>
    %910 = vector.shape_cast %909 : vector<1x1x1x4x32xf32> to vector<4x32xf32>
    %cst_503 = arith.constant dense<0.000000e+00> : vector<4x32xf32>
    %911 = tpu.matmul %837, %10, %cst_503 {dimension_numbers = #tpu.dot_dimension_numbers<[1], [0], [0], [1], [0, 0, 1, 1], [], []>} : vector<4x32xf32>, vector<32x32xf32>, vector<4x32xf32> -> vector<4x32xf32>
    %912 = arith.addf %910, %911 : vector<4x32xf32>
    %913 = vector.broadcast %22 : vector<1x32xf32> to vector<4x32xf32>
    %914 = arith.addf %912, %913 : vector<4x32xf32>
    %915 = arith.negf %914 : vector<4x32xf32>
    %916 = math.exp %915 : vector<4x32xf32>
    %cst_504 = arith.constant 1.000000e+00 : f32
    %917 = vector.broadcast %cst_504 : f32 to vector<4x32xf32>
    %918 = arith.addf %917, %916 : vector<4x32xf32>
    %919 = arith.divf %917, %918 : vector<4x32xf32>
    %c1_505 = arith.constant 1 : index
    %c1_506 = arith.constant 1 : index
    %c2_507 = arith.constant 2 : index
    %c0_508 = arith.constant 0 : index
    %c0_509 = arith.constant 0 : index
    %920 = vector.load %arg1[%c1_505, %c1_506, %c2_507, %c0_508, %c0_509] : memref<2x10x3x4x32xf32, #tpu.memory_space<vmem>>, vector<1x1x1x4x32xf32>
    %921 = vector.shape_cast %920 : vector<1x1x1x4x32xf32> to vector<4x32xf32>
    %cst_510 = arith.constant dense<0.000000e+00> : vector<4x32xf32>
    %922 = tpu.matmul %837, %12, %cst_510 {dimension_numbers = #tpu.dot_dimension_numbers<[1], [0], [0], [1], [0, 0, 1, 1], [], []>} : vector<4x32xf32>, vector<32x32xf32>, vector<4x32xf32> -> vector<4x32xf32>
    %923 = vector.broadcast %24 : vector<1x32xf32> to vector<4x32xf32>
    %924 = arith.addf %922, %923 : vector<4x32xf32>
    %925 = arith.mulf %908, %924 : vector<4x32xf32>
    %926 = arith.addf %921, %925 : vector<4x32xf32>
    %927 = math.tanh %926 : vector<4x32xf32>
    %cst_511 = arith.constant 1.000000e+00 : f32
    %928 = vector.broadcast %cst_511 : f32 to vector<4x32xf32>
    %929 = arith.subf %928, %919 : vector<4x32xf32>
    %930 = arith.mulf %929, %927 : vector<4x32xf32>
    %931 = arith.mulf %919, %837 : vector<4x32xf32>
    %932 = arith.addf %930, %931 : vector<4x32xf32>
    %933 = vector.broadcast %897 : vector<4x1xf32> to vector<4x32xf32>
    %934 = arith.mulf %933, %932 : vector<4x32xf32>
    %cst_512 = arith.constant 1.000000e+00 : f32
    %935 = vector.broadcast %cst_512 : f32 to vector<4x1xf32>
    %936 = arith.subf %935, %897 : vector<4x1xf32>
    %937 = vector.broadcast %936 : vector<4x1xf32> to vector<4x32xf32>
    %938 = arith.mulf %937, %837 : vector<4x32xf32>
    %939 = arith.addf %934, %938 : vector<4x32xf32>
    %940 = vector.broadcast %897 : vector<4x1xf32> to vector<4x32xf32>
    %941 = arith.mulf %940, %939 : vector<4x32xf32>
    %c1_513 = arith.constant 1 : index
    %c1_514 = arith.constant 1 : index
    %c0_515 = arith.constant 0 : index
    %c0_516 = arith.constant 0 : index
    %942 = vector.load %arg5[%c1_513, %c1_514, %c0_515, %c0_516] : memref<2x10x4x32xf32, #tpu.memory_space<vmem>>, vector<1x1x4x32xf32>
    %943 = vector.shape_cast %942 : vector<1x1x4x32xf32> to vector<4x32xf32>
    %944 = vector.shape_cast %941 : vector<4x32xf32> to vector<1x1x4x32xf32>
    tpu.vector_store %arg5[%c1_513, %c1_514, %c0_515, %c0_516], %944 {strides = array<i32>} : memref<2x10x4x32xf32, #tpu.memory_space<vmem>>, vector<1x1x4x32xf32>,
    %c9_i32_517 = arith.constant 9 : i32
    %945 = vector.broadcast %c9_i32_517 : i32 to vector<4x1xi32>
    %946 = arith.cmpi sgt, %0, %945 : vector<4x1xi32>
    %947 = arith.extui %946 : vector<4x1xi1> to vector<4x1xi32>
    %948 = arith.sitofp %947 : vector<4x1xi32> to vector<4x1xf32>
    %c0_518 = arith.constant 0 : index
    %c9_519 = arith.constant 9 : index
    %c0_520 = arith.constant 0 : index
    %c0_521 = arith.constant 0 : index
    %c0_522 = arith.constant 0 : index
    %949 = vector.load %arg1[%c0_518, %c9_519, %c0_520, %c0_521, %c0_522] : memref<2x10x3x4x32xf32, #tpu.memory_space<vmem>>, vector<1x1x1x4x32xf32>
    %950 = vector.shape_cast %949 : vector<1x1x1x4x32xf32> to vector<4x32xf32>
    %cst_523 = arith.constant dense<0.000000e+00> : vector<4x32xf32>
    %951 = tpu.matmul %888, %2, %cst_523 {dimension_numbers = #tpu.dot_dimension_numbers<[1], [0], [0], [1], [0, 0, 1, 1], [], []>} : vector<4x32xf32>, vector<32x32xf32>, vector<4x32xf32> -> vector<4x32xf32>
    %952 = arith.addf %950, %951 : vector<4x32xf32>
    %953 = vector.broadcast %14 : vector<1x32xf32> to vector<4x32xf32>
    %954 = arith.addf %952, %953 : vector<4x32xf32>
    %955 = arith.negf %954 : vector<4x32xf32>
    %956 = math.exp %955 : vector<4x32xf32>
    %cst_524 = arith.constant 1.000000e+00 : f32
    %957 = vector.broadcast %cst_524 : f32 to vector<4x32xf32>
    %958 = arith.addf %957, %956 : vector<4x32xf32>
    %959 = arith.divf %957, %958 : vector<4x32xf32>
    %c0_525 = arith.constant 0 : index
    %c9_526 = arith.constant 9 : index
    %c1_527 = arith.constant 1 : index
    %c0_528 = arith.constant 0 : index
    %c0_529 = arith.constant 0 : index
    %960 = vector.load %arg1[%c0_525, %c9_526, %c1_527, %c0_528, %c0_529] : memref<2x10x3x4x32xf32, #tpu.memory_space<vmem>>, vector<1x1x1x4x32xf32>
    %961 = vector.shape_cast %960 : vector<1x1x1x4x32xf32> to vector<4x32xf32>
    %cst_530 = arith.constant dense<0.000000e+00> : vector<4x32xf32>
    %962 = tpu.matmul %888, %4, %cst_530 {dimension_numbers = #tpu.dot_dimension_numbers<[1], [0], [0], [1], [0, 0, 1, 1], [], []>} : vector<4x32xf32>, vector<32x32xf32>, vector<4x32xf32> -> vector<4x32xf32>
    %963 = arith.addf %961, %962 : vector<4x32xf32>
    %964 = vector.broadcast %16 : vector<1x32xf32> to vector<4x32xf32>
    %965 = arith.addf %963, %964 : vector<4x32xf32>
    %966 = arith.negf %965 : vector<4x32xf32>
    %967 = math.exp %966 : vector<4x32xf32>
    %cst_531 = arith.constant 1.000000e+00 : f32
    %968 = vector.broadcast %cst_531 : f32 to vector<4x32xf32>
    %969 = arith.addf %968, %967 : vector<4x32xf32>
    %970 = arith.divf %968, %969 : vector<4x32xf32>
    %c0_532 = arith.constant 0 : index
    %c9_533 = arith.constant 9 : index
    %c2_534 = arith.constant 2 : index
    %c0_535 = arith.constant 0 : index
    %c0_536 = arith.constant 0 : index
    %971 = vector.load %arg1[%c0_532, %c9_533, %c2_534, %c0_535, %c0_536] : memref<2x10x3x4x32xf32, #tpu.memory_space<vmem>>, vector<1x1x1x4x32xf32>
    %972 = vector.shape_cast %971 : vector<1x1x1x4x32xf32> to vector<4x32xf32>
    %cst_537 = arith.constant dense<0.000000e+00> : vector<4x32xf32>
    %973 = tpu.matmul %888, %6, %cst_537 {dimension_numbers = #tpu.dot_dimension_numbers<[1], [0], [0], [1], [0, 0, 1, 1], [], []>} : vector<4x32xf32>, vector<32x32xf32>, vector<4x32xf32> -> vector<4x32xf32>
    %974 = vector.broadcast %18 : vector<1x32xf32> to vector<4x32xf32>
    %975 = arith.addf %973, %974 : vector<4x32xf32>
    %976 = arith.mulf %959, %975 : vector<4x32xf32>
    %977 = arith.addf %972, %976 : vector<4x32xf32>
    %978 = math.tanh %977 : vector<4x32xf32>
    %cst_538 = arith.constant 1.000000e+00 : f32
    %979 = vector.broadcast %cst_538 : f32 to vector<4x32xf32>
    %980 = arith.subf %979, %970 : vector<4x32xf32>
    %981 = arith.mulf %980, %978 : vector<4x32xf32>
    %982 = arith.mulf %970, %888 : vector<4x32xf32>
    %983 = arith.addf %981, %982 : vector<4x32xf32>
    %984 = vector.broadcast %948 : vector<4x1xf32> to vector<4x32xf32>
    %985 = arith.mulf %984, %983 : vector<4x32xf32>
    %cst_539 = arith.constant 1.000000e+00 : f32
    %986 = vector.broadcast %cst_539 : f32 to vector<4x1xf32>
    %987 = arith.subf %986, %948 : vector<4x1xf32>
    %988 = vector.broadcast %987 : vector<4x1xf32> to vector<4x32xf32>
    %989 = arith.mulf %988, %888 : vector<4x32xf32>
    %990 = arith.addf %985, %989 : vector<4x32xf32>
    %991 = vector.broadcast %948 : vector<4x1xf32> to vector<4x32xf32>
    %992 = arith.mulf %991, %990 : vector<4x32xf32>
    %c0_540 = arith.constant 0 : index
    %c9_541 = arith.constant 9 : index
    %c0_542 = arith.constant 0 : index
    %c0_543 = arith.constant 0 : index
    %993 = vector.load %arg5[%c0_540, %c9_541, %c0_542, %c0_543] : memref<2x10x4x32xf32, #tpu.memory_space<vmem>>, vector<1x1x4x32xf32>
    %994 = vector.shape_cast %993 : vector<1x1x4x32xf32> to vector<4x32xf32>
    %995 = vector.shape_cast %992 : vector<4x32xf32> to vector<1x1x4x32xf32>
    tpu.vector_store %arg5[%c0_540, %c9_541, %c0_542, %c0_543], %995 {strides = array<i32>} : memref<2x10x4x32xf32, #tpu.memory_space<vmem>>, vector<1x1x4x32xf32>,
    %c0_i32_544 = arith.constant 0 : i32
    %996 = vector.broadcast %c0_i32_544 : i32 to vector<4x1xi32>
    %997 = arith.cmpi sgt, %0, %996 : vector<4x1xi32>
    %998 = arith.extui %997 : vector<4x1xi1> to vector<4x1xi32>
    %999 = arith.sitofp %998 : vector<4x1xi32> to vector<4x1xf32>
    %c1_545 = arith.constant 1 : index
    %c0_546 = arith.constant 0 : index
    %c0_547 = arith.constant 0 : index
    %c0_548 = arith.constant 0 : index
    %c0_549 = arith.constant 0 : index
    %1000 = vector.load %arg1[%c1_545, %c0_546, %c0_547, %c0_548, %c0_549] : memref<2x10x3x4x32xf32, #tpu.memory_space<vmem>>, vector<1x1x1x4x32xf32>
    %1001 = vector.shape_cast %1000 : vector<1x1x1x4x32xf32> to vector<4x32xf32>
    %cst_550 = arith.constant dense<0.000000e+00> : vector<4x32xf32>
    %1002 = tpu.matmul %939, %8, %cst_550 {dimension_numbers = #tpu.dot_dimension_numbers<[1], [0], [0], [1], [0, 0, 1, 1], [], []>} : vector<4x32xf32>, vector<32x32xf32>, vector<4x32xf32> -> vector<4x32xf32>
    %1003 = arith.addf %1001, %1002 : vector<4x32xf32>
    %1004 = vector.broadcast %20 : vector<1x32xf32> to vector<4x32xf32>
    %1005 = arith.addf %1003, %1004 : vector<4x32xf32>
    %1006 = arith.negf %1005 : vector<4x32xf32>
    %1007 = math.exp %1006 : vector<4x32xf32>
    %cst_551 = arith.constant 1.000000e+00 : f32
    %1008 = vector.broadcast %cst_551 : f32 to vector<4x32xf32>
    %1009 = arith.addf %1008, %1007 : vector<4x32xf32>
    %1010 = arith.divf %1008, %1009 : vector<4x32xf32>
    %c1_552 = arith.constant 1 : index
    %c0_553 = arith.constant 0 : index
    %c1_554 = arith.constant 1 : index
    %c0_555 = arith.constant 0 : index
    %c0_556 = arith.constant 0 : index
    %1011 = vector.load %arg1[%c1_552, %c0_553, %c1_554, %c0_555, %c0_556] : memref<2x10x3x4x32xf32, #tpu.memory_space<vmem>>, vector<1x1x1x4x32xf32>
    %1012 = vector.shape_cast %1011 : vector<1x1x1x4x32xf32> to vector<4x32xf32>
    %cst_557 = arith.constant dense<0.000000e+00> : vector<4x32xf32>
    %1013 = tpu.matmul %939, %10, %cst_557 {dimension_numbers = #tpu.dot_dimension_numbers<[1], [0], [0], [1], [0, 0, 1, 1], [], []>} : vector<4x32xf32>, vector<32x32xf32>, vector<4x32xf32> -> vector<4x32xf32>
    %1014 = arith.addf %1012, %1013 : vector<4x32xf32>
    %1015 = vector.broadcast %22 : vector<1x32xf32> to vector<4x32xf32>
    %1016 = arith.addf %1014, %1015 : vector<4x32xf32>
    %1017 = arith.negf %1016 : vector<4x32xf32>
    %1018 = math.exp %1017 : vector<4x32xf32>
    %cst_558 = arith.constant 1.000000e+00 : f32
    %1019 = vector.broadcast %cst_558 : f32 to vector<4x32xf32>
    %1020 = arith.addf %1019, %1018 : vector<4x32xf32>
    %1021 = arith.divf %1019, %1020 : vector<4x32xf32>
    %c1_559 = arith.constant 1 : index
    %c0_560 = arith.constant 0 : index
    %c2_561 = arith.constant 2 : index
    %c0_562 = arith.constant 0 : index
    %c0_563 = arith.constant 0 : index
    %1022 = vector.load %arg1[%c1_559, %c0_560, %c2_561, %c0_562, %c0_563] : memref<2x10x3x4x32xf32, #tpu.memory_space<vmem>>, vector<1x1x1x4x32xf32>
    %1023 = vector.shape_cast %1022 : vector<1x1x1x4x32xf32> to vector<4x32xf32>
    %cst_564 = arith.constant dense<0.000000e+00> : vector<4x32xf32>
    %1024 = tpu.matmul %939, %12, %cst_564 {dimension_numbers = #tpu.dot_dimension_numbers<[1], [0], [0], [1], [0, 0, 1, 1], [], []>} : vector<4x32xf32>, vector<32x32xf32>, vector<4x32xf32> -> vector<4x32xf32>
    %1025 = vector.broadcast %24 : vector<1x32xf32> to vector<4x32xf32>
    %1026 = arith.addf %1024, %1025 : vector<4x32xf32>
    %1027 = arith.mulf %1010, %1026 : vector<4x32xf32>
    %1028 = arith.addf %1023, %1027 : vector<4x32xf32>
    %1029 = math.tanh %1028 : vector<4x32xf32>
    %cst_565 = arith.constant 1.000000e+00 : f32
    %1030 = vector.broadcast %cst_565 : f32 to vector<4x32xf32>
    %1031 = arith.subf %1030, %1021 : vector<4x32xf32>
    %1032 = arith.mulf %1031, %1029 : vector<4x32xf32>
    %1033 = arith.mulf %1021, %939 : vector<4x32xf32>
    %1034 = arith.addf %1032, %1033 : vector<4x32xf32>
    %1035 = vector.broadcast %999 : vector<4x1xf32> to vector<4x32xf32>
    %1036 = arith.mulf %1035, %1034 : vector<4x32xf32>
    %cst_566 = arith.constant 1.000000e+00 : f32
    %1037 = vector.broadcast %cst_566 : f32 to vector<4x1xf32>
    %1038 = arith.subf %1037, %999 : vector<4x1xf32>
    %1039 = vector.broadcast %1038 : vector<4x1xf32> to vector<4x32xf32>
    %1040 = arith.mulf %1039, %939 : vector<4x32xf32>
    %1041 = arith.addf %1036, %1040 : vector<4x32xf32>
    %1042 = vector.broadcast %999 : vector<4x1xf32> to vector<4x32xf32>
    %1043 = arith.mulf %1042, %1041 : vector<4x32xf32>
    %c1_567 = arith.constant 1 : index
    %c0_568 = arith.constant 0 : index
    %c0_569 = arith.constant 0 : index
    %c0_570 = arith.constant 0 : index
    %1044 = vector.load %arg5[%c1_567, %c0_568, %c0_569, %c0_570] : memref<2x10x4x32xf32, #tpu.memory_space<vmem>>, vector<1x1x4x32xf32>
    %1045 = vector.shape_cast %1044 : vector<1x1x4x32xf32> to vector<4x32xf32>
    %1046 = vector.shape_cast %1043 : vector<4x32xf32> to vector<1x1x4x32xf32>
    tpu.vector_store %arg5[%c1_567, %c0_568, %c0_569, %c0_570], %1046 {strides = array<i32>} : memref<2x10x4x32xf32, #tpu.memory_space<vmem>>, vector<1x1x4x32xf32>,
    return
  }
  func.func @transform_0(%arg0: i32) -> (i32, i32, i32, i32, i32) {
    %c0_i32 = arith.constant 0 : i32
    %c0_i32_0 = arith.constant 0 : i32
    %c0_i32_1 = arith.constant 0 : i32
    %c0_i32_2 = arith.constant 0 : i32
    %c0_i32_3 = arith.constant 0 : i32
    %c0_i32_4 = arith.constant 0 : i32
    return %c0_i32, %c0_i32_0, %c0_i32_1, %c0_i32_2, %c0_i32_3 : i32, i32, i32, i32, i32
  }
  func.func @transform_1(%arg0: i32) -> (i32, i32) {
    %c0_i32 = arith.constant 0 : i32
    %c0_i32_0 = arith.constant 0 : i32
    %c0_i32_1 = arith.constant 0 : i32
    return %c0_i32, %c0_i32_0 : i32, i32
  }
  func.func @transform_2(%arg0: i32) -> (i32, i32, i32, i32) {
    %c0_i32 = arith.constant 0 : i32
    %c0_i32_0 = arith.constant 0 : i32
    %c0_i32_1 = arith.constant 0 : i32
    %c0_i32_2 = arith.constant 0 : i32
    %c0_i32_3 = arith.constant 0 : i32
    return %c0_i32, %c0_i32_0, %c0_i32_1, %c0_i32_2 : i32, i32, i32, i32
  }
  func.func @transform_3(%arg0: i32) -> (i32, i32, i32, i32) {
    %c0_i32 = arith.constant 0 : i32
    %c0_i32_0 = arith.constant 0 : i32
    %c0_i32_1 = arith.constant 0 : i32
    %c0_i32_2 = arith.constant 0 : i32
    %c0_i32_3 = arith.constant 0 : i32
    return %c0_i32, %c0_i32_0, %c0_i32_1, %c0_i32_2 : i32, i32, i32, i32
  }
  func.func @transform_4(%arg0: i32) -> (i32, i32, i32, i32) {
    %c0_i32 = arith.constant 0 : i32
    %c0_i32_0 = arith.constant 0 : i32
    %c0_i32_1 = arith.constant 0 : i32
    %c0_i32_2 = arith.constant 0 : i32
    %c0_i32_3 = arith.constant 0 : i32
    return %c0_i32, %c0_i32_0, %c0_i32_1, %c0_i32_2 : i32, i32, i32, i32
  }
}

</mosaic_0001>

<llo_original>
// kernel: tpu_custom_call.1
$region0: #{tpu_custom_call.1}
  #allocation0 [shape = 'u32[]', space=smem, size = 0x4, offset = 0x4, fixed_abs, tag = 'smem constant byte address 0x4 - core index']
  #allocation1 [shape = 'u32[144,128]{1,0:T(1,128)}', space=vmem, size = 0x12000, scoped, tag = 'internal scratch']
  %s0 = inlined_call_operand.hbm [shape: f32[2,10,3,4,32], index: 0, kind: input, shape index: {}]
  %s1 = inlined_call_operand.vmem [shape: s32[4,1], index: 1, kind: input, shape index: {}]
  %s2 = inlined_call_operand.hbm [shape: f32[2,3,32,32], index: 2, kind: input, shape index: {}]
  %s3 = inlined_call_operand.vmem [shape: f32[2,3,1,32], index: 3, kind: input, shape index: {}]
  %s4 = inlined_call_operand.hbm [shape: f32[2,10,4,32], index: 4, kind: output, shape index: {}]
  %s5 = sld [smem:[#allocation0]]
  $region34: #{tpu_custom_call.1} parent=0
    _
  %s7 = ssub.s32 1, %s5
  %s8 = scalar_select 0, %s7, %s5
  $region1: #{tpu_custom_call.1} parent=0
    #allocation2 [shape = 'u8[122880]{0}', space=vmem, size = 0x1e000, scoped, tag = 'input window, operand 0, single buffered']
    #allocation3 [shape = 's32[1]{0}', space=sflag, size = 0x4, scoped, tag = 'scoped memory for tpu_custom_call.1']
    #allocation4 [shape = 's32[1]{0}', space=sflag, size = 0x4, scoped, tag = 'scoped memory for tpu_custom_call.1']
    #allocation5 [shape = 'u8[98304]{0}', space=vmem, size = 0x18000, scoped, tag = 'input window, operand 2, single buffered']
    #allocation6 [shape = 's32[1]{0}', space=sflag, size = 0x4, scoped, tag = 'scoped memory for tpu_custom_call.1']
    #allocation7 [shape = 'u8[40960]{0}', space=vmem, size = 0xa000, scoped, tag = 'output window, operand 0, single buffered']
    %9 = vsyncpa [#allocation3], 0
    %10 = vsyncpa [#allocation6], 0
    %11 = vsyncpa [#allocation4], 0
    // Predicated region
    $region2: #{tpu_custom_call.1} parent=1 // pred_check
      _
    $region3: #{tpu_custom_call.1} parent=1 // pred_check_branch
      %13 = sbr.rel (0) target = $region5
    $region4: #{tpu_custom_call.1} parent=1 // pred_region
      %s15 = ssub.s32 3840, 3840
      %16 = vsyncadd [#allocation3], %s15
      %s17 = sshll.u32 [#allocation2], 4
      %s18 = int_to_ptr.vmem [resolvable:$true] %s17
      %23 = dma.hbm_to_vmem [thread:$0]  %s0, 3840, %s18, [#allocation3], 64, 64, 4
    $region5: #{tpu_custom_call.1} parent=1 // pred_fallthru
      _
    // Predicated region
    $region6: #{tpu_custom_call.1} parent=1 // pred_check
      _
    $region7: #{tpu_custom_call.1} parent=1 // pred_check_branch
      %25 = sbr.rel (0) target = $region9
    $region8: #{tpu_custom_call.1} parent=1 // pred_region
      _
    $region9: #{tpu_custom_call.1} parent=1 // pred_fallthru
      _
    // Predicated region
    $region10: #{tpu_custom_call.1} parent=1 // pred_check
      _
    $region11: #{tpu_custom_call.1} parent=1 // pred_check_branch
      %27 = sbr.rel (0) target = $region13
    $region12: #{tpu_custom_call.1} parent=1 // pred_region
      %s29 = ssub.s32 3072, 3072
      %30 = vsyncadd [#allocation6], %s29
      %s31 = sshll.u32 [#allocation5], 4
      %s32 = int_to_ptr.vmem [resolvable:$true] %s31
      %37 = dma.hbm_to_vmem [thread:$0]  %s2, 3072, %s32, [#allocation6], 128, 128, 8
    $region13: #{tpu_custom_call.1} parent=1 // pred_fallthru
      _
    // Predicated region
    $region14: #{tpu_custom_call.1} parent=1 // pred_check
      _
    $region15: #{tpu_custom_call.1} parent=1 // pred_check_branch
      %39 = sbr.rel (0) target = $region17
    $region16: #{tpu_custom_call.1} parent=1 // pred_region
      _
    $region17: #{tpu_custom_call.1} parent=1 // pred_fallthru
      _
    // Predicated region
    $region18: #{tpu_custom_call.1} parent=1 // pred_check
      _
    $region19: #{tpu_custom_call.1} parent=1 // pred_check_branch
      %41 = sbr.rel (0) target = $region21
    $region20: #{tpu_custom_call.1} parent=1 // pred_region
      %42 = dma.done [#allocation3], 3840
    $region21: #{tpu_custom_call.1} parent=1 // pred_fallthru
      _
    // Predicated region
    $region22: #{tpu_custom_call.1} parent=1 // pred_check
      _
    $region23: #{tpu_custom_call.1} parent=1 // pred_check_branch
      %44 = sbr.rel (0) target = $region25
    $region24: #{tpu_custom_call.1} parent=1 // pred_region
      %45 = dma.done [#allocation6], 3072
    $region25: #{tpu_custom_call.1} parent=1 // pred_fallthru
      _
    %v46 = vld [vmem:[%s1] sm:$0xf]
    %v47 = vld [vmem:[#allocation5] sm:$0xff]
    %v48 = vld [vmem:[#allocation5 + $0x8] sm:$0xff]
    %v49 = vld [vmem:[#allocation5 + $0x10] sm:$0xff]
    %v50 = vld [vmem:[#allocation5 + $0x18] sm:$0xff]
    %s51 = scalar_lea.vmem [#allocation5], 32
    %v52 = vld [vmem:[%s51] sm:$0xff]
    %v53 = vld [vmem:[%s51 + $0x8] sm:$0xff]
    %v54 = vld [vmem:[%s51 + $0x10] sm:$0xff]
    %v55 = vld [vmem:[%s51 + $0x18] sm:$0xff]
    %s56 = scalar_lea.vmem [#allocation5], 64
    %v57 = vld [vmem:[%s56] sm:$0xff]
    %v58 = vld [vmem:[%s56 + $0x8] sm:$0xff]
    %v59 = vld [vmem:[%s56 + $0x10] sm:$0xff]
    %v60 = vld [vmem:[%s56 + $0x18] sm:$0xff]
    %s61 = scalar_lea.vmem [#allocation5], 96
    %v62 = vld [vmem:[%s61] sm:$0xff]
    %v63 = vld [vmem:[%s61 + $0x8] sm:$0xff]
    %v64 = vld [vmem:[%s61 + $0x10] sm:$0xff]
    %v65 = vld [vmem:[%s61 + $0x18] sm:$0xff]
    %s66 = scalar_lea.vmem [#allocation5], 128
    %v67 = vld [vmem:[%s66] sm:$0xff]
    %v68 = vld [vmem:[%s66 + $0x8] sm:$0xff]
    %v69 = vld [vmem:[%s66 + $0x10] sm:$0xff]
    %v70 = vld [vmem:[%s66 + $0x18] sm:$0xff]
    %s71 = scalar_lea.vmem [#allocation5], 160
    %v72 = vld [vmem:[%s71] sm:$0xff]
    %v73 = vld [vmem:[%s71 + $0x8] sm:$0xff]
    %v74 = vld [vmem:[%s71 + $0x10] sm:$0xff]
    %v75 = vld [vmem:[%s71 + $0x18] sm:$0xff]
    %v76 = vld [vmem:[%s3] sm:$0x1]
    %s77 = scalar_lea.vmem %s3, 1
    %v78 = vld [vmem:[%s77] sm:$0x1]
    %s79 = scalar_lea.vmem %s3, 2
    %v80 = vld [vmem:[%s79] sm:$0x1]
    %s81 = scalar_lea.vmem %s3, 3
    %v82 = vld [vmem:[%s81] sm:$0x1]
    %s83 = scalar_lea.vmem %s3, 4
    %v84 = vld [vmem:[%s83] sm:$0x1]
    %s85 = scalar_lea.vmem %s3, 5
    %v86 = vld [vmem:[%s85] sm:$0x1]
    %vm87 = vcmp.gt.s32.totalorder %v46, 0
    %v88 = vsel %vm87, 1, 0
    %v89 = vcvt.s32.f32 %v88
    %v90 = vld [vmem:[#allocation2] sm:$0xf]
    %vm91 = vcmask 261120
    %v93 = vsel %vm91, 0.0, 0
    %95 = vmatprep.subr.mxu0 0.0
    %96 = vmatpush1.msra.mxu0 %v47
    %97 = vmatprep.subr.mxu0 0.0
    %98 = vmatpush1.msra.mxu0 %v48
    %99 = vmatprep.subr.mxu0 0.0
    %100 = vmatpush1.msra.mxu0 %v49
    %101 = vmatprep.subr.mxu0 0.0
    %102 = vmatpush1.msra.mxu0 %v50
    %103 = vmatprep.subr.mxu0 0.0
    %104 = vmatpush1.msra.mxu0 0.0
    %105 = vmatprep.subr.mxu0 0.0
    %106 = vmatpush1.msra.mxu0 0.0
    %107 = vmatprep.subr.mxu0 0.0
    %108 = vmatpush1.msra.mxu0 0.0
    %109 = vmatprep.subr.mxu0 0.0
    %110 = vmatpush1.msra.mxu0 0.0
    %111 = vmatprep.subr.mxu0 0.0
    %112 = vmatpush1.msra.mxu0 0.0
    %113 = vmatprep.subr.mxu0 0.0
    %114 = vmatpush1.msra.mxu0 0.0
    %115 = vmatprep.subr.mxu0 0.0
    %116 = vmatpush1.msra.mxu0 0.0
    %117 = vmatprep.subr.mxu0 0.0
    %118 = vmatpush1.msra.mxu0 0.0
    %119 = vmatprep.subr.mxu0 0.0
    %120 = vmatpush1.msra.mxu0 0.0
    %121 = vmatprep.subr.mxu0 0.0
    %122 = vmatpush1.msra.mxu0 0.0
    %123 = vmatprep.subr.mxu0 0.0
    %124 = vmatpush1.msra.mxu0 0.0
    %125 = vmatprep.subr.mxu0 0.0
    %126 = vmatpush1.msra.mxu0 0.0
    %127 = vmatprep.subr.mxu0 0.0
    %128 = vmatpush1.msra.mxu0 0.0
    %129 = vmatprep.subr.mxu0 0.0
    %130 = vmatpush1.msra.mxu0 0.0
    %131 = vmatprep.subr.mxu0 0.0
    %132 = vmatpush1.msra.mxu0 0.0
    %133 = vmatprep.subr.mxu0 0.0
    %134 = vmatpush1.msra.mxu0 0.0
    %135 = vmatprep.subr.mxu0 0.0
    %136 = vmatpush1.msra.mxu0 0.0
    %137 = vmatprep.subr.mxu0 0.0
    %138 = vmatpush1.msra.mxu0 0.0
    %139 = vmatprep.subr.mxu0 0.0
    %140 = vmatpush1.msra.mxu0 0.0
    %141 = vmatprep.subr.mxu0 0.0
    %142 = vmatpush1.msra.mxu0 0.0
    %143 = vmatprep.subr.mxu0 0.0
    %144 = vmatpush1.msra.mxu0 0.0
    %145 = vmatprep.subr.mxu0 0.0
    %146 = vmatpush1.msra.mxu0 0.0
    %147 = vmatprep.subr.mxu0 0.0
    %148 = vmatpush1.msra.mxu0 0.0
    %149 = vmatprep.subr.mxu0 0.0
    %150 = vmatpush1.msra.mxu0 0.0
    %151 = vmatprep.subr.mxu0 0.0
    %152 = vmatpush1.msra.mxu0 0.0
    %153 = vmatprep.subr.mxu0 0.0
    %154 = vmatpush1.msra.mxu0 0.0
    %155 = vmatprep.subr.mxu0 0.0
    %156 = vmatpush1.msra.mxu0 0.0
    %157 = vmatprep.subr.mxu0 0.0
    %158 = vmatpush1.msra.mxu0 0.0
    %159 = vmatprep.mubr.f32.mxu0 0.0
    %160 = vmatmul.mubr.f32.gmra.mrb[0].mxu0 %v93
    %v161 = vpop.f32.mrb[0].mxu0
    %v162 = vadd.f32 0.0, %v161
    %v163 = vpop.f32.mrb[0].mxu0
    %164 = vdwg.mxu0
    %v165 = vadd.f32 %v90, %v162
    %v167 = vlaneseq
    %v168 = vshrl.u32 %v167, 7
    %v169 = vsub.s32 0, %v168
    %v170 = vrot.slane %v76, %v169
    %v172 = vadd.f32 %v165, %v170
    %v173 = vxor.u32 %v172, 2147483648
    %v174 = vmul.f32 %v173, 1.442695
    %v175 = vpow.pop %v174
    %v176 = vadd.f32 %v175, 1.0
    %v177 = vrcp.pop %v176
    %v178 = vmul.f32 1.0, %v177
    %s179 = scalar_lea.vmem [#allocation2], 4
    %v180 = vld [vmem:[%s179] sm:$0xf]
    %181 = vmatprep.subr.mxu0 0.0
    %182 = vmatpush1.msra.mxu0 %v52
    %183 = vmatprep.subr.mxu0 0.0
    %184 = vmatpush1.msra.mxu0 %v53
    %185 = vmatprep.subr.mxu0 0.0
    %186 = vmatpush1.msra.mxu0 %v54
    %187 = vmatprep.subr.mxu0 0.0
    %188 = vmatpush1.msra.mxu0 %v55
    %189 = vmatprep.subr.mxu0 0.0
    %190 = vmatpush1.msra.mxu0 0.0
    %191 = vmatprep.subr.mxu0 0.0
    %192 = vmatpush1.msra.mxu0 0.0
    %193 = vmatprep.subr.mxu0 0.0
    %194 = vmatpush1.msra.mxu0 0.0
    %195 = vmatprep.subr.mxu0 0.0
    %196 = vmatpush1.msra.mxu0 0.0
    %197 = vmatprep.subr.mxu0 0.0
    %198 = vmatpush1.msra.mxu0 0.0
    %199 = vmatprep.subr.mxu0 0.0
    %200 = vmatpush1.msra.mxu0 0.0
    %201 = vmatprep.subr.mxu0 0.0
    %202 = vmatpush1.msra.mxu0 0.0
    %203 = vmatprep.subr.mxu0 0.0
    %204 = vmatpush1.msra.mxu0 0.0
    %205 = vmatprep.subr.mxu0 0.0
    %206 = vmatpush1.msra.mxu0 0.0
    %207 = vmatprep.subr.mxu0 0.0
    %208 = vmatpush1.msra.mxu0 0.0
    %209 = vmatprep.subr.mxu0 0.0
    %210 = vmatpush1.msra.mxu0 0.0
    %211 = vmatprep.subr.mxu0 0.0
    %212 = vmatpush1.msra.mxu0 0.0
    %213 = vmatprep.subr.mxu0 0.0
    %214 = vmatpush1.msra.mxu0 0.0
    %215 = vmatprep.subr.mxu0 0.0
    %216 = vmatpush1.msra.mxu0 0.0
    %217 = vmatprep.subr.mxu0 0.0
    %218 = vmatpush1.msra.mxu0 0.0
    %219 = vmatprep.subr.mxu0 0.0
    %220 = vmatpush1.msra.mxu0 0.0
    %221 = vmatprep.subr.mxu0 0.0
    %222 = vmatpush1.msra.mxu0 0.0
    %223 = vmatprep.subr.mxu0 0.0
    %224 = vmatpush1.msra.mxu0 0.0
    %225 = vmatprep.subr.mxu0 0.0
    %226 = vmatpush1.msra.mxu0 0.0
    %227 = vmatprep.subr.mxu0 0.0
    %228 = vmatpush1.msra.mxu0 0.0
    %229 = vmatprep.subr.mxu0 0.0
    %230 = vmatpush1.msra.mxu0 0.0
    %231 = vmatprep.subr.mxu0 0.0
    %232 = vmatpush1.msra.mxu0 0.0
    %233 = vmatprep.subr.mxu0 0.0
    %234 = vmatpush1.msra.mxu0 0.0
    %235 = vmatprep.subr.mxu0 0.0
    %236 = vmatpush1.msra.mxu0 0.0
    %237 = vmatprep.subr.mxu0 0.0
    %238 = vmatpush1.msra.mxu0 0.0
    %239 = vmatprep.subr.mxu0 0.0
    %240 = vmatpush1.msra.mxu0 0.0
    %241 = vmatprep.subr.mxu0 0.0
    %242 = vmatpush1.msra.mxu0 0.0
    %243 = vmatprep.subr.mxu0 0.0
    %244 = vmatpush1.msra.mxu0 0.0
    %245 = vmatprep.mubr.f32.mxu0 0.0
    %246 = vmatmul.mubr.f32.gmra.mrb[0].mxu0 %v93
    %v247 = vpop.f32.mrb[0].mxu0
    %v248 = vadd.f32 0.0, %v247
    %v249 = vpop.f32.mrb[0].mxu0
    %250 = vdwg.mxu0
    %v251 = vadd.f32 %v180, %v248
    %v253 = vlaneseq
    %v254 = vshrl.u32 %v253, 7
    %v255 = vsub.s32 0, %v254
    %v256 = vrot.slane %v78, %v255
    %v258 = vadd.f32 %v251, %v256
    %v259 = vxor.u32 %v258, 2147483648
    %v260 = vmul.f32 %v259, 1.442695
    %v261 = vpow.pop %v260
    %v262 = vadd.f32 %v261, 1.0
    %v263 = vrcp.pop %v262
    %v264 = vmul.f32 1.0, %v263
    %s265 = scalar_lea.vmem [#allocation2], 8
    %v266 = vld [vmem:[%s265] sm:$0xf]
    %v268 = vlaneseq
    %v269 = vshrl.u32 %v268, 7
    %v270 = vsub.s32 0, %v269
    %v271 = vrot.slane %v80, %v270
    %273 = vmatprep.subr.mxu0 0.0
    %274 = vmatpush1.msra.mxu0 %v57
    %275 = vmatprep.subr.mxu0 0.0
    %276 = vmatpush1.msra.mxu0 %v58
    %277 = vmatprep.subr.mxu0 0.0
    %278 = vmatpush1.msra.mxu0 %v59
    %279 = vmatprep.subr.mxu0 0.0
    %280 = vmatpush1.msra.mxu0 %v60
    %281 = vmatprep.subr.mxu0 0.0
    %282 = vmatpush1.msra.mxu0 0.0
    %283 = vmatprep.subr.mxu0 0.0
    %284 = vmatpush1.msra.mxu0 0.0
    %285 = vmatprep.subr.mxu0 0.0
    %286 = vmatpush1.msra.mxu0 0.0
    %287 = vmatprep.subr.mxu0 0.0
    %288 = vmatpush1.msra.mxu0 0.0
    %289 = vmatprep.subr.mxu0 0.0
    %290 = vmatpush1.msra.mxu0 0.0
    %291 = vmatprep.subr.mxu0 0.0
    %292 = vmatpush1.msra.mxu0 0.0
    %293 = vmatprep.subr.mxu0 0.0
    %294 = vmatpush1.msra.mxu0 0.0
    %295 = vmatprep.subr.mxu0 0.0
    %296 = vmatpush1.msra.mxu0 0.0
    %297 = vmatprep.subr.mxu0 0.0
    %298 = vmatpush1.msra.mxu0 0.0
    %299 = vmatprep.subr.mxu0 0.0
    %300 = vmatpush1.msra.mxu0 0.0
    %301 = vmatprep.subr.mxu0 0.0
    %302 = vmatpush1.msra.mxu0 0.0
    %303 = vmatprep.subr.mxu0 0.0
    %304 = vmatpush1.msra.mxu0 0.0
    %305 = vmatprep.subr.mxu0 0.0
    %306 = vmatpush1.msra.mxu0 0.0
    %307 = vmatprep.subr.mxu0 0.0
    %308 = vmatpush1.msra.mxu0 0.0
    %309 = vmatprep.subr.mxu0 0.0
    %310 = vmatpush1.msra.mxu0 0.0
    %311 = vmatprep.subr.mxu0 0.0
    %312 = vmatpush1.msra.mxu0 0.0
    %313 = vmatprep.subr.mxu0 0.0
    %314 = vmatpush1.msra.mxu0 0.0
    %315 = vmatprep.subr.mxu0 0.0
    %316 = vmatpush1.msra.mxu0 0.0
    %317 = vmatprep.subr.mxu0 0.0
    %318 = vmatpush1.msra.mxu0 0.0
    %319 = vmatprep.subr.mxu0 0.0
    %320 = vmatpush1.msra.mxu0 0.0
    %321 = vmatprep.subr.mxu0 0.0
    %322 = vmatpush1.msra.mxu0 0.0
    %323 = vmatprep.subr.mxu0 0.0
    %324 = vmatpush1.msra.mxu0 0.0
    %325 = vmatprep.subr.mxu0 0.0
    %326 = vmatpush1.msra.mxu0 0.0
    %327 = vmatprep.subr.mxu0 0.0
    %328 = vmatpush1.msra.mxu0 0.0
    %329 = vmatprep.subr.mxu0 0.0
    %330 = vmatpush1.msra.mxu0 0.0
    %331 = vmatprep.subr.mxu0 0.0
    %332 = vmatpush1.msra.mxu0 0.0
    %333 = vmatprep.subr.mxu0 0.0
    %334 = vmatpush1.msra.mxu0 0.0
    %335 = vmatprep.subr.mxu0 0.0
    %336 = vmatpush1.msra.mxu0 0.0
    %337 = vmatprep.mubr.f32.mxu0 0.0
    %338 = vmatmul.mubr.f32.gmra.mrb[0].mxu0 %v93
    %v339 = vpop.f32.mrb[0].mxu0
    %v340 = vadd.f32 %v271, %v339
    %v341 = vpop.f32.mrb[0].mxu0
    %342 = vdwg.mxu0
    %v343 = vmul.f32 %v178, %v340
    %v344 = vadd.f32 %v266, %v343
    %v345 = vtanh.pop %v344
    %v346 = vsub.f32 1.0, %v264
    %v347 = vmul.f32 %v346, %v345
    %v348 = vmul.f32 %v264, 0.0
    %v349 = vadd.f32 %v347, %v348
    %351 = vset.pattern.permute.xlu0 0
    %352 = vperm.xlu0 %351, %v89
    %v353 = vpop.permute.xlu0 %352
    %v355 = vmul.f32 %v353, %v349
    %v356 = vsub.f32 1.0, %v89
    %358 = vset.pattern.permute.xlu0 0
    %359 = vperm.xlu0 %358, %v356
    %v360 = vpop.permute.xlu0 %359
    %v362 = vmul.f32 %v360, 0.0
    %v363 = vadd.f32 %v355, %v362
    %v364 = vmul.f32 %v353, %v363
    %vm365 = vcmask 257024
    %366 = vst.msk [vmem:[#allocation7] sm:$0xf] %vm365, %v364
    %vm367 = vcmp.gt.s32.totalorder %v46, 9
    %v368 = vsel %vm367, 1, 0
    %v369 = vcvt.s32.f32 %v368
    %s370 = scalar_lea.vmem [#allocation2], 228
    %v371 = vld [vmem:[%s370] sm:$0xf]
    %372 = vmatprep.subr.mxu0 0.0
    %373 = vmatpush1.msra.mxu0 %v62
    %374 = vmatprep.subr.mxu0 0.0
    %375 = vmatpush1.msra.mxu0 %v63
    %376 = vmatprep.subr.mxu0 0.0
    %377 = vmatpush1.msra.mxu0 %v64
    %378 = vmatprep.subr.mxu0 0.0
    %379 = vmatpush1.msra.mxu0 %v65
    %380 = vmatprep.subr.mxu0 0.0
    %381 = vmatpush1.msra.mxu0 0.0
    %382 = vmatprep.subr.mxu0 0.0
    %383 = vmatpush1.msra.mxu0 0.0
    %384 = vmatprep.subr.mxu0 0.0
    %385 = vmatpush1.msra.mxu0 0.0
    %386 = vmatprep.subr.mxu0 0.0
    %387 = vmatpush1.msra.mxu0 0.0
    %388 = vmatprep.subr.mxu0 0.0
    %389 = vmatpush1.msra.mxu0 0.0
    %390 = vmatprep.subr.mxu0 0.0
    %391 = vmatpush1.msra.mxu0 0.0
    %392 = vmatprep.subr.mxu0 0.0
    %393 = vmatpush1.msra.mxu0 0.0
    %394 = vmatprep.subr.mxu0 0.0
    %395 = vmatpush1.msra.mxu0 0.0
    %396 = vmatprep.subr.mxu0 0.0
    %397 = vmatpush1.msra.mxu0 0.0
    %398 = vmatprep.subr.mxu0 0.0
    %399 = vmatpush1.msra.mxu0 0.0
    %400 = vmatprep.subr.mxu0 0.0
    %401 = vmatpush1.msra.mxu0 0.0
    %402 = vmatprep.subr.mxu0 0.0
    %403 = vmatpush1.msra.mxu0 0.0
    %404 = vmatprep.subr.mxu0 0.0
    %405 = vmatpush1.msra.mxu0 0.0
    %406 = vmatprep.subr.mxu0 0.0
    %407 = vmatpush1.msra.mxu0 0.0
    %408 = vmatprep.subr.mxu0 0.0
    %409 = vmatpush1.msra.mxu0 0.0
    %410 = vmatprep.subr.mxu0 0.0
    %411 = vmatpush1.msra.mxu0 0.0
    %412 = vmatprep.subr.mxu0 0.0
    %413 = vmatpush1.msra.mxu0 0.0
    %414 = vmatprep.subr.mxu0 0.0
    %415 = vmatpush1.msra.mxu0 0.0
    %416 = vmatprep.subr.mxu0 0.0
    %417 = vmatpush1.msra.mxu0 0.0
    %418 = vmatprep.subr.mxu0 0.0
    %419 = vmatpush1.msra.mxu0 0.0
    %420 = vmatprep.subr.mxu0 0.0
    %421 = vmatpush1.msra.mxu0 0.0
    %422 = vmatprep.subr.mxu0 0.0
    %423 = vmatpush1.msra.mxu0 0.0
    %424 = vmatprep.subr.mxu0 0.0
    %425 = vmatpush1.msra.mxu0 0.0
    %426 = vmatprep.subr.mxu0 0.0
    %427 = vmatpush1.msra.mxu0 0.0
    %428 = vmatprep.subr.mxu0 0.0
    %429 = vmatpush1.msra.mxu0 0.0
    %430 = vmatprep.subr.mxu0 0.0
    %431 = vmatpush1.msra.mxu0 0.0
    %432 = vmatprep.subr.mxu0 0.0
    %433 = vmatpush1.msra.mxu0 0.0
    %434 = vmatprep.subr.mxu0 0.0
    %435 = vmatpush1.msra.mxu0 0.0
    %436 = vmatprep.mubr.f32.mxu0 0.0
    %437 = vmatmul.mubr.f32.gmra.mrb[0].mxu0 %v93
    %v438 = vpop.f32.mrb[0].mxu0
    %v439 = vadd.f32 0.0, %v438
    %v440 = vpop.f32.mrb[0].mxu0
    %441 = vdwg.mxu0
    %v442 = vadd.f32 %v371, %v439
    %v444 = vlaneseq
    %v445 = vshrl.u32 %v444, 7
    %v446 = vsub.s32 0, %v445
    %v447 = vrot.slane %v82, %v446
    %v449 = vadd.f32 %v442, %v447
    %v450 = vxor.u32 %v449, 2147483648
    %v451 = vmul.f32 %v450, 1.442695
    %v452 = vpow.pop %v451
    %v453 = vadd.f32 %v452, 1.0
    %v454 = vrcp.pop %v453
    %v455 = vmul.f32 1.0, %v454
    %s456 = scalar_lea.vmem [#allocation2], 232
    %v457 = vld [vmem:[%s456] sm:$0xf]
    %458 = vmatprep.subr.mxu0 0.0
    %459 = vmatpush1.msra.mxu0 %v67
    %460 = vmatprep.subr.mxu0 0.0
    %461 = vmatpush1.msra.mxu0 %v68
    %462 = vmatprep.subr.mxu0 0.0
    %463 = vmatpush1.msra.mxu0 %v69
    %464 = vmatprep.subr.mxu0 0.0
    %465 = vmatpush1.msra.mxu0 %v70
    %466 = vmatprep.subr.mxu0 0.0
    %467 = vmatpush1.msra.mxu0 0.0
    %468 = vmatprep.subr.mxu0 0.0
    %469 = vmatpush1.msra.mxu0 0.0
    %470 = vmatprep.subr.mxu0 0.0
    %471 = vmatpush1.msra.mxu0 0.0
    %472 = vmatprep.subr.mxu0 0.0
    %473 = vmatpush1.msra.mxu0 0.0
    %474 = vmatprep.subr.mxu0 0.0
    %475 = vmatpush1.msra.mxu0 0.0
    %476 = vmatprep.subr.mxu0 0.0
    %477 = vmatpush1.msra.mxu0 0.0
    %478 = vmatprep.subr.mxu0 0.0
    %479 = vmatpush1.msra.mxu0 0.0
    %480 = vmatprep.subr.mxu0 0.0
    %481 = vmatpush1.msra.mxu0 0.0
    %482 = vmatprep.subr.mxu0 0.0
    %483 = vmatpush1.msra.mxu0 0.0
    %484 = vmatprep.subr.mxu0 0.0
    %485 = vmatpush1.msra.mxu0 0.0
    %486 = vmatprep.subr.mxu0 0.0
    %487 = vmatpush1.msra.mxu0 0.0
    %488 = vmatprep.subr.mxu0 0.0
    %489 = vmatpush1.msra.mxu0 0.0
    %490 = vmatprep.subr.mxu0 0.0
    %491 = vmatpush1.msra.mxu0 0.0
    %492 = vmatprep.subr.mxu0 0.0
    %493 = vmatpush1.msra.mxu0 0.0
    %494 = vmatprep.subr.mxu0 0.0
    %495 = vmatpush1.msra.mxu0 0.0
    %496 = vmatprep.subr.mxu0 0.0
    %497 = vmatpush1.msra.mxu0 0.0
    %498 = vmatprep.subr.mxu0 0.0
    %499 = vmatpush1.msra.mxu0 0.0
    %500 = vmatprep.subr.mxu0 0.0
    %501 = vmatpush1.msra.mxu0 0.0
    %502 = vmatprep.subr.mxu0 0.0
    %503 = vmatpush1.msra.mxu0 0.0
    %504 = vmatprep.subr.mxu0 0.0
    %505 = vmatpush1.msra.mxu0 0.0
    %506 = vmatprep.subr.mxu0 0.0
    %507 = vmatpush1.msra.mxu0 0.0
    %508 = vmatprep.subr.mxu0 0.0
    %509 = vmatpush1.msra.mxu0 0.0
    %510 = vmatprep.subr.mxu0 0.0
    %511 = vmatpush1.msra.mxu0 0.0
    %512 = vmatprep.subr.mxu0 0.0
    %513 = vmatpush1.msra.mxu0 0.0
    %514 = vmatprep.subr.mxu0 0.0
    %515 = vmatpush1.msra.mxu0 0.0
    %516 = vmatprep.subr.mxu0 0.0
    %517 = vmatpush1.msra.mxu0 0.0
    %518 = vmatprep.subr.mxu0 0.0
    %519 = vmatpush1.msra.mxu0 0.0
    %520 = vmatprep.subr.mxu0 0.0
    %521 = vmatpush1.msra.mxu0 0.0
    %522 = vmatprep.mubr.f32.mxu0 0.0
    %523 = vmatmul.mubr.f32.gmra.mrb[0].mxu0 %v93
    %v524 = vpop.f32.mrb[0].mxu0
    %v525 = vadd.f32 0.0, %v524
    %v526 = vpop.f32.mrb[0].mxu0
    %527 = vdwg.mxu0
    %v528 = vadd.f32 %v457, %v525
    %v530 = vlaneseq
    %v531 = vshrl.u32 %v530, 7
    %v532 = vsub.s32 0, %v531
    %v533 = vrot.slane %v84, %v532
    %v535 = vadd.f32 %v528, %v533
    %v536 = vxor.u32 %v535, 2147483648
    %v537 = vmul.f32 %v536, 1.442695
    %v538 = vpow.pop %v537
    %v539 = vadd.f32 %v538, 1.0
    %v540 = vrcp.pop %v539
    %v541 = vmul.f32 1.0, %v540
    %s542 = scalar_lea.vmem [#allocation2], 236
    %v543 = vld [vmem:[%s542] sm:$0xf]
    %v545 = vlaneseq
    %v546 = vshrl.u32 %v545, 7
    %v547 = vsub.s32 0, %v546
    %v548 = vrot.slane %v86, %v547
    %550 = vmatprep.subr.mxu0 0.0
    %551 = vmatpush1.msra.mxu0 %v72
    %552 = vmatprep.subr.mxu0 0.0
    %553 = vmatpush1.msra.mxu0 %v73
    %554 = vmatprep.subr.mxu0 0.0
    %555 = vmatpush1.msra.mxu0 %v74
    %556 = vmatprep.subr.mxu0 0.0
    %557 = vmatpush1.msra.mxu0 %v75
    %558 = vmatprep.subr.mxu0 0.0
    %559 = vmatpush1.msra.mxu0 0.0
    %560 = vmatprep.subr.mxu0 0.0
    %561 = vmatpush1.msra.mxu0 0.0
    %562 = vmatprep.subr.mxu0 0.0
    %563 = vmatpush1.msra.mxu0 0.0
    %564 = vmatprep.subr.mxu0 0.0
    %565 = vmatpush1.msra.mxu0 0.0
    %566 = vmatprep.subr.mxu0 0.0
    %567 = vmatpush1.msra.mxu0 0.0
    %568 = vmatprep.subr.mxu0 0.0
    %569 = vmatpush1.msra.mxu0 0.0
    %570 = vmatprep.subr.mxu0 0.0
    %571 = vmatpush1.msra.mxu0 0.0
    %572 = vmatprep.subr.mxu0 0.0
    %573 = vmatpush1.msra.mxu0 0.0
    %574 = vmatprep.subr.mxu0 0.0
    %575 = vmatpush1.msra.mxu0 0.0
    %576 = vmatprep.subr.mxu0 0.0
    %577 = vmatpush1.msra.mxu0 0.0
    %578 = vmatprep.subr.mxu0 0.0
    %579 = vmatpush1.msra.mxu0 0.0
    %580 = vmatprep.subr.mxu0 0.0
    %581 = vmatpush1.msra.mxu0 0.0
    %582 = vmatprep.subr.mxu0 0.0
    %583 = vmatpush1.msra.mxu0 0.0
    %584 = vmatprep.subr.mxu0 0.0
    %585 = vmatpush1.msra.mxu0 0.0
    %586 = vmatprep.subr.mxu0 0.0
    %587 = vmatpush1.msra.mxu0 0.0
    %588 = vmatprep.subr.mxu0 0.0
    %589 = vmatpush1.msra.mxu0 0.0
    %590 = vmatprep.subr.mxu0 0.0
    %591 = vmatpush1.msra.mxu0 0.0
    %592 = vmatprep.subr.mxu0 0.0
    %593 = vmatpush1.msra.mxu0 0.0
    %594 = vmatprep.subr.mxu0 0.0
    %595 = vmatpush1.msra.mxu0 0.0
    %596 = vmatprep.subr.mxu0 0.0
    %597 = vmatpush1.msra.mxu0 0.0
    %598 = vmatprep.subr.mxu0 0.0
    %599 = vmatpush1.msra.mxu0 0.0
    %600 = vmatprep.subr.mxu0 0.0
    %601 = vmatpush1.msra.mxu0 0.0
    %602 = vmatprep.subr.mxu0 0.0
    %603 = vmatpush1.msra.mxu0 0.0
    %604 = vmatprep.subr.mxu0 0.0
    %605 = vmatpush1.msra.mxu0 0.0
    %606 = vmatprep.subr.mxu0 0.0
    %607 = vmatpush1.msra.mxu0 0.0
    %608 = vmatprep.subr.mxu0 0.0
    %609 = vmatpush1.msra.mxu0 0.0
    %610 = vmatprep.subr.mxu0 0.0
    %611 = vmatpush1.msra.mxu0 0.0
    %612 = vmatprep.subr.mxu0 0.0
    %613 = vmatpush1.msra.mxu0 0.0
    %614 = vmatprep.mubr.f32.mxu0 0.0
    %615 = vmatmul.mubr.f32.gmra.mrb[0].mxu0 %v93
    %v616 = vpop.f32.mrb[0].mxu0
    %v617 = vadd.f32 %v548, %v616
    %v618 = vpop.f32.mrb[0].mxu0
    %619 = vdwg.mxu0
    %v620 = vmul.f32 %v455, %v617
    %v621 = vadd.f32 %v543, %v620
    %v622 = vtanh.pop %v621
    %v623 = vsub.f32 1.0, %v541
    %v624 = vmul.f32 %v623, %v622
    %v625 = vmul.f32 %v541, 0.0
    %v626 = vadd.f32 %v624, %v625
    %628 = vset.pattern.permute.xlu0 0
    %629 = vperm.xlu0 %628, %v369
    %v630 = vpop.permute.xlu0 %629
    %v632 = vmul.f32 %v630, %v626
    %v633 = vsub.f32 1.0, %v369
    %635 = vset.pattern.permute.xlu0 0
    %636 = vperm.xlu0 %635, %v633
    %v637 = vpop.permute.xlu0 %636
    %v639 = vmul.f32 %v637, 0.0
    %v640 = vadd.f32 %v632, %v639
    %v641 = vmul.f32 %v630, %v640
    %s642 = scalar_lea.vmem [#allocation7], 76
    %643 = vst.msk [vmem:[%s642] sm:$0xf] %vm365, %v641
    %vm644 = vcmp.gt.s32.totalorder %v46, 1
    %v645 = vsel %vm644, 1, 0
    %v646 = vcvt.s32.f32 %v645
    %s647 = scalar_lea.vmem [#allocation2], 12
    %v648 = vld [vmem:[%s647] sm:$0xf]
    %v650 = vsel %vm91, %v363, 0
    %652 = vmatprep.subr.mxu0 0.0
    %653 = vmatpush1.msra.mxu0 %v47
    %654 = vmatprep.subr.mxu0 0.0
    %655 = vmatpush1.msra.mxu0 %v48
    %656 = vmatprep.subr.mxu0 0.0
    %657 = vmatpush1.msra.mxu0 %v49
    %658 = vmatprep.subr.mxu0 0.0
    %659 = vmatpush1.msra.mxu0 %v50
    %660 = vmatprep.subr.mxu0 0.0
    %661 = vmatpush1.msra.mxu0 0.0
    %662 = vmatprep.subr.mxu0 0.0
    %663 = vmatpush1.msra.mxu0 0.0
    %664 = vmatprep.subr.mxu0 0.0
    %665 = vmatpush1.msra.mxu0 0.0
    %666 = vmatprep.subr.mxu0 0.0
    %667 = vmatpush1.msra.mxu0 0.0
    %668 = vmatprep.subr.mxu0 0.0
    %669 = vmatpush1.msra.mxu0 0.0
    %670 = vmatprep.subr.mxu0 0.0
    %671 = vmatpush1.msra.mxu0 0.0
    %672 = vmatprep.subr.mxu0 0.0
    %673 = vmatpush1.msra.mxu0 0.0
    %674 = vmatprep.subr.mxu0 0.0
    %675 = vmatpush1.msra.mxu0 0.0
    %676 = vmatprep.subr.mxu0 0.0
    %677 = vmatpush1.msra.mxu0 0.0
    %678 = vmatprep.subr.mxu0 0.0
    %679 = vmatpush1.msra.mxu0 0.0
    %680 = vmatprep.subr.mxu0 0.0
    %681 = vmatpush1.msra.mxu0 0.0
    %682 = vmatprep.subr.mxu0 0.0
    %683 = vmatpush1.msra.mxu0 0.0
    %684 = vmatprep.subr.mxu0 0.0
    %685 = vmatpush1.msra.mxu0 0.0
    %686 = vmatprep.subr.mxu0 0.0
    %687 = vmatpush1.msra.mxu0 0.0
    %688 = vmatprep.subr.mxu0 0.0
    %689 = vmatpush1.msra.mxu0 0.0
    %690 = vmatprep.subr.mxu0 0.0
    %691 = vmatpush1.msra.mxu0 0.0
    %692 = vmatprep.subr.mxu0 0.0
    %693 = vmatpush1.msra.mxu0 0.0
    %694 = vmatprep.subr.mxu0 0.0
    %695 = vmatpush1.msra.mxu0 0.0
    %696 = vmatprep.subr.mxu0 0.0
    %697 = vmatpush1.msra.mxu0 0.0
    %698 = vmatprep.subr.mxu0 0.0
    %699 = vmatpush1.msra.mxu0 0.0
    %700 = vmatprep.subr.mxu0 0.0
    %701 = vmatpush1.msra.mxu0 0.0
    %702 = vmatprep.subr.mxu0 0.0
    %703 = vmatpush1.msra.mxu0 0.0
    %704 = vmatprep.subr.mxu0 0.0
    %705 = vmatpush1.msra.mxu0 0.0
    %706 = vmatprep.subr.mxu0 0.0
    %707 = vmatpush1.msra.mxu0 0.0
    %708 = vmatprep.subr.mxu0 0.0
    %709 = vmatpush1.msra.mxu0 0.0
    %710 = vmatprep.subr.mxu0 0.0
    %711 = vmatpush1.msra.mxu0 0.0
    %712 = vmatprep.subr.mxu0 0.0
    %713 = vmatpush1.msra.mxu0 0.0
    %714 = vmatprep.subr.mxu0 0.0
    %715 = vmatpush1.msra.mxu0 0.0
    %716 = vmatprep.mubr.f32.mxu0 0.0
    %717 = vmatmul.mubr.f32.gmra.mrb[0].mxu0 %v650
    %v718 = vpop.f32.mrb[0].mxu0
    %v719 = vadd.f32 0.0, %v718
    %v720 = vpop.f32.mrb[0].mxu0
    %721 = vdwg.mxu0
    %v722 = vadd.f32 %v648, %v719
    %v723 = vadd.f32 %v722, %v170
    %v724 = vxor.u32 %v723, 2147483648
    %v725 = vmul.f32 %v724, 1.442695
    %v726 = vpow.pop %v725
    %v727 = vadd.f32 %v726, 1.0
    %v728 = vrcp.pop %v727
    %v729 = vmul.f32 1.0, %v728
    %s730 = scalar_lea.vmem [#allocation2], 16
    %v731 = vld [vmem:[%s730] sm:$0xf]
    %732 = vmatprep.subr.mxu0 0.0
    %733 = vmatpush1.msra.mxu0 %v52
    %734 = vmatprep.subr.mxu0 0.0
    %735 = vmatpush1.msra.mxu0 %v53
    %736 = vmatprep.subr.mxu0 0.0
    %737 = vmatpush1.msra.mxu0 %v54
    %738 = vmatprep.subr.mxu0 0.0
    %739 = vmatpush1.msra.mxu0 %v55
    %740 = vmatprep.subr.mxu0 0.0
    %741 = vmatpush1.msra.mxu0 0.0
    %742 = vmatprep.subr.mxu0 0.0
    %743 = vmatpush1.msra.mxu0 0.0
    %744 = vmatprep.subr.mxu0 0.0
    %745 = vmatpush1.msra.mxu0 0.0
    %746 = vmatprep.subr.mxu0 0.0
    %747 = vmatpush1.msra.mxu0 0.0
    %748 = vmatprep.subr.mxu0 0.0
    %749 = vmatpush1.msra.mxu0 0.0
    %750 = vmatprep.subr.mxu0 0.0
    %751 = vmatpush1.msra.mxu0 0.0
    %752 = vmatprep.subr.mxu0 0.0
    %753 = vmatpush1.msra.mxu0 0.0
    %754 = vmatprep.subr.mxu0 0.0
    %755 = vmatpush1.msra.mxu0 0.0
    %756 = vmatprep.subr.mxu0 0.0
    %757 = vmatpush1.msra.mxu0 0.0
    %758 = vmatprep.subr.mxu0 0.0
    %759 = vmatpush1.msra.mxu0 0.0
    %760 = vmatprep.subr.mxu0 0.0
    %761 = vmatpush1.msra.mxu0 0.0
    %762 = vmatprep.subr.mxu0 0.0
    %763 = vmatpush1.msra.mxu0 0.0
    %764 = vmatprep.subr.mxu0 0.0
    %765 = vmatpush1.msra.mxu0 0.0
    %766 = vmatprep.subr.mxu0 0.0
    %767 = vmatpush1.msra.mxu0 0.0
    %768 = vmatprep.subr.mxu0 0.0
    %769 = vmatpush1.msra.mxu0 0.0
    %770 = vmatprep.subr.mxu0 0.0
    %771 = vmatpush1.msra.mxu0 0.0
    %772 = vmatprep.subr.mxu0 0.0
    %773 = vmatpush1.msra.mxu0 0.0
    %774 = vmatprep.subr.mxu0 0.0
    %775 = vmatpush1.msra.mxu0 0.0
    %776 = vmatprep.subr.mxu0 0.0
    %777 = vmatpush1.msra.mxu0 0.0
    %778 = vmatprep.subr.mxu0 0.0
    %779 = vmatpush1.msra.mxu0 0.0
    %780 = vmatprep.subr.mxu0 0.0
    %781 = vmatpush1.msra.mxu0 0.0
    %782 = vmatprep.subr.mxu0 0.0
    %783 = vmatpush1.msra.mxu0 0.0
    %784 = vmatprep.subr.mxu0 0.0
    %785 = vmatpush1.msra.mxu0 0.0
    %786 = vmatprep.subr.mxu0 0.0
    %787 = vmatpush1.msra.mxu0 0.0
    %788 = vmatprep.subr.mxu0 0.0
    %789 = vmatpush1.msra.mxu0 0.0
    %790 = vmatprep.subr.mxu0 0.0
    %791 = vmatpush1.msra.mxu0 0.0
    %792 = vmatprep.subr.mxu0 0.0
    %793 = vmatpush1.msra.mxu0 0.0
    %794 = vmatprep.subr.mxu0 0.0
    %795 = vmatpush1.msra.mxu0 0.0
    %796 = vmatprep.mubr.f32.mxu0 0.0
    %797 = vmatmul.mubr.f32.gmra.mrb[0].mxu0 %v650
    %v798 = vpop.f32.mrb[0].mxu0
    %v799 = vadd.f32 0.0, %v798
    %v800 = vpop.f32.mrb[0].mxu0
    %801 = vdwg.mxu0
    %v802 = vadd.f32 %v731, %v799
    %v803 = vadd.f32 %v802, %v256
    %v804 = vxor.u32 %v803, 2147483648
    %v805 = vmul.f32 %v804, 1.442695
    %v806 = vpow.pop %v805
    %v807 = vadd.f32 %v806, 1.0
    %v808 = vrcp.pop %v807
    %v809 = vmul.f32 1.0, %v808
    %s810 = scalar_lea.vmem [#allocation2], 20
    %v811 = vld [vmem:[%s810] sm:$0xf]
    %812 = vmatprep.subr.mxu0 0.0
    %813 = vmatpush1.msra.mxu0 %v57
    %814 = vmatprep.subr.mxu0 0.0
    %815 = vmatpush1.msra.mxu0 %v58
    %816 = vmatprep.subr.mxu0 0.0
    %817 = vmatpush1.msra.mxu0 %v59
    %818 = vmatprep.subr.mxu0 0.0
    %819 = vmatpush1.msra.mxu0 %v60
    %820 = vmatprep.subr.mxu0 0.0
    %821 = vmatpush1.msra.mxu0 0.0
    %822 = vmatprep.subr.mxu0 0.0
    %823 = vmatpush1.msra.mxu0 0.0
    %824 = vmatprep.subr.mxu0 0.0
    %825 = vmatpush1.msra.mxu0 0.0
    %826 = vmatprep.subr.mxu0 0.0
    %827 = vmatpush1.msra.mxu0 0.0
    %828 = vmatprep.subr.mxu0 0.0
    %829 = vmatpush1.msra.mxu0 0.0
    %830 = vmatprep.subr.mxu0 0.0
    %831 = vmatpush1.msra.mxu0 0.0
    %832 = vmatprep.subr.mxu0 0.0
    %833 = vmatpush1.msra.mxu0 0.0
    %834 = vmatprep.subr.mxu0 0.0
    %835 = vmatpush1.msra.mxu0 0.0
    %836 = vmatprep.subr.mxu0 0.0
    %837 = vmatpush1.msra.mxu0 0.0
    %838 = vmatprep.subr.mxu0 0.0
    %839 = vmatpush1.msra.mxu0 0.0
    %840 = vmatprep.subr.mxu0 0.0
    %841 = vmatpush1.msra.mxu0 0.0
    %842 = vmatprep.subr.mxu0 0.0
    %843 = vmatpush1.msra.mxu0 0.0
    %844 = vmatprep.subr.mxu0 0.0
    %845 = vmatpush1.msra.mxu0 0.0
    %846 = vmatprep.subr.mxu0 0.0
    %847 = vmatpush1.msra.mxu0 0.0
    %848 = vmatprep.subr.mxu0 0.0
    %849 = vmatpush1.msra.mxu0 0.0
    %850 = vmatprep.subr.mxu0 0.0
    %851 = vmatpush1.msra.mxu0 0.0
    %852 = vmatprep.subr.mxu0 0.0
    %853 = vmatpush1.msra.mxu0 0.0
    %854 = vmatprep.subr.mxu0 0.0
    %855 = vmatpush1.msra.mxu0 0.0
    %856 = vmatprep.subr.mxu0 0.0
    %857 = vmatpush1.msra.mxu0 0.0
    %858 = vmatprep.subr.mxu0 0.0
    %859 = vmatpush1.msra.mxu0 0.0
    %860 = vmatprep.subr.mxu0 0.0
    %861 = vmatpush1.msra.mxu0 0.0
    %862 = vmatprep.subr.mxu0 0.0
    %863 = vmatpush1.msra.mxu0 0.0
    %864 = vmatprep.subr.mxu0 0.0
    %865 = vmatpush1.msra.mxu0 0.0
    %866 = vmatprep.subr.mxu0 0.0
    %867 = vmatpush1.msra.mxu0 0.0
    %868 = vmatprep.subr.mxu0 0.0
    %869 = vmatpush1.msra.mxu0 0.0
    %870 = vmatprep.subr.mxu0 0.0
    %871 = vmatpush1.msra.mxu0 0.0
    %872 = vmatprep.subr.mxu0 0.0
    %873 = vmatpush1.msra.mxu0 0.0
    %874 = vmatprep.subr.mxu0 0.0
    %875 = vmatpush1.msra.mxu0 0.0
    %876 = vmatprep.mubr.f32.mxu0 0.0
    %877 = vmatmul.mubr.f32.gmra.mrb[0].mxu0 %v650
    %v878 = vpop.f32.mrb[0].mxu0
    %v879 = vadd.f32 %v271, %v878
    %v880 = vpop.f32.mrb[0].mxu0
    %881 = vdwg.mxu0
    %v882 = vmul.f32 %v729, %v879
    %v883 = vadd.f32 %v811, %v882
    %v884 = vtanh.pop %v883
    %v885 = vsub.f32 1.0, %v809
    %v886 = vmul.f32 %v885, %v884
    %v887 = vmul.f32 %v809, %v363
    %v888 = vadd.f32 %v886, %v887
    %890 = vset.pattern.permute.xlu0 0
    %891 = vperm.xlu0 %890, %v646
    %v892 = vpop.permute.xlu0 %891
    %v894 = vmul.f32 %v892, %v888
    %v895 = vsub.f32 1.0, %v646
    %897 = vset.pattern.permute.xlu0 0
    %898 = vperm.xlu0 %897, %v895
    %v899 = vpop.permute.xlu0 %898
    %v901 = vmul.f32 %v899, %v363
    %v902 = vadd.f32 %v894, %v901
    %v903 = vmul.f32 %v892, %v902
    %s904 = scalar_lea.vmem [#allocation7], 4
    %905 = vst.msk [vmem:[%s904] sm:$0xf] %vm365, %v903
    %vm906 = vcmp.gt.s32.totalorder %v46, 8
    %v907 = vsel %vm906, 1, 0
    %v908 = vcvt.s32.f32 %v907
    %s909 = scalar_lea.vmem [#allocation2], 216
    %v910 = vld [vmem:[%s909] sm:$0xf]
    %v912 = vsel %vm91, %v640, 0
    %914 = vmatprep.subr.mxu0 0.0
    %915 = vmatpush1.msra.mxu0 %v62
    %916 = vmatprep.subr.mxu0 0.0
    %917 = vmatpush1.msra.mxu0 %v63
    %918 = vmatprep.subr.mxu0 0.0
    %919 = vmatpush1.msra.mxu0 %v64
    %920 = vmatprep.subr.mxu0 0.0
    %921 = vmatpush1.msra.mxu0 %v65
    %922 = vmatprep.subr.mxu0 0.0
    %923 = vmatpush1.msra.mxu0 0.0
    %924 = vmatprep.subr.mxu0 0.0
    %925 = vmatpush1.msra.mxu0 0.0
    %926 = vmatprep.subr.mxu0 0.0
    %927 = vmatpush1.msra.mxu0 0.0
    %928 = vmatprep.subr.mxu0 0.0
    %929 = vmatpush1.msra.mxu0 0.0
    %930 = vmatprep.subr.mxu0 0.0
    %931 = vmatpush1.msra.mxu0 0.0
    %932 = vmatprep.subr.mxu0 0.0
    %933 = vmatpush1.msra.mxu0 0.0
    %934 = vmatprep.subr.mxu0 0.0
    %935 = vmatpush1.msra.mxu0 0.0
    %936 = vmatprep.subr.mxu0 0.0
    %937 = vmatpush1.msra.mxu0 0.0
    %938 = vmatprep.subr.mxu0 0.0
    %939 = vmatpush1.msra.mxu0 0.0
    %940 = vmatprep.subr.mxu0 0.0
    %941 = vmatpush1.msra.mxu0 0.0
    %942 = vmatprep.subr.mxu0 0.0
    %943 = vmatpush1.msra.mxu0 0.0
    %944 = vmatprep.subr.mxu0 0.0
    %945 = vmatpush1.msra.mxu0 0.0
    %946 = vmatprep.subr.mxu0 0.0
    %947 = vmatpush1.msra.mxu0 0.0
    %948 = vmatprep.subr.mxu0 0.0
    %949 = vmatpush1.msra.mxu0 0.0
    %950 = vmatprep.subr.mxu0 0.0
    %951 = vmatpush1.msra.mxu0 0.0
    %952 = vmatprep.subr.mxu0 0.0
    %953 = vmatpush1.msra.mxu0 0.0
    %954 = vmatprep.subr.mxu0 0.0
    %955 = vmatpush1.msra.mxu0 0.0
    %956 = vmatprep.subr.mxu0 0.0
    %957 = vmatpush1.msra.mxu0 0.0
    %958 = vmatprep.subr.mxu0 0.0
    %959 = vmatpush1.msra.mxu0 0.0
    %960 = vmatprep.subr.mxu0 0.0
    %961 = vmatpush1.msra.mxu0 0.0
    %962 = vmatprep.subr.mxu0 0.0
    %963 = vmatpush1.msra.mxu0 0.0
    %964 = vmatprep.subr.mxu0 0.0
    %965 = vmatpush1.msra.mxu0 0.0
    %966 = vmatprep.subr.mxu0 0.0
    %967 = vmatpush1.msra.mxu0 0.0
    %968 = vmatprep.subr.mxu0 0.0
    %969 = vmatpush1.msra.mxu0 0.0
    %970 = vmatprep.subr.mxu0 0.0
    %971 = vmatpush1.msra.mxu0 0.0
    %972 = vmatprep.subr.mxu0 0.0
    %973 = vmatpush1.msra.mxu0 0.0
    %974 = vmatprep.subr.mxu0 0.0
    %975 = vmatpush1.msra.mxu0 0.0
    %976 = vmatprep.subr.mxu0 0.0
    %977 = vmatpush1.msra.mxu0 0.0
    %978 = vmatprep.mubr.f32.mxu0 0.0
    %979 = vmatmul.mubr.f32.gmra.mrb[0].mxu0 %v912
    %v980 = vpop.f32.mrb[0].mxu0
    %v981 = vadd.f32 0.0, %v980
    %v982 = vpop.f32.mrb[0].mxu0
    %983 = vdwg.mxu0
    %v984 = vadd.f32 %v910, %v981
    %v985 = vadd.f32 %v984, %v447
    %v986 = vxor.u32 %v985, 2147483648
    %v987 = vmul.f32 %v986, 1.442695
    %v988 = vpow.pop %v987
    %v989 = vadd.f32 %v988, 1.0
    %v990 = vrcp.pop %v989
    %v991 = vmul.f32 1.0, %v990
    %s992 = scalar_lea.vmem [#allocation2], 220
    %v993 = vld [vmem:[%s992] sm:$0xf]
    %994 = vmatprep.subr.mxu0 0.0
    %995 = vmatpush1.msra.mxu0 %v67
    %996 = vmatprep.subr.mxu0 0.0
    %997 = vmatpush1.msra.mxu0 %v68
    %998 = vmatprep.subr.mxu0 0.0
    %999 = vmatpush1.msra.mxu0 %v69
    %1000 = vmatprep.subr.mxu0 0.0
    %1001 = vmatpush1.msra.mxu0 %v70
    %1002 = vmatprep.subr.mxu0 0.0
    %1003 = vmatpush1.msra.mxu0 0.0
    %1004 = vmatprep.subr.mxu0 0.0
    %1005 = vmatpush1.msra.mxu0 0.0
    %1006 = vmatprep.subr.mxu0 0.0
    %1007 = vmatpush1.msra.mxu0 0.0
    %1008 = vmatprep.subr.mxu0 0.0
    %1009 = vmatpush1.msra.mxu0 0.0
    %1010 = vmatprep.subr.mxu0 0.0
    %1011 = vmatpush1.msra.mxu0 0.0
    %1012 = vmatprep.subr.mxu0 0.0
    %1013 = vmatpush1.msra.mxu0 0.0
    %1014 = vmatprep.subr.mxu0 0.0
    %1015 = vmatpush1.msra.mxu0 0.0
    %1016 = vmatprep.subr.mxu0 0.0
    %1017 = vmatpush1.msra.mxu0 0.0
    %1018 = vmatprep.subr.mxu0 0.0
    %1019 = vmatpush1.msra.mxu0 0.0
    %1020 = vmatprep.subr.mxu0 0.0
    %1021 = vmatpush1.msra.mxu0 0.0
    %1022 = vmatprep.subr.mxu0 0.0
    %1023 = vmatpush1.msra.mxu0 0.0
    %1024 = vmatprep.subr.mxu0 0.0
    %1025 = vmatpush1.msra.mxu0 0.0
    %1026 = vmatprep.subr.mxu0 0.0
    %1027 = vmatpush1.msra.mxu0 0.0
    %1028 = vmatprep.subr.mxu0 0.0
    %1029 = vmatpush1.msra.mxu0 0.0
    %1030 = vmatprep.subr.mxu0 0.0
    %1031 = vmatpush1.msra.mxu0 0.0
    %1032 = vmatprep.subr.mxu0 0.0
    %1033 = vmatpush1.msra.mxu0 0.0
    %1034 = vmatprep.subr.mxu0 0.0
    %1035 = vmatpush1.msra.mxu0 0.0
    %1036 = vmatprep.subr.mxu0 0.0
    %1037 = vmatpush1.msra.mxu0 0.0
    %1038 = vmatprep.subr.mxu0 0.0
    %1039 = vmatpush1.msra.mxu0 0.0
    %1040 = vmatprep.subr.mxu0 0.0
    %1041 = vmatpush1.msra.mxu0 0.0
    %1042 = vmatprep.subr.mxu0 0.0
    %1043 = vmatpush1.msra.mxu0 0.0
    %1044 = vmatprep.subr.mxu0 0.0
    %1045 = vmatpush1.msra.mxu0 0.0
    %1046 = vmatprep.subr.mxu0 0.0
    %1047 = vmatpush1.msra.mxu0 0.0
    %1048 = vmatprep.subr.mxu0 0.0
    %1049 = vmatpush1.msra.mxu0 0.0
    %1050 = vmatprep.subr.mxu0 0.0
    %1051 = vmatpush1.msra.mxu0 0.0
    %1052 = vmatprep.subr.mxu0 0.0
    %1053 = vmatpush1.msra.mxu0 0.0
    %1054 = vmatprep.subr.mxu0 0.0
    %1055 = vmatpush1.msra.mxu0 0.0
    %1056 = vmatprep.subr.mxu0 0.0
    %1057 = vmatpush1.msra.mxu0 0.0
    %1058 = vmatprep.mubr.f32.mxu0 0.0
    %1059 = vmatmul.mubr.f32.gmra.mrb[0].mxu0 %v912
    %v1060 = vpop.f32.mrb[0].mxu0
    %v1061 = vadd.f32 0.0, %v1060
    %v1062 = vpop.f32.mrb[0].mxu0
    %1063 = vdwg.mxu0
    %v1064 = vadd.f32 %v993, %v1061
    %v1065 = vadd.f32 %v1064, %v533
    %v1066 = vxor.u32 %v1065, 2147483648
    %v1067 = vmul.f32 %v1066, 1.442695
    %v1068 = vpow.pop %v1067
    %v1069 = vadd.f32 %v1068, 1.0
    %v1070 = vrcp.pop %v1069
    %v1071 = vmul.f32 1.0, %v1070
    %s1072 = scalar_lea.vmem [#allocation2], 224
    %v1073 = vld [vmem:[%s1072] sm:$0xf]
    %1074 = vmatprep.subr.mxu0 0.0
    %1075 = vmatpush1.msra.mxu0 %v72
    %1076 = vmatprep.subr.mxu0 0.0
    %1077 = vmatpush1.msra.mxu0 %v73
    %1078 = vmatprep.subr.mxu0 0.0
    %1079 = vmatpush1.msra.mxu0 %v74
    %1080 = vmatprep.subr.mxu0 0.0
    %1081 = vmatpush1.msra.mxu0 %v75
    %1082 = vmatprep.subr.mxu0 0.0
    %1083 = vmatpush1.msra.mxu0 0.0
    %1084 = vmatprep.subr.mxu0 0.0
    %1085 = vmatpush1.msra.mxu0 0.0
    %1086 = vmatprep.subr.mxu0 0.0
    %1087 = vmatpush1.msra.mxu0 0.0
    %1088 = vmatprep.subr.mxu0 0.0
    %1089 = vmatpush1.msra.mxu0 0.0
    %1090 = vmatprep.subr.mxu0 0.0
    %1091 = vmatpush1.msra.mxu0 0.0
    %1092 = vmatprep.subr.mxu0 0.0
    %1093 = vmatpush1.msra.mxu0 0.0
    %1094 = vmatprep.subr.mxu0 0.0
    %1095 = vmatpush1.msra.mxu0 0.0
    %1096 = vmatprep.subr.mxu0 0.0
    %1097 = vmatpush1.msra.mxu0 0.0
    %1098 = vmatprep.subr.mxu0 0.0
    %1099 = vmatpush1.msra.mxu0 0.0
    %1100 = vmatprep.subr.mxu0 0.0
    %1101 = vmatpush1.msra.mxu0 0.0
    %1102 = vmatprep.subr.mxu0 0.0
    %1103 = vmatpush1.msra.mxu0 0.0
    %1104 = vmatprep.subr.mxu0 0.0
    %1105 = vmatpush1.msra.mxu0 0.0
    %1106 = vmatprep.subr.mxu0 0.0
    %1107 = vmatpush1.msra.mxu0 0.0
    %1108 = vmatprep.subr.mxu0 0.0
    %1109 = vmatpush1.msra.mxu0 0.0
    %1110 = vmatprep.subr.mxu0 0.0
    %1111 = vmatpush1.msra.mxu0 0.0
    %1112 = vmatprep.subr.mxu0 0.0
    %1113 = vmatpush1.msra.mxu0 0.0
    %1114 = vmatprep.subr.mxu0 0.0
    %1115 = vmatpush1.msra.mxu0 0.0
    %1116 = vmatprep.subr.mxu0 0.0
    %1117 = vmatpush1.msra.mxu0 0.0
    %1118 = vmatprep.subr.mxu0 0.0
    %1119 = vmatpush1.msra.mxu0 0.0
    %1120 = vmatprep.subr.mxu0 0.0
    %1121 = vmatpush1.msra.mxu0 0.0
    %1122 = vmatprep.subr.mxu0 0.0
    %1123 = vmatpush1.msra.mxu0 0.0
    %1124 = vmatprep.subr.mxu0 0.0
    %1125 = vmatpush1.msra.mxu0 0.0
    %1126 = vmatprep.subr.mxu0 0.0
    %1127 = vmatpush1.msra.mxu0 0.0
    %1128 = vmatprep.subr.mxu0 0.0
    %1129 = vmatpush1.msra.mxu0 0.0
    %1130 = vmatprep.subr.mxu0 0.0
    %1131 = vmatpush1.msra.mxu0 0.0
    %1132 = vmatprep.subr.mxu0 0.0
    %1133 = vmatpush1.msra.mxu0 0.0
    %1134 = vmatprep.subr.mxu0 0.0
    %1135 = vmatpush1.msra.mxu0 0.0
    %1136 = vmatprep.subr.mxu0 0.0
    %1137 = vmatpush1.msra.mxu0 0.0
    %1138 = vmatprep.mubr.f32.mxu0 0.0
    %1139 = vmatmul.mubr.f32.gmra.mrb[0].mxu0 %v912
    %v1140 = vpop.f32.mrb[0].mxu0
    %v1141 = vadd.f32 %v548, %v1140
    %v1142 = vpop.f32.mrb[0].mxu0
    %1143 = vdwg.mxu0
    %v1144 = vmul.f32 %v991, %v1141
    %v1145 = vadd.f32 %v1073, %v1144
    %v1146 = vtanh.pop %v1145
    %v1147 = vsub.f32 1.0, %v1071
    %v1148 = vmul.f32 %v1147, %v1146
    %v1149 = vmul.f32 %v1071, %v640
    %v1150 = vadd.f32 %v1148, %v1149
    %1152 = vset.pattern.permute.xlu0 0
    %1153 = vperm.xlu0 %1152, %v908
    %v1154 = vpop.permute.xlu0 %1153
    %v1156 = vmul.f32 %v1154, %v1150
    %v1157 = vsub.f32 1.0, %v908
    %1159 = vset.pattern.permute.xlu0 0
    %1160 = vperm.xlu0 %1159, %v1157
    %v1161 = vpop.permute.xlu0 %1160
    %v1163 = vmul.f32 %v1161, %v640
    %v1164 = vadd.f32 %v1156, %v1163
    %v1165 = vmul.f32 %v1154, %v1164
    %s1166 = scalar_lea.vmem [#allocation7], 72
    %1167 = vst.msk [vmem:[%s1166] sm:$0xf] %vm365, %v1165
    %vm1168 = vcmp.gt.s32.totalorder %v46, 2
    %v1169 = vsel %vm1168, 1, 0
    %v1170 = vcvt.s32.f32 %v1169
    %s1171 = scalar_lea.vmem [#allocation2], 24
    %v1172 = vld [vmem:[%s1171] sm:$0xf]
    %v1174 = vsel %vm91, %v902, 0
    %1176 = vmatprep.subr.mxu0 0.0
    %1177 = vmatpush1.msra.mxu0 %v47
    %1178 = vmatprep.subr.mxu0 0.0
    %1179 = vmatpush1.msra.mxu0 %v48
    %1180 = vmatprep.subr.mxu0 0.0
    %1181 = vmatpush1.msra.mxu0 %v49
    %1182 = vmatprep.subr.mxu0 0.0
    %1183 = vmatpush1.msra.mxu0 %v50
    %1184 = vmatprep.subr.mxu0 0.0
    %1185 = vmatpush1.msra.mxu0 0.0
    %1186 = vmatprep.subr.mxu0 0.0
    %1187 = vmatpush1.msra.mxu0 0.0
    %1188 = vmatprep.subr.mxu0 0.0
    %1189 = vmatpush1.msra.mxu0 0.0
    %1190 = vmatprep.subr.mxu0 0.0
    %1191 = vmatpush1.msra.mxu0 0.0
    %1192 = vmatprep.subr.mxu0 0.0
    %1193 = vmatpush1.msra.mxu0 0.0
    %1194 = vmatprep.subr.mxu0 0.0
    %1195 = vmatpush1.msra.mxu0 0.0
    %1196 = vmatprep.subr.mxu0 0.0
    %1197 = vmatpush1.msra.mxu0 0.0
    %1198 = vmatprep.subr.mxu0 0.0
    %1199 = vmatpush1.msra.mxu0 0.0
    %1200 = vmatprep.subr.mxu0 0.0
    %1201 = vmatpush1.msra.mxu0 0.0
    %1202 = vmatprep.subr.mxu0 0.0
    %1203 = vmatpush1.msra.mxu0 0.0
    %1204 = vmatprep.subr.mxu0 0.0
    %1205 = vmatpush1.msra.mxu0 0.0
    %1206 = vmatprep.subr.mxu0 0.0
    %1207 = vmatpush1.msra.mxu0 0.0
    %1208 = vmatprep.subr.mxu0 0.0
    %1209 = vmatpush1.msra.mxu0 0.0
    %1210 = vmatprep.subr.mxu0 0.0
    %1211 = vmatpush1.msra.mxu0 0.0
    %1212 = vmatprep.subr.mxu0 0.0
    %1213 = vmatpush1.msra.mxu0 0.0
    %1214 = vmatprep.subr.mxu0 0.0
    %1215 = vmatpush1.msra.mxu0 0.0
    %1216 = vmatprep.subr.mxu0 0.0
    %1217 = vmatpush1.msra.mxu0 0.0
    %1218 = vmatprep.subr.mxu0 0.0
    %1219 = vmatpush1.msra.mxu0 0.0
    %1220 = vmatprep.subr.mxu0 0.0
    %1221 = vmatpush1.msra.mxu0 0.0
    %1222 = vmatprep.subr.mxu0 0.0
    %1223 = vmatpush1.msra.mxu0 0.0
    %1224 = vmatprep.subr.mxu0 0.0
    %1225 = vmatpush1.msra.mxu0 0.0
    %1226 = vmatprep.subr.mxu0 0.0
    %1227 = vmatpush1.msra.mxu0 0.0
    %1228 = vmatprep.subr.mxu0 0.0
    %1229 = vmatpush1.msra.mxu0 0.0
    %1230 = vmatprep.subr.mxu0 0.0
    %1231 = vmatpush1.msra.mxu0 0.0
    %1232 = vmatprep.subr.mxu0 0.0
    %1233 = vmatpush1.msra.mxu0 0.0
    %1234 = vmatprep.subr.mxu0 0.0
    %1235 = vmatpush1.msra.mxu0 0.0
    %1236 = vmatprep.subr.mxu0 0.0
    %1237 = vmatpush1.msra.mxu0 0.0
    %1238 = vmatprep.subr.mxu0 0.0
    %1239 = vmatpush1.msra.mxu0 0.0
    %1240 = vmatprep.mubr.f32.mxu0 0.0
    %1241 = vmatmul.mubr.f32.gmra.mrb[0].mxu0 %v1174
    %v1242 = vpop.f32.mrb[0].mxu0
    %v1243 = vadd.f32 0.0, %v1242
    %v1244 = vpop.f32.mrb[0].mxu0
    %1245 = vdwg.mxu0
    %v1246 = vadd.f32 %v1172, %v1243
    %v1247 = vadd.f32 %v1246, %v170
    %v1248 = vxor.u32 %v1247, 2147483648
    %v1249 = vmul.f32 %v1248, 1.442695
    %v1250 = vpow.pop %v1249
    %v1251 = vadd.f32 %v1250, 1.0
    %v1252 = vrcp.pop %v1251
    %v1253 = vmul.f32 1.0, %v1252
    %s1254 = scalar_lea.vmem [#allocation2], 28
    %v1255 = vld [vmem:[%s1254] sm:$0xf]
    %1256 = vmatprep.subr.mxu0 0.0
    %1257 = vmatpush1.msra.mxu0 %v52
    %1258 = vmatprep.subr.mxu0 0.0
    %1259 = vmatpush1.msra.mxu0 %v53
    %1260 = vmatprep.subr.mxu0 0.0
    %1261 = vmatpush1.msra.mxu0 %v54
    %1262 = vmatprep.subr.mxu0 0.0
    %1263 = vmatpush1.msra.mxu0 %v55
    %1264 = vmatprep.subr.mxu0 0.0
    %1265 = vmatpush1.msra.mxu0 0.0
    %1266 = vmatprep.subr.mxu0 0.0
    %1267 = vmatpush1.msra.mxu0 0.0
    %1268 = vmatprep.subr.mxu0 0.0
    %1269 = vmatpush1.msra.mxu0 0.0
    %1270 = vmatprep.subr.mxu0 0.0
    %1271 = vmatpush1.msra.mxu0 0.0
    %1272 = vmatprep.subr.mxu0 0.0
    %1273 = vmatpush1.msra.mxu0 0.0
    %1274 = vmatprep.subr.mxu0 0.0
    %1275 = vmatpush1.msra.mxu0 0.0
    %1276 = vmatprep.subr.mxu0 0.0
    %1277 = vmatpush1.msra.mxu0 0.0
    %1278 = vmatprep.subr.mxu0 0.0
    %1279 = vmatpush1.msra.mxu0 0.0
    %1280 = vmatprep.subr.mxu0 0.0
    %1281 = vmatpush1.msra.mxu0 0.0
    %1282 = vmatprep.subr.mxu0 0.0
    %1283 = vmatpush1.msra.mxu0 0.0
    %1284 = vmatprep.subr.mxu0 0.0
    %1285 = vmatpush1.msra.mxu0 0.0
    %1286 = vmatprep.subr.mxu0 0.0
    %1287 = vmatpush1.msra.mxu0 0.0
    %1288 = vmatprep.subr.mxu0 0.0
    %1289 = vmatpush1.msra.mxu0 0.0
    %1290 = vmatprep.subr.mxu0 0.0
    %1291 = vmatpush1.msra.mxu0 0.0
    %1292 = vmatprep.subr.mxu0 0.0
    %1293 = vmatpush1.msra.mxu0 0.0
    %1294 = vmatprep.subr.mxu0 0.0
    %1295 = vmatpush1.msra.mxu0 0.0
    %1296 = vmatprep.subr.mxu0 0.0
    %1297 = vmatpush1.msra.mxu0 0.0
    %1298 = vmatprep.subr.mxu0 0.0
    %1299 = vmatpush1.msra.mxu0 0.0
    %1300 = vmatprep.subr.mxu0 0.0
    %1301 = vmatpush1.msra.mxu0 0.0
    %1302 = vmatprep.subr.mxu0 0.0
    %1303 = vmatpush1.msra.mxu0 0.0
    %1304 = vmatprep.subr.mxu0 0.0
    %1305 = vmatpush1.msra.mxu0 0.0
    %1306 = vmatprep.subr.mxu0 0.0
    %1307 = vmatpush1.msra.mxu0 0.0
    %1308 = vmatprep.subr.mxu0 0.0
    %1309 = vmatpush1.msra.mxu0 0.0
    %1310 = vmatprep.subr.mxu0 0.0
    %1311 = vmatpush1.msra.mxu0 0.0
    %1312 = vmatprep.subr.mxu0 0.0
    %1313 = vmatpush1.msra.mxu0 0.0
    %1314 = vmatprep.subr.mxu0 0.0
    %1315 = vmatpush1.msra.mxu0 0.0
    %1316 = vmatprep.subr.mxu0 0.0
    %1317 = vmatpush1.msra.mxu0 0.0
    %1318 = vmatprep.subr.mxu0 0.0
    %1319 = vmatpush1.msra.mxu0 0.0
    %1320 = vmatprep.mubr.f32.mxu0 0.0
    %1321 = vmatmul.mubr.f32.gmra.mrb[0].mxu0 %v1174
    %v1322 = vpop.f32.mrb[0].mxu0
    %v1323 = vadd.f32 0.0, %v1322
    %v1324 = vpop.f32.mrb[0].mxu0
    %1325 = vdwg.mxu0
    %v1326 = vadd.f32 %v1255, %v1323
    %v1327 = vadd.f32 %v1326, %v256
    %v1328 = vxor.u32 %v1327, 2147483648
    %v1329 = vmul.f32 %v1328, 1.442695
    %v1330 = vpow.pop %v1329
    %v1331 = vadd.f32 %v1330, 1.0
    %v1332 = vrcp.pop %v1331
    %v1333 = vmul.f32 1.0, %v1332
    %s1334 = scalar_lea.vmem [#allocation2], 32
    %v1335 = vld [vmem:[%s1334] sm:$0xf]
    %1336 = vmatprep.subr.mxu0 0.0
    %1337 = vmatpush1.msra.mxu0 %v57
    %1338 = vmatprep.subr.mxu0 0.0
    %1339 = vmatpush1.msra.mxu0 %v58
    %1340 = vmatprep.subr.mxu0 0.0
    %1341 = vmatpush1.msra.mxu0 %v59
    %1342 = vmatprep.subr.mxu0 0.0
    %1343 = vmatpush1.msra.mxu0 %v60
    %1344 = vmatprep.subr.mxu0 0.0
    %1345 = vmatpush1.msra.mxu0 0.0
    %1346 = vmatprep.subr.mxu0 0.0
    %1347 = vmatpush1.msra.mxu0 0.0
    %1348 = vmatprep.subr.mxu0 0.0
    %1349 = vmatpush1.msra.mxu0 0.0
    %1350 = vmatprep.subr.mxu0 0.0
    %1351 = vmatpush1.msra.mxu0 0.0
    %1352 = vmatprep.subr.mxu0 0.0
    %1353 = vmatpush1.msra.mxu0 0.0
    %1354 = vmatprep.subr.mxu0 0.0
    %1355 = vmatpush1.msra.mxu0 0.0
    %1356 = vmatprep.subr.mxu0 0.0
    %1357 = vmatpush1.msra.mxu0 0.0
    %1358 = vmatprep.subr.mxu0 0.0
    %1359 = vmatpush1.msra.mxu0 0.0
    %1360 = vmatprep.subr.mxu0 0.0
    %1361 = vmatpush1.msra.mxu0 0.0
    %1362 = vmatprep.subr.mxu0 0.0
    %1363 = vmatpush1.msra.mxu0 0.0
    %1364 = vmatprep.subr.mxu0 0.0
    %1365 = vmatpush1.msra.mxu0 0.0
    %1366 = vmatprep.subr.mxu0 0.0
    %1367 = vmatpush1.msra.mxu0 0.0
    %1368 = vmatprep.subr.mxu0 0.0
    %1369 = vmatpush1.msra.mxu0 0.0
    %1370 = vmatprep.subr.mxu0 0.0
    %1371 = vmatpush1.msra.mxu0 0.0
    %1372 = vmatprep.subr.mxu0 0.0
    %1373 = vmatpush1.msra.mxu0 0.0
    %1374 = vmatprep.subr.mxu0 0.0
    %1375 = vmatpush1.msra.mxu0 0.0
    %1376 = vmatprep.subr.mxu0 0.0
    %1377 = vmatpush1.msra.mxu0 0.0
    %1378 = vmatprep.subr.mxu0 0.0
    %1379 = vmatpush1.msra.mxu0 0.0
    %1380 = vmatprep.subr.mxu0 0.0
    %1381 = vmatpush1.msra.mxu0 0.0
    %1382 = vmatprep.subr.mxu0 0.0
    %1383 = vmatpush1.msra.mxu0 0.0
    %1384 = vmatprep.subr.mxu0 0.0
    %1385 = vmatpush1.msra.mxu0 0.0
    %1386 = vmatprep.subr.mxu0 0.0
    %1387 = vmatpush1.msra.mxu0 0.0
    %1388 = vmatprep.subr.mxu0 0.0
    %1389 = vmatpush1.msra.mxu0 0.0
    %1390 = vmatprep.subr.mxu0 0.0
    %1391 = vmatpush1.msra.mxu0 0.0
    %1392 = vmatprep.subr.mxu0 0.0
    %1393 = vmatpush1.msra.mxu0 0.0
    %1394 = vmatprep.subr.mxu0 0.0
    %1395 = vmatpush1.msra.mxu0 0.0
    %1396 = vmatprep.subr.mxu0 0.0
    %1397 = vmatpush1.msra.mxu0 0.0
    %1398 = vmatprep.subr.mxu0 0.0
    %1399 = vmatpush1.msra.mxu0 0.0
    %1400 = vmatprep.mubr.f32.mxu0 0.0
    %1401 = vmatmul.mubr.f32.gmra.mrb[0].mxu0 %v1174
    %v1402 = vpop.f32.mrb[0].mxu0
    %v1403 = vadd.f32 %v271, %v1402
    %v1404 = vpop.f32.mrb[0].mxu0
    %1405 = vdwg.mxu0
    %v1406 = vmul.f32 %v1253, %v1403
    %v1407 = vadd.f32 %v1335, %v1406
    %v1408 = vtanh.pop %v1407
    %v1409 = vsub.f32 1.0, %v1333
    %v1410 = vmul.f32 %v1409, %v1408
    %v1411 = vmul.f32 %v1333, %v902
    %v1412 = vadd.f32 %v1410, %v1411
    %1414 = vset.pattern.permute.xlu0 0
    %1415 = vperm.xlu0 %1414, %v1170
    %v1416 = vpop.permute.xlu0 %1415
    %v1418 = vmul.f32 %v1416, %v1412
    %v1419 = vsub.f32 1.0, %v1170
    %1421 = vset.pattern.permute.xlu0 0
    %1422 = vperm.xlu0 %1421, %v1419
    %v1423 = vpop.permute.xlu0 %1422
    %v1425 = vmul.f32 %v1423, %v902
    %v1426 = vadd.f32 %v1418, %v1425
    %v1427 = vmul.f32 %v1416, %v1426
    %s1428 = scalar_lea.vmem [#allocation7], 8
    %1429 = vst.msk [vmem:[%s1428] sm:$0xf] %vm365, %v1427
    %vm1430 = vcmp.gt.s32.totalorder %v46, 7
    %v1431 = vsel %vm1430, 1, 0
    %v1432 = vcvt.s32.f32 %v1431
    %s1433 = scalar_lea.vmem [#allocation2], 204
    %v1434 = vld [vmem:[%s1433] sm:$0xf]
    %v1436 = vsel %vm91, %v1164, 0
    %1438 = vmatprep.subr.mxu0 0.0
    %1439 = vmatpush1.msra.mxu0 %v62
    %1440 = vmatprep.subr.mxu0 0.0
    %1441 = vmatpush1.msra.mxu0 %v63
    %1442 = vmatprep.subr.mxu0 0.0
    %1443 = vmatpush1.msra.mxu0 %v64
    %1444 = vmatprep.subr.mxu0 0.0
    %1445 = vmatpush1.msra.mxu0 %v65
    %1446 = vmatprep.subr.mxu0 0.0
    %1447 = vmatpush1.msra.mxu0 0.0
    %1448 = vmatprep.subr.mxu0 0.0
    %1449 = vmatpush1.msra.mxu0 0.0
    %1450 = vmatprep.subr.mxu0 0.0
    %1451 = vmatpush1.msra.mxu0 0.0
    %1452 = vmatprep.subr.mxu0 0.0
    %1453 = vmatpush1.msra.mxu0 0.0
    %1454 = vmatprep.subr.mxu0 0.0
    %1455 = vmatpush1.msra.mxu0 0.0
    %1456 = vmatprep.subr.mxu0 0.0
    %1457 = vmatpush1.msra.mxu0 0.0
    %1458 = vmatprep.subr.mxu0 0.0
    %1459 = vmatpush1.msra.mxu0 0.0
    %1460 = vmatprep.subr.mxu0 0.0
    %1461 = vmatpush1.msra.mxu0 0.0
    %1462 = vmatprep.subr.mxu0 0.0
    %1463 = vmatpush1.msra.mxu0 0.0
    %1464 = vmatprep.subr.mxu0 0.0
    %1465 = vmatpush1.msra.mxu0 0.0
    %1466 = vmatprep.subr.mxu0 0.0
    %1467 = vmatpush1.msra.mxu0 0.0
    %1468 = vmatprep.subr.mxu0 0.0
    %1469 = vmatpush1.msra.mxu0 0.0
    %1470 = vmatprep.subr.mxu0 0.0
    %1471 = vmatpush1.msra.mxu0 0.0
    %1472 = vmatprep.subr.mxu0 0.0
    %1473 = vmatpush1.msra.mxu0 0.0
    %1474 = vmatprep.subr.mxu0 0.0
    %1475 = vmatpush1.msra.mxu0 0.0
    %1476 = vmatprep.subr.mxu0 0.0
    %1477 = vmatpush1.msra.mxu0 0.0
    %1478 = vmatprep.subr.mxu0 0.0
    %1479 = vmatpush1.msra.mxu0 0.0
    %1480 = vmatprep.subr.mxu0 0.0
    %1481 = vmatpush1.msra.mxu0 0.0
    %1482 = vmatprep.subr.mxu0 0.0
    %1483 = vmatpush1.msra.mxu0 0.0
    %1484 = vmatprep.subr.mxu0 0.0
    %1485 = vmatpush1.msra.mxu0 0.0
    %1486 = vmatprep.subr.mxu0 0.0
    %1487 = vmatpush1.msra.mxu0 0.0
    %1488 = vmatprep.subr.mxu0 0.0
    %1489 = vmatpush1.msra.mxu0 0.0
    %1490 = vmatprep.subr.mxu0 0.0
    %1491 = vmatpush1.msra.mxu0 0.0
    %1492 = vmatprep.subr.mxu0 0.0
    %1493 = vmatpush1.msra.mxu0 0.0
    %1494 = vmatprep.subr.mxu0 0.0
    %1495 = vmatpush1.msra.mxu0 0.0
    %1496 = vmatprep.subr.mxu0 0.0
    %1497 = vmatpush1.msra.mxu0 0.0
    %1498 = vmatprep.subr.mxu0 0.0
    %1499 = vmatpush1.msra.mxu0 0.0
    %1500 = vmatprep.subr.mxu0 0.0
    %1501 = vmatpush1.msra.mxu0 0.0
    %1502 = vmatprep.mubr.f32.mxu0 0.0
    %1503 = vmatmul.mubr.f32.gmra.mrb[0].mxu0 %v1436
    %v1504 = vpop.f32.mrb[0].mxu0
    %v1505 = vadd.f32 0.0, %v1504
    %v1506 = vpop.f32.mrb[0].mxu0
    %1507 = vdwg.mxu0
    %v1508 = vadd.f32 %v1434, %v1505
    %v1509 = vadd.f32 %v1508, %v447
    %v1510 = vxor.u32 %v1509, 2147483648
    %v1511 = vmul.f32 %v1510, 1.442695
    %v1512 = vpow.pop %v1511
    %v1513 = vadd.f32 %v1512, 1.0
    %v1514 = vrcp.pop %v1513
    %v1515 = vmul.f32 1.0, %v1514
    %s1516 = scalar_lea.vmem [#allocation2], 208
    %v1517 = vld [vmem:[%s1516] sm:$0xf]
    %1518 = vmatprep.subr.mxu0 0.0
    %1519 = vmatpush1.msra.mxu0 %v67
    %1520 = vmatprep.subr.mxu0 0.0
    %1521 = vmatpush1.msra.mxu0 %v68
    %1522 = vmatprep.subr.mxu0 0.0
    %1523 = vmatpush1.msra.mxu0 %v69
    %1524 = vmatprep.subr.mxu0 0.0
    %1525 = vmatpush1.msra.mxu0 %v70
    %1526 = vmatprep.subr.mxu0 0.0
    %1527 = vmatpush1.msra.mxu0 0.0
    %1528 = vmatprep.subr.mxu0 0.0
    %1529 = vmatpush1.msra.mxu0 0.0
    %1530 = vmatprep.subr.mxu0 0.0
    %1531 = vmatpush1.msra.mxu0 0.0
    %1532 = vmatprep.subr.mxu0 0.0
    %1533 = vmatpush1.msra.mxu0 0.0
    %1534 = vmatprep.subr.mxu0 0.0
    %1535 = vmatpush1.msra.mxu0 0.0
    %1536 = vmatprep.subr.mxu0 0.0
    %1537 = vmatpush1.msra.mxu0 0.0
    %1538 = vmatprep.subr.mxu0 0.0
    %1539 = vmatpush1.msra.mxu0 0.0
    %1540 = vmatprep.subr.mxu0 0.0
    %1541 = vmatpush1.msra.mxu0 0.0
    %1542 = vmatprep.subr.mxu0 0.0
    %1543 = vmatpush1.msra.mxu0 0.0
    %1544 = vmatprep.subr.mxu0 0.0
    %1545 = vmatpush1.msra.mxu0 0.0
    %1546 = vmatprep.subr.mxu0 0.0
    %1547 = vmatpush1.msra.mxu0 0.0
    %1548 = vmatprep.subr.mxu0 0.0
    %1549 = vmatpush1.msra.mxu0 0.0
    %1550 = vmatprep.subr.mxu0 0.0
    %1551 = vmatpush1.msra.mxu0 0.0
    %1552 = vmatprep.subr.mxu0 0.0
    %1553 = vmatpush1.msra.mxu0 0.0
    %1554 = vmatprep.subr.mxu0 0.0
    %1555 = vmatpush1.msra.mxu0 0.0
    %1556 = vmatprep.subr.mxu0 0.0
    %1557 = vmatpush1.msra.mxu0 0.0
    %1558 = vmatprep.subr.mxu0 0.0
    %1559 = vmatpush1.msra.mxu0 0.0
    %1560 = vmatprep.subr.mxu0 0.0
    %1561 = vmatpush1.msra.mxu0 0.0
    %1562 = vmatprep.subr.mxu0 0.0
    %1563 = vmatpush1.msra.mxu0 0.0
    %1564 = vmatprep.subr.mxu0 0.0
    %1565 = vmatpush1.msra.mxu0 0.0
    %1566 = vmatprep.subr.mxu0 0.0
    %1567 = vmatpush1.msra.mxu0 0.0
    %1568 = vmatprep.subr.mxu0 0.0
    %1569 = vmatpush1.msra.mxu0 0.0
    %1570 = vmatprep.subr.mxu0 0.0
    %1571 = vmatpush1.msra.mxu0 0.0
    %1572 = vmatprep.subr.mxu0 0.0
    %1573 = vmatpush1.msra.mxu0 0.0
    %1574 = vmatprep.subr.mxu0 0.0
    %1575 = vmatpush1.msra.mxu0 0.0
    %1576 = vmatprep.subr.mxu0 0.0
    %1577 = vmatpush1.msra.mxu0 0.0
    %1578 = vmatprep.subr.mxu0 0.0
    %1579 = vmatpush1.msra.mxu0 0.0
    %1580 = vmatprep.subr.mxu0 0.0
    %1581 = vmatpush1.msra.mxu0 0.0
    %1582 = vmatprep.mubr.f32.mxu0 0.0
    %1583 = vmatmul.mubr.f32.gmra.mrb[0].mxu0 %v1436
    %v1584 = vpop.f32.mrb[0].mxu0
    %v1585 = vadd.f32 0.0, %v1584
    %v1586 = vpop.f32.mrb[0].mxu0
    %1587 = vdwg.mxu0
    %v1588 = vadd.f32 %v1517, %v1585
    %v1589 = vadd.f32 %v1588, %v533
    %v1590 = vxor.u32 %v1589, 2147483648
    %v1591 = vmul.f32 %v1590, 1.442695
    %v1592 = vpow.pop %v1591
    %v1593 = vadd.f32 %v1592, 1.0
    %v1594 = vrcp.pop %v1593
    %v1595 = vmul.f32 1.0, %v1594
    %s1596 = scalar_lea.vmem [#allocation2], 212
    %v1597 = vld [vmem:[%s1596] sm:$0xf]
    %1598 = vmatprep.subr.mxu0 0.0
    %1599 = vmatpush1.msra.mxu0 %v72
    %1600 = vmatprep.subr.mxu0 0.0
    %1601 = vmatpush1.msra.mxu0 %v73
    %1602 = vmatprep.subr.mxu0 0.0
    %1603 = vmatpush1.msra.mxu0 %v74
    %1604 = vmatprep.subr.mxu0 0.0
    %1605 = vmatpush1.msra.mxu0 %v75
    %1606 = vmatprep.subr.mxu0 0.0
    %1607 = vmatpush1.msra.mxu0 0.0
    %1608 = vmatprep.subr.mxu0 0.0
    %1609 = vmatpush1.msra.mxu0 0.0
    %1610 = vmatprep.subr.mxu0 0.0
    %1611 = vmatpush1.msra.mxu0 0.0
    %1612 = vmatprep.subr.mxu0 0.0
    %1613 = vmatpush1.msra.mxu0 0.0
    %1614 = vmatprep.subr.mxu0 0.0
    %1615 = vmatpush1.msra.mxu0 0.0
    %1616 = vmatprep.subr.mxu0 0.0
    %1617 = vmatpush1.msra.mxu0 0.0
    %1618 = vmatprep.subr.mxu0 0.0
    %1619 = vmatpush1.msra.mxu0 0.0
    %1620 = vmatprep.subr.mxu0 0.0
    %1621 = vmatpush1.msra.mxu0 0.0
    %1622 = vmatprep.subr.mxu0 0.0
    %1623 = vmatpush1.msra.mxu0 0.0
    %1624 = vmatprep.subr.mxu0 0.0
    %1625 = vmatpush1.msra.mxu0 0.0
    %1626 = vmatprep.subr.mxu0 0.0
    %1627 = vmatpush1.msra.mxu0 0.0
    %1628 = vmatprep.subr.mxu0 0.0
    %1629 = vmatpush1.msra.mxu0 0.0
    %1630 = vmatprep.subr.mxu0 0.0
    %1631 = vmatpush1.msra.mxu0 0.0
    %1632 = vmatprep.subr.mxu0 0.0
    %1633 = vmatpush1.msra.mxu0 0.0
    %1634 = vmatprep.subr.mxu0 0.0
    %1635 = vmatpush1.msra.mxu0 0.0
    %1636 = vmatprep.subr.mxu0 0.0
    %1637 = vmatpush1.msra.mxu0 0.0
    %1638 = vmatprep.subr.mxu0 0.0
    %1639 = vmatpush1.msra.mxu0 0.0
    %1640 = vmatprep.subr.mxu0 0.0
    %1641 = vmatpush1.msra.mxu0 0.0
    %1642 = vmatprep.subr.mxu0 0.0
    %1643 = vmatpush1.msra.mxu0 0.0
    %1644 = vmatprep.subr.mxu0 0.0
    %1645 = vmatpush1.msra.mxu0 0.0
    %1646 = vmatprep.subr.mxu0 0.0
    %1647 = vmatpush1.msra.mxu0 0.0
    %1648 = vmatprep.subr.mxu0 0.0
    %1649 = vmatpush1.msra.mxu0 0.0
    %1650 = vmatprep.subr.mxu0 0.0
    %1651 = vmatpush1.msra.mxu0 0.0
    %1652 = vmatprep.subr.mxu0 0.0
    %1653 = vmatpush1.msra.mxu0 0.0
    %1654 = vmatprep.subr.mxu0 0.0
    %1655 = vmatpush1.msra.mxu0 0.0
    %1656 = vmatprep.subr.mxu0 0.0
    %1657 = vmatpush1.msra.mxu0 0.0
    %1658 = vmatprep.subr.mxu0 0.0
    %1659 = vmatpush1.msra.mxu0 0.0
    %1660 = vmatprep.subr.mxu0 0.0
    %1661 = vmatpush1.msra.mxu0 0.0
    %1662 = vmatprep.mubr.f32.mxu0 0.0
    %1663 = vmatmul.mubr.f32.gmra.mrb[0].mxu0 %v1436
    %v1664 = vpop.f32.mrb[0].mxu0
    %v1665 = vadd.f32 %v548, %v1664
    %v1666 = vpop.f32.mrb[0].mxu0
    %1667 = vdwg.mxu0
    %v1668 = vmul.f32 %v1515, %v1665
    %v1669 = vadd.f32 %v1597, %v1668
    %v1670 = vtanh.pop %v1669
    %v1671 = vsub.f32 1.0, %v1595
    %v1672 = vmul.f32 %v1671, %v1670
    %v1673 = vmul.f32 %v1595, %v1164
    %v1674 = vadd.f32 %v1672, %v1673
    %1676 = vset.pattern.permute.xlu0 0
    %1677 = vperm.xlu0 %1676, %v1432
    %v1678 = vpop.permute.xlu0 %1677
    %v1680 = vmul.f32 %v1678, %v1674
    %v1681 = vsub.f32 1.0, %v1432
    %1683 = vset.pattern.permute.xlu0 0
    %1684 = vperm.xlu0 %1683, %v1681
    %v1685 = vpop.permute.xlu0 %1684
    %v1687 = vmul.f32 %v1685, %v1164
    %v1688 = vadd.f32 %v1680, %v1687
    %v1689 = vmul.f32 %v1678, %v1688
    %s1690 = scalar_lea.vmem [#allocation7], 68
    %1691 = vst.msk [vmem:[%s1690] sm:$0xf] %vm365, %v1689
    %vm1692 = vcmp.gt.s32.totalorder %v46, 3
    %v1693 = vsel %vm1692, 1, 0
    %v1694 = vcvt.s32.f32 %v1693
    %s1695 = scalar_lea.vmem [#allocation2], 36
    %v1696 = vld [vmem:[%s1695] sm:$0xf]
    %v1698 = vsel %vm91, %v1426, 0
    %1700 = vmatprep.subr.mxu0 0.0
    %1701 = vmatpush1.msra.mxu0 %v47
    %1702 = vmatprep.subr.mxu0 0.0
    %1703 = vmatpush1.msra.mxu0 %v48
    %1704 = vmatprep.subr.mxu0 0.0
    %1705 = vmatpush1.msra.mxu0 %v49
    %1706 = vmatprep.subr.mxu0 0.0
    %1707 = vmatpush1.msra.mxu0 %v50
    %1708 = vmatprep.subr.mxu0 0.0
    %1709 = vmatpush1.msra.mxu0 0.0
    %1710 = vmatprep.subr.mxu0 0.0
    %1711 = vmatpush1.msra.mxu0 0.0
    %1712 = vmatprep.subr.mxu0 0.0
    %1713 = vmatpush1.msra.mxu0 0.0
    %1714 = vmatprep.subr.mxu0 0.0
    %1715 = vmatpush1.msra.mxu0 0.0
    %1716 = vmatprep.subr.mxu0 0.0
    %1717 = vmatpush1.msra.mxu0 0.0
    %1718 = vmatprep.subr.mxu0 0.0
    %1719 = vmatpush1.msra.mxu0 0.0
    %1720 = vmatprep.subr.mxu0 0.0
    %1721 = vmatpush1.msra.mxu0 0.0
    %1722 = vmatprep.subr.mxu0 0.0
    %1723 = vmatpush1.msra.mxu0 0.0
    %1724 = vmatprep.subr.mxu0 0.0
    %1725 = vmatpush1.msra.mxu0 0.0
    %1726 = vmatprep.subr.mxu0 0.0
    %1727 = vmatpush1.msra.mxu0 0.0
    %1728 = vmatprep.subr.mxu0 0.0
    %1729 = vmatpush1.msra.mxu0 0.0
    %1730 = vmatprep.subr.mxu0 0.0
    %1731 = vmatpush1.msra.mxu0 0.0
    %1732 = vmatprep.subr.mxu0 0.0
    %1733 = vmatpush1.msra.mxu0 0.0
    %1734 = vmatprep.subr.mxu0 0.0
    %1735 = vmatpush1.msra.mxu0 0.0
    %1736 = vmatprep.subr.mxu0 0.0
    %1737 = vmatpush1.msra.mxu0 0.0
    %1738 = vmatprep.subr.mxu0 0.0
    %1739 = vmatpush1.msra.mxu0 0.0
    %1740 = vmatprep.subr.mxu0 0.0
    %1741 = vmatpush1.msra.mxu0 0.0
    %1742 = vmatprep.subr.mxu0 0.0
    %1743 = vmatpush1.msra.mxu0 0.0
    %1744 = vmatprep.subr.mxu0 0.0
    %1745 = vmatpush1.msra.mxu0 0.0
    %1746 = vmatprep.subr.mxu0 0.0
    %1747 = vmatpush1.msra.mxu0 0.0
    %1748 = vmatprep.subr.mxu0 0.0
    %1749 = vmatpush1.msra.mxu0 0.0
    %1750 = vmatprep.subr.mxu0 0.0
    %1751 = vmatpush1.msra.mxu0 0.0
    %1752 = vmatprep.subr.mxu0 0.0
    %1753 = vmatpush1.msra.mxu0 0.0
    %1754 = vmatprep.subr.mxu0 0.0
    %1755 = vmatpush1.msra.mxu0 0.0
    %1756 = vmatprep.subr.mxu0 0.0
    %1757 = vmatpush1.msra.mxu0 0.0
    %1758 = vmatprep.subr.mxu0 0.0
    %1759 = vmatpush1.msra.mxu0 0.0
    %1760 = vmatprep.subr.mxu0 0.0
    %1761 = vmatpush1.msra.mxu0 0.0
    %1762 = vmatprep.subr.mxu0 0.0
    %1763 = vmatpush1.msra.mxu0 0.0
    %1764 = vmatprep.mubr.f32.mxu0 0.0
    %1765 = vmatmul.mubr.f32.gmra.mrb[0].mxu0 %v1698
    %v1766 = vpop.f32.mrb[0].mxu0
    %v1767 = vadd.f32 0.0, %v1766
    %v1768 = vpop.f32.mrb[0].mxu0
    %1769 = vdwg.mxu0
    %v1770 = vadd.f32 %v1696, %v1767
    %v1771 = vadd.f32 %v1770, %v170
    %v1772 = vxor.u32 %v1771, 2147483648
    %v1773 = vmul.f32 %v1772, 1.442695
    %v1774 = vpow.pop %v1773
    %v1775 = vadd.f32 %v1774, 1.0
    %v1776 = vrcp.pop %v1775
    %v1777 = vmul.f32 1.0, %v1776
    %s1778 = scalar_lea.vmem [#allocation2], 40
    %v1779 = vld [vmem:[%s1778] sm:$0xf]
    %1780 = vmatprep.subr.mxu0 0.0
    %1781 = vmatpush1.msra.mxu0 %v52
    %1782 = vmatprep.subr.mxu0 0.0
    %1783 = vmatpush1.msra.mxu0 %v53
    %1784 = vmatprep.subr.mxu0 0.0
    %1785 = vmatpush1.msra.mxu0 %v54
    %1786 = vmatprep.subr.mxu0 0.0
    %1787 = vmatpush1.msra.mxu0 %v55
    %1788 = vmatprep.subr.mxu0 0.0
    %1789 = vmatpush1.msra.mxu0 0.0
    %1790 = vmatprep.subr.mxu0 0.0
    %1791 = vmatpush1.msra.mxu0 0.0
    %1792 = vmatprep.subr.mxu0 0.0
    %1793 = vmatpush1.msra.mxu0 0.0
    %1794 = vmatprep.subr.mxu0 0.0
    %1795 = vmatpush1.msra.mxu0 0.0
    %1796 = vmatprep.subr.mxu0 0.0
    %1797 = vmatpush1.msra.mxu0 0.0
    %1798 = vmatprep.subr.mxu0 0.0
    %1799 = vmatpush1.msra.mxu0 0.0
    %1800 = vmatprep.subr.mxu0 0.0
    %1801 = vmatpush1.msra.mxu0 0.0
    %1802 = vmatprep.subr.mxu0 0.0
    %1803 = vmatpush1.msra.mxu0 0.0
    %1804 = vmatprep.subr.mxu0 0.0
    %1805 = vmatpush1.msra.mxu0 0.0
    %1806 = vmatprep.subr.mxu0 0.0
    %1807 = vmatpush1.msra.mxu0 0.0
    %1808 = vmatprep.subr.mxu0 0.0
    %1809 = vmatpush1.msra.mxu0 0.0
    %1810 = vmatprep.subr.mxu0 0.0
    %1811 = vmatpush1.msra.mxu0 0.0
    %1812 = vmatprep.subr.mxu0 0.0
    %1813 = vmatpush1.msra.mxu0 0.0
    %1814 = vmatprep.subr.mxu0 0.0
    %1815 = vmatpush1.msra.mxu0 0.0
    %1816 = vmatprep.subr.mxu0 0.0
    %1817 = vmatpush1.msra.mxu0 0.0
    %1818 = vmatprep.subr.mxu0 0.0
    %1819 = vmatpush1.msra.mxu0 0.0
    %1820 = vmatprep.subr.mxu0 0.0
    %1821 = vmatpush1.msra.mxu0 0.0
    %1822 = vmatprep.subr.mxu0 0.0
    %1823 = vmatpush1.msra.mxu0 0.0
    %1824 = vmatprep.subr.mxu0 0.0
    %1825 = vmatpush1.msra.mxu0 0.0
    %1826 = vmatprep.subr.mxu0 0.0
    %1827 = vmatpush1.msra.mxu0 0.0
    %1828 = vmatprep.subr.mxu0 0.0
    %1829 = vmatpush1.msra.mxu0 0.0
    %1830 = vmatprep.subr.mxu0 0.0
    %1831 = vmatpush1.msra.mxu0 0.0
    %1832 = vmatprep.subr.mxu0 0.0
    %1833 = vmatpush1.msra.mxu0 0.0
    %1834 = vmatprep.subr.mxu0 0.0
    %1835 = vmatpush1.msra.mxu0 0.0
    %1836 = vmatprep.subr.mxu0 0.0
    %1837 = vmatpush1.msra.mxu0 0.0
    %1838 = vmatprep.subr.mxu0 0.0
    %1839 = vmatpush1.msra.mxu0 0.0
    %1840 = vmatprep.subr.mxu0 0.0
    %1841 = vmatpush1.msra.mxu0 0.0
    %1842 = vmatprep.subr.mxu0 0.0
    %1843 = vmatpush1.msra.mxu0 0.0
    %1844 = vmatprep.mubr.f32.mxu0 0.0
    %1845 = vmatmul.mubr.f32.gmra.mrb[0].mxu0 %v1698
    %v1846 = vpop.f32.mrb[0].mxu0
    %v1847 = vadd.f32 0.0, %v1846
    %v1848 = vpop.f32.mrb[0].mxu0
    %1849 = vdwg.mxu0
    %v1850 = vadd.f32 %v1779, %v1847
    %v1851 = vadd.f32 %v1850, %v256
    %v1852 = vxor.u32 %v1851, 2147483648
    %v1853 = vmul.f32 %v1852, 1.442695
    %v1854 = vpow.pop %v1853
    %v1855 = vadd.f32 %v1854, 1.0
    %v1856 = vrcp.pop %v1855
    %v1857 = vmul.f32 1.0, %v1856
    %s1858 = scalar_lea.vmem [#allocation2], 44
    %v1859 = vld [vmem:[%s1858] sm:$0xf]
    %1860 = vmatprep.subr.mxu0 0.0
    %1861 = vmatpush1.msra.mxu0 %v57
    %1862 = vmatprep.subr.mxu0 0.0
    %1863 = vmatpush1.msra.mxu0 %v58
    %1864 = vmatprep.subr.mxu0 0.0
    %1865 = vmatpush1.msra.mxu0 %v59
    %1866 = vmatprep.subr.mxu0 0.0
    %1867 = vmatpush1.msra.mxu0 %v60
    %1868 = vmatprep.subr.mxu0 0.0
    %1869 = vmatpush1.msra.mxu0 0.0
    %1870 = vmatprep.subr.mxu0 0.0
    %1871 = vmatpush1.msra.mxu0 0.0
    %1872 = vmatprep.subr.mxu0 0.0
    %1873 = vmatpush1.msra.mxu0 0.0
    %1874 = vmatprep.subr.mxu0 0.0
    %1875 = vmatpush1.msra.mxu0 0.0
    %1876 = vmatprep.subr.mxu0 0.0
    %1877 = vmatpush1.msra.mxu0 0.0
    %1878 = vmatprep.subr.mxu0 0.0
    %1879 = vmatpush1.msra.mxu0 0.0
    %1880 = vmatprep.subr.mxu0 0.0
    %1881 = vmatpush1.msra.mxu0 0.0
    %1882 = vmatprep.subr.mxu0 0.0
    %1883 = vmatpush1.msra.mxu0 0.0
    %1884 = vmatprep.subr.mxu0 0.0
    %1885 = vmatpush1.msra.mxu0 0.0
    %1886 = vmatprep.subr.mxu0 0.0
    %1887 = vmatpush1.msra.mxu0 0.0
    %1888 = vmatprep.subr.mxu0 0.0
    %1889 = vmatpush1.msra.mxu0 0.0
    %1890 = vmatprep.subr.mxu0 0.0
    %1891 = vmatpush1.msra.mxu0 0.0
    %1892 = vmatprep.subr.mxu0 0.0
    %1893 = vmatpush1.msra.mxu0 0.0
    %1894 = vmatprep.subr.mxu0 0.0
    %1895 = vmatpush1.msra.mxu0 0.0
    %1896 = vmatprep.subr.mxu0 0.0
    %1897 = vmatpush1.msra.mxu0 0.0
    %1898 = vmatprep.subr.mxu0 0.0
    %1899 = vmatpush1.msra.mxu0 0.0
    %1900 = vmatprep.subr.mxu0 0.0
    %1901 = vmatpush1.msra.mxu0 0.0
    %1902 = vmatprep.subr.mxu0 0.0
    %1903 = vmatpush1.msra.mxu0 0.0
    %1904 = vmatprep.subr.mxu0 0.0
    %1905 = vmatpush1.msra.mxu0 0.0
    %1906 = vmatprep.subr.mxu0 0.0
    %1907 = vmatpush1.msra.mxu0 0.0
    %1908 = vmatprep.subr.mxu0 0.0
    %1909 = vmatpush1.msra.mxu0 0.0
    %1910 = vmatprep.subr.mxu0 0.0
    %1911 = vmatpush1.msra.mxu0 0.0
    %1912 = vmatprep.subr.mxu0 0.0
    %1913 = vmatpush1.msra.mxu0 0.0
    %1914 = vmatprep.subr.mxu0 0.0
    %1915 = vmatpush1.msra.mxu0 0.0
    %1916 = vmatprep.subr.mxu0 0.0
    %1917 = vmatpush1.msra.mxu0 0.0
    %1918 = vmatprep.subr.mxu0 0.0
    %1919 = vmatpush1.msra.mxu0 0.0
    %1920 = vmatprep.subr.mxu0 0.0
    %1921 = vmatpush1.msra.mxu0 0.0
    %1922 = vmatprep.subr.mxu0 0.0
    %1923 = vmatpush1.msra.mxu0 0.0
    %1924 = vmatprep.mubr.f32.mxu0 0.0
    %1925 = vmatmul.mubr.f32.gmra.mrb[0].mxu0 %v1698
    %v1926 = vpop.f32.mrb[0].mxu0
    %v1927 = vadd.f32 %v271, %v1926
    %v1928 = vpop.f32.mrb[0].mxu0
    %1929 = vdwg.mxu0
    %v1930 = vmul.f32 %v1777, %v1927
    %v1931 = vadd.f32 %v1859, %v1930
    %v1932 = vtanh.pop %v1931
    %v1933 = vsub.f32 1.0, %v1857
    %v1934 = vmul.f32 %v1933, %v1932
    %v1935 = vmul.f32 %v1857, %v1426
    %v1936 = vadd.f32 %v1934, %v1935
    %1938 = vset.pattern.permute.xlu0 0
    %1939 = vperm.xlu0 %1938, %v1694
    %v1940 = vpop.permute.xlu0 %1939
    %v1942 = vmul.f32 %v1940, %v1936
    %v1943 = vsub.f32 1.0, %v1694
    %1945 = vset.pattern.permute.xlu0 0
    %1946 = vperm.xlu0 %1945, %v1943
    %v1947 = vpop.permute.xlu0 %1946
    %v1949 = vmul.f32 %v1947, %v1426
    %v1950 = vadd.f32 %v1942, %v1949
    %v1951 = vmul.f32 %v1940, %v1950
    %s1952 = scalar_lea.vmem [#allocation7], 12
    %1953 = vst.msk [vmem:[%s1952] sm:$0xf] %vm365, %v1951
    %vm1954 = vcmp.gt.s32.totalorder %v46, 6
    %v1955 = vsel %vm1954, 1, 0
    %v1956 = vcvt.s32.f32 %v1955
    %s1957 = scalar_lea.vmem [#allocation2], 192
    %v1958 = vld [vmem:[%s1957] sm:$0xf]
    %v1960 = vsel %vm91, %v1688, 0
    %1962 = vmatprep.subr.mxu0 0.0
    %1963 = vmatpush1.msra.mxu0 %v62
    %1964 = vmatprep.subr.mxu0 0.0
    %1965 = vmatpush1.msra.mxu0 %v63
    %1966 = vmatprep.subr.mxu0 0.0
    %1967 = vmatpush1.msra.mxu0 %v64
    %1968 = vmatprep.subr.mxu0 0.0
    %1969 = vmatpush1.msra.mxu0 %v65
    %1970 = vmatprep.subr.mxu0 0.0
    %1971 = vmatpush1.msra.mxu0 0.0
    %1972 = vmatprep.subr.mxu0 0.0
    %1973 = vmatpush1.msra.mxu0 0.0
    %1974 = vmatprep.subr.mxu0 0.0
    %1975 = vmatpush1.msra.mxu0 0.0
    %1976 = vmatprep.subr.mxu0 0.0
    %1977 = vmatpush1.msra.mxu0 0.0
    %1978 = vmatprep.subr.mxu0 0.0
    %1979 = vmatpush1.msra.mxu0 0.0
    %1980 = vmatprep.subr.mxu0 0.0
    %1981 = vmatpush1.msra.mxu0 0.0
    %1982 = vmatprep.subr.mxu0 0.0
    %1983 = vmatpush1.msra.mxu0 0.0
    %1984 = vmatprep.subr.mxu0 0.0
    %1985 = vmatpush1.msra.mxu0 0.0
    %1986 = vmatprep.subr.mxu0 0.0
    %1987 = vmatpush1.msra.mxu0 0.0
    %1988 = vmatprep.subr.mxu0 0.0
    %1989 = vmatpush1.msra.mxu0 0.0
    %1990 = vmatprep.subr.mxu0 0.0
    %1991 = vmatpush1.msra.mxu0 0.0
    %1992 = vmatprep.subr.mxu0 0.0
    %1993 = vmatpush1.msra.mxu0 0.0
    %1994 = vmatprep.subr.mxu0 0.0
    %1995 = vmatpush1.msra.mxu0 0.0
    %1996 = vmatprep.subr.mxu0 0.0
    %1997 = vmatpush1.msra.mxu0 0.0
    %1998 = vmatprep.subr.mxu0 0.0
    %1999 = vmatpush1.msra.mxu0 0.0
    %2000 = vmatprep.subr.mxu0 0.0
    %2001 = vmatpush1.msra.mxu0 0.0
    %2002 = vmatprep.subr.mxu0 0.0
    %2003 = vmatpush1.msra.mxu0 0.0
    %2004 = vmatprep.subr.mxu0 0.0
    %2005 = vmatpush1.msra.mxu0 0.0
    %2006 = vmatprep.subr.mxu0 0.0
    %2007 = vmatpush1.msra.mxu0 0.0
    %2008 = vmatprep.subr.mxu0 0.0
    %2009 = vmatpush1.msra.mxu0 0.0
    %2010 = vmatprep.subr.mxu0 0.0
    %2011 = vmatpush1.msra.mxu0 0.0
    %2012 = vmatprep.subr.mxu0 0.0
    %2013 = vmatpush1.msra.mxu0 0.0
    %2014 = vmatprep.subr.mxu0 0.0
    %2015 = vmatpush1.msra.mxu0 0.0
    %2016 = vmatprep.subr.mxu0 0.0
    %2017 = vmatpush1.msra.mxu0 0.0
    %2018 = vmatprep.subr.mxu0 0.0
    %2019 = vmatpush1.msra.mxu0 0.0
    %2020 = vmatprep.subr.mxu0 0.0
    %2021 = vmatpush1.msra.mxu0 0.0
    %2022 = vmatprep.subr.mxu0 0.0
    %2023 = vmatpush1.msra.mxu0 0.0
    %2024 = vmatprep.subr.mxu0 0.0
    %2025 = vmatpush1.msra.mxu0 0.0
    %2026 = vmatprep.mubr.f32.mxu0 0.0
    %2027 = vmatmul.mubr.f32.gmra.mrb[0].mxu0 %v1960
    %v2028 = vpop.f32.mrb[0].mxu0
    %v2029 = vadd.f32 0.0, %v2028
    %v2030 = vpop.f32.mrb[0].mxu0
    %2031 = vdwg.mxu0
    %v2032 = vadd.f32 %v1958, %v2029
    %v2033 = vadd.f32 %v2032, %v447
    %v2034 = vxor.u32 %v2033, 2147483648
    %v2035 = vmul.f32 %v2034, 1.442695
    %v2036 = vpow.pop %v2035
    %v2037 = vadd.f32 %v2036, 1.0
    %v2038 = vrcp.pop %v2037
    %v2039 = vmul.f32 1.0, %v2038
    %s2040 = scalar_lea.vmem [#allocation2], 196
    %v2041 = vld [vmem:[%s2040] sm:$0xf]
    %2042 = vmatprep.subr.mxu0 0.0
    %2043 = vmatpush1.msra.mxu0 %v67
    %2044 = vmatprep.subr.mxu0 0.0
    %2045 = vmatpush1.msra.mxu0 %v68
    %2046 = vmatprep.subr.mxu0 0.0
    %2047 = vmatpush1.msra.mxu0 %v69
    %2048 = vmatprep.subr.mxu0 0.0
    %2049 = vmatpush1.msra.mxu0 %v70
    %2050 = vmatprep.subr.mxu0 0.0
    %2051 = vmatpush1.msra.mxu0 0.0
    %2052 = vmatprep.subr.mxu0 0.0
    %2053 = vmatpush1.msra.mxu0 0.0
    %2054 = vmatprep.subr.mxu0 0.0
    %2055 = vmatpush1.msra.mxu0 0.0
    %2056 = vmatprep.subr.mxu0 0.0
    %2057 = vmatpush1.msra.mxu0 0.0
    %2058 = vmatprep.subr.mxu0 0.0
    %2059 = vmatpush1.msra.mxu0 0.0
    %2060 = vmatprep.subr.mxu0 0.0
    %2061 = vmatpush1.msra.mxu0 0.0
    %2062 = vmatprep.subr.mxu0 0.0
    %2063 = vmatpush1.msra.mxu0 0.0
    %2064 = vmatprep.subr.mxu0 0.0
    %2065 = vmatpush1.msra.mxu0 0.0
    %2066 = vmatprep.subr.mxu0 0.0
    %2067 = vmatpush1.msra.mxu0 0.0
    %2068 = vmatprep.subr.mxu0 0.0
    %2069 = vmatpush1.msra.mxu0 0.0
    %2070 = vmatprep.subr.mxu0 0.0
    %2071 = vmatpush1.msra.mxu0 0.0
    %2072 = vmatprep.subr.mxu0 0.0
    %2073 = vmatpush1.msra.mxu0 0.0
    %2074 = vmatprep.subr.mxu0 0.0
    %2075 = vmatpush1.msra.mxu0 0.0
    %2076 = vmatprep.subr.mxu0 0.0
    %2077 = vmatpush1.msra.mxu0 0.0
    %2078 = vmatprep.subr.mxu0 0.0
    %2079 = vmatpush1.msra.mxu0 0.0
    %2080 = vmatprep.subr.mxu0 0.0
    %2081 = vmatpush1.msra.mxu0 0.0
    %2082 = vmatprep.subr.mxu0 0.0
    %2083 = vmatpush1.msra.mxu0 0.0
    %2084 = vmatprep.subr.mxu0 0.0
    %2085 = vmatpush1.msra.mxu0 0.0
    %2086 = vmatprep.subr.mxu0 0.0
    %2087 = vmatpush1.msra.mxu0 0.0
    %2088 = vmatprep.subr.mxu0 0.0
    %2089 = vmatpush1.msra.mxu0 0.0
    %2090 = vmatprep.subr.mxu0 0.0
    %2091 = vmatpush1.msra.mxu0 0.0
    %2092 = vmatprep.subr.mxu0 0.0
    %2093 = vmatpush1.msra.mxu0 0.0
    %2094 = vmatprep.subr.mxu0 0.0
    %2095 = vmatpush1.msra.mxu0 0.0
    %2096 = vmatprep.subr.mxu0 0.0
    %2097 = vmatpush1.msra.mxu0 0.0
    %2098 = vmatprep.subr.mxu0 0.0
    %2099 = vmatpush1.msra.mxu0 0.0
    %2100 = vmatprep.subr.mxu0 0.0
    %2101 = vmatpush1.msra.mxu0 0.0
    %2102 = vmatprep.subr.mxu0 0.0
    %2103 = vmatpush1.msra.mxu0 0.0
    %2104 = vmatprep.subr.mxu0 0.0
    %2105 = vmatpush1.msra.mxu0 0.0
    %2106 = vmatprep.mubr.f32.mxu0 0.0
    %2107 = vmatmul.mubr.f32.gmra.mrb[0].mxu0 %v1960
    %v2108 = vpop.f32.mrb[0].mxu0
    %v2109 = vadd.f32 0.0, %v2108
    %v2110 = vpop.f32.mrb[0].mxu0
    %2111 = vdwg.mxu0
    %v2112 = vadd.f32 %v2041, %v2109
    %v2113 = vadd.f32 %v2112, %v533
    %v2114 = vxor.u32 %v2113, 2147483648
    %v2115 = vmul.f32 %v2114, 1.442695
    %v2116 = vpow.pop %v2115
    %v2117 = vadd.f32 %v2116, 1.0
    %v2118 = vrcp.pop %v2117
    %v2119 = vmul.f32 1.0, %v2118
    %s2120 = scalar_lea.vmem [#allocation2], 200
    %v2121 = vld [vmem:[%s2120] sm:$0xf]
    %2122 = vmatprep.subr.mxu0 0.0
    %2123 = vmatpush1.msra.mxu0 %v72
    %2124 = vmatprep.subr.mxu0 0.0
    %2125 = vmatpush1.msra.mxu0 %v73
    %2126 = vmatprep.subr.mxu0 0.0
    %2127 = vmatpush1.msra.mxu0 %v74
    %2128 = vmatprep.subr.mxu0 0.0
    %2129 = vmatpush1.msra.mxu0 %v75
    %2130 = vmatprep.subr.mxu0 0.0
    %2131 = vmatpush1.msra.mxu0 0.0
    %2132 = vmatprep.subr.mxu0 0.0
    %2133 = vmatpush1.msra.mxu0 0.0
    %2134 = vmatprep.subr.mxu0 0.0
    %2135 = vmatpush1.msra.mxu0 0.0
    %2136 = vmatprep.subr.mxu0 0.0
    %2137 = vmatpush1.msra.mxu0 0.0
    %2138 = vmatprep.subr.mxu0 0.0
    %2139 = vmatpush1.msra.mxu0 0.0
    %2140 = vmatprep.subr.mxu0 0.0
    %2141 = vmatpush1.msra.mxu0 0.0
    %2142 = vmatprep.subr.mxu0 0.0
    %2143 = vmatpush1.msra.mxu0 0.0
    %2144 = vmatprep.subr.mxu0 0.0
    %2145 = vmatpush1.msra.mxu0 0.0
    %2146 = vmatprep.subr.mxu0 0.0
    %2147 = vmatpush1.msra.mxu0 0.0
    %2148 = vmatprep.subr.mxu0 0.0
    %2149 = vmatpush1.msra.mxu0 0.0
    %2150 = vmatprep.subr.mxu0 0.0
    %2151 = vmatpush1.msra.mxu0 0.0
    %2152 = vmatprep.subr.mxu0 0.0
    %2153 = vmatpush1.msra.mxu0 0.0
    %2154 = vmatprep.subr.mxu0 0.0
    %2155 = vmatpush1.msra.mxu0 0.0
    %2156 = vmatprep.subr.mxu0 0.0
    %2157 = vmatpush1.msra.mxu0 0.0
    %2158 = vmatprep.subr.mxu0 0.0
    %2159 = vmatpush1.msra.mxu0 0.0
    %2160 = vmatprep.subr.mxu0 0.0
    %2161 = vmatpush1.msra.mxu0 0.0
    %2162 = vmatprep.subr.mxu0 0.0
    %2163 = vmatpush1.msra.mxu0 0.0
    %2164 = vmatprep.subr.mxu0 0.0
    %2165 = vmatpush1.msra.mxu0 0.0
    %2166 = vmatprep.subr.mxu0 0.0
    %2167 = vmatpush1.msra.mxu0 0.0
    %2168 = vmatprep.subr.mxu0 0.0
    %2169 = vmatpush1.msra.mxu0 0.0
    %2170 = vmatprep.subr.mxu0 0.0
    %2171 = vmatpush1.msra.mxu0 0.0
    %2172 = vmatprep.subr.mxu0 0.0
    %2173 = vmatpush1.msra.mxu0 0.0
    %2174 = vmatprep.subr.mxu0 0.0
    %2175 = vmatpush1.msra.mxu0 0.0
    %2176 = vmatprep.subr.mxu0 0.0
    %2177 = vmatpush1.msra.mxu0 0.0
    %2178 = vmatprep.subr.mxu0 0.0
    %2179 = vmatpush1.msra.mxu0 0.0
    %2180 = vmatprep.subr.mxu0 0.0
    %2181 = vmatpush1.msra.mxu0 0.0
    %2182 = vmatprep.subr.mxu0 0.0
    %2183 = vmatpush1.msra.mxu0 0.0
    %2184 = vmatprep.subr.mxu0 0.0
    %2185 = vmatpush1.msra.mxu0 0.0
    %2186 = vmatprep.mubr.f32.mxu0 0.0
    %2187 = vmatmul.mubr.f32.gmra.mrb[0].mxu0 %v1960
    %v2188 = vpop.f32.mrb[0].mxu0
    %v2189 = vadd.f32 %v548, %v2188
    %v2190 = vpop.f32.mrb[0].mxu0
    %2191 = vdwg.mxu0
    %v2192 = vmul.f32 %v2039, %v2189
    %v2193 = vadd.f32 %v2121, %v2192
    %v2194 = vtanh.pop %v2193
    %v2195 = vsub.f32 1.0, %v2119
    %v2196 = vmul.f32 %v2195, %v2194
    %v2197 = vmul.f32 %v2119, %v1688
    %v2198 = vadd.f32 %v2196, %v2197
    %2200 = vset.pattern.permute.xlu0 0
    %2201 = vperm.xlu0 %2200, %v1956
    %v2202 = vpop.permute.xlu0 %2201
    %v2204 = vmul.f32 %v2202, %v2198
    %v2205 = vsub.f32 1.0, %v1956
    %2207 = vset.pattern.permute.xlu0 0
    %2208 = vperm.xlu0 %2207, %v2205
    %v2209 = vpop.permute.xlu0 %2208
    %v2211 = vmul.f32 %v2209, %v1688
    %v2212 = vadd.f32 %v2204, %v2211
    %v2213 = vmul.f32 %v2202, %v2212
    %s2214 = scalar_lea.vmem [#allocation7], 64
    %2215 = vst.msk [vmem:[%s2214] sm:$0xf] %vm365, %v2213
    %vm2216 = vcmp.gt.s32.totalorder %v46, 4
    %v2217 = vsel %vm2216, 1, 0
    %v2218 = vcvt.s32.f32 %v2217
    %s2219 = scalar_lea.vmem [#allocation2], 48
    %v2220 = vld [vmem:[%s2219] sm:$0xf]
    %v2222 = vsel %vm91, %v1950, 0
    %2224 = vmatprep.subr.mxu0 0.0
    %2225 = vmatpush1.msra.mxu0 %v47
    %2226 = vmatprep.subr.mxu0 0.0
    %2227 = vmatpush1.msra.mxu0 %v48
    %2228 = vmatprep.subr.mxu0 0.0
    %2229 = vmatpush1.msra.mxu0 %v49
    %2230 = vmatprep.subr.mxu0 0.0
    %2231 = vmatpush1.msra.mxu0 %v50
    %2232 = vmatprep.subr.mxu0 0.0
    %2233 = vmatpush1.msra.mxu0 0.0
    %2234 = vmatprep.subr.mxu0 0.0
    %2235 = vmatpush1.msra.mxu0 0.0
    %2236 = vmatprep.subr.mxu0 0.0
    %2237 = vmatpush1.msra.mxu0 0.0
    %2238 = vmatprep.subr.mxu0 0.0
    %2239 = vmatpush1.msra.mxu0 0.0
    %2240 = vmatprep.subr.mxu0 0.0
    %2241 = vmatpush1.msra.mxu0 0.0
    %2242 = vmatprep.subr.mxu0 0.0
    %2243 = vmatpush1.msra.mxu0 0.0
    %2244 = vmatprep.subr.mxu0 0.0
    %2245 = vmatpush1.msra.mxu0 0.0
    %2246 = vmatprep.subr.mxu0 0.0
    %2247 = vmatpush1.msra.mxu0 0.0
    %2248 = vmatprep.subr.mxu0 0.0
    %2249 = vmatpush1.msra.mxu0 0.0
    %2250 = vmatprep.subr.mxu0 0.0
    %2251 = vmatpush1.msra.mxu0 0.0
    %2252 = vmatprep.subr.mxu0 0.0
    %2253 = vmatpush1.msra.mxu0 0.0
    %2254 = vmatprep.subr.mxu0 0.0
    %2255 = vmatpush1.msra.mxu0 0.0
    %2256 = vmatprep.subr.mxu0 0.0
    %2257 = vmatpush1.msra.mxu0 0.0
    %2258 = vmatprep.subr.mxu0 0.0
    %2259 = vmatpush1.msra.mxu0 0.0
    %2260 = vmatprep.subr.mxu0 0.0
    %2261 = vmatpush1.msra.mxu0 0.0
    %2262 = vmatprep.subr.mxu0 0.0
    %2263 = vmatpush1.msra.mxu0 0.0
    %2264 = vmatprep.subr.mxu0 0.0
    %2265 = vmatpush1.msra.mxu0 0.0
    %2266 = vmatprep.subr.mxu0 0.0
    %2267 = vmatpush1.msra.mxu0 0.0
    %2268 = vmatprep.subr.mxu0 0.0
    %2269 = vmatpush1.msra.mxu0 0.0
    %2270 = vmatprep.subr.mxu0 0.0
    %2271 = vmatpush1.msra.mxu0 0.0
    %2272 = vmatprep.subr.mxu0 0.0
    %2273 = vmatpush1.msra.mxu0 0.0
    %2274 = vmatprep.subr.mxu0 0.0
    %2275 = vmatpush1.msra.mxu0 0.0
    %2276 = vmatprep.subr.mxu0 0.0
    %2277 = vmatpush1.msra.mxu0 0.0
    %2278 = vmatprep.subr.mxu0 0.0
    %2279 = vmatpush1.msra.mxu0 0.0
    %2280 = vmatprep.subr.mxu0 0.0
    %2281 = vmatpush1.msra.mxu0 0.0
    %2282 = vmatprep.subr.mxu0 0.0
    %2283 = vmatpush1.msra.mxu0 0.0
    %2284 = vmatprep.subr.mxu0 0.0
    %2285 = vmatpush1.msra.mxu0 0.0
    %2286 = vmatprep.subr.mxu0 0.0
    %2287 = vmatpush1.msra.mxu0 0.0
    %2288 = vmatprep.mubr.f32.mxu0 0.0
    %2289 = vmatmul.mubr.f32.gmra.mrb[0].mxu0 %v2222
    %v2290 = vpop.f32.mrb[0].mxu0
    %v2291 = vadd.f32 0.0, %v2290
    %v2292 = vpop.f32.mrb[0].mxu0
    %2293 = vdwg.mxu0
    %v2294 = vadd.f32 %v2220, %v2291
    %v2295 = vadd.f32 %v2294, %v170
    %v2296 = vxor.u32 %v2295, 2147483648
    %v2297 = vmul.f32 %v2296, 1.442695
    %v2298 = vpow.pop %v2297
    %v2299 = vadd.f32 %v2298, 1.0
    %v2300 = vrcp.pop %v2299
    %v2301 = vmul.f32 1.0, %v2300
    %s2302 = scalar_lea.vmem [#allocation2], 52
    %v2303 = vld [vmem:[%s2302] sm:$0xf]
    %2304 = vmatprep.subr.mxu0 0.0
    %2305 = vmatpush1.msra.mxu0 %v52
    %2306 = vmatprep.subr.mxu0 0.0
    %2307 = vmatpush1.msra.mxu0 %v53
    %2308 = vmatprep.subr.mxu0 0.0
    %2309 = vmatpush1.msra.mxu0 %v54
    %2310 = vmatprep.subr.mxu0 0.0
    %2311 = vmatpush1.msra.mxu0 %v55
    %2312 = vmatprep.subr.mxu0 0.0
    %2313 = vmatpush1.msra.mxu0 0.0
    %2314 = vmatprep.subr.mxu0 0.0
    %2315 = vmatpush1.msra.mxu0 0.0
    %2316 = vmatprep.subr.mxu0 0.0
    %2317 = vmatpush1.msra.mxu0 0.0
    %2318 = vmatprep.subr.mxu0 0.0
    %2319 = vmatpush1.msra.mxu0 0.0
    %2320 = vmatprep.subr.mxu0 0.0
    %2321 = vmatpush1.msra.mxu0 0.0
    %2322 = vmatprep.subr.mxu0 0.0
    %2323 = vmatpush1.msra.mxu0 0.0
    %2324 = vmatprep.subr.mxu0 0.0
    %2325 = vmatpush1.msra.mxu0 0.0
    %2326 = vmatprep.subr.mxu0 0.0
    %2327 = vmatpush1.msra.mxu0 0.0
    %2328 = vmatprep.subr.mxu0 0.0
    %2329 = vmatpush1.msra.mxu0 0.0
    %2330 = vmatprep.subr.mxu0 0.0
    %2331 = vmatpush1.msra.mxu0 0.0
    %2332 = vmatprep.subr.mxu0 0.0
    %2333 = vmatpush1.msra.mxu0 0.0
    %2334 = vmatprep.subr.mxu0 0.0
    %2335 = vmatpush1.msra.mxu0 0.0
    %2336 = vmatprep.subr.mxu0 0.0
    %2337 = vmatpush1.msra.mxu0 0.0
    %2338 = vmatprep.subr.mxu0 0.0
    %2339 = vmatpush1.msra.mxu0 0.0
    %2340 = vmatprep.subr.mxu0 0.0
    %2341 = vmatpush1.msra.mxu0 0.0
    %2342 = vmatprep.subr.mxu0 0.0
    %2343 = vmatpush1.msra.mxu0 0.0
    %2344 = vmatprep.subr.mxu0 0.0
    %2345 = vmatpush1.msra.mxu0 0.0
    %2346 = vmatprep.subr.mxu0 0.0
    %2347 = vmatpush1.msra.mxu0 0.0
    %2348 = vmatprep.subr.mxu0 0.0
    %2349 = vmatpush1.msra.mxu0 0.0
    %2350 = vmatprep.subr.mxu0 0.0
    %2351 = vmatpush1.msra.mxu0 0.0
    %2352 = vmatprep.subr.mxu0 0.0
    %2353 = vmatpush1.msra.mxu0 0.0
    %2354 = vmatprep.subr.mxu0 0.0
    %2355 = vmatpush1.msra.mxu0 0.0
    %2356 = vmatprep.subr.mxu0 0.0
    %2357 = vmatpush1.msra.mxu0 0.0
    %2358 = vmatprep.subr.mxu0 0.0
    %2359 = vmatpush1.msra.mxu0 0.0
    %2360 = vmatprep.subr.mxu0 0.0
    %2361 = vmatpush1.msra.mxu0 0.0
    %2362 = vmatprep.subr.mxu0 0.0
    %2363 = vmatpush1.msra.mxu0 0.0
    %2364 = vmatprep.subr.mxu0 0.0
    %2365 = vmatpush1.msra.mxu0 0.0
    %2366 = vmatprep.subr.mxu0 0.0
    %2367 = vmatpush1.msra.mxu0 0.0
    %2368 = vmatprep.mubr.f32.mxu0 0.0
    %2369 = vmatmul.mubr.f32.gmra.mrb[0].mxu0 %v2222
    %v2370 = vpop.f32.mrb[0].mxu0
    %v2371 = vadd.f32 0.0, %v2370
    %v2372 = vpop.f32.mrb[0].mxu0
    %2373 = vdwg.mxu0
    %v2374 = vadd.f32 %v2303, %v2371
    %v2375 = vadd.f32 %v2374, %v256
    %v2376 = vxor.u32 %v2375, 2147483648
    %v2377 = vmul.f32 %v2376, 1.442695
    %v2378 = vpow.pop %v2377
    %v2379 = vadd.f32 %v2378, 1.0
    %v2380 = vrcp.pop %v2379
    %v2381 = vmul.f32 1.0, %v2380
    %s2382 = scalar_lea.vmem [#allocation2], 56
    %v2383 = vld [vmem:[%s2382] sm:$0xf]
    %2384 = vmatprep.subr.mxu0 0.0
    %2385 = vmatpush1.msra.mxu0 %v57
    %2386 = vmatprep.subr.mxu0 0.0
    %2387 = vmatpush1.msra.mxu0 %v58
    %2388 = vmatprep.subr.mxu0 0.0
    %2389 = vmatpush1.msra.mxu0 %v59
    %2390 = vmatprep.subr.mxu0 0.0
    %2391 = vmatpush1.msra.mxu0 %v60
    %2392 = vmatprep.subr.mxu0 0.0
    %2393 = vmatpush1.msra.mxu0 0.0
    %2394 = vmatprep.subr.mxu0 0.0
    %2395 = vmatpush1.msra.mxu0 0.0
    %2396 = vmatprep.subr.mxu0 0.0
    %2397 = vmatpush1.msra.mxu0 0.0
    %2398 = vmatprep.subr.mxu0 0.0
    %2399 = vmatpush1.msra.mxu0 0.0
    %2400 = vmatprep.subr.mxu0 0.0
    %2401 = vmatpush1.msra.mxu0 0.0
    %2402 = vmatprep.subr.mxu0 0.0
    %2403 = vmatpush1.msra.mxu0 0.0
    %2404 = vmatprep.subr.mxu0 0.0
    %2405 = vmatpush1.msra.mxu0 0.0
    %2406 = vmatprep.subr.mxu0 0.0
    %2407 = vmatpush1.msra.mxu0 0.0
    %2408 = vmatprep.subr.mxu0 0.0
    %2409 = vmatpush1.msra.mxu0 0.0
    %2410 = vmatprep.subr.mxu0 0.0
    %2411 = vmatpush1.msra.mxu0 0.0
    %2412 = vmatprep.subr.mxu0 0.0
    %2413 = vmatpush1.msra.mxu0 0.0
    %2414 = vmatprep.subr.mxu0 0.0
    %2415 = vmatpush1.msra.mxu0 0.0
    %2416 = vmatprep.subr.mxu0 0.0
    %2417 = vmatpush1.msra.mxu0 0.0
    %2418 = vmatprep.subr.mxu0 0.0
    %2419 = vmatpush1.msra.mxu0 0.0
    %2420 = vmatprep.subr.mxu0 0.0
    %2421 = vmatpush1.msra.mxu0 0.0
    %2422 = vmatprep.subr.mxu0 0.0
    %2423 = vmatpush1.msra.mxu0 0.0
    %2424 = vmatprep.subr.mxu0 0.0
    %2425 = vmatpush1.msra.mxu0 0.0
    %2426 = vmatprep.subr.mxu0 0.0
    %2427 = vmatpush1.msra.mxu0 0.0
    %2428 = vmatprep.subr.mxu0 0.0
    %2429 = vmatpush1.msra.mxu0 0.0
    %2430 = vmatprep.subr.mxu0 0.0
    %2431 = vmatpush1.msra.mxu0 0.0
    %2432 = vmatprep.subr.mxu0 0.0
    %2433 = vmatpush1.msra.mxu0 0.0
    %2434 = vmatprep.subr.mxu0 0.0
    %2435 = vmatpush1.msra.mxu0 0.0
    %2436 = vmatprep.subr.mxu0 0.0
    %2437 = vmatpush1.msra.mxu0 0.0
    %2438 = vmatprep.subr.mxu0 0.0
    %2439 = vmatpush1.msra.mxu0 0.0
    %2440 = vmatprep.subr.mxu0 0.0
    %2441 = vmatpush1.msra.mxu0 0.0
    %2442 = vmatprep.subr.mxu0 0.0
    %2443 = vmatpush1.msra.mxu0 0.0
    %2444 = vmatprep.subr.mxu0 0.0
    %2445 = vmatpush1.msra.mxu0 0.0
    %2446 = vmatprep.subr.mxu0 0.0
    %2447 = vmatpush1.msra.mxu0 0.0
    %2448 = vmatprep.mubr.f32.mxu0 0.0
    %2449 = vmatmul.mubr.f32.gmra.mrb[0].mxu0 %v2222
    %v2450 = vpop.f32.mrb[0].mxu0
    %v2451 = vadd.f32 %v271, %v2450
    %v2452 = vpop.f32.mrb[0].mxu0
    %2453 = vdwg.mxu0
    %v2454 = vmul.f32 %v2301, %v2451
    %v2455 = vadd.f32 %v2383, %v2454
    %v2456 = vtanh.pop %v2455
    %v2457 = vsub.f32 1.0, %v2381
    %v2458 = vmul.f32 %v2457, %v2456
    %v2459 = vmul.f32 %v2381, %v1950
    %v2460 = vadd.f32 %v2458, %v2459
    %2462 = vset.pattern.permute.xlu0 0
    %2463 = vperm.xlu0 %2462, %v2218
    %v2464 = vpop.permute.xlu0 %2463
    %v2466 = vmul.f32 %v2464, %v2460
    %v2467 = vsub.f32 1.0, %v2218
    %2469 = vset.pattern.permute.xlu0 0
    %2470 = vperm.xlu0 %2469, %v2467
    %v2471 = vpop.permute.xlu0 %2470
    %v2473 = vmul.f32 %v2471, %v1950
    %v2474 = vadd.f32 %v2466, %v2473
    %v2475 = vmul.f32 %v2464, %v2474
    %s2476 = scalar_lea.vmem [#allocation7], 16
    %2477 = vst.msk [vmem:[%s2476] sm:$0xf] %vm365, %v2475
    %vm2478 = vcmp.gt.s32.totalorder %v46, 5
    %v2479 = vsel %vm2478, 1, 0
    %v2480 = vcvt.s32.f32 %v2479
    %s2481 = scalar_lea.vmem [#allocation2], 180
    %v2482 = vld [vmem:[%s2481] sm:$0xf]
    %v2484 = vsel %vm91, %v2212, 0
    %2486 = vmatprep.subr.mxu0 0.0
    %2487 = vmatpush1.msra.mxu0 %v62
    %2488 = vmatprep.subr.mxu0 0.0
    %2489 = vmatpush1.msra.mxu0 %v63
    %2490 = vmatprep.subr.mxu0 0.0
    %2491 = vmatpush1.msra.mxu0 %v64
    %2492 = vmatprep.subr.mxu0 0.0
    %2493 = vmatpush1.msra.mxu0 %v65
    %2494 = vmatprep.subr.mxu0 0.0
    %2495 = vmatpush1.msra.mxu0 0.0
    %2496 = vmatprep.subr.mxu0 0.0
    %2497 = vmatpush1.msra.mxu0 0.0
    %2498 = vmatprep.subr.mxu0 0.0
    %2499 = vmatpush1.msra.mxu0 0.0
    %2500 = vmatprep.subr.mxu0 0.0
    %2501 = vmatpush1.msra.mxu0 0.0
    %2502 = vmatprep.subr.mxu0 0.0
    %2503 = vmatpush1.msra.mxu0 0.0
    %2504 = vmatprep.subr.mxu0 0.0
    %2505 = vmatpush1.msra.mxu0 0.0
    %2506 = vmatprep.subr.mxu0 0.0
    %2507 = vmatpush1.msra.mxu0 0.0
    %2508 = vmatprep.subr.mxu0 0.0
    %2509 = vmatpush1.msra.mxu0 0.0
    %2510 = vmatprep.subr.mxu0 0.0
    %2511 = vmatpush1.msra.mxu0 0.0
    %2512 = vmatprep.subr.mxu0 0.0
    %2513 = vmatpush1.msra.mxu0 0.0
    %2514 = vmatprep.subr.mxu0 0.0
    %2515 = vmatpush1.msra.mxu0 0.0
    %2516 = vmatprep.subr.mxu0 0.0
    %2517 = vmatpush1.msra.mxu0 0.0
    %2518 = vmatprep.subr.mxu0 0.0
    %2519 = vmatpush1.msra.mxu0 0.0
    %2520 = vmatprep.subr.mxu0 0.0
    %2521 = vmatpush1.msra.mxu0 0.0
    %2522 = vmatprep.subr.mxu0 0.0
    %2523 = vmatpush1.msra.mxu0 0.0
    %2524 = vmatprep.subr.mxu0 0.0
    %2525 = vmatpush1.msra.mxu0 0.0
    %2526 = vmatprep.subr.mxu0 0.0
    %2527 = vmatpush1.msra.mxu0 0.0
    %2528 = vmatprep.subr.mxu0 0.0
    %2529 = vmatpush1.msra.mxu0 0.0
    %2530 = vmatprep.subr.mxu0 0.0
    %2531 = vmatpush1.msra.mxu0 0.0
    %2532 = vmatprep.subr.mxu0 0.0
    %2533 = vmatpush1.msra.mxu0 0.0
    %2534 = vmatprep.subr.mxu0 0.0
    %2535 = vmatpush1.msra.mxu0 0.0
    %2536 = vmatprep.subr.mxu0 0.0
    %2537 = vmatpush1.msra.mxu0 0.0
    %2538 = vmatprep.subr.mxu0 0.0
    %2539 = vmatpush1.msra.mxu0 0.0
    %2540 = vmatprep.subr.mxu0 0.0
    %2541 = vmatpush1.msra.mxu0 0.0
    %2542 = vmatprep.subr.mxu0 0.0
    %2543 = vmatpush1.msra.mxu0 0.0
    %2544 = vmatprep.subr.mxu0 0.0
    %2545 = vmatpush1.msra.mxu0 0.0
    %2546 = vmatprep.subr.mxu0 0.0
    %2547 = vmatpush1.msra.mxu0 0.0
    %2548 = vmatprep.subr.mxu0 0.0
    %2549 = vmatpush1.msra.mxu0 0.0
    %2550 = vmatprep.mubr.f32.mxu0 0.0
    %2551 = vmatmul.mubr.f32.gmra.mrb[0].mxu0 %v2484
    %v2552 = vpop.f32.mrb[0].mxu0
    %v2553 = vadd.f32 0.0, %v2552
    %v2554 = vpop.f32.mrb[0].mxu0
    %2555 = vdwg.mxu0
    %v2556 = vadd.f32 %v2482, %v2553
    %v2557 = vadd.f32 %v2556, %v447
    %v2558 = vxor.u32 %v2557, 2147483648
    %v2559 = vmul.f32 %v2558, 1.442695
    %v2560 = vpow.pop %v2559
    %v2561 = vadd.f32 %v2560, 1.0
    %v2562 = vrcp.pop %v2561
    %v2563 = vmul.f32 1.0, %v2562
    %s2564 = scalar_lea.vmem [#allocation2], 184
    %v2565 = vld [vmem:[%s2564] sm:$0xf]
    %2566 = vmatprep.subr.mxu0 0.0
    %2567 = vmatpush1.msra.mxu0 %v67
    %2568 = vmatprep.subr.mxu0 0.0
    %2569 = vmatpush1.msra.mxu0 %v68
    %2570 = vmatprep.subr.mxu0 0.0
    %2571 = vmatpush1.msra.mxu0 %v69
    %2572 = vmatprep.subr.mxu0 0.0
    %2573 = vmatpush1.msra.mxu0 %v70
    %2574 = vmatprep.subr.mxu0 0.0
    %2575 = vmatpush1.msra.mxu0 0.0
    %2576 = vmatprep.subr.mxu0 0.0
    %2577 = vmatpush1.msra.mxu0 0.0
    %2578 = vmatprep.subr.mxu0 0.0
    %2579 = vmatpush1.msra.mxu0 0.0
    %2580 = vmatprep.subr.mxu0 0.0
    %2581 = vmatpush1.msra.mxu0 0.0
    %2582 = vmatprep.subr.mxu0 0.0
    %2583 = vmatpush1.msra.mxu0 0.0
    %2584 = vmatprep.subr.mxu0 0.0
    %2585 = vmatpush1.msra.mxu0 0.0
    %2586 = vmatprep.subr.mxu0 0.0
    %2587 = vmatpush1.msra.mxu0 0.0
    %2588 = vmatprep.subr.mxu0 0.0
    %2589 = vmatpush1.msra.mxu0 0.0
    %2590 = vmatprep.subr.mxu0 0.0
    %2591 = vmatpush1.msra.mxu0 0.0
    %2592 = vmatprep.subr.mxu0 0.0
    %2593 = vmatpush1.msra.mxu0 0.0
    %2594 = vmatprep.subr.mxu0 0.0
    %2595 = vmatpush1.msra.mxu0 0.0
    %2596 = vmatprep.subr.mxu0 0.0
    %2597 = vmatpush1.msra.mxu0 0.0
    %2598 = vmatprep.subr.mxu0 0.0
    %2599 = vmatpush1.msra.mxu0 0.0
    %2600 = vmatprep.subr.mxu0 0.0
    %2601 = vmatpush1.msra.mxu0 0.0
    %2602 = vmatprep.subr.mxu0 0.0
    %2603 = vmatpush1.msra.mxu0 0.0
    %2604 = vmatprep.subr.mxu0 0.0
    %2605 = vmatpush1.msra.mxu0 0.0
    %2606 = vmatprep.subr.mxu0 0.0
    %2607 = vmatpush1.msra.mxu0 0.0
    %2608 = vmatprep.subr.mxu0 0.0
    %2609 = vmatpush1.msra.mxu0 0.0
    %2610 = vmatprep.subr.mxu0 0.0
    %2611 = vmatpush1.msra.mxu0 0.0
    %2612 = vmatprep.subr.mxu0 0.0
    %2613 = vmatpush1.msra.mxu0 0.0
    %2614 = vmatprep.subr.mxu0 0.0
    %2615 = vmatpush1.msra.mxu0 0.0
    %2616 = vmatprep.subr.mxu0 0.0
    %2617 = vmatpush1.msra.mxu0 0.0
    %2618 = vmatprep.subr.mxu0 0.0
    %2619 = vmatpush1.msra.mxu0 0.0
    %2620 = vmatprep.subr.mxu0 0.0
    %2621 = vmatpush1.msra.mxu0 0.0
    %2622 = vmatprep.subr.mxu0 0.0
    %2623 = vmatpush1.msra.mxu0 0.0
    %2624 = vmatprep.subr.mxu0 0.0
    %2625 = vmatpush1.msra.mxu0 0.0
    %2626 = vmatprep.subr.mxu0 0.0
    %2627 = vmatpush1.msra.mxu0 0.0
    %2628 = vmatprep.subr.mxu0 0.0
    %2629 = vmatpush1.msra.mxu0 0.0
    %2630 = vmatprep.mubr.f32.mxu0 0.0
    %2631 = vmatmul.mubr.f32.gmra.mrb[0].mxu0 %v2484
    %v2632 = vpop.f32.mrb[0].mxu0
    %v2633 = vadd.f32 0.0, %v2632
    %v2634 = vpop.f32.mrb[0].mxu0
    %2635 = vdwg.mxu0
    %v2636 = vadd.f32 %v2565, %v2633
    %v2637 = vadd.f32 %v2636, %v533
    %v2638 = vxor.u32 %v2637, 2147483648
    %v2639 = vmul.f32 %v2638, 1.442695
    %v2640 = vpow.pop %v2639
    %v2641 = vadd.f32 %v2640, 1.0
    %v2642 = vrcp.pop %v2641
    %v2643 = vmul.f32 1.0, %v2642
    %s2644 = scalar_lea.vmem [#allocation2], 188
    %v2645 = vld [vmem:[%s2644] sm:$0xf]
    %2646 = vmatprep.subr.mxu0 0.0
    %2647 = vmatpush1.msra.mxu0 %v72
    %2648 = vmatprep.subr.mxu0 0.0
    %2649 = vmatpush1.msra.mxu0 %v73
    %2650 = vmatprep.subr.mxu0 0.0
    %2651 = vmatpush1.msra.mxu0 %v74
    %2652 = vmatprep.subr.mxu0 0.0
    %2653 = vmatpush1.msra.mxu0 %v75
    %2654 = vmatprep.subr.mxu0 0.0
    %2655 = vmatpush1.msra.mxu0 0.0
    %2656 = vmatprep.subr.mxu0 0.0
    %2657 = vmatpush1.msra.mxu0 0.0
    %2658 = vmatprep.subr.mxu0 0.0
    %2659 = vmatpush1.msra.mxu0 0.0
    %2660 = vmatprep.subr.mxu0 0.0
    %2661 = vmatpush1.msra.mxu0 0.0
    %2662 = vmatprep.subr.mxu0 0.0
    %2663 = vmatpush1.msra.mxu0 0.0
    %2664 = vmatprep.subr.mxu0 0.0
    %2665 = vmatpush1.msra.mxu0 0.0
    %2666 = vmatprep.subr.mxu0 0.0
    %2667 = vmatpush1.msra.mxu0 0.0
    %2668 = vmatprep.subr.mxu0 0.0
    %2669 = vmatpush1.msra.mxu0 0.0
    %2670 = vmatprep.subr.mxu0 0.0
    %2671 = vmatpush1.msra.mxu0 0.0
    %2672 = vmatprep.subr.mxu0 0.0
    %2673 = vmatpush1.msra.mxu0 0.0
    %2674 = vmatprep.subr.mxu0 0.0
    %2675 = vmatpush1.msra.mxu0 0.0
    %2676 = vmatprep.subr.mxu0 0.0
    %2677 = vmatpush1.msra.mxu0 0.0
    %2678 = vmatprep.subr.mxu0 0.0
    %2679 = vmatpush1.msra.mxu0 0.0
    %2680 = vmatprep.subr.mxu0 0.0
    %2681 = vmatpush1.msra.mxu0 0.0
    %2682 = vmatprep.subr.mxu0 0.0
    %2683 = vmatpush1.msra.mxu0 0.0
    %2684 = vmatprep.subr.mxu0 0.0
    %2685 = vmatpush1.msra.mxu0 0.0
    %2686 = vmatprep.subr.mxu0 0.0
    %2687 = vmatpush1.msra.mxu0 0.0
    %2688 = vmatprep.subr.mxu0 0.0
    %2689 = vmatpush1.msra.mxu0 0.0
    %2690 = vmatprep.subr.mxu0 0.0
    %2691 = vmatpush1.msra.mxu0 0.0
    %2692 = vmatprep.subr.mxu0 0.0
    %2693 = vmatpush1.msra.mxu0 0.0
    %2694 = vmatprep.subr.mxu0 0.0
    %2695 = vmatpush1.msra.mxu0 0.0
    %2696 = vmatprep.subr.mxu0 0.0
    %2697 = vmatpush1.msra.mxu0 0.0
    %2698 = vmatprep.subr.mxu0 0.0
    %2699 = vmatpush1.msra.mxu0 0.0
    %2700 = vmatprep.subr.mxu0 0.0
    %2701 = vmatpush1.msra.mxu0 0.0
    %2702 = vmatprep.subr.mxu0 0.0
    %2703 = vmatpush1.msra.mxu0 0.0
    %2704 = vmatprep.subr.mxu0 0.0
    %2705 = vmatpush1.msra.mxu0 0.0
    %2706 = vmatprep.subr.mxu0 0.0
    %2707 = vmatpush1.msra.mxu0 0.0
    %2708 = vmatprep.subr.mxu0 0.0
    %2709 = vmatpush1.msra.mxu0 0.0
    %2710 = vmatprep.mubr.f32.mxu0 0.0
    %2711 = vmatmul.mubr.f32.gmra.mrb[0].mxu0 %v2484
    %v2712 = vpop.f32.mrb[0].mxu0
    %v2713 = vadd.f32 %v548, %v2712
    %v2714 = vpop.f32.mrb[0].mxu0
    %2715 = vdwg.mxu0
    %v2716 = vmul.f32 %v2563, %v2713
    %v2717 = vadd.f32 %v2645, %v2716
    %v2718 = vtanh.pop %v2717
    %v2719 = vsub.f32 1.0, %v2643
    %v2720 = vmul.f32 %v2719, %v2718
    %v2721 = vmul.f32 %v2643, %v2212
    %v2722 = vadd.f32 %v2720, %v2721
    %2724 = vset.pattern.permute.xlu0 0
    %2725 = vperm.xlu0 %2724, %v2480
    %v2726 = vpop.permute.xlu0 %2725
    %v2728 = vmul.f32 %v2726, %v2722
    %v2729 = vsub.f32 1.0, %v2480
    %2731 = vset.pattern.permute.xlu0 0
    %2732 = vperm.xlu0 %2731, %v2729
    %v2733 = vpop.permute.xlu0 %2732
    %v2735 = vmul.f32 %v2733, %v2212
    %v2736 = vadd.f32 %v2728, %v2735
    %v2737 = vmul.f32 %v2726, %v2736
    %s2738 = scalar_lea.vmem [#allocation7], 60
    %2739 = vst.msk [vmem:[%s2738] sm:$0xf] %vm365, %v2737
    %s2740 = scalar_lea.vmem [#allocation2], 60
    %v2741 = vld [vmem:[%s2740] sm:$0xf]
    %v2743 = vsel %vm91, %v2474, 0
    %2745 = vmatprep.subr.mxu0 0.0
    %2746 = vmatpush1.msra.mxu0 %v47
    %2747 = vmatprep.subr.mxu0 0.0
    %2748 = vmatpush1.msra.mxu0 %v48
    %2749 = vmatprep.subr.mxu0 0.0
    %2750 = vmatpush1.msra.mxu0 %v49
    %2751 = vmatprep.subr.mxu0 0.0
    %2752 = vmatpush1.msra.mxu0 %v50
    %2753 = vmatprep.subr.mxu0 0.0
    %2754 = vmatpush1.msra.mxu0 0.0
    %2755 = vmatprep.subr.mxu0 0.0
    %2756 = vmatpush1.msra.mxu0 0.0
    %2757 = vmatprep.subr.mxu0 0.0
    %2758 = vmatpush1.msra.mxu0 0.0
    %2759 = vmatprep.subr.mxu0 0.0
    %2760 = vmatpush1.msra.mxu0 0.0
    %2761 = vmatprep.subr.mxu0 0.0
    %2762 = vmatpush1.msra.mxu0 0.0
    %2763 = vmatprep.subr.mxu0 0.0
    %2764 = vmatpush1.msra.mxu0 0.0
    %2765 = vmatprep.subr.mxu0 0.0
    %2766 = vmatpush1.msra.mxu0 0.0
    %2767 = vmatprep.subr.mxu0 0.0
    %2768 = vmatpush1.msra.mxu0 0.0
    %2769 = vmatprep.subr.mxu0 0.0
    %2770 = vmatpush1.msra.mxu0 0.0
    %2771 = vmatprep.subr.mxu0 0.0
    %2772 = vmatpush1.msra.mxu0 0.0
    %2773 = vmatprep.subr.mxu0 0.0
    %2774 = vmatpush1.msra.mxu0 0.0
    %2775 = vmatprep.subr.mxu0 0.0
    %2776 = vmatpush1.msra.mxu0 0.0
    %2777 = vmatprep.subr.mxu0 0.0
    %2778 = vmatpush1.msra.mxu0 0.0
    %2779 = vmatprep.subr.mxu0 0.0
    %2780 = vmatpush1.msra.mxu0 0.0
    %2781 = vmatprep.subr.mxu0 0.0
    %2782 = vmatpush1.msra.mxu0 0.0
    %2783 = vmatprep.subr.mxu0 0.0
    %2784 = vmatpush1.msra.mxu0 0.0
    %2785 = vmatprep.subr.mxu0 0.0
    %2786 = vmatpush1.msra.mxu0 0.0
    %2787 = vmatprep.subr.mxu0 0.0
    %2788 = vmatpush1.msra.mxu0 0.0
    %2789 = vmatprep.subr.mxu0 0.0
    %2790 = vmatpush1.msra.mxu0 0.0
    %2791 = vmatprep.subr.mxu0 0.0
    %2792 = vmatpush1.msra.mxu0 0.0
    %2793 = vmatprep.subr.mxu0 0.0
    %2794 = vmatpush1.msra.mxu0 0.0
    %2795 = vmatprep.subr.mxu0 0.0
    %2796 = vmatpush1.msra.mxu0 0.0
    %2797 = vmatprep.subr.mxu0 0.0
    %2798 = vmatpush1.msra.mxu0 0.0
    %2799 = vmatprep.subr.mxu0 0.0
    %2800 = vmatpush1.msra.mxu0 0.0
    %2801 = vmatprep.subr.mxu0 0.0
    %2802 = vmatpush1.msra.mxu0 0.0
    %2803 = vmatprep.subr.mxu0 0.0
    %2804 = vmatpush1.msra.mxu0 0.0
    %2805 = vmatprep.subr.mxu0 0.0
    %2806 = vmatpush1.msra.mxu0 0.0
    %2807 = vmatprep.subr.mxu0 0.0
    %2808 = vmatpush1.msra.mxu0 0.0
    %2809 = vmatprep.mubr.f32.mxu0 0.0
    %2810 = vmatmul.mubr.f32.gmra.mrb[0].mxu0 %v2743
    %v2811 = vpop.f32.mrb[0].mxu0
    %v2812 = vadd.f32 0.0, %v2811
    %v2813 = vpop.f32.mrb[0].mxu0
    %2814 = vdwg.mxu0
    %v2815 = vadd.f32 %v2741, %v2812
    %v2816 = vadd.f32 %v2815, %v170
    %v2817 = vxor.u32 %v2816, 2147483648
    %v2818 = vmul.f32 %v2817, 1.442695
    %v2819 = vpow.pop %v2818
    %v2820 = vadd.f32 %v2819, 1.0
    %v2821 = vrcp.pop %v2820
    %v2822 = vmul.f32 1.0, %v2821
    %s2823 = scalar_lea.vmem [#allocation2], 64
    %v2824 = vld [vmem:[%s2823] sm:$0xf]
    %2825 = vmatprep.subr.mxu0 0.0
    %2826 = vmatpush1.msra.mxu0 %v52
    %2827 = vmatprep.subr.mxu0 0.0
    %2828 = vmatpush1.msra.mxu0 %v53
    %2829 = vmatprep.subr.mxu0 0.0
    %2830 = vmatpush1.msra.mxu0 %v54
    %2831 = vmatprep.subr.mxu0 0.0
    %2832 = vmatpush1.msra.mxu0 %v55
    %2833 = vmatprep.subr.mxu0 0.0
    %2834 = vmatpush1.msra.mxu0 0.0
    %2835 = vmatprep.subr.mxu0 0.0
    %2836 = vmatpush1.msra.mxu0 0.0
    %2837 = vmatprep.subr.mxu0 0.0
    %2838 = vmatpush1.msra.mxu0 0.0
    %2839 = vmatprep.subr.mxu0 0.0
    %2840 = vmatpush1.msra.mxu0 0.0
    %2841 = vmatprep.subr.mxu0 0.0
    %2842 = vmatpush1.msra.mxu0 0.0
    %2843 = vmatprep.subr.mxu0 0.0
    %2844 = vmatpush1.msra.mxu0 0.0
    %2845 = vmatprep.subr.mxu0 0.0
    %2846 = vmatpush1.msra.mxu0 0.0
    %2847 = vmatprep.subr.mxu0 0.0
    %2848 = vmatpush1.msra.mxu0 0.0
    %2849 = vmatprep.subr.mxu0 0.0
    %2850 = vmatpush1.msra.mxu0 0.0
    %2851 = vmatprep.subr.mxu0 0.0
    %2852 = vmatpush1.msra.mxu0 0.0
    %2853 = vmatprep.subr.mxu0 0.0
    %2854 = vmatpush1.msra.mxu0 0.0
    %2855 = vmatprep.subr.mxu0 0.0
    %2856 = vmatpush1.msra.mxu0 0.0
    %2857 = vmatprep.subr.mxu0 0.0
    %2858 = vmatpush1.msra.mxu0 0.0
    %2859 = vmatprep.subr.mxu0 0.0
    %2860 = vmatpush1.msra.mxu0 0.0
    %2861 = vmatprep.subr.mxu0 0.0
    %2862 = vmatpush1.msra.mxu0 0.0
    %2863 = vmatprep.subr.mxu0 0.0
    %2864 = vmatpush1.msra.mxu0 0.0
    %2865 = vmatprep.subr.mxu0 0.0
    %2866 = vmatpush1.msra.mxu0 0.0
    %2867 = vmatprep.subr.mxu0 0.0
    %2868 = vmatpush1.msra.mxu0 0.0
    %2869 = vmatprep.subr.mxu0 0.0
    %2870 = vmatpush1.msra.mxu0 0.0
    %2871 = vmatprep.subr.mxu0 0.0
    %2872 = vmatpush1.msra.mxu0 0.0
    %2873 = vmatprep.subr.mxu0 0.0
    %2874 = vmatpush1.msra.mxu0 0.0
    %2875 = vmatprep.subr.mxu0 0.0
    %2876 = vmatpush1.msra.mxu0 0.0
    %2877 = vmatprep.subr.mxu0 0.0
    %2878 = vmatpush1.msra.mxu0 0.0
    %2879 = vmatprep.subr.mxu0 0.0
    %2880 = vmatpush1.msra.mxu0 0.0
    %2881 = vmatprep.subr.mxu0 0.0
    %2882 = vmatpush1.msra.mxu0 0.0
    %2883 = vmatprep.subr.mxu0 0.0
    %2884 = vmatpush1.msra.mxu0 0.0
    %2885 = vmatprep.subr.mxu0 0.0
    %2886 = vmatpush1.msra.mxu0 0.0
    %2887 = vmatprep.subr.mxu0 0.0
    %2888 = vmatpush1.msra.mxu0 0.0
    %2889 = vmatprep.mubr.f32.mxu0 0.0
    %2890 = vmatmul.mubr.f32.gmra.mrb[0].mxu0 %v2743
    %v2891 = vpop.f32.mrb[0].mxu0
    %v2892 = vadd.f32 0.0, %v2891
    %v2893 = vpop.f32.mrb[0].mxu0
    %2894 = vdwg.mxu0
    %v2895 = vadd.f32 %v2824, %v2892
    %v2896 = vadd.f32 %v2895, %v256
    %v2897 = vxor.u32 %v2896, 2147483648
    %v2898 = vmul.f32 %v2897, 1.442695
    %v2899 = vpow.pop %v2898
    %v2900 = vadd.f32 %v2899, 1.0
    %v2901 = vrcp.pop %v2900
    %v2902 = vmul.f32 1.0, %v2901
    %s2903 = scalar_lea.vmem [#allocation2], 68
    %v2904 = vld [vmem:[%s2903] sm:$0xf]
    %2905 = vmatprep.subr.mxu0 0.0
    %2906 = vmatpush1.msra.mxu0 %v57
    %2907 = vmatprep.subr.mxu0 0.0
    %2908 = vmatpush1.msra.mxu0 %v58
    %2909 = vmatprep.subr.mxu0 0.0
    %2910 = vmatpush1.msra.mxu0 %v59
    %2911 = vmatprep.subr.mxu0 0.0
    %2912 = vmatpush1.msra.mxu0 %v60
    %2913 = vmatprep.subr.mxu0 0.0
    %2914 = vmatpush1.msra.mxu0 0.0
    %2915 = vmatprep.subr.mxu0 0.0
    %2916 = vmatpush1.msra.mxu0 0.0
    %2917 = vmatprep.subr.mxu0 0.0
    %2918 = vmatpush1.msra.mxu0 0.0
    %2919 = vmatprep.subr.mxu0 0.0
    %2920 = vmatpush1.msra.mxu0 0.0
    %2921 = vmatprep.subr.mxu0 0.0
    %2922 = vmatpush1.msra.mxu0 0.0
    %2923 = vmatprep.subr.mxu0 0.0
    %2924 = vmatpush1.msra.mxu0 0.0
    %2925 = vmatprep.subr.mxu0 0.0
    %2926 = vmatpush1.msra.mxu0 0.0
    %2927 = vmatprep.subr.mxu0 0.0
    %2928 = vmatpush1.msra.mxu0 0.0
    %2929 = vmatprep.subr.mxu0 0.0
    %2930 = vmatpush1.msra.mxu0 0.0
    %2931 = vmatprep.subr.mxu0 0.0
    %2932 = vmatpush1.msra.mxu0 0.0
    %2933 = vmatprep.subr.mxu0 0.0
    %2934 = vmatpush1.msra.mxu0 0.0
    %2935 = vmatprep.subr.mxu0 0.0
    %2936 = vmatpush1.msra.mxu0 0.0
    %2937 = vmatprep.subr.mxu0 0.0
    %2938 = vmatpush1.msra.mxu0 0.0
    %2939 = vmatprep.subr.mxu0 0.0
    %2940 = vmatpush1.msra.mxu0 0.0
    %2941 = vmatprep.subr.mxu0 0.0
    %2942 = vmatpush1.msra.mxu0 0.0
    %2943 = vmatprep.subr.mxu0 0.0
    %2944 = vmatpush1.msra.mxu0 0.0
    %2945 = vmatprep.subr.mxu0 0.0
    %2946 = vmatpush1.msra.mxu0 0.0
    %2947 = vmatprep.subr.mxu0 0.0
    %2948 = vmatpush1.msra.mxu0 0.0
    %2949 = vmatprep.subr.mxu0 0.0
    %2950 = vmatpush1.msra.mxu0 0.0
    %2951 = vmatprep.subr.mxu0 0.0
    %2952 = vmatpush1.msra.mxu0 0.0
    %2953 = vmatprep.subr.mxu0 0.0
    %2954 = vmatpush1.msra.mxu0 0.0
    %2955 = vmatprep.subr.mxu0 0.0
    %2956 = vmatpush1.msra.mxu0 0.0
    %2957 = vmatprep.subr.mxu0 0.0
    %2958 = vmatpush1.msra.mxu0 0.0
    %2959 = vmatprep.subr.mxu0 0.0
    %2960 = vmatpush1.msra.mxu0 0.0
    %2961 = vmatprep.subr.mxu0 0.0
    %2962 = vmatpush1.msra.mxu0 0.0
    %2963 = vmatprep.subr.mxu0 0.0
    %2964 = vmatpush1.msra.mxu0 0.0
    %2965 = vmatprep.subr.mxu0 0.0
    %2966 = vmatpush1.msra.mxu0 0.0
    %2967 = vmatprep.subr.mxu0 0.0
    %2968 = vmatpush1.msra.mxu0 0.0
    %2969 = vmatprep.mubr.f32.mxu0 0.0
    %2970 = vmatmul.mubr.f32.gmra.mrb[0].mxu0 %v2743
    %v2971 = vpop.f32.mrb[0].mxu0
    %v2972 = vadd.f32 %v271, %v2971
    %v2973 = vpop.f32.mrb[0].mxu0
    %2974 = vdwg.mxu0
    %v2975 = vmul.f32 %v2822, %v2972
    %v2976 = vadd.f32 %v2904, %v2975
    %v2977 = vtanh.pop %v2976
    %v2978 = vsub.f32 1.0, %v2902
    %v2979 = vmul.f32 %v2978, %v2977
    %v2980 = vmul.f32 %v2902, %v2474
    %v2981 = vadd.f32 %v2979, %v2980
    %v2982 = vmul.f32 %v2726, %v2981
    %v2983 = vmul.f32 %v2733, %v2474
    %v2984 = vadd.f32 %v2982, %v2983
    %v2985 = vmul.f32 %v2726, %v2984
    %s2986 = scalar_lea.vmem [#allocation7], 20
    %2987 = vst.msk [vmem:[%s2986] sm:$0xf] %vm365, %v2985
    %s2988 = scalar_lea.vmem [#allocation2], 168
    %v2989 = vld [vmem:[%s2988] sm:$0xf]
    %v2991 = vsel %vm91, %v2736, 0
    %2993 = vmatprep.subr.mxu0 0.0
    %2994 = vmatpush1.msra.mxu0 %v62
    %2995 = vmatprep.subr.mxu0 0.0
    %2996 = vmatpush1.msra.mxu0 %v63
    %2997 = vmatprep.subr.mxu0 0.0
    %2998 = vmatpush1.msra.mxu0 %v64
    %2999 = vmatprep.subr.mxu0 0.0
    %3000 = vmatpush1.msra.mxu0 %v65
    %3001 = vmatprep.subr.mxu0 0.0
    %3002 = vmatpush1.msra.mxu0 0.0
    %3003 = vmatprep.subr.mxu0 0.0
    %3004 = vmatpush1.msra.mxu0 0.0
    %3005 = vmatprep.subr.mxu0 0.0
    %3006 = vmatpush1.msra.mxu0 0.0
    %3007 = vmatprep.subr.mxu0 0.0
    %3008 = vmatpush1.msra.mxu0 0.0
    %3009 = vmatprep.subr.mxu0 0.0
    %3010 = vmatpush1.msra.mxu0 0.0
    %3011 = vmatprep.subr.mxu0 0.0
    %3012 = vmatpush1.msra.mxu0 0.0
    %3013 = vmatprep.subr.mxu0 0.0
    %3014 = vmatpush1.msra.mxu0 0.0
    %3015 = vmatprep.subr.mxu0 0.0
    %3016 = vmatpush1.msra.mxu0 0.0
    %3017 = vmatprep.subr.mxu0 0.0
    %3018 = vmatpush1.msra.mxu0 0.0
    %3019 = vmatprep.subr.mxu0 0.0
    %3020 = vmatpush1.msra.mxu0 0.0
    %3021 = vmatprep.subr.mxu0 0.0
    %3022 = vmatpush1.msra.mxu0 0.0
    %3023 = vmatprep.subr.mxu0 0.0
    %3024 = vmatpush1.msra.mxu0 0.0
    %3025 = vmatprep.subr.mxu0 0.0
    %3026 = vmatpush1.msra.mxu0 0.0
    %3027 = vmatprep.subr.mxu0 0.0
    %3028 = vmatpush1.msra.mxu0 0.0
    %3029 = vmatprep.subr.mxu0 0.0
    %3030 = vmatpush1.msra.mxu0 0.0
    %3031 = vmatprep.subr.mxu0 0.0
    %3032 = vmatpush1.msra.mxu0 0.0
    %3033 = vmatprep.subr.mxu0 0.0
    %3034 = vmatpush1.msra.mxu0 0.0
    %3035 = vmatprep.subr.mxu0 0.0
    %3036 = vmatpush1.msra.mxu0 0.0
    %3037 = vmatprep.subr.mxu0 0.0
    %3038 = vmatpush1.msra.mxu0 0.0
    %3039 = vmatprep.subr.mxu0 0.0
    %3040 = vmatpush1.msra.mxu0 0.0
    %3041 = vmatprep.subr.mxu0 0.0
    %3042 = vmatpush1.msra.mxu0 0.0
    %3043 = vmatprep.subr.mxu0 0.0
    %3044 = vmatpush1.msra.mxu0 0.0
    %3045 = vmatprep.subr.mxu0 0.0
    %3046 = vmatpush1.msra.mxu0 0.0
    %3047 = vmatprep.subr.mxu0 0.0
    %3048 = vmatpush1.msra.mxu0 0.0
    %3049 = vmatprep.subr.mxu0 0.0
    %3050 = vmatpush1.msra.mxu0 0.0
    %3051 = vmatprep.subr.mxu0 0.0
    %3052 = vmatpush1.msra.mxu0 0.0
    %3053 = vmatprep.subr.mxu0 0.0
    %3054 = vmatpush1.msra.mxu0 0.0
    %3055 = vmatprep.subr.mxu0 0.0
    %3056 = vmatpush1.msra.mxu0 0.0
    %3057 = vmatprep.mubr.f32.mxu0 0.0
    %3058 = vmatmul.mubr.f32.gmra.mrb[0].mxu0 %v2991
    %v3059 = vpop.f32.mrb[0].mxu0
    %v3060 = vadd.f32 0.0, %v3059
    %v3061 = vpop.f32.mrb[0].mxu0
    %3062 = vdwg.mxu0
    %v3063 = vadd.f32 %v2989, %v3060
    %v3064 = vadd.f32 %v3063, %v447
    %v3065 = vxor.u32 %v3064, 2147483648
    %v3066 = vmul.f32 %v3065, 1.442695
    %v3067 = vpow.pop %v3066
    %v3068 = vadd.f32 %v3067, 1.0
    %v3069 = vrcp.pop %v3068
    %v3070 = vmul.f32 1.0, %v3069
    %s3071 = scalar_lea.vmem [#allocation2], 172
    %v3072 = vld [vmem:[%s3071] sm:$0xf]
    %3073 = vmatprep.subr.mxu0 0.0
    %3074 = vmatpush1.msra.mxu0 %v67
    %3075 = vmatprep.subr.mxu0 0.0
    %3076 = vmatpush1.msra.mxu0 %v68
    %3077 = vmatprep.subr.mxu0 0.0
    %3078 = vmatpush1.msra.mxu0 %v69
    %3079 = vmatprep.subr.mxu0 0.0
    %3080 = vmatpush1.msra.mxu0 %v70
    %3081 = vmatprep.subr.mxu0 0.0
    %3082 = vmatpush1.msra.mxu0 0.0
    %3083 = vmatprep.subr.mxu0 0.0
    %3084 = vmatpush1.msra.mxu0 0.0
    %3085 = vmatprep.subr.mxu0 0.0
    %3086 = vmatpush1.msra.mxu0 0.0
    %3087 = vmatprep.subr.mxu0 0.0
    %3088 = vmatpush1.msra.mxu0 0.0
    %3089 = vmatprep.subr.mxu0 0.0
    %3090 = vmatpush1.msra.mxu0 0.0
    %3091 = vmatprep.subr.mxu0 0.0
    %3092 = vmatpush1.msra.mxu0 0.0
    %3093 = vmatprep.subr.mxu0 0.0
    %3094 = vmatpush1.msra.mxu0 0.0
    %3095 = vmatprep.subr.mxu0 0.0
    %3096 = vmatpush1.msra.mxu0 0.0
    %3097 = vmatprep.subr.mxu0 0.0
    %3098 = vmatpush1.msra.mxu0 0.0
    %3099 = vmatprep.subr.mxu0 0.0
    %3100 = vmatpush1.msra.mxu0 0.0
    %3101 = vmatprep.subr.mxu0 0.0
    %3102 = vmatpush1.msra.mxu0 0.0
    %3103 = vmatprep.subr.mxu0 0.0
    %3104 = vmatpush1.msra.mxu0 0.0
    %3105 = vmatprep.subr.mxu0 0.0
    %3106 = vmatpush1.msra.mxu0 0.0
    %3107 = vmatprep.subr.mxu0 0.0
    %3108 = vmatpush1.msra.mxu0 0.0
    %3109 = vmatprep.subr.mxu0 0.0
    %3110 = vmatpush1.msra.mxu0 0.0
    %3111 = vmatprep.subr.mxu0 0.0
    %3112 = vmatpush1.msra.mxu0 0.0
    %3113 = vmatprep.subr.mxu0 0.0
    %3114 = vmatpush1.msra.mxu0 0.0
    %3115 = vmatprep.subr.mxu0 0.0
    %3116 = vmatpush1.msra.mxu0 0.0
    %3117 = vmatprep.subr.mxu0 0.0
    %3118 = vmatpush1.msra.mxu0 0.0
    %3119 = vmatprep.subr.mxu0 0.0
    %3120 = vmatpush1.msra.mxu0 0.0
    %3121 = vmatprep.subr.mxu0 0.0
    %3122 = vmatpush1.msra.mxu0 0.0
    %3123 = vmatprep.subr.mxu0 0.0
    %3124 = vmatpush1.msra.mxu0 0.0
    %3125 = vmatprep.subr.mxu0 0.0
    %3126 = vmatpush1.msra.mxu0 0.0
    %3127 = vmatprep.subr.mxu0 0.0
    %3128 = vmatpush1.msra.mxu0 0.0
    %3129 = vmatprep.subr.mxu0 0.0
    %3130 = vmatpush1.msra.mxu0 0.0
    %3131 = vmatprep.subr.mxu0 0.0
    %3132 = vmatpush1.msra.mxu0 0.0
    %3133 = vmatprep.subr.mxu0 0.0
    %3134 = vmatpush1.msra.mxu0 0.0
    %3135 = vmatprep.subr.mxu0 0.0
    %3136 = vmatpush1.msra.mxu0 0.0
    %3137 = vmatprep.mubr.f32.mxu0 0.0
    %3138 = vmatmul.mubr.f32.gmra.mrb[0].mxu0 %v2991
    %v3139 = vpop.f32.mrb[0].mxu0
    %v3140 = vadd.f32 0.0, %v3139
    %v3141 = vpop.f32.mrb[0].mxu0
    %3142 = vdwg.mxu0
    %v3143 = vadd.f32 %v3072, %v3140
    %v3144 = vadd.f32 %v3143, %v533
    %v3145 = vxor.u32 %v3144, 2147483648
    %v3146 = vmul.f32 %v3145, 1.442695
    %v3147 = vpow.pop %v3146
    %v3148 = vadd.f32 %v3147, 1.0
    %v3149 = vrcp.pop %v3148
    %v3150 = vmul.f32 1.0, %v3149
    %s3151 = scalar_lea.vmem [#allocation2], 176
    %v3152 = vld [vmem:[%s3151] sm:$0xf]
    %3153 = vmatprep.subr.mxu0 0.0
    %3154 = vmatpush1.msra.mxu0 %v72
    %3155 = vmatprep.subr.mxu0 0.0
    %3156 = vmatpush1.msra.mxu0 %v73
    %3157 = vmatprep.subr.mxu0 0.0
    %3158 = vmatpush1.msra.mxu0 %v74
    %3159 = vmatprep.subr.mxu0 0.0
    %3160 = vmatpush1.msra.mxu0 %v75
    %3161 = vmatprep.subr.mxu0 0.0
    %3162 = vmatpush1.msra.mxu0 0.0
    %3163 = vmatprep.subr.mxu0 0.0
    %3164 = vmatpush1.msra.mxu0 0.0
    %3165 = vmatprep.subr.mxu0 0.0
    %3166 = vmatpush1.msra.mxu0 0.0
    %3167 = vmatprep.subr.mxu0 0.0
    %3168 = vmatpush1.msra.mxu0 0.0
    %3169 = vmatprep.subr.mxu0 0.0
    %3170 = vmatpush1.msra.mxu0 0.0
    %3171 = vmatprep.subr.mxu0 0.0
    %3172 = vmatpush1.msra.mxu0 0.0
    %3173 = vmatprep.subr.mxu0 0.0
    %3174 = vmatpush1.msra.mxu0 0.0
    %3175 = vmatprep.subr.mxu0 0.0
    %3176 = vmatpush1.msra.mxu0 0.0
    %3177 = vmatprep.subr.mxu0 0.0
    %3178 = vmatpush1.msra.mxu0 0.0
    %3179 = vmatprep.subr.mxu0 0.0
    %3180 = vmatpush1.msra.mxu0 0.0
    %3181 = vmatprep.subr.mxu0 0.0
    %3182 = vmatpush1.msra.mxu0 0.0
    %3183 = vmatprep.subr.mxu0 0.0
    %3184 = vmatpush1.msra.mxu0 0.0
    %3185 = vmatprep.subr.mxu0 0.0
    %3186 = vmatpush1.msra.mxu0 0.0
    %3187 = vmatprep.subr.mxu0 0.0
    %3188 = vmatpush1.msra.mxu0 0.0
    %3189 = vmatprep.subr.mxu0 0.0
    %3190 = vmatpush1.msra.mxu0 0.0
    %3191 = vmatprep.subr.mxu0 0.0
    %3192 = vmatpush1.msra.mxu0 0.0
    %3193 = vmatprep.subr.mxu0 0.0
    %3194 = vmatpush1.msra.mxu0 0.0
    %3195 = vmatprep.subr.mxu0 0.0
    %3196 = vmatpush1.msra.mxu0 0.0
    %3197 = vmatprep.subr.mxu0 0.0
    %3198 = vmatpush1.msra.mxu0 0.0
    %3199 = vmatprep.subr.mxu0 0.0
    %3200 = vmatpush1.msra.mxu0 0.0
    %3201 = vmatprep.subr.mxu0 0.0
    %3202 = vmatpush1.msra.mxu0 0.0
    %3203 = vmatprep.subr.mxu0 0.0
    %3204 = vmatpush1.msra.mxu0 0.0
    %3205 = vmatprep.subr.mxu0 0.0
    %3206 = vmatpush1.msra.mxu0 0.0
    %3207 = vmatprep.subr.mxu0 0.0
    %3208 = vmatpush1.msra.mxu0 0.0
    %3209 = vmatprep.subr.mxu0 0.0
    %3210 = vmatpush1.msra.mxu0 0.0
    %3211 = vmatprep.subr.mxu0 0.0
    %3212 = vmatpush1.msra.mxu0 0.0
    %3213 = vmatprep.subr.mxu0 0.0
    %3214 = vmatpush1.msra.mxu0 0.0
    %3215 = vmatprep.subr.mxu0 0.0
    %3216 = vmatpush1.msra.mxu0 0.0
    %3217 = vmatprep.mubr.f32.mxu0 0.0
    %3218 = vmatmul.mubr.f32.gmra.mrb[0].mxu0 %v2991
    %v3219 = vpop.f32.mrb[0].mxu0
    %v3220 = vadd.f32 %v548, %v3219
    %v3221 = vpop.f32.mrb[0].mxu0
    %3222 = vdwg.mxu0
    %v3223 = vmul.f32 %v3070, %v3220
    %v3224 = vadd.f32 %v3152, %v3223
    %v3225 = vtanh.pop %v3224
    %v3226 = vsub.f32 1.0, %v3150
    %v3227 = vmul.f32 %v3226, %v3225
    %v3228 = vmul.f32 %v3150, %v2736
    %v3229 = vadd.f32 %v3227, %v3228
    %v3230 = vmul.f32 %v2464, %v3229
    %v3231 = vmul.f32 %v2471, %v2736
    %v3232 = vadd.f32 %v3230, %v3231
    %v3233 = vmul.f32 %v2464, %v3232
    %s3234 = scalar_lea.vmem [#allocation7], 56
    %3235 = vst.msk [vmem:[%s3234] sm:$0xf] %vm365, %v3233
    %s3236 = scalar_lea.vmem [#allocation2], 72
    %v3237 = vld [vmem:[%s3236] sm:$0xf]
    %v3239 = vsel %vm91, %v2984, 0
    %3241 = vmatprep.subr.mxu0 0.0
    %3242 = vmatpush1.msra.mxu0 %v47
    %3243 = vmatprep.subr.mxu0 0.0
    %3244 = vmatpush1.msra.mxu0 %v48
    %3245 = vmatprep.subr.mxu0 0.0
    %3246 = vmatpush1.msra.mxu0 %v49
    %3247 = vmatprep.subr.mxu0 0.0
    %3248 = vmatpush1.msra.mxu0 %v50
    %3249 = vmatprep.subr.mxu0 0.0
    %3250 = vmatpush1.msra.mxu0 0.0
    %3251 = vmatprep.subr.mxu0 0.0
    %3252 = vmatpush1.msra.mxu0 0.0
    %3253 = vmatprep.subr.mxu0 0.0
    %3254 = vmatpush1.msra.mxu0 0.0
    %3255 = vmatprep.subr.mxu0 0.0
    %3256 = vmatpush1.msra.mxu0 0.0
    %3257 = vmatprep.subr.mxu0 0.0
    %3258 = vmatpush1.msra.mxu0 0.0
    %3259 = vmatprep.subr.mxu0 0.0
    %3260 = vmatpush1.msra.mxu0 0.0
    %3261 = vmatprep.subr.mxu0 0.0
    %3262 = vmatpush1.msra.mxu0 0.0
    %3263 = vmatprep.subr.mxu0 0.0
    %3264 = vmatpush1.msra.mxu0 0.0
    %3265 = vmatprep.subr.mxu0 0.0
    %3266 = vmatpush1.msra.mxu0 0.0
    %3267 = vmatprep.subr.mxu0 0.0
    %3268 = vmatpush1.msra.mxu0 0.0
    %3269 = vmatprep.subr.mxu0 0.0
    %3270 = vmatpush1.msra.mxu0 0.0
    %3271 = vmatprep.subr.mxu0 0.0
    %3272 = vmatpush1.msra.mxu0 0.0
    %3273 = vmatprep.subr.mxu0 0.0
    %3274 = vmatpush1.msra.mxu0 0.0
    %3275 = vmatprep.subr.mxu0 0.0
    %3276 = vmatpush1.msra.mxu0 0.0
    %3277 = vmatprep.subr.mxu0 0.0
    %3278 = vmatpush1.msra.mxu0 0.0
    %3279 = vmatprep.subr.mxu0 0.0
    %3280 = vmatpush1.msra.mxu0 0.0
    %3281 = vmatprep.subr.mxu0 0.0
    %3282 = vmatpush1.msra.mxu0 0.0
    %3283 = vmatprep.subr.mxu0 0.0
    %3284 = vmatpush1.msra.mxu0 0.0
    %3285 = vmatprep.subr.mxu0 0.0
    %3286 = vmatpush1.msra.mxu0 0.0
    %3287 = vmatprep.subr.mxu0 0.0
    %3288 = vmatpush1.msra.mxu0 0.0
    %3289 = vmatprep.subr.mxu0 0.0
    %3290 = vmatpush1.msra.mxu0 0.0
    %3291 = vmatprep.subr.mxu0 0.0
    %3292 = vmatpush1.msra.mxu0 0.0
    %3293 = vmatprep.subr.mxu0 0.0
    %3294 = vmatpush1.msra.mxu0 0.0
    %3295 = vmatprep.subr.mxu0 0.0
    %3296 = vmatpush1.msra.mxu0 0.0
    %3297 = vmatprep.subr.mxu0 0.0
    %3298 = vmatpush1.msra.mxu0 0.0
    %3299 = vmatprep.subr.mxu0 0.0
    %3300 = vmatpush1.msra.mxu0 0.0
    %3301 = vmatprep.subr.mxu0 0.0
    %3302 = vmatpush1.msra.mxu0 0.0
    %3303 = vmatprep.subr.mxu0 0.0
    %3304 = vmatpush1.msra.mxu0 0.0
    %3305 = vmatprep.mubr.f32.mxu0 0.0
    %3306 = vmatmul.mubr.f32.gmra.mrb[0].mxu0 %v3239
    %v3307 = vpop.f32.mrb[0].mxu0
    %v3308 = vadd.f32 0.0, %v3307
    %v3309 = vpop.f32.mrb[0].mxu0
    %3310 = vdwg.mxu0
    %v3311 = vadd.f32 %v3237, %v3308
    %v3312 = vadd.f32 %v3311, %v170
    %v3313 = vxor.u32 %v3312, 2147483648
    %v3314 = vmul.f32 %v3313, 1.442695
    %v3315 = vpow.pop %v3314
    %v3316 = vadd.f32 %v3315, 1.0
    %v3317 = vrcp.pop %v3316
    %v3318 = vmul.f32 1.0, %v3317
    %s3319 = scalar_lea.vmem [#allocation2], 76
    %v3320 = vld [vmem:[%s3319] sm:$0xf]
    %3321 = vmatprep.subr.mxu0 0.0
    %3322 = vmatpush1.msra.mxu0 %v52
    %3323 = vmatprep.subr.mxu0 0.0
    %3324 = vmatpush1.msra.mxu0 %v53
    %3325 = vmatprep.subr.mxu0 0.0
    %3326 = vmatpush1.msra.mxu0 %v54
    %3327 = vmatprep.subr.mxu0 0.0
    %3328 = vmatpush1.msra.mxu0 %v55
    %3329 = vmatprep.subr.mxu0 0.0
    %3330 = vmatpush1.msra.mxu0 0.0
    %3331 = vmatprep.subr.mxu0 0.0
    %3332 = vmatpush1.msra.mxu0 0.0
    %3333 = vmatprep.subr.mxu0 0.0
    %3334 = vmatpush1.msra.mxu0 0.0
    %3335 = vmatprep.subr.mxu0 0.0
    %3336 = vmatpush1.msra.mxu0 0.0
    %3337 = vmatprep.subr.mxu0 0.0
    %3338 = vmatpush1.msra.mxu0 0.0
    %3339 = vmatprep.subr.mxu0 0.0
    %3340 = vmatpush1.msra.mxu0 0.0
    %3341 = vmatprep.subr.mxu0 0.0
    %3342 = vmatpush1.msra.mxu0 0.0
    %3343 = vmatprep.subr.mxu0 0.0
    %3344 = vmatpush1.msra.mxu0 0.0
    %3345 = vmatprep.subr.mxu0 0.0
    %3346 = vmatpush1.msra.mxu0 0.0
    %3347 = vmatprep.subr.mxu0 0.0
    %3348 = vmatpush1.msra.mxu0 0.0
    %3349 = vmatprep.subr.mxu0 0.0
    %3350 = vmatpush1.msra.mxu0 0.0
    %3351 = vmatprep.subr.mxu0 0.0
    %3352 = vmatpush1.msra.mxu0 0.0
    %3353 = vmatprep.subr.mxu0 0.0
    %3354 = vmatpush1.msra.mxu0 0.0
    %3355 = vmatprep.subr.mxu0 0.0
    %3356 = vmatpush1.msra.mxu0 0.0
    %3357 = vmatprep.subr.mxu0 0.0
    %3358 = vmatpush1.msra.mxu0 0.0
    %3359 = vmatprep.subr.mxu0 0.0
    %3360 = vmatpush1.msra.mxu0 0.0
    %3361 = vmatprep.subr.mxu0 0.0
    %3362 = vmatpush1.msra.mxu0 0.0
    %3363 = vmatprep.subr.mxu0 0.0
    %3364 = vmatpush1.msra.mxu0 0.0
    %3365 = vmatprep.subr.mxu0 0.0
    %3366 = vmatpush1.msra.mxu0 0.0
    %3367 = vmatprep.subr.mxu0 0.0
    %3368 = vmatpush1.msra.mxu0 0.0
    %3369 = vmatprep.subr.mxu0 0.0
    %3370 = vmatpush1.msra.mxu0 0.0
    %3371 = vmatprep.subr.mxu0 0.0
    %3372 = vmatpush1.msra.mxu0 0.0
    %3373 = vmatprep.subr.mxu0 0.0
    %3374 = vmatpush1.msra.mxu0 0.0
    %3375 = vmatprep.subr.mxu0 0.0
    %3376 = vmatpush1.msra.mxu0 0.0
    %3377 = vmatprep.subr.mxu0 0.0
    %3378 = vmatpush1.msra.mxu0 0.0
    %3379 = vmatprep.subr.mxu0 0.0
    %3380 = vmatpush1.msra.mxu0 0.0
    %3381 = vmatprep.subr.mxu0 0.0
    %3382 = vmatpush1.msra.mxu0 0.0
    %3383 = vmatprep.subr.mxu0 0.0
    %3384 = vmatpush1.msra.mxu0 0.0
    %3385 = vmatprep.mubr.f32.mxu0 0.0
    %3386 = vmatmul.mubr.f32.gmra.mrb[0].mxu0 %v3239
    %v3387 = vpop.f32.mrb[0].mxu0
    %v3388 = vadd.f32 0.0, %v3387
    %v3389 = vpop.f32.mrb[0].mxu0
    %3390 = vdwg.mxu0
    %v3391 = vadd.f32 %v3320, %v3388
    %v3392 = vadd.f32 %v3391, %v256
    %v3393 = vxor.u32 %v3392, 2147483648
    %v3394 = vmul.f32 %v3393, 1.442695
    %v3395 = vpow.pop %v3394
    %v3396 = vadd.f32 %v3395, 1.0
    %v3397 = vrcp.pop %v3396
    %v3398 = vmul.f32 1.0, %v3397
    %s3399 = scalar_lea.vmem [#allocation2], 80
    %v3400 = vld [vmem:[%s3399] sm:$0xf]
    %3401 = vmatprep.subr.mxu0 0.0
    %3402 = vmatpush1.msra.mxu0 %v57
    %3403 = vmatprep.subr.mxu0 0.0
    %3404 = vmatpush1.msra.mxu0 %v58
    %3405 = vmatprep.subr.mxu0 0.0
    %3406 = vmatpush1.msra.mxu0 %v59
    %3407 = vmatprep.subr.mxu0 0.0
    %3408 = vmatpush1.msra.mxu0 %v60
    %3409 = vmatprep.subr.mxu0 0.0
    %3410 = vmatpush1.msra.mxu0 0.0
    %3411 = vmatprep.subr.mxu0 0.0
    %3412 = vmatpush1.msra.mxu0 0.0
    %3413 = vmatprep.subr.mxu0 0.0
    %3414 = vmatpush1.msra.mxu0 0.0
    %3415 = vmatprep.subr.mxu0 0.0
    %3416 = vmatpush1.msra.mxu0 0.0
    %3417 = vmatprep.subr.mxu0 0.0
    %3418 = vmatpush1.msra.mxu0 0.0
    %3419 = vmatprep.subr.mxu0 0.0
    %3420 = vmatpush1.msra.mxu0 0.0
    %3421 = vmatprep.subr.mxu0 0.0
    %3422 = vmatpush1.msra.mxu0 0.0
    %3423 = vmatprep.subr.mxu0 0.0
    %3424 = vmatpush1.msra.mxu0 0.0
    %3425 = vmatprep.subr.mxu0 0.0
    %3426 = vmatpush1.msra.mxu0 0.0
    %3427 = vmatprep.subr.mxu0 0.0
    %3428 = vmatpush1.msra.mxu0 0.0
    %3429 = vmatprep.subr.mxu0 0.0
    %3430 = vmatpush1.msra.mxu0 0.0
    %3431 = vmatprep.subr.mxu0 0.0
    %3432 = vmatpush1.msra.mxu0 0.0
    %3433 = vmatprep.subr.mxu0 0.0
    %3434 = vmatpush1.msra.mxu0 0.0
    %3435 = vmatprep.subr.mxu0 0.0
    %3436 = vmatpush1.msra.mxu0 0.0
    %3437 = vmatprep.subr.mxu0 0.0
    %3438 = vmatpush1.msra.mxu0 0.0
    %3439 = vmatprep.subr.mxu0 0.0
    %3440 = vmatpush1.msra.mxu0 0.0
    %3441 = vmatprep.subr.mxu0 0.0
    %3442 = vmatpush1.msra.mxu0 0.0
    %3443 = vmatprep.subr.mxu0 0.0
    %3444 = vmatpush1.msra.mxu0 0.0
    %3445 = vmatprep.subr.mxu0 0.0
    %3446 = vmatpush1.msra.mxu0 0.0
    %3447 = vmatprep.subr.mxu0 0.0
    %3448 = vmatpush1.msra.mxu0 0.0
    %3449 = vmatprep.subr.mxu0 0.0
    %3450 = vmatpush1.msra.mxu0 0.0
    %3451 = vmatprep.subr.mxu0 0.0
    %3452 = vmatpush1.msra.mxu0 0.0
    %3453 = vmatprep.subr.mxu0 0.0
    %3454 = vmatpush1.msra.mxu0 0.0
    %3455 = vmatprep.subr.mxu0 0.0
    %3456 = vmatpush1.msra.mxu0 0.0
    %3457 = vmatprep.subr.mxu0 0.0
    %3458 = vmatpush1.msra.mxu0 0.0
    %3459 = vmatprep.subr.mxu0 0.0
    %3460 = vmatpush1.msra.mxu0 0.0
    %3461 = vmatprep.subr.mxu0 0.0
    %3462 = vmatpush1.msra.mxu0 0.0
    %3463 = vmatprep.subr.mxu0 0.0
    %3464 = vmatpush1.msra.mxu0 0.0
    %3465 = vmatprep.mubr.f32.mxu0 0.0
    %3466 = vmatmul.mubr.f32.gmra.mrb[0].mxu0 %v3239
    %v3467 = vpop.f32.mrb[0].mxu0
    %v3468 = vadd.f32 %v271, %v3467
    %v3469 = vpop.f32.mrb[0].mxu0
    %3470 = vdwg.mxu0
    %v3471 = vmul.f32 %v3318, %v3468
    %v3472 = vadd.f32 %v3400, %v3471
    %v3473 = vtanh.pop %v3472
    %v3474 = vsub.f32 1.0, %v3398
    %v3475 = vmul.f32 %v3474, %v3473
    %v3476 = vmul.f32 %v3398, %v2984
    %v3477 = vadd.f32 %v3475, %v3476
    %v3478 = vmul.f32 %v2202, %v3477
    %v3479 = vmul.f32 %v2209, %v2984
    %v3480 = vadd.f32 %v3478, %v3479
    %v3481 = vmul.f32 %v2202, %v3480
    %s3482 = scalar_lea.vmem [#allocation7], 24
    %3483 = vst.msk [vmem:[%s3482] sm:$0xf] %vm365, %v3481
    %s3484 = scalar_lea.vmem [#allocation2], 156
    %v3485 = vld [vmem:[%s3484] sm:$0xf]
    %v3487 = vsel %vm91, %v3232, 0
    %3489 = vmatprep.subr.mxu0 0.0
    %3490 = vmatpush1.msra.mxu0 %v62
    %3491 = vmatprep.subr.mxu0 0.0
    %3492 = vmatpush1.msra.mxu0 %v63
    %3493 = vmatprep.subr.mxu0 0.0
    %3494 = vmatpush1.msra.mxu0 %v64
    %3495 = vmatprep.subr.mxu0 0.0
    %3496 = vmatpush1.msra.mxu0 %v65
    %3497 = vmatprep.subr.mxu0 0.0
    %3498 = vmatpush1.msra.mxu0 0.0
    %3499 = vmatprep.subr.mxu0 0.0
    %3500 = vmatpush1.msra.mxu0 0.0
    %3501 = vmatprep.subr.mxu0 0.0
    %3502 = vmatpush1.msra.mxu0 0.0
    %3503 = vmatprep.subr.mxu0 0.0
    %3504 = vmatpush1.msra.mxu0 0.0
    %3505 = vmatprep.subr.mxu0 0.0
    %3506 = vmatpush1.msra.mxu0 0.0
    %3507 = vmatprep.subr.mxu0 0.0
    %3508 = vmatpush1.msra.mxu0 0.0
    %3509 = vmatprep.subr.mxu0 0.0
    %3510 = vmatpush1.msra.mxu0 0.0
    %3511 = vmatprep.subr.mxu0 0.0
    %3512 = vmatpush1.msra.mxu0 0.0
    %3513 = vmatprep.subr.mxu0 0.0
    %3514 = vmatpush1.msra.mxu0 0.0
    %3515 = vmatprep.subr.mxu0 0.0
    %3516 = vmatpush1.msra.mxu0 0.0
    %3517 = vmatprep.subr.mxu0 0.0
    %3518 = vmatpush1.msra.mxu0 0.0
    %3519 = vmatprep.subr.mxu0 0.0
    %3520 = vmatpush1.msra.mxu0 0.0
    %3521 = vmatprep.subr.mxu0 0.0
    %3522 = vmatpush1.msra.mxu0 0.0
    %3523 = vmatprep.subr.mxu0 0.0
    %3524 = vmatpush1.msra.mxu0 0.0
    %3525 = vmatprep.subr.mxu0 0.0
    %3526 = vmatpush1.msra.mxu0 0.0
    %3527 = vmatprep.subr.mxu0 0.0
    %3528 = vmatpush1.msra.mxu0 0.0
    %3529 = vmatprep.subr.mxu0 0.0
    %3530 = vmatpush1.msra.mxu0 0.0
    %3531 = vmatprep.subr.mxu0 0.0
    %3532 = vmatpush1.msra.mxu0 0.0
    %3533 = vmatprep.subr.mxu0 0.0
    %3534 = vmatpush1.msra.mxu0 0.0
    %3535 = vmatprep.subr.mxu0 0.0
    %3536 = vmatpush1.msra.mxu0 0.0
    %3537 = vmatprep.subr.mxu0 0.0
    %3538 = vmatpush1.msra.mxu0 0.0
    %3539 = vmatprep.subr.mxu0 0.0
    %3540 = vmatpush1.msra.mxu0 0.0
    %3541 = vmatprep.subr.mxu0 0.0
    %3542 = vmatpush1.msra.mxu0 0.0
    %3543 = vmatprep.subr.mxu0 0.0
    %3544 = vmatpush1.msra.mxu0 0.0
    %3545 = vmatprep.subr.mxu0 0.0
    %3546 = vmatpush1.msra.mxu0 0.0
    %3547 = vmatprep.subr.mxu0 0.0
    %3548 = vmatpush1.msra.mxu0 0.0
    %3549 = vmatprep.subr.mxu0 0.0
    %3550 = vmatpush1.msra.mxu0 0.0
    %3551 = vmatprep.subr.mxu0 0.0
    %3552 = vmatpush1.msra.mxu0 0.0
    %3553 = vmatprep.mubr.f32.mxu0 0.0
    %3554 = vmatmul.mubr.f32.gmra.mrb[0].mxu0 %v3487
    %v3555 = vpop.f32.mrb[0].mxu0
    %v3556 = vadd.f32 0.0, %v3555
    %v3557 = vpop.f32.mrb[0].mxu0
    %3558 = vdwg.mxu0
    %v3559 = vadd.f32 %v3485, %v3556
    %v3560 = vadd.f32 %v3559, %v447
    %v3561 = vxor.u32 %v3560, 2147483648
    %v3562 = vmul.f32 %v3561, 1.442695
    %v3563 = vpow.pop %v3562
    %v3564 = vadd.f32 %v3563, 1.0
    %v3565 = vrcp.pop %v3564
    %v3566 = vmul.f32 1.0, %v3565
    %s3567 = scalar_lea.vmem [#allocation2], 160
    %v3568 = vld [vmem:[%s3567] sm:$0xf]
    %3569 = vmatprep.subr.mxu0 0.0
    %3570 = vmatpush1.msra.mxu0 %v67
    %3571 = vmatprep.subr.mxu0 0.0
    %3572 = vmatpush1.msra.mxu0 %v68
    %3573 = vmatprep.subr.mxu0 0.0
    %3574 = vmatpush1.msra.mxu0 %v69
    %3575 = vmatprep.subr.mxu0 0.0
    %3576 = vmatpush1.msra.mxu0 %v70
    %3577 = vmatprep.subr.mxu0 0.0
    %3578 = vmatpush1.msra.mxu0 0.0
    %3579 = vmatprep.subr.mxu0 0.0
    %3580 = vmatpush1.msra.mxu0 0.0
    %3581 = vmatprep.subr.mxu0 0.0
    %3582 = vmatpush1.msra.mxu0 0.0
    %3583 = vmatprep.subr.mxu0 0.0
    %3584 = vmatpush1.msra.mxu0 0.0
    %3585 = vmatprep.subr.mxu0 0.0
    %3586 = vmatpush1.msra.mxu0 0.0
    %3587 = vmatprep.subr.mxu0 0.0
    %3588 = vmatpush1.msra.mxu0 0.0
    %3589 = vmatprep.subr.mxu0 0.0
    %3590 = vmatpush1.msra.mxu0 0.0
    %3591 = vmatprep.subr.mxu0 0.0
    %3592 = vmatpush1.msra.mxu0 0.0
    %3593 = vmatprep.subr.mxu0 0.0
    %3594 = vmatpush1.msra.mxu0 0.0
    %3595 = vmatprep.subr.mxu0 0.0
    %3596 = vmatpush1.msra.mxu0 0.0
    %3597 = vmatprep.subr.mxu0 0.0
    %3598 = vmatpush1.msra.mxu0 0.0
    %3599 = vmatprep.subr.mxu0 0.0
    %3600 = vmatpush1.msra.mxu0 0.0
    %3601 = vmatprep.subr.mxu0 0.0
    %3602 = vmatpush1.msra.mxu0 0.0
    %3603 = vmatprep.subr.mxu0 0.0
    %3604 = vmatpush1.msra.mxu0 0.0
    %3605 = vmatprep.subr.mxu0 0.0
    %3606 = vmatpush1.msra.mxu0 0.0
    %3607 = vmatprep.subr.mxu0 0.0
    %3608 = vmatpush1.msra.mxu0 0.0
    %3609 = vmatprep.subr.mxu0 0.0
    %3610 = vmatpush1.msra.mxu0 0.0
    %3611 = vmatprep.subr.mxu0 0.0
    %3612 = vmatpush1.msra.mxu0 0.0
    %3613 = vmatprep.subr.mxu0 0.0
    %3614 = vmatpush1.msra.mxu0 0.0
    %3615 = vmatprep.subr.mxu0 0.0
    %3616 = vmatpush1.msra.mxu0 0.0
    %3617 = vmatprep.subr.mxu0 0.0
    %3618 = vmatpush1.msra.mxu0 0.0
    %3619 = vmatprep.subr.mxu0 0.0
    %3620 = vmatpush1.msra.mxu0 0.0
    %3621 = vmatprep.subr.mxu0 0.0
    %3622 = vmatpush1.msra.mxu0 0.0
    %3623 = vmatprep.subr.mxu0 0.0
    %3624 = vmatpush1.msra.mxu0 0.0
    %3625 = vmatprep.subr.mxu0 0.0
    %3626 = vmatpush1.msra.mxu0 0.0
    %3627 = vmatprep.subr.mxu0 0.0
    %3628 = vmatpush1.msra.mxu0 0.0
    %3629 = vmatprep.subr.mxu0 0.0
    %3630 = vmatpush1.msra.mxu0 0.0
    %3631 = vmatprep.subr.mxu0 0.0
    %3632 = vmatpush1.msra.mxu0 0.0
    %3633 = vmatprep.mubr.f32.mxu0 0.0
    %3634 = vmatmul.mubr.f32.gmra.mrb[0].mxu0 %v3487
    %v3635 = vpop.f32.mrb[0].mxu0
    %v3636 = vadd.f32 0.0, %v3635
    %v3637 = vpop.f32.mrb[0].mxu0
    %3638 = vdwg.mxu0
    %v3639 = vadd.f32 %v3568, %v3636
    %v3640 = vadd.f32 %v3639, %v533
    %v3641 = vxor.u32 %v3640, 2147483648
    %v3642 = vmul.f32 %v3641, 1.442695
    %v3643 = vpow.pop %v3642
    %v3644 = vadd.f32 %v3643, 1.0
    %v3645 = vrcp.pop %v3644
    %v3646 = vmul.f32 1.0, %v3645
    %s3647 = scalar_lea.vmem [#allocation2], 164
    %v3648 = vld [vmem:[%s3647] sm:$0xf]
    %3649 = vmatprep.subr.mxu0 0.0
    %3650 = vmatpush1.msra.mxu0 %v72
    %3651 = vmatprep.subr.mxu0 0.0
    %3652 = vmatpush1.msra.mxu0 %v73
    %3653 = vmatprep.subr.mxu0 0.0
    %3654 = vmatpush1.msra.mxu0 %v74
    %3655 = vmatprep.subr.mxu0 0.0
    %3656 = vmatpush1.msra.mxu0 %v75
    %3657 = vmatprep.subr.mxu0 0.0
    %3658 = vmatpush1.msra.mxu0 0.0
    %3659 = vmatprep.subr.mxu0 0.0
    %3660 = vmatpush1.msra.mxu0 0.0
    %3661 = vmatprep.subr.mxu0 0.0
    %3662 = vmatpush1.msra.mxu0 0.0
    %3663 = vmatprep.subr.mxu0 0.0
    %3664 = vmatpush1.msra.mxu0 0.0
    %3665 = vmatprep.subr.mxu0 0.0
    %3666 = vmatpush1.msra.mxu0 0.0
    %3667 = vmatprep.subr.mxu0 0.0
    %3668 = vmatpush1.msra.mxu0 0.0
    %3669 = vmatprep.subr.mxu0 0.0
    %3670 = vmatpush1.msra.mxu0 0.0
    %3671 = vmatprep.subr.mxu0 0.0
    %3672 = vmatpush1.msra.mxu0 0.0
    %3673 = vmatprep.subr.mxu0 0.0
    %3674 = vmatpush1.msra.mxu0 0.0
    %3675 = vmatprep.subr.mxu0 0.0
    %3676 = vmatpush1.msra.mxu0 0.0
    %3677 = vmatprep.subr.mxu0 0.0
    %3678 = vmatpush1.msra.mxu0 0.0
    %3679 = vmatprep.subr.mxu0 0.0
    %3680 = vmatpush1.msra.mxu0 0.0
    %3681 = vmatprep.subr.mxu0 0.0
    %3682 = vmatpush1.msra.mxu0 0.0
    %3683 = vmatprep.subr.mxu0 0.0
    %3684 = vmatpush1.msra.mxu0 0.0
    %3685 = vmatprep.subr.mxu0 0.0
    %3686 = vmatpush1.msra.mxu0 0.0
    %3687 = vmatprep.subr.mxu0 0.0
    %3688 = vmatpush1.msra.mxu0 0.0
    %3689 = vmatprep.subr.mxu0 0.0
    %3690 = vmatpush1.msra.mxu0 0.0
    %3691 = vmatprep.subr.mxu0 0.0
    %3692 = vmatpush1.msra.mxu0 0.0
    %3693 = vmatprep.subr.mxu0 0.0
    %3694 = vmatpush1.msra.mxu0 0.0
    %3695 = vmatprep.subr.mxu0 0.0
    %3696 = vmatpush1.msra.mxu0 0.0
    %3697 = vmatprep.subr.mxu0 0.0
    %3698 = vmatpush1.msra.mxu0 0.0
    %3699 = vmatprep.subr.mxu0 0.0
    %3700 = vmatpush1.msra.mxu0 0.0
    %3701 = vmatprep.subr.mxu0 0.0
    %3702 = vmatpush1.msra.mxu0 0.0
    %3703 = vmatprep.subr.mxu0 0.0
    %3704 = vmatpush1.msra.mxu0 0.0
    %3705 = vmatprep.subr.mxu0 0.0
    %3706 = vmatpush1.msra.mxu0 0.0
    %3707 = vmatprep.subr.mxu0 0.0
    %3708 = vmatpush1.msra.mxu0 0.0
    %3709 = vmatprep.subr.mxu0 0.0
    %3710 = vmatpush1.msra.mxu0 0.0
    %3711 = vmatprep.subr.mxu0 0.0
    %3712 = vmatpush1.msra.mxu0 0.0
    %3713 = vmatprep.mubr.f32.mxu0 0.0
    %3714 = vmatmul.mubr.f32.gmra.mrb[0].mxu0 %v3487
    %v3715 = vpop.f32.mrb[0].mxu0
    %v3716 = vadd.f32 %v548, %v3715
    %v3717 = vpop.f32.mrb[0].mxu0
    %3718 = vdwg.mxu0
    %v3719 = vmul.f32 %v3566, %v3716
    %v3720 = vadd.f32 %v3648, %v3719
    %v3721 = vtanh.pop %v3720
    %v3722 = vsub.f32 1.0, %v3646
    %v3723 = vmul.f32 %v3722, %v3721
    %v3724 = vmul.f32 %v3646, %v3232
    %v3725 = vadd.f32 %v3723, %v3724
    %v3726 = vmul.f32 %v1940, %v3725
    %v3727 = vmul.f32 %v1947, %v3232
    %v3728 = vadd.f32 %v3726, %v3727
    %v3729 = vmul.f32 %v1940, %v3728
    %s3730 = scalar_lea.vmem [#allocation7], 52
    %3731 = vst.msk [vmem:[%s3730] sm:$0xf] %vm365, %v3729
    %s3732 = scalar_lea.vmem [#allocation2], 84
    %v3733 = vld [vmem:[%s3732] sm:$0xf]
    %v3735 = vsel %vm91, %v3480, 0
    %3737 = vmatprep.subr.mxu0 0.0
    %3738 = vmatpush1.msra.mxu0 %v47
    %3739 = vmatprep.subr.mxu0 0.0
    %3740 = vmatpush1.msra.mxu0 %v48
    %3741 = vmatprep.subr.mxu0 0.0
    %3742 = vmatpush1.msra.mxu0 %v49
    %3743 = vmatprep.subr.mxu0 0.0
    %3744 = vmatpush1.msra.mxu0 %v50
    %3745 = vmatprep.subr.mxu0 0.0
    %3746 = vmatpush1.msra.mxu0 0.0
    %3747 = vmatprep.subr.mxu0 0.0
    %3748 = vmatpush1.msra.mxu0 0.0
    %3749 = vmatprep.subr.mxu0 0.0
    %3750 = vmatpush1.msra.mxu0 0.0
    %3751 = vmatprep.subr.mxu0 0.0
    %3752 = vmatpush1.msra.mxu0 0.0
    %3753 = vmatprep.subr.mxu0 0.0
    %3754 = vmatpush1.msra.mxu0 0.0
    %3755 = vmatprep.subr.mxu0 0.0
    %3756 = vmatpush1.msra.mxu0 0.0
    %3757 = vmatprep.subr.mxu0 0.0
    %3758 = vmatpush1.msra.mxu0 0.0
    %3759 = vmatprep.subr.mxu0 0.0
    %3760 = vmatpush1.msra.mxu0 0.0
    %3761 = vmatprep.subr.mxu0 0.0
    %3762 = vmatpush1.msra.mxu0 0.0
    %3763 = vmatprep.subr.mxu0 0.0
    %3764 = vmatpush1.msra.mxu0 0.0
    %3765 = vmatprep.subr.mxu0 0.0
    %3766 = vmatpush1.msra.mxu0 0.0
    %3767 = vmatprep.subr.mxu0 0.0
    %3768 = vmatpush1.msra.mxu0 0.0
    %3769 = vmatprep.subr.mxu0 0.0
    %3770 = vmatpush1.msra.mxu0 0.0
    %3771 = vmatprep.subr.mxu0 0.0
    %3772 = vmatpush1.msra.mxu0 0.0
    %3773 = vmatprep.subr.mxu0 0.0
    %3774 = vmatpush1.msra.mxu0 0.0
    %3775 = vmatprep.subr.mxu0 0.0
    %3776 = vmatpush1.msra.mxu0 0.0
    %3777 = vmatprep.subr.mxu0 0.0
    %3778 = vmatpush1.msra.mxu0 0.0
    %3779 = vmatprep.subr.mxu0 0.0
    %3780 = vmatpush1.msra.mxu0 0.0
    %3781 = vmatprep.subr.mxu0 0.0
    %3782 = vmatpush1.msra.mxu0 0.0
    %3783 = vmatprep.subr.mxu0 0.0
    %3784 = vmatpush1.msra.mxu0 0.0
    %3785 = vmatprep.subr.mxu0 0.0
    %3786 = vmatpush1.msra.mxu0 0.0
    %3787 = vmatprep.subr.mxu0 0.0
    %3788 = vmatpush1.msra.mxu0 0.0
    %3789 = vmatprep.subr.mxu0 0.0
    %3790 = vmatpush1.msra.mxu0 0.0
    %3791 = vmatprep.subr.mxu0 0.0
    %3792 = vmatpush1.msra.mxu0 0.0
    %3793 = vmatprep.subr.mxu0 0.0
    %3794 = vmatpush1.msra.mxu0 0.0
    %3795 = vmatprep.subr.mxu0 0.0
    %3796 = vmatpush1.msra.mxu0 0.0
    %3797 = vmatprep.subr.mxu0 0.0
    %3798 = vmatpush1.msra.mxu0 0.0
    %3799 = vmatprep.subr.mxu0 0.0
    %3800 = vmatpush1.msra.mxu0 0.0
    %3801 = vmatprep.mubr.f32.mxu0 0.0
    %3802 = vmatmul.mubr.f32.gmra.mrb[0].mxu0 %v3735
    %v3803 = vpop.f32.mrb[0].mxu0
    %v3804 = vadd.f32 0.0, %v3803
    %v3805 = vpop.f32.mrb[0].mxu0
    %3806 = vdwg.mxu0
    %v3807 = vadd.f32 %v3733, %v3804
    %v3808 = vadd.f32 %v3807, %v170
    %v3809 = vxor.u32 %v3808, 2147483648
    %v3810 = vmul.f32 %v3809, 1.442695
    %v3811 = vpow.pop %v3810
    %v3812 = vadd.f32 %v3811, 1.0
    %v3813 = vrcp.pop %v3812
    %v3814 = vmul.f32 1.0, %v3813
    %s3815 = scalar_lea.vmem [#allocation2], 88
    %v3816 = vld [vmem:[%s3815] sm:$0xf]
    %3817 = vmatprep.subr.mxu0 0.0
    %3818 = vmatpush1.msra.mxu0 %v52
    %3819 = vmatprep.subr.mxu0 0.0
    %3820 = vmatpush1.msra.mxu0 %v53
    %3821 = vmatprep.subr.mxu0 0.0
    %3822 = vmatpush1.msra.mxu0 %v54
    %3823 = vmatprep.subr.mxu0 0.0
    %3824 = vmatpush1.msra.mxu0 %v55
    %3825 = vmatprep.subr.mxu0 0.0
    %3826 = vmatpush1.msra.mxu0 0.0
    %3827 = vmatprep.subr.mxu0 0.0
    %3828 = vmatpush1.msra.mxu0 0.0
    %3829 = vmatprep.subr.mxu0 0.0
    %3830 = vmatpush1.msra.mxu0 0.0
    %3831 = vmatprep.subr.mxu0 0.0
    %3832 = vmatpush1.msra.mxu0 0.0
    %3833 = vmatprep.subr.mxu0 0.0
    %3834 = vmatpush1.msra.mxu0 0.0
    %3835 = vmatprep.subr.mxu0 0.0
    %3836 = vmatpush1.msra.mxu0 0.0
    %3837 = vmatprep.subr.mxu0 0.0
    %3838 = vmatpush1.msra.mxu0 0.0
    %3839 = vmatprep.subr.mxu0 0.0
    %3840 = vmatpush1.msra.mxu0 0.0
    %3841 = vmatprep.subr.mxu0 0.0
    %3842 = vmatpush1.msra.mxu0 0.0
    %3843 = vmatprep.subr.mxu0 0.0
    %3844 = vmatpush1.msra.mxu0 0.0
    %3845 = vmatprep.subr.mxu0 0.0
    %3846 = vmatpush1.msra.mxu0 0.0
    %3847 = vmatprep.subr.mxu0 0.0
    %3848 = vmatpush1.msra.mxu0 0.0
    %3849 = vmatprep.subr.mxu0 0.0
    %3850 = vmatpush1.msra.mxu0 0.0
    %3851 = vmatprep.subr.mxu0 0.0
    %3852 = vmatpush1.msra.mxu0 0.0
    %3853 = vmatprep.subr.mxu0 0.0
    %3854 = vmatpush1.msra.mxu0 0.0
    %3855 = vmatprep.subr.mxu0 0.0
    %3856 = vmatpush1.msra.mxu0 0.0
    %3857 = vmatprep.subr.mxu0 0.0
    %3858 = vmatpush1.msra.mxu0 0.0
    %3859 = vmatprep.subr.mxu0 0.0
    %3860 = vmatpush1.msra.mxu0 0.0
    %3861 = vmatprep.subr.mxu0 0.0
    %3862 = vmatpush1.msra.mxu0 0.0
    %3863 = vmatprep.subr.mxu0 0.0
    %3864 = vmatpush1.msra.mxu0 0.0
    %3865 = vmatprep.subr.mxu0 0.0
    %3866 = vmatpush1.msra.mxu0 0.0
    %3867 = vmatprep.subr.mxu0 0.0
    %3868 = vmatpush1.msra.mxu0 0.0
    %3869 = vmatprep.subr.mxu0 0.0
    %3870 = vmatpush1.msra.mxu0 0.0
    %3871 = vmatprep.subr.mxu0 0.0
    %3872 = vmatpush1.msra.mxu0 0.0
    %3873 = vmatprep.subr.mxu0 0.0
    %3874 = vmatpush1.msra.mxu0 0.0
    %3875 = vmatprep.subr.mxu0 0.0
    %3876 = vmatpush1.msra.mxu0 0.0
    %3877 = vmatprep.subr.mxu0 0.0
    %3878 = vmatpush1.msra.mxu0 0.0
    %3879 = vmatprep.subr.mxu0 0.0
    %3880 = vmatpush1.msra.mxu0 0.0
    %3881 = vmatprep.mubr.f32.mxu0 0.0
    %3882 = vmatmul.mubr.f32.gmra.mrb[0].mxu0 %v3735
    %v3883 = vpop.f32.mrb[0].mxu0
    %v3884 = vadd.f32 0.0, %v3883
    %v3885 = vpop.f32.mrb[0].mxu0
    %3886 = vdwg.mxu0
    %v3887 = vadd.f32 %v3816, %v3884
    %v3888 = vadd.f32 %v3887, %v256
    %v3889 = vxor.u32 %v3888, 2147483648
    %v3890 = vmul.f32 %v3889, 1.442695
    %v3891 = vpow.pop %v3890
    %v3892 = vadd.f32 %v3891, 1.0
    %v3893 = vrcp.pop %v3892
    %v3894 = vmul.f32 1.0, %v3893
    %s3895 = scalar_lea.vmem [#allocation2], 92
    %v3896 = vld [vmem:[%s3895] sm:$0xf]
    %3897 = vmatprep.subr.mxu0 0.0
    %3898 = vmatpush1.msra.mxu0 %v57
    %3899 = vmatprep.subr.mxu0 0.0
    %3900 = vmatpush1.msra.mxu0 %v58
    %3901 = vmatprep.subr.mxu0 0.0
    %3902 = vmatpush1.msra.mxu0 %v59
    %3903 = vmatprep.subr.mxu0 0.0
    %3904 = vmatpush1.msra.mxu0 %v60
    %3905 = vmatprep.subr.mxu0 0.0
    %3906 = vmatpush1.msra.mxu0 0.0
    %3907 = vmatprep.subr.mxu0 0.0
    %3908 = vmatpush1.msra.mxu0 0.0
    %3909 = vmatprep.subr.mxu0 0.0
    %3910 = vmatpush1.msra.mxu0 0.0
    %3911 = vmatprep.subr.mxu0 0.0
    %3912 = vmatpush1.msra.mxu0 0.0
    %3913 = vmatprep.subr.mxu0 0.0
    %3914 = vmatpush1.msra.mxu0 0.0
    %3915 = vmatprep.subr.mxu0 0.0
    %3916 = vmatpush1.msra.mxu0 0.0
    %3917 = vmatprep.subr.mxu0 0.0
    %3918 = vmatpush1.msra.mxu0 0.0
    %3919 = vmatprep.subr.mxu0 0.0
    %3920 = vmatpush1.msra.mxu0 0.0
    %3921 = vmatprep.subr.mxu0 0.0
    %3922 = vmatpush1.msra.mxu0 0.0
    %3923 = vmatprep.subr.mxu0 0.0
    %3924 = vmatpush1.msra.mxu0 0.0
    %3925 = vmatprep.subr.mxu0 0.0
    %3926 = vmatpush1.msra.mxu0 0.0
    %3927 = vmatprep.subr.mxu0 0.0
    %3928 = vmatpush1.msra.mxu0 0.0
    %3929 = vmatprep.subr.mxu0 0.0
    %3930 = vmatpush1.msra.mxu0 0.0
    %3931 = vmatprep.subr.mxu0 0.0
    %3932 = vmatpush1.msra.mxu0 0.0
    %3933 = vmatprep.subr.mxu0 0.0
    %3934 = vmatpush1.msra.mxu0 0.0
    %3935 = vmatprep.subr.mxu0 0.0
    %3936 = vmatpush1.msra.mxu0 0.0
    %3937 = vmatprep.subr.mxu0 0.0
    %3938 = vmatpush1.msra.mxu0 0.0
    %3939 = vmatprep.subr.mxu0 0.0
    %3940 = vmatpush1.msra.mxu0 0.0
    %3941 = vmatprep.subr.mxu0 0.0
    %3942 = vmatpush1.msra.mxu0 0.0
    %3943 = vmatprep.subr.mxu0 0.0
    %3944 = vmatpush1.msra.mxu0 0.0
    %3945 = vmatprep.subr.mxu0 0.0
    %3946 = vmatpush1.msra.mxu0 0.0
    %3947 = vmatprep.subr.mxu0 0.0
    %3948 = vmatpush1.msra.mxu0 0.0
    %3949 = vmatprep.subr.mxu0 0.0
    %3950 = vmatpush1.msra.mxu0 0.0
    %3951 = vmatprep.subr.mxu0 0.0
    %3952 = vmatpush1.msra.mxu0 0.0
    %3953 = vmatprep.subr.mxu0 0.0
    %3954 = vmatpush1.msra.mxu0 0.0
    %3955 = vmatprep.subr.mxu0 0.0
    %3956 = vmatpush1.msra.mxu0 0.0
    %3957 = vmatprep.subr.mxu0 0.0
    %3958 = vmatpush1.msra.mxu0 0.0
    %3959 = vmatprep.subr.mxu0 0.0
    %3960 = vmatpush1.msra.mxu0 0.0
    %3961 = vmatprep.mubr.f32.mxu0 0.0
    %3962 = vmatmul.mubr.f32.gmra.mrb[0].mxu0 %v3735
    %v3963 = vpop.f32.mrb[0].mxu0
    %v3964 = vadd.f32 %v271, %v3963
    %v3965 = vpop.f32.mrb[0].mxu0
    %3966 = vdwg.mxu0
    %v3967 = vmul.f32 %v3814, %v3964
    %v3968 = vadd.f32 %v3896, %v3967
    %v3969 = vtanh.pop %v3968
    %v3970 = vsub.f32 1.0, %v3894
    %v3971 = vmul.f32 %v3970, %v3969
    %v3972 = vmul.f32 %v3894, %v3480
    %v3973 = vadd.f32 %v3971, %v3972
    %v3974 = vmul.f32 %v1678, %v3973
    %v3975 = vmul.f32 %v1685, %v3480
    %v3976 = vadd.f32 %v3974, %v3975
    %v3977 = vmul.f32 %v1678, %v3976
    %s3978 = scalar_lea.vmem [#allocation7], 28
    %3979 = vst.msk [vmem:[%s3978] sm:$0xf] %vm365, %v3977
    %s3980 = scalar_lea.vmem [#allocation2], 144
    %v3981 = vld [vmem:[%s3980] sm:$0xf]
    %v3983 = vsel %vm91, %v3728, 0
    %3985 = vmatprep.subr.mxu0 0.0
    %3986 = vmatpush1.msra.mxu0 %v62
    %3987 = vmatprep.subr.mxu0 0.0
    %3988 = vmatpush1.msra.mxu0 %v63
    %3989 = vmatprep.subr.mxu0 0.0
    %3990 = vmatpush1.msra.mxu0 %v64
    %3991 = vmatprep.subr.mxu0 0.0
    %3992 = vmatpush1.msra.mxu0 %v65
    %3993 = vmatprep.subr.mxu0 0.0
    %3994 = vmatpush1.msra.mxu0 0.0
    %3995 = vmatprep.subr.mxu0 0.0
    %3996 = vmatpush1.msra.mxu0 0.0
    %3997 = vmatprep.subr.mxu0 0.0
    %3998 = vmatpush1.msra.mxu0 0.0
    %3999 = vmatprep.subr.mxu0 0.0
    %4000 = vmatpush1.msra.mxu0 0.0
    %4001 = vmatprep.subr.mxu0 0.0
    %4002 = vmatpush1.msra.mxu0 0.0
    %4003 = vmatprep.subr.mxu0 0.0
    %4004 = vmatpush1.msra.mxu0 0.0
    %4005 = vmatprep.subr.mxu0 0.0
    %4006 = vmatpush1.msra.mxu0 0.0
    %4007 = vmatprep.subr.mxu0 0.0
    %4008 = vmatpush1.msra.mxu0 0.0
    %4009 = vmatprep.subr.mxu0 0.0
    %4010 = vmatpush1.msra.mxu0 0.0
    %4011 = vmatprep.subr.mxu0 0.0
    %4012 = vmatpush1.msra.mxu0 0.0
    %4013 = vmatprep.subr.mxu0 0.0
    %4014 = vmatpush1.msra.mxu0 0.0
    %4015 = vmatprep.subr.mxu0 0.0
    %4016 = vmatpush1.msra.mxu0 0.0
    %4017 = vmatprep.subr.mxu0 0.0
    %4018 = vmatpush1.msra.mxu0 0.0
    %4019 = vmatprep.subr.mxu0 0.0
    %4020 = vmatpush1.msra.mxu0 0.0
    %4021 = vmatprep.subr.mxu0 0.0
    %4022 = vmatpush1.msra.mxu0 0.0
    %4023 = vmatprep.subr.mxu0 0.0
    %4024 = vmatpush1.msra.mxu0 0.0
    %4025 = vmatprep.subr.mxu0 0.0
    %4026 = vmatpush1.msra.mxu0 0.0
    %4027 = vmatprep.subr.mxu0 0.0
    %4028 = vmatpush1.msra.mxu0 0.0
    %4029 = vmatprep.subr.mxu0 0.0
    %4030 = vmatpush1.msra.mxu0 0.0
    %4031 = vmatprep.subr.mxu0 0.0
    %4032 = vmatpush1.msra.mxu0 0.0
    %4033 = vmatprep.subr.mxu0 0.0
    %4034 = vmatpush1.msra.mxu0 0.0
    %4035 = vmatprep.subr.mxu0 0.0
    %4036 = vmatpush1.msra.mxu0 0.0
    %4037 = vmatprep.subr.mxu0 0.0
    %4038 = vmatpush1.msra.mxu0 0.0
    %4039 = vmatprep.subr.mxu0 0.0
    %4040 = vmatpush1.msra.mxu0 0.0
    %4041 = vmatprep.subr.mxu0 0.0
    %4042 = vmatpush1.msra.mxu0 0.0
    %4043 = vmatprep.subr.mxu0 0.0
    %4044 = vmatpush1.msra.mxu0 0.0
    %4045 = vmatprep.subr.mxu0 0.0
    %4046 = vmatpush1.msra.mxu0 0.0
    %4047 = vmatprep.subr.mxu0 0.0
    %4048 = vmatpush1.msra.mxu0 0.0
    %4049 = vmatprep.mubr.f32.mxu0 0.0
    %4050 = vmatmul.mubr.f32.gmra.mrb[0].mxu0 %v3983
    %v4051 = vpop.f32.mrb[0].mxu0
    %v4052 = vadd.f32 0.0, %v4051
    %v4053 = vpop.f32.mrb[0].mxu0
    %4054 = vdwg.mxu0
    %v4055 = vadd.f32 %v3981, %v4052
    %v4056 = vadd.f32 %v4055, %v447
    %v4057 = vxor.u32 %v4056, 2147483648
    %v4058 = vmul.f32 %v4057, 1.442695
    %v4059 = vpow.pop %v4058
    %v4060 = vadd.f32 %v4059, 1.0
    %v4061 = vrcp.pop %v4060
    %v4062 = vmul.f32 1.0, %v4061
    %s4063 = scalar_lea.vmem [#allocation2], 148
    %v4064 = vld [vmem:[%s4063] sm:$0xf]
    %4065 = vmatprep.subr.mxu0 0.0
    %4066 = vmatpush1.msra.mxu0 %v67
    %4067 = vmatprep.subr.mxu0 0.0
    %4068 = vmatpush1.msra.mxu0 %v68
    %4069 = vmatprep.subr.mxu0 0.0
    %4070 = vmatpush1.msra.mxu0 %v69
    %4071 = vmatprep.subr.mxu0 0.0
    %4072 = vmatpush1.msra.mxu0 %v70
    %4073 = vmatprep.subr.mxu0 0.0
    %4074 = vmatpush1.msra.mxu0 0.0
    %4075 = vmatprep.subr.mxu0 0.0
    %4076 = vmatpush1.msra.mxu0 0.0
    %4077 = vmatprep.subr.mxu0 0.0
    %4078 = vmatpush1.msra.mxu0 0.0
    %4079 = vmatprep.subr.mxu0 0.0
    %4080 = vmatpush1.msra.mxu0 0.0
    %4081 = vmatprep.subr.mxu0 0.0
    %4082 = vmatpush1.msra.mxu0 0.0
    %4083 = vmatprep.subr.mxu0 0.0
    %4084 = vmatpush1.msra.mxu0 0.0
    %4085 = vmatprep.subr.mxu0 0.0
    %4086 = vmatpush1.msra.mxu0 0.0
    %4087 = vmatprep.subr.mxu0 0.0
    %4088 = vmatpush1.msra.mxu0 0.0
    %4089 = vmatprep.subr.mxu0 0.0
    %4090 = vmatpush1.msra.mxu0 0.0
    %4091 = vmatprep.subr.mxu0 0.0
    %4092 = vmatpush1.msra.mxu0 0.0
    %4093 = vmatprep.subr.mxu0 0.0
    %4094 = vmatpush1.msra.mxu0 0.0
    %4095 = vmatprep.subr.mxu0 0.0
    %4096 = vmatpush1.msra.mxu0 0.0
    %4097 = vmatprep.subr.mxu0 0.0
    %4098 = vmatpush1.msra.mxu0 0.0
    %4099 = vmatprep.subr.mxu0 0.0
    %4100 = vmatpush1.msra.mxu0 0.0
    %4101 = vmatprep.subr.mxu0 0.0
    %4102 = vmatpush1.msra.mxu0 0.0
    %4103 = vmatprep.subr.mxu0 0.0
    %4104 = vmatpush1.msra.mxu0 0.0
    %4105 = vmatprep.subr.mxu0 0.0
    %4106 = vmatpush1.msra.mxu0 0.0
    %4107 = vmatprep.subr.mxu0 0.0
    %4108 = vmatpush1.msra.mxu0 0.0
    %4109 = vmatprep.subr.mxu0 0.0
    %4110 = vmatpush1.msra.mxu0 0.0
    %4111 = vmatprep.subr.mxu0 0.0
    %4112 = vmatpush1.msra.mxu0 0.0
    %4113 = vmatprep.subr.mxu0 0.0
    %4114 = vmatpush1.msra.mxu0 0.0
    %4115 = vmatprep.subr.mxu0 0.0
    %4116 = vmatpush1.msra.mxu0 0.0
    %4117 = vmatprep.subr.mxu0 0.0
    %4118 = vmatpush1.msra.mxu0 0.0
    %4119 = vmatprep.subr.mxu0 0.0
    %4120 = vmatpush1.msra.mxu0 0.0
    %4121 = vmatprep.subr.mxu0 0.0
    %4122 = vmatpush1.msra.mxu0 0.0
    %4123 = vmatprep.subr.mxu0 0.0
    %4124 = vmatpush1.msra.mxu0 0.0
    %4125 = vmatprep.subr.mxu0 0.0
    %4126 = vmatpush1.msra.mxu0 0.0
    %4127 = vmatprep.subr.mxu0 0.0
    %4128 = vmatpush1.msra.mxu0 0.0
    %4129 = vmatprep.mubr.f32.mxu0 0.0
    %4130 = vmatmul.mubr.f32.gmra.mrb[0].mxu0 %v3983
    %v4131 = vpop.f32.mrb[0].mxu0
    %v4132 = vadd.f32 0.0, %v4131
    %v4133 = vpop.f32.mrb[0].mxu0
    %4134 = vdwg.mxu0
    %v4135 = vadd.f32 %v4064, %v4132
    %v4136 = vadd.f32 %v4135, %v533
    %v4137 = vxor.u32 %v4136, 2147483648
    %v4138 = vmul.f32 %v4137, 1.442695
    %v4139 = vpow.pop %v4138
    %v4140 = vadd.f32 %v4139, 1.0
    %v4141 = vrcp.pop %v4140
    %v4142 = vmul.f32 1.0, %v4141
    %s4143 = scalar_lea.vmem [#allocation2], 152
    %v4144 = vld [vmem:[%s4143] sm:$0xf]
    %4145 = vmatprep.subr.mxu0 0.0
    %4146 = vmatpush1.msra.mxu0 %v72
    %4147 = vmatprep.subr.mxu0 0.0
    %4148 = vmatpush1.msra.mxu0 %v73
    %4149 = vmatprep.subr.mxu0 0.0
    %4150 = vmatpush1.msra.mxu0 %v74
    %4151 = vmatprep.subr.mxu0 0.0
    %4152 = vmatpush1.msra.mxu0 %v75
    %4153 = vmatprep.subr.mxu0 0.0
    %4154 = vmatpush1.msra.mxu0 0.0
    %4155 = vmatprep.subr.mxu0 0.0
    %4156 = vmatpush1.msra.mxu0 0.0
    %4157 = vmatprep.subr.mxu0 0.0
    %4158 = vmatpush1.msra.mxu0 0.0
    %4159 = vmatprep.subr.mxu0 0.0
    %4160 = vmatpush1.msra.mxu0 0.0
    %4161 = vmatprep.subr.mxu0 0.0
    %4162 = vmatpush1.msra.mxu0 0.0
    %4163 = vmatprep.subr.mxu0 0.0
    %4164 = vmatpush1.msra.mxu0 0.0
    %4165 = vmatprep.subr.mxu0 0.0
    %4166 = vmatpush1.msra.mxu0 0.0
    %4167 = vmatprep.subr.mxu0 0.0
    %4168 = vmatpush1.msra.mxu0 0.0
    %4169 = vmatprep.subr.mxu0 0.0
    %4170 = vmatpush1.msra.mxu0 0.0
    %4171 = vmatprep.subr.mxu0 0.0
    %4172 = vmatpush1.msra.mxu0 0.0
    %4173 = vmatprep.subr.mxu0 0.0
    %4174 = vmatpush1.msra.mxu0 0.0
    %4175 = vmatprep.subr.mxu0 0.0
    %4176 = vmatpush1.msra.mxu0 0.0
    %4177 = vmatprep.subr.mxu0 0.0
    %4178 = vmatpush1.msra.mxu0 0.0
    %4179 = vmatprep.subr.mxu0 0.0
    %4180 = vmatpush1.msra.mxu0 0.0
    %4181 = vmatprep.subr.mxu0 0.0
    %4182 = vmatpush1.msra.mxu0 0.0
    %4183 = vmatprep.subr.mxu0 0.0
    %4184 = vmatpush1.msra.mxu0 0.0
    %4185 = vmatprep.subr.mxu0 0.0
    %4186 = vmatpush1.msra.mxu0 0.0
    %4187 = vmatprep.subr.mxu0 0.0
    %4188 = vmatpush1.msra.mxu0 0.0
    %4189 = vmatprep.subr.mxu0 0.0
    %4190 = vmatpush1.msra.mxu0 0.0
    %4191 = vmatprep.subr.mxu0 0.0
    %4192 = vmatpush1.msra.mxu0 0.0
    %4193 = vmatprep.subr.mxu0 0.0
    %4194 = vmatpush1.msra.mxu0 0.0
    %4195 = vmatprep.subr.mxu0 0.0
    %4196 = vmatpush1.msra.mxu0 0.0
    %4197 = vmatprep.subr.mxu0 0.0
    %4198 = vmatpush1.msra.mxu0 0.0
    %4199 = vmatprep.subr.mxu0 0.0
    %4200 = vmatpush1.msra.mxu0 0.0
    %4201 = vmatprep.subr.mxu0 0.0
    %4202 = vmatpush1.msra.mxu0 0.0
    %4203 = vmatprep.subr.mxu0 0.0
    %4204 = vmatpush1.msra.mxu0 0.0
    %4205 = vmatprep.subr.mxu0 0.0
    %4206 = vmatpush1.msra.mxu0 0.0
    %4207 = vmatprep.subr.mxu0 0.0
    %4208 = vmatpush1.msra.mxu0 0.0
    %4209 = vmatprep.mubr.f32.mxu0 0.0
    %4210 = vmatmul.mubr.f32.gmra.mrb[0].mxu0 %v3983
    %v4211 = vpop.f32.mrb[0].mxu0
    %v4212 = vadd.f32 %v548, %v4211
    %v4213 = vpop.f32.mrb[0].mxu0
    %4214 = vdwg.mxu0
    %v4215 = vmul.f32 %v4062, %v4212
    %v4216 = vadd.f32 %v4144, %v4215
    %v4217 = vtanh.pop %v4216
    %v4218 = vsub.f32 1.0, %v4142
    %v4219 = vmul.f32 %v4218, %v4217
    %v4220 = vmul.f32 %v4142, %v3728
    %v4221 = vadd.f32 %v4219, %v4220
    %v4222 = vmul.f32 %v1416, %v4221
    %v4223 = vmul.f32 %v1423, %v3728
    %v4224 = vadd.f32 %v4222, %v4223
    %v4225 = vmul.f32 %v1416, %v4224
    %s4226 = scalar_lea.vmem [#allocation7], 48
    %4227 = vst.msk [vmem:[%s4226] sm:$0xf] %vm365, %v4225
    %s4228 = scalar_lea.vmem [#allocation2], 96
    %v4229 = vld [vmem:[%s4228] sm:$0xf]
    %v4231 = vsel %vm91, %v3976, 0
    %4233 = vmatprep.subr.mxu0 0.0
    %4234 = vmatpush1.msra.mxu0 %v47
    %4235 = vmatprep.subr.mxu0 0.0
    %4236 = vmatpush1.msra.mxu0 %v48
    %4237 = vmatprep.subr.mxu0 0.0
    %4238 = vmatpush1.msra.mxu0 %v49
    %4239 = vmatprep.subr.mxu0 0.0
    %4240 = vmatpush1.msra.mxu0 %v50
    %4241 = vmatprep.subr.mxu0 0.0
    %4242 = vmatpush1.msra.mxu0 0.0
    %4243 = vmatprep.subr.mxu0 0.0
    %4244 = vmatpush1.msra.mxu0 0.0
    %4245 = vmatprep.subr.mxu0 0.0
    %4246 = vmatpush1.msra.mxu0 0.0
    %4247 = vmatprep.subr.mxu0 0.0
    %4248 = vmatpush1.msra.mxu0 0.0
    %4249 = vmatprep.subr.mxu0 0.0
    %4250 = vmatpush1.msra.mxu0 0.0
    %4251 = vmatprep.subr.mxu0 0.0
    %4252 = vmatpush1.msra.mxu0 0.0
    %4253 = vmatprep.subr.mxu0 0.0
    %4254 = vmatpush1.msra.mxu0 0.0
    %4255 = vmatprep.subr.mxu0 0.0
    %4256 = vmatpush1.msra.mxu0 0.0
    %4257 = vmatprep.subr.mxu0 0.0
    %4258 = vmatpush1.msra.mxu0 0.0
    %4259 = vmatprep.subr.mxu0 0.0
    %4260 = vmatpush1.msra.mxu0 0.0
    %4261 = vmatprep.subr.mxu0 0.0
    %4262 = vmatpush1.msra.mxu0 0.0
    %4263 = vmatprep.subr.mxu0 0.0
    %4264 = vmatpush1.msra.mxu0 0.0
    %4265 = vmatprep.subr.mxu0 0.0
    %4266 = vmatpush1.msra.mxu0 0.0
    %4267 = vmatprep.subr.mxu0 0.0
    %4268 = vmatpush1.msra.mxu0 0.0
    %4269 = vmatprep.subr.mxu0 0.0
    %4270 = vmatpush1.msra.mxu0 0.0
    %4271 = vmatprep.subr.mxu0 0.0
    %4272 = vmatpush1.msra.mxu0 0.0
    %4273 = vmatprep.subr.mxu0 0.0
    %4274 = vmatpush1.msra.mxu0 0.0
    %4275 = vmatprep.subr.mxu0 0.0
    %4276 = vmatpush1.msra.mxu0 0.0
    %4277 = vmatprep.subr.mxu0 0.0
    %4278 = vmatpush1.msra.mxu0 0.0
    %4279 = vmatprep.subr.mxu0 0.0
    %4280 = vmatpush1.msra.mxu0 0.0
    %4281 = vmatprep.subr.mxu0 0.0
    %4282 = vmatpush1.msra.mxu0 0.0
    %4283 = vmatprep.subr.mxu0 0.0
    %4284 = vmatpush1.msra.mxu0 0.0
    %4285 = vmatprep.subr.mxu0 0.0
    %4286 = vmatpush1.msra.mxu0 0.0
    %4287 = vmatprep.subr.mxu0 0.0
    %4288 = vmatpush1.msra.mxu0 0.0
    %4289 = vmatprep.subr.mxu0 0.0
    %4290 = vmatpush1.msra.mxu0 0.0
    %4291 = vmatprep.subr.mxu0 0.0
    %4292 = vmatpush1.msra.mxu0 0.0
    %4293 = vmatprep.subr.mxu0 0.0
    %4294 = vmatpush1.msra.mxu0 0.0
    %4295 = vmatprep.subr.mxu0 0.0
    %4296 = vmatpush1.msra.mxu0 0.0
    %4297 = vmatprep.mubr.f32.mxu0 0.0
    %4298 = vmatmul.mubr.f32.gmra.mrb[0].mxu0 %v4231
    %v4299 = vpop.f32.mrb[0].mxu0
    %v4300 = vadd.f32 0.0, %v4299
    %v4301 = vpop.f32.mrb[0].mxu0
    %4302 = vdwg.mxu0
    %v4303 = vadd.f32 %v4229, %v4300
    %v4304 = vadd.f32 %v4303, %v170
    %v4305 = vxor.u32 %v4304, 2147483648
    %v4306 = vmul.f32 %v4305, 1.442695
    %v4307 = vpow.pop %v4306
    %v4308 = vadd.f32 %v4307, 1.0
    %v4309 = vrcp.pop %v4308
    %v4310 = vmul.f32 1.0, %v4309
    %s4311 = scalar_lea.vmem [#allocation2], 100
    %v4312 = vld [vmem:[%s4311] sm:$0xf]
    %4313 = vmatprep.subr.mxu0 0.0
    %4314 = vmatpush1.msra.mxu0 %v52
    %4315 = vmatprep.subr.mxu0 0.0
    %4316 = vmatpush1.msra.mxu0 %v53
    %4317 = vmatprep.subr.mxu0 0.0
    %4318 = vmatpush1.msra.mxu0 %v54
    %4319 = vmatprep.subr.mxu0 0.0
    %4320 = vmatpush1.msra.mxu0 %v55
    %4321 = vmatprep.subr.mxu0 0.0
    %4322 = vmatpush1.msra.mxu0 0.0
    %4323 = vmatprep.subr.mxu0 0.0
    %4324 = vmatpush1.msra.mxu0 0.0
    %4325 = vmatprep.subr.mxu0 0.0
    %4326 = vmatpush1.msra.mxu0 0.0
    %4327 = vmatprep.subr.mxu0 0.0
    %4328 = vmatpush1.msra.mxu0 0.0
    %4329 = vmatprep.subr.mxu0 0.0
    %4330 = vmatpush1.msra.mxu0 0.0
    %4331 = vmatprep.subr.mxu0 0.0
    %4332 = vmatpush1.msra.mxu0 0.0
    %4333 = vmatprep.subr.mxu0 0.0
    %4334 = vmatpush1.msra.mxu0 0.0
    %4335 = vmatprep.subr.mxu0 0.0
    %4336 = vmatpush1.msra.mxu0 0.0
    %4337 = vmatprep.subr.mxu0 0.0
    %4338 = vmatpush1.msra.mxu0 0.0
    %4339 = vmatprep.subr.mxu0 0.0
    %4340 = vmatpush1.msra.mxu0 0.0
    %4341 = vmatprep.subr.mxu0 0.0
    %4342 = vmatpush1.msra.mxu0 0.0
    %4343 = vmatprep.subr.mxu0 0.0
    %4344 = vmatpush1.msra.mxu0 0.0
    %4345 = vmatprep.subr.mxu0 0.0
    %4346 = vmatpush1.msra.mxu0 0.0
    %4347 = vmatprep.subr.mxu0 0.0
    %4348 = vmatpush1.msra.mxu0 0.0
    %4349 = vmatprep.subr.mxu0 0.0
    %4350 = vmatpush1.msra.mxu0 0.0
    %4351 = vmatprep.subr.mxu0 0.0
    %4352 = vmatpush1.msra.mxu0 0.0
    %4353 = vmatprep.subr.mxu0 0.0
    %4354 = vmatpush1.msra.mxu0 0.0
    %4355 = vmatprep.subr.mxu0 0.0
    %4356 = vmatpush1.msra.mxu0 0.0
    %4357 = vmatprep.subr.mxu0 0.0
    %4358 = vmatpush1.msra.mxu0 0.0
    %4359 = vmatprep.subr.mxu0 0.0
    %4360 = vmatpush1.msra.mxu0 0.0
    %4361 = vmatprep.subr.mxu0 0.0
    %4362 = vmatpush1.msra.mxu0 0.0
    %4363 = vmatprep.subr.mxu0 0.0
    %4364 = vmatpush1.msra.mxu0 0.0
    %4365 = vmatprep.subr.mxu0 0.0
    %4366 = vmatpush1.msra.mxu0 0.0
    %4367 = vmatprep.subr.mxu0 0.0
    %4368 = vmatpush1.msra.mxu0 0.0
    %4369 = vmatprep.subr.mxu0 0.0
    %4370 = vmatpush1.msra.mxu0 0.0
    %4371 = vmatprep.subr.mxu0 0.0
    %4372 = vmatpush1.msra.mxu0 0.0
    %4373 = vmatprep.subr.mxu0 0.0
    %4374 = vmatpush1.msra.mxu0 0.0
    %4375 = vmatprep.subr.mxu0 0.0
    %4376 = vmatpush1.msra.mxu0 0.0
    %4377 = vmatprep.mubr.f32.mxu0 0.0
    %4378 = vmatmul.mubr.f32.gmra.mrb[0].mxu0 %v4231
    %v4379 = vpop.f32.mrb[0].mxu0
    %v4380 = vadd.f32 0.0, %v4379
    %v4381 = vpop.f32.mrb[0].mxu0
    %4382 = vdwg.mxu0
    %v4383 = vadd.f32 %v4312, %v4380
    %v4384 = vadd.f32 %v4383, %v256
    %v4385 = vxor.u32 %v4384, 2147483648
    %v4386 = vmul.f32 %v4385, 1.442695
    %v4387 = vpow.pop %v4386
    %v4388 = vadd.f32 %v4387, 1.0
    %v4389 = vrcp.pop %v4388
    %v4390 = vmul.f32 1.0, %v4389
    %s4391 = scalar_lea.vmem [#allocation2], 104
    %v4392 = vld [vmem:[%s4391] sm:$0xf]
    %4393 = vmatprep.subr.mxu0 0.0
    %4394 = vmatpush1.msra.mxu0 %v57
    %4395 = vmatprep.subr.mxu0 0.0
    %4396 = vmatpush1.msra.mxu0 %v58
    %4397 = vmatprep.subr.mxu0 0.0
    %4398 = vmatpush1.msra.mxu0 %v59
    %4399 = vmatprep.subr.mxu0 0.0
    %4400 = vmatpush1.msra.mxu0 %v60
    %4401 = vmatprep.subr.mxu0 0.0
    %4402 = vmatpush1.msra.mxu0 0.0
    %4403 = vmatprep.subr.mxu0 0.0
    %4404 = vmatpush1.msra.mxu0 0.0
    %4405 = vmatprep.subr.mxu0 0.0
    %4406 = vmatpush1.msra.mxu0 0.0
    %4407 = vmatprep.subr.mxu0 0.0
    %4408 = vmatpush1.msra.mxu0 0.0
    %4409 = vmatprep.subr.mxu0 0.0
    %4410 = vmatpush1.msra.mxu0 0.0
    %4411 = vmatprep.subr.mxu0 0.0
    %4412 = vmatpush1.msra.mxu0 0.0
    %4413 = vmatprep.subr.mxu0 0.0
    %4414 = vmatpush1.msra.mxu0 0.0
    %4415 = vmatprep.subr.mxu0 0.0
    %4416 = vmatpush1.msra.mxu0 0.0
    %4417 = vmatprep.subr.mxu0 0.0
    %4418 = vmatpush1.msra.mxu0 0.0
    %4419 = vmatprep.subr.mxu0 0.0
    %4420 = vmatpush1.msra.mxu0 0.0
    %4421 = vmatprep.subr.mxu0 0.0
    %4422 = vmatpush1.msra.mxu0 0.0
    %4423 = vmatprep.subr.mxu0 0.0
    %4424 = vmatpush1.msra.mxu0 0.0
    %4425 = vmatprep.subr.mxu0 0.0
    %4426 = vmatpush1.msra.mxu0 0.0
    %4427 = vmatprep.subr.mxu0 0.0
    %4428 = vmatpush1.msra.mxu0 0.0
    %4429 = vmatprep.subr.mxu0 0.0
    %4430 = vmatpush1.msra.mxu0 0.0
    %4431 = vmatprep.subr.mxu0 0.0
    %4432 = vmatpush1.msra.mxu0 0.0
    %4433 = vmatprep.subr.mxu0 0.0
    %4434 = vmatpush1.msra.mxu0 0.0
    %4435 = vmatprep.subr.mxu0 0.0
    %4436 = vmatpush1.msra.mxu0 0.0
    %4437 = vmatprep.subr.mxu0 0.0
    %4438 = vmatpush1.msra.mxu0 0.0
    %4439 = vmatprep.subr.mxu0 0.0
    %4440 = vmatpush1.msra.mxu0 0.0
    %4441 = vmatprep.subr.mxu0 0.0
    %4442 = vmatpush1.msra.mxu0 0.0
    %4443 = vmatprep.subr.mxu0 0.0
    %4444 = vmatpush1.msra.mxu0 0.0
    %4445 = vmatprep.subr.mxu0 0.0
    %4446 = vmatpush1.msra.mxu0 0.0
    %4447 = vmatprep.subr.mxu0 0.0
    %4448 = vmatpush1.msra.mxu0 0.0
    %4449 = vmatprep.subr.mxu0 0.0
    %4450 = vmatpush1.msra.mxu0 0.0
    %4451 = vmatprep.subr.mxu0 0.0
    %4452 = vmatpush1.msra.mxu0 0.0
    %4453 = vmatprep.subr.mxu0 0.0
    %4454 = vmatpush1.msra.mxu0 0.0
    %4455 = vmatprep.subr.mxu0 0.0
    %4456 = vmatpush1.msra.mxu0 0.0
    %4457 = vmatprep.mubr.f32.mxu0 0.0
    %4458 = vmatmul.mubr.f32.gmra.mrb[0].mxu0 %v4231
    %v4459 = vpop.f32.mrb[0].mxu0
    %v4460 = vadd.f32 %v271, %v4459
    %v4461 = vpop.f32.mrb[0].mxu0
    %4462 = vdwg.mxu0
    %v4463 = vmul.f32 %v4310, %v4460
    %v4464 = vadd.f32 %v4392, %v4463
    %v4465 = vtanh.pop %v4464
    %v4466 = vsub.f32 1.0, %v4390
    %v4467 = vmul.f32 %v4466, %v4465
    %v4468 = vmul.f32 %v4390, %v3976
    %v4469 = vadd.f32 %v4467, %v4468
    %v4470 = vmul.f32 %v1154, %v4469
    %v4471 = vmul.f32 %v1161, %v3976
    %v4472 = vadd.f32 %v4470, %v4471
    %v4473 = vmul.f32 %v1154, %v4472
    %s4474 = scalar_lea.vmem [#allocation7], 32
    %4475 = vst.msk [vmem:[%s4474] sm:$0xf] %vm365, %v4473
    %s4476 = scalar_lea.vmem [#allocation2], 132
    %v4477 = vld [vmem:[%s4476] sm:$0xf]
    %v4479 = vsel %vm91, %v4224, 0
    %4481 = vmatprep.subr.mxu0 0.0
    %4482 = vmatpush1.msra.mxu0 %v62
    %4483 = vmatprep.subr.mxu0 0.0
    %4484 = vmatpush1.msra.mxu0 %v63
    %4485 = vmatprep.subr.mxu0 0.0
    %4486 = vmatpush1.msra.mxu0 %v64
    %4487 = vmatprep.subr.mxu0 0.0
    %4488 = vmatpush1.msra.mxu0 %v65
    %4489 = vmatprep.subr.mxu0 0.0
    %4490 = vmatpush1.msra.mxu0 0.0
    %4491 = vmatprep.subr.mxu0 0.0
    %4492 = vmatpush1.msra.mxu0 0.0
    %4493 = vmatprep.subr.mxu0 0.0
    %4494 = vmatpush1.msra.mxu0 0.0
    %4495 = vmatprep.subr.mxu0 0.0
    %4496 = vmatpush1.msra.mxu0 0.0
    %4497 = vmatprep.subr.mxu0 0.0
    %4498 = vmatpush1.msra.mxu0 0.0
    %4499 = vmatprep.subr.mxu0 0.0
    %4500 = vmatpush1.msra.mxu0 0.0
    %4501 = vmatprep.subr.mxu0 0.0
    %4502 = vmatpush1.msra.mxu0 0.0
    %4503 = vmatprep.subr.mxu0 0.0
    %4504 = vmatpush1.msra.mxu0 0.0
    %4505 = vmatprep.subr.mxu0 0.0
    %4506 = vmatpush1.msra.mxu0 0.0
    %4507 = vmatprep.subr.mxu0 0.0
    %4508 = vmatpush1.msra.mxu0 0.0
    %4509 = vmatprep.subr.mxu0 0.0
    %4510 = vmatpush1.msra.mxu0 0.0
    %4511 = vmatprep.subr.mxu0 0.0
    %4512 = vmatpush1.msra.mxu0 0.0
    %4513 = vmatprep.subr.mxu0 0.0
    %4514 = vmatpush1.msra.mxu0 0.0
    %4515 = vmatprep.subr.mxu0 0.0
    %4516 = vmatpush1.msra.mxu0 0.0
    %4517 = vmatprep.subr.mxu0 0.0
    %4518 = vmatpush1.msra.mxu0 0.0
    %4519 = vmatprep.subr.mxu0 0.0
    %4520 = vmatpush1.msra.mxu0 0.0
    %4521 = vmatprep.subr.mxu0 0.0
    %4522 = vmatpush1.msra.mxu0 0.0
    %4523 = vmatprep.subr.mxu0 0.0
    %4524 = vmatpush1.msra.mxu0 0.0
    %4525 = vmatprep.subr.mxu0 0.0
    %4526 = vmatpush1.msra.mxu0 0.0
    %4527 = vmatprep.subr.mxu0 0.0
    %4528 = vmatpush1.msra.mxu0 0.0
    %4529 = vmatprep.subr.mxu0 0.0
    %4530 = vmatpush1.msra.mxu0 0.0
    %4531 = vmatprep.subr.mxu0 0.0
    %4532 = vmatpush1.msra.mxu0 0.0
    %4533 = vmatprep.subr.mxu0 0.0
    %4534 = vmatpush1.msra.mxu0 0.0
    %4535 = vmatprep.subr.mxu0 0.0
    %4536 = vmatpush1.msra.mxu0 0.0
    %4537 = vmatprep.subr.mxu0 0.0
    %4538 = vmatpush1.msra.mxu0 0.0
    %4539 = vmatprep.subr.mxu0 0.0
    %4540 = vmatpush1.msra.mxu0 0.0
    %4541 = vmatprep.subr.mxu0 0.0
    %4542 = vmatpush1.msra.mxu0 0.0
    %4543 = vmatprep.subr.mxu0 0.0
    %4544 = vmatpush1.msra.mxu0 0.0
    %4545 = vmatprep.mubr.f32.mxu0 0.0
    %4546 = vmatmul.mubr.f32.gmra.mrb[0].mxu0 %v4479
    %v4547 = vpop.f32.mrb[0].mxu0
    %v4548 = vadd.f32 0.0, %v4547
    %v4549 = vpop.f32.mrb[0].mxu0
    %4550 = vdwg.mxu0
    %v4551 = vadd.f32 %v4477, %v4548
    %v4552 = vadd.f32 %v4551, %v447
    %v4553 = vxor.u32 %v4552, 2147483648
    %v4554 = vmul.f32 %v4553, 1.442695
    %v4555 = vpow.pop %v4554
    %v4556 = vadd.f32 %v4555, 1.0
    %v4557 = vrcp.pop %v4556
    %v4558 = vmul.f32 1.0, %v4557
    %s4559 = scalar_lea.vmem [#allocation2], 136
    %v4560 = vld [vmem:[%s4559] sm:$0xf]
    %4561 = vmatprep.subr.mxu0 0.0
    %4562 = vmatpush1.msra.mxu0 %v67
    %4563 = vmatprep.subr.mxu0 0.0
    %4564 = vmatpush1.msra.mxu0 %v68
    %4565 = vmatprep.subr.mxu0 0.0
    %4566 = vmatpush1.msra.mxu0 %v69
    %4567 = vmatprep.subr.mxu0 0.0
    %4568 = vmatpush1.msra.mxu0 %v70
    %4569 = vmatprep.subr.mxu0 0.0
    %4570 = vmatpush1.msra.mxu0 0.0
    %4571 = vmatprep.subr.mxu0 0.0
    %4572 = vmatpush1.msra.mxu0 0.0
    %4573 = vmatprep.subr.mxu0 0.0
    %4574 = vmatpush1.msra.mxu0 0.0
    %4575 = vmatprep.subr.mxu0 0.0
    %4576 = vmatpush1.msra.mxu0 0.0
    %4577 = vmatprep.subr.mxu0 0.0
    %4578 = vmatpush1.msra.mxu0 0.0
    %4579 = vmatprep.subr.mxu0 0.0
    %4580 = vmatpush1.msra.mxu0 0.0
    %4581 = vmatprep.subr.mxu0 0.0
    %4582 = vmatpush1.msra.mxu0 0.0
    %4583 = vmatprep.subr.mxu0 0.0
    %4584 = vmatpush1.msra.mxu0 0.0
    %4585 = vmatprep.subr.mxu0 0.0
    %4586 = vmatpush1.msra.mxu0 0.0
    %4587 = vmatprep.subr.mxu0 0.0
    %4588 = vmatpush1.msra.mxu0 0.0
    %4589 = vmatprep.subr.mxu0 0.0
    %4590 = vmatpush1.msra.mxu0 0.0
    %4591 = vmatprep.subr.mxu0 0.0
    %4592 = vmatpush1.msra.mxu0 0.0
    %4593 = vmatprep.subr.mxu0 0.0
    %4594 = vmatpush1.msra.mxu0 0.0
    %4595 = vmatprep.subr.mxu0 0.0
    %4596 = vmatpush1.msra.mxu0 0.0
    %4597 = vmatprep.subr.mxu0 0.0
    %4598 = vmatpush1.msra.mxu0 0.0
    %4599 = vmatprep.subr.mxu0 0.0
    %4600 = vmatpush1.msra.mxu0 0.0
    %4601 = vmatprep.subr.mxu0 0.0
    %4602 = vmatpush1.msra.mxu0 0.0
    %4603 = vmatprep.subr.mxu0 0.0
    %4604 = vmatpush1.msra.mxu0 0.0
    %4605 = vmatprep.subr.mxu0 0.0
    %4606 = vmatpush1.msra.mxu0 0.0
    %4607 = vmatprep.subr.mxu0 0.0
    %4608 = vmatpush1.msra.mxu0 0.0
    %4609 = vmatprep.subr.mxu0 0.0
    %4610 = vmatpush1.msra.mxu0 0.0
    %4611 = vmatprep.subr.mxu0 0.0
    %4612 = vmatpush1.msra.mxu0 0.0
    %4613 = vmatprep.subr.mxu0 0.0
    %4614 = vmatpush1.msra.mxu0 0.0
    %4615 = vmatprep.subr.mxu0 0.0
    %4616 = vmatpush1.msra.mxu0 0.0
    %4617 = vmatprep.subr.mxu0 0.0
    %4618 = vmatpush1.msra.mxu0 0.0
    %4619 = vmatprep.subr.mxu0 0.0
    %4620 = vmatpush1.msra.mxu0 0.0
    %4621 = vmatprep.subr.mxu0 0.0
    %4622 = vmatpush1.msra.mxu0 0.0
    %4623 = vmatprep.subr.mxu0 0.0
    %4624 = vmatpush1.msra.mxu0 0.0
    %4625 = vmatprep.mubr.f32.mxu0 0.0
    %4626 = vmatmul.mubr.f32.gmra.mrb[0].mxu0 %v4479
    %v4627 = vpop.f32.mrb[0].mxu0
    %v4628 = vadd.f32 0.0, %v4627
    %v4629 = vpop.f32.mrb[0].mxu0
    %4630 = vdwg.mxu0
    %v4631 = vadd.f32 %v4560, %v4628
    %v4632 = vadd.f32 %v4631, %v533
    %v4633 = vxor.u32 %v4632, 2147483648
    %v4634 = vmul.f32 %v4633, 1.442695
    %v4635 = vpow.pop %v4634
    %v4636 = vadd.f32 %v4635, 1.0
    %v4637 = vrcp.pop %v4636
    %v4638 = vmul.f32 1.0, %v4637
    %s4639 = scalar_lea.vmem [#allocation2], 140
    %v4640 = vld [vmem:[%s4639] sm:$0xf]
    %4641 = vmatprep.subr.mxu0 0.0
    %4642 = vmatpush1.msra.mxu0 %v72
    %4643 = vmatprep.subr.mxu0 0.0
    %4644 = vmatpush1.msra.mxu0 %v73
    %4645 = vmatprep.subr.mxu0 0.0
    %4646 = vmatpush1.msra.mxu0 %v74
    %4647 = vmatprep.subr.mxu0 0.0
    %4648 = vmatpush1.msra.mxu0 %v75
    %4649 = vmatprep.subr.mxu0 0.0
    %4650 = vmatpush1.msra.mxu0 0.0
    %4651 = vmatprep.subr.mxu0 0.0
    %4652 = vmatpush1.msra.mxu0 0.0
    %4653 = vmatprep.subr.mxu0 0.0
    %4654 = vmatpush1.msra.mxu0 0.0
    %4655 = vmatprep.subr.mxu0 0.0
    %4656 = vmatpush1.msra.mxu0 0.0
    %4657 = vmatprep.subr.mxu0 0.0
    %4658 = vmatpush1.msra.mxu0 0.0
    %4659 = vmatprep.subr.mxu0 0.0
    %4660 = vmatpush1.msra.mxu0 0.0
    %4661 = vmatprep.subr.mxu0 0.0
    %4662 = vmatpush1.msra.mxu0 0.0
    %4663 = vmatprep.subr.mxu0 0.0
    %4664 = vmatpush1.msra.mxu0 0.0
    %4665 = vmatprep.subr.mxu0 0.0
    %4666 = vmatpush1.msra.mxu0 0.0
    %4667 = vmatprep.subr.mxu0 0.0
    %4668 = vmatpush1.msra.mxu0 0.0
    %4669 = vmatprep.subr.mxu0 0.0
    %4670 = vmatpush1.msra.mxu0 0.0
    %4671 = vmatprep.subr.mxu0 0.0
    %4672 = vmatpush1.msra.mxu0 0.0
    %4673 = vmatprep.subr.mxu0 0.0
    %4674 = vmatpush1.msra.mxu0 0.0
    %4675 = vmatprep.subr.mxu0 0.0
    %4676 = vmatpush1.msra.mxu0 0.0
    %4677 = vmatprep.subr.mxu0 0.0
    %4678 = vmatpush1.msra.mxu0 0.0
    %4679 = vmatprep.subr.mxu0 0.0
    %4680 = vmatpush1.msra.mxu0 0.0
    %4681 = vmatprep.subr.mxu0 0.0
    %4682 = vmatpush1.msra.mxu0 0.0
    %4683 = vmatprep.subr.mxu0 0.0
    %4684 = vmatpush1.msra.mxu0 0.0
    %4685 = vmatprep.subr.mxu0 0.0
    %4686 = vmatpush1.msra.mxu0 0.0
    %4687 = vmatprep.subr.mxu0 0.0
    %4688 = vmatpush1.msra.mxu0 0.0
    %4689 = vmatprep.subr.mxu0 0.0
    %4690 = vmatpush1.msra.mxu0 0.0
    %4691 = vmatprep.subr.mxu0 0.0
    %4692 = vmatpush1.msra.mxu0 0.0
    %4693 = vmatprep.subr.mxu0 0.0
    %4694 = vmatpush1.msra.mxu0 0.0
    %4695 = vmatprep.subr.mxu0 0.0
    %4696 = vmatpush1.msra.mxu0 0.0
    %4697 = vmatprep.subr.mxu0 0.0
    %4698 = vmatpush1.msra.mxu0 0.0
    %4699 = vmatprep.subr.mxu0 0.0
    %4700 = vmatpush1.msra.mxu0 0.0
    %4701 = vmatprep.subr.mxu0 0.0
    %4702 = vmatpush1.msra.mxu0 0.0
    %4703 = vmatprep.subr.mxu0 0.0
    %4704 = vmatpush1.msra.mxu0 0.0
    %4705 = vmatprep.mubr.f32.mxu0 0.0
    %4706 = vmatmul.mubr.f32.gmra.mrb[0].mxu0 %v4479
    %v4707 = vpop.f32.mrb[0].mxu0
    %v4708 = vadd.f32 %v548, %v4707
    %v4709 = vpop.f32.mrb[0].mxu0
    %4710 = vdwg.mxu0
    %v4711 = vmul.f32 %v4558, %v4708
    %v4712 = vadd.f32 %v4640, %v4711
    %v4713 = vtanh.pop %v4712
    %v4714 = vsub.f32 1.0, %v4638
    %v4715 = vmul.f32 %v4714, %v4713
    %v4716 = vmul.f32 %v4638, %v4224
    %v4717 = vadd.f32 %v4715, %v4716
    %v4718 = vmul.f32 %v892, %v4717
    %v4719 = vmul.f32 %v899, %v4224
    %v4720 = vadd.f32 %v4718, %v4719
    %v4721 = vmul.f32 %v892, %v4720
    %s4722 = scalar_lea.vmem [#allocation7], 44
    %4723 = vst.msk [vmem:[%s4722] sm:$0xf] %vm365, %v4721
    %s4724 = scalar_lea.vmem [#allocation2], 108
    %v4725 = vld [vmem:[%s4724] sm:$0xf]
    %v4727 = vsel %vm91, %v4472, 0
    %4729 = vmatprep.subr.mxu0 0.0
    %4730 = vmatpush1.msra.mxu0 %v47
    %4731 = vmatprep.subr.mxu0 0.0
    %4732 = vmatpush1.msra.mxu0 %v48
    %4733 = vmatprep.subr.mxu0 0.0
    %4734 = vmatpush1.msra.mxu0 %v49
    %4735 = vmatprep.subr.mxu0 0.0
    %4736 = vmatpush1.msra.mxu0 %v50
    %4737 = vmatprep.subr.mxu0 0.0
    %4738 = vmatpush1.msra.mxu0 0.0
    %4739 = vmatprep.subr.mxu0 0.0
    %4740 = vmatpush1.msra.mxu0 0.0
    %4741 = vmatprep.subr.mxu0 0.0
    %4742 = vmatpush1.msra.mxu0 0.0
    %4743 = vmatprep.subr.mxu0 0.0
    %4744 = vmatpush1.msra.mxu0 0.0
    %4745 = vmatprep.subr.mxu0 0.0
    %4746 = vmatpush1.msra.mxu0 0.0
    %4747 = vmatprep.subr.mxu0 0.0
    %4748 = vmatpush1.msra.mxu0 0.0
    %4749 = vmatprep.subr.mxu0 0.0
    %4750 = vmatpush1.msra.mxu0 0.0
    %4751 = vmatprep.subr.mxu0 0.0
    %4752 = vmatpush1.msra.mxu0 0.0
    %4753 = vmatprep.subr.mxu0 0.0
    %4754 = vmatpush1.msra.mxu0 0.0
    %4755 = vmatprep.subr.mxu0 0.0
    %4756 = vmatpush1.msra.mxu0 0.0
    %4757 = vmatprep.subr.mxu0 0.0
    %4758 = vmatpush1.msra.mxu0 0.0
    %4759 = vmatprep.subr.mxu0 0.0
    %4760 = vmatpush1.msra.mxu0 0.0
    %4761 = vmatprep.subr.mxu0 0.0
    %4762 = vmatpush1.msra.mxu0 0.0
    %4763 = vmatprep.subr.mxu0 0.0
    %4764 = vmatpush1.msra.mxu0 0.0
    %4765 = vmatprep.subr.mxu0 0.0
    %4766 = vmatpush1.msra.mxu0 0.0
    %4767 = vmatprep.subr.mxu0 0.0
    %4768 = vmatpush1.msra.mxu0 0.0
    %4769 = vmatprep.subr.mxu0 0.0
    %4770 = vmatpush1.msra.mxu0 0.0
    %4771 = vmatprep.subr.mxu0 0.0
    %4772 = vmatpush1.msra.mxu0 0.0
    %4773 = vmatprep.subr.mxu0 0.0
    %4774 = vmatpush1.msra.mxu0 0.0
    %4775 = vmatprep.subr.mxu0 0.0
    %4776 = vmatpush1.msra.mxu0 0.0
    %4777 = vmatprep.subr.mxu0 0.0
    %4778 = vmatpush1.msra.mxu0 0.0
    %4779 = vmatprep.subr.mxu0 0.0
    %4780 = vmatpush1.msra.mxu0 0.0
    %4781 = vmatprep.subr.mxu0 0.0
    %4782 = vmatpush1.msra.mxu0 0.0
    %4783 = vmatprep.subr.mxu0 0.0
    %4784 = vmatpush1.msra.mxu0 0.0
    %4785 = vmatprep.subr.mxu0 0.0
    %4786 = vmatpush1.msra.mxu0 0.0
    %4787 = vmatprep.subr.mxu0 0.0
    %4788 = vmatpush1.msra.mxu0 0.0
    %4789 = vmatprep.subr.mxu0 0.0
    %4790 = vmatpush1.msra.mxu0 0.0
    %4791 = vmatprep.subr.mxu0 0.0
    %4792 = vmatpush1.msra.mxu0 0.0
    %4793 = vmatprep.mubr.f32.mxu0 0.0
    %4794 = vmatmul.mubr.f32.gmra.mrb[0].mxu0 %v4727
    %v4795 = vpop.f32.mrb[0].mxu0
    %v4796 = vadd.f32 0.0, %v4795
    %v4797 = vpop.f32.mrb[0].mxu0
    %4798 = vdwg.mxu0
    %v4799 = vadd.f32 %v4725, %v4796
    %v4800 = vadd.f32 %v4799, %v170
    %v4801 = vxor.u32 %v4800, 2147483648
    %v4802 = vmul.f32 %v4801, 1.442695
    %v4803 = vpow.pop %v4802
    %v4804 = vadd.f32 %v4803, 1.0
    %v4805 = vrcp.pop %v4804
    %v4806 = vmul.f32 1.0, %v4805
    %s4807 = scalar_lea.vmem [#allocation2], 112
    %v4808 = vld [vmem:[%s4807] sm:$0xf]
    %4809 = vmatprep.subr.mxu0 0.0
    %4810 = vmatpush1.msra.mxu0 %v52
    %4811 = vmatprep.subr.mxu0 0.0
    %4812 = vmatpush1.msra.mxu0 %v53
    %4813 = vmatprep.subr.mxu0 0.0
    %4814 = vmatpush1.msra.mxu0 %v54
    %4815 = vmatprep.subr.mxu0 0.0
    %4816 = vmatpush1.msra.mxu0 %v55
    %4817 = vmatprep.subr.mxu0 0.0
    %4818 = vmatpush1.msra.mxu0 0.0
    %4819 = vmatprep.subr.mxu0 0.0
    %4820 = vmatpush1.msra.mxu0 0.0
    %4821 = vmatprep.subr.mxu0 0.0
    %4822 = vmatpush1.msra.mxu0 0.0
    %4823 = vmatprep.subr.mxu0 0.0
    %4824 = vmatpush1.msra.mxu0 0.0
    %4825 = vmatprep.subr.mxu0 0.0
    %4826 = vmatpush1.msra.mxu0 0.0
    %4827 = vmatprep.subr.mxu0 0.0
    %4828 = vmatpush1.msra.mxu0 0.0
    %4829 = vmatprep.subr.mxu0 0.0
    %4830 = vmatpush1.msra.mxu0 0.0
    %4831 = vmatprep.subr.mxu0 0.0
    %4832 = vmatpush1.msra.mxu0 0.0
    %4833 = vmatprep.subr.mxu0 0.0
    %4834 = vmatpush1.msra.mxu0 0.0
    %4835 = vmatprep.subr.mxu0 0.0
    %4836 = vmatpush1.msra.mxu0 0.0
    %4837 = vmatprep.subr.mxu0 0.0
    %4838 = vmatpush1.msra.mxu0 0.0
    %4839 = vmatprep.subr.mxu0 0.0
    %4840 = vmatpush1.msra.mxu0 0.0
    %4841 = vmatprep.subr.mxu0 0.0
    %4842 = vmatpush1.msra.mxu0 0.0
    %4843 = vmatprep.subr.mxu0 0.0
    %4844 = vmatpush1.msra.mxu0 0.0
    %4845 = vmatprep.subr.mxu0 0.0
    %4846 = vmatpush1.msra.mxu0 0.0
    %4847 = vmatprep.subr.mxu0 0.0
    %4848 = vmatpush1.msra.mxu0 0.0
    %4849 = vmatprep.subr.mxu0 0.0
    %4850 = vmatpush1.msra.mxu0 0.0
    %4851 = vmatprep.subr.mxu0 0.0
    %4852 = vmatpush1.msra.mxu0 0.0
    %4853 = vmatprep.subr.mxu0 0.0
    %4854 = vmatpush1.msra.mxu0 0.0
    %4855 = vmatprep.subr.mxu0 0.0
    %4856 = vmatpush1.msra.mxu0 0.0
    %4857 = vmatprep.subr.mxu0 0.0
    %4858 = vmatpush1.msra.mxu0 0.0
    %4859 = vmatprep.subr.mxu0 0.0
    %4860 = vmatpush1.msra.mxu0 0.0
    %4861 = vmatprep.subr.mxu0 0.0
    %4862 = vmatpush1.msra.mxu0 0.0
    %4863 = vmatprep.subr.mxu0 0.0
    %4864 = vmatpush1.msra.mxu0 0.0
    %4865 = vmatprep.subr.mxu0 0.0
    %4866 = vmatpush1.msra.mxu0 0.0
    %4867 = vmatprep.subr.mxu0 0.0
    %4868 = vmatpush1.msra.mxu0 0.0
    %4869 = vmatprep.subr.mxu0 0.0
    %4870 = vmatpush1.msra.mxu0 0.0
    %4871 = vmatprep.subr.mxu0 0.0
    %4872 = vmatpush1.msra.mxu0 0.0
    %4873 = vmatprep.mubr.f32.mxu0 0.0
    %4874 = vmatmul.mubr.f32.gmra.mrb[0].mxu0 %v4727
    %v4875 = vpop.f32.mrb[0].mxu0
    %v4876 = vadd.f32 0.0, %v4875
    %v4877 = vpop.f32.mrb[0].mxu0
    %4878 = vdwg.mxu0
    %v4879 = vadd.f32 %v4808, %v4876
    %v4880 = vadd.f32 %v4879, %v256
    %v4881 = vxor.u32 %v4880, 2147483648
    %v4882 = vmul.f32 %v4881, 1.442695
    %v4883 = vpow.pop %v4882
    %v4884 = vadd.f32 %v4883, 1.0
    %v4885 = vrcp.pop %v4884
    %v4886 = vmul.f32 1.0, %v4885
    %s4887 = scalar_lea.vmem [#allocation2], 116
    %v4888 = vld [vmem:[%s4887] sm:$0xf]
    %4889 = vmatprep.subr.mxu0 0.0
    %4890 = vmatpush1.msra.mxu0 %v57
    %4891 = vmatprep.subr.mxu0 0.0
    %4892 = vmatpush1.msra.mxu0 %v58
    %4893 = vmatprep.subr.mxu0 0.0
    %4894 = vmatpush1.msra.mxu0 %v59
    %4895 = vmatprep.subr.mxu0 0.0
    %4896 = vmatpush1.msra.mxu0 %v60
    %4897 = vmatprep.subr.mxu0 0.0
    %4898 = vmatpush1.msra.mxu0 0.0
    %4899 = vmatprep.subr.mxu0 0.0
    %4900 = vmatpush1.msra.mxu0 0.0
    %4901 = vmatprep.subr.mxu0 0.0
    %4902 = vmatpush1.msra.mxu0 0.0
    %4903 = vmatprep.subr.mxu0 0.0
    %4904 = vmatpush1.msra.mxu0 0.0
    %4905 = vmatprep.subr.mxu0 0.0
    %4906 = vmatpush1.msra.mxu0 0.0
    %4907 = vmatprep.subr.mxu0 0.0
    %4908 = vmatpush1.msra.mxu0 0.0
    %4909 = vmatprep.subr.mxu0 0.0
    %4910 = vmatpush1.msra.mxu0 0.0
    %4911 = vmatprep.subr.mxu0 0.0
    %4912 = vmatpush1.msra.mxu0 0.0
    %4913 = vmatprep.subr.mxu0 0.0
    %4914 = vmatpush1.msra.mxu0 0.0
    %4915 = vmatprep.subr.mxu0 0.0
    %4916 = vmatpush1.msra.mxu0 0.0
    %4917 = vmatprep.subr.mxu0 0.0
    %4918 = vmatpush1.msra.mxu0 0.0
    %4919 = vmatprep.subr.mxu0 0.0
    %4920 = vmatpush1.msra.mxu0 0.0
    %4921 = vmatprep.subr.mxu0 0.0
    %4922 = vmatpush1.msra.mxu0 0.0
    %4923 = vmatprep.subr.mxu0 0.0
    %4924 = vmatpush1.msra.mxu0 0.0
    %4925 = vmatprep.subr.mxu0 0.0
    %4926 = vmatpush1.msra.mxu0 0.0
    %4927 = vmatprep.subr.mxu0 0.0
    %4928 = vmatpush1.msra.mxu0 0.0
    %4929 = vmatprep.subr.mxu0 0.0
    %4930 = vmatpush1.msra.mxu0 0.0
    %4931 = vmatprep.subr.mxu0 0.0
    %4932 = vmatpush1.msra.mxu0 0.0
    %4933 = vmatprep.subr.mxu0 0.0
    %4934 = vmatpush1.msra.mxu0 0.0
    %4935 = vmatprep.subr.mxu0 0.0
    %4936 = vmatpush1.msra.mxu0 0.0
    %4937 = vmatprep.subr.mxu0 0.0
    %4938 = vmatpush1.msra.mxu0 0.0
    %4939 = vmatprep.subr.mxu0 0.0
    %4940 = vmatpush1.msra.mxu0 0.0
    %4941 = vmatprep.subr.mxu0 0.0
    %4942 = vmatpush1.msra.mxu0 0.0
    %4943 = vmatprep.subr.mxu0 0.0
    %4944 = vmatpush1.msra.mxu0 0.0
    %4945 = vmatprep.subr.mxu0 0.0
    %4946 = vmatpush1.msra.mxu0 0.0
    %4947 = vmatprep.subr.mxu0 0.0
    %4948 = vmatpush1.msra.mxu0 0.0
    %4949 = vmatprep.subr.mxu0 0.0
    %4950 = vmatpush1.msra.mxu0 0.0
    %4951 = vmatprep.subr.mxu0 0.0
    %4952 = vmatpush1.msra.mxu0 0.0
    %4953 = vmatprep.mubr.f32.mxu0 0.0
    %4954 = vmatmul.mubr.f32.gmra.mrb[0].mxu0 %v4727
    %v4955 = vpop.f32.mrb[0].mxu0
    %v4956 = vadd.f32 %v271, %v4955
    %v4957 = vpop.f32.mrb[0].mxu0
    %4958 = vdwg.mxu0
    %v4959 = vmul.f32 %v4806, %v4956
    %v4960 = vadd.f32 %v4888, %v4959
    %v4961 = vtanh.pop %v4960
    %v4962 = vsub.f32 1.0, %v4886
    %v4963 = vmul.f32 %v4962, %v4961
    %v4964 = vmul.f32 %v4886, %v4472
    %v4965 = vadd.f32 %v4963, %v4964
    %v4966 = vmul.f32 %v630, %v4965
    %v4967 = vmul.f32 %v637, %v4472
    %v4968 = vadd.f32 %v4966, %v4967
    %v4969 = vmul.f32 %v630, %v4968
    %s4970 = scalar_lea.vmem [#allocation7], 36
    %4971 = vst.msk [vmem:[%s4970] sm:$0xf] %vm365, %v4969
    %s4972 = scalar_lea.vmem [#allocation2], 120
    %v4973 = vld [vmem:[%s4972] sm:$0xf]
    %v4975 = vsel %vm91, %v4720, 0
    %4977 = vmatprep.subr.mxu0 0.0
    %4978 = vmatpush1.msra.mxu0 %v62
    %4979 = vmatprep.subr.mxu0 0.0
    %4980 = vmatpush1.msra.mxu0 %v63
    %4981 = vmatprep.subr.mxu0 0.0
    %4982 = vmatpush1.msra.mxu0 %v64
    %4983 = vmatprep.subr.mxu0 0.0
    %4984 = vmatpush1.msra.mxu0 %v65
    %4985 = vmatprep.subr.mxu0 0.0
    %4986 = vmatpush1.msra.mxu0 0.0
    %4987 = vmatprep.subr.mxu0 0.0
    %4988 = vmatpush1.msra.mxu0 0.0
    %4989 = vmatprep.subr.mxu0 0.0
    %4990 = vmatpush1.msra.mxu0 0.0
    %4991 = vmatprep.subr.mxu0 0.0
    %4992 = vmatpush1.msra.mxu0 0.0
    %4993 = vmatprep.subr.mxu0 0.0
    %4994 = vmatpush1.msra.mxu0 0.0
    %4995 = vmatprep.subr.mxu0 0.0
    %4996 = vmatpush1.msra.mxu0 0.0
    %4997 = vmatprep.subr.mxu0 0.0
    %4998 = vmatpush1.msra.mxu0 0.0
    %4999 = vmatprep.subr.mxu0 0.0
    %5000 = vmatpush1.msra.mxu0 0.0
    %5001 = vmatprep.subr.mxu0 0.0
    %5002 = vmatpush1.msra.mxu0 0.0
    %5003 = vmatprep.subr.mxu0 0.0
    %5004 = vmatpush1.msra.mxu0 0.0
    %5005 = vmatprep.subr.mxu0 0.0
    %5006 = vmatpush1.msra.mxu0 0.0
    %5007 = vmatprep.subr.mxu0 0.0
    %5008 = vmatpush1.msra.mxu0 0.0
    %5009 = vmatprep.subr.mxu0 0.0
    %5010 = vmatpush1.msra.mxu0 0.0
    %5011 = vmatprep.subr.mxu0 0.0
    %5012 = vmatpush1.msra.mxu0 0.0
    %5013 = vmatprep.subr.mxu0 0.0
    %5014 = vmatpush1.msra.mxu0 0.0
    %5015 = vmatprep.subr.mxu0 0.0
    %5016 = vmatpush1.msra.mxu0 0.0
    %5017 = vmatprep.subr.mxu0 0.0
    %5018 = vmatpush1.msra.mxu0 0.0
    %5019 = vmatprep.subr.mxu0 0.0
    %5020 = vmatpush1.msra.mxu0 0.0
    %5021 = vmatprep.subr.mxu0 0.0
    %5022 = vmatpush1.msra.mxu0 0.0
    %5023 = vmatprep.subr.mxu0 0.0
    %5024 = vmatpush1.msra.mxu0 0.0
    %5025 = vmatprep.subr.mxu0 0.0
    %5026 = vmatpush1.msra.mxu0 0.0
    %5027 = vmatprep.subr.mxu0 0.0
    %5028 = vmatpush1.msra.mxu0 0.0
    %5029 = vmatprep.subr.mxu0 0.0
    %5030 = vmatpush1.msra.mxu0 0.0
    %5031 = vmatprep.subr.mxu0 0.0
    %5032 = vmatpush1.msra.mxu0 0.0
    %5033 = vmatprep.subr.mxu0 0.0
    %5034 = vmatpush1.msra.mxu0 0.0
    %5035 = vmatprep.subr.mxu0 0.0
    %5036 = vmatpush1.msra.mxu0 0.0
    %5037 = vmatprep.subr.mxu0 0.0
    %5038 = vmatpush1.msra.mxu0 0.0
    %5039 = vmatprep.subr.mxu0 0.0
    %5040 = vmatpush1.msra.mxu0 0.0
    %5041 = vmatprep.mubr.f32.mxu0 0.0
    %5042 = vmatmul.mubr.f32.gmra.mrb[0].mxu0 %v4975
    %v5043 = vpop.f32.mrb[0].mxu0
    %v5044 = vadd.f32 0.0, %v5043
    %v5045 = vpop.f32.mrb[0].mxu0
    %5046 = vdwg.mxu0
    %v5047 = vadd.f32 %v4973, %v5044
    %v5048 = vadd.f32 %v5047, %v447
    %v5049 = vxor.u32 %v5048, 2147483648
    %v5050 = vmul.f32 %v5049, 1.442695
    %v5051 = vpow.pop %v5050
    %v5052 = vadd.f32 %v5051, 1.0
    %v5053 = vrcp.pop %v5052
    %v5054 = vmul.f32 1.0, %v5053
    %s5055 = scalar_lea.vmem [#allocation2], 124
    %v5056 = vld [vmem:[%s5055] sm:$0xf]
    %5057 = vmatprep.subr.mxu0 0.0
    %5058 = vmatpush1.msra.mxu0 %v67
    %5059 = vmatprep.subr.mxu0 0.0
    %5060 = vmatpush1.msra.mxu0 %v68
    %5061 = vmatprep.subr.mxu0 0.0
    %5062 = vmatpush1.msra.mxu0 %v69
    %5063 = vmatprep.subr.mxu0 0.0
    %5064 = vmatpush1.msra.mxu0 %v70
    %5065 = vmatprep.subr.mxu0 0.0
    %5066 = vmatpush1.msra.mxu0 0.0
    %5067 = vmatprep.subr.mxu0 0.0
    %5068 = vmatpush1.msra.mxu0 0.0
    %5069 = vmatprep.subr.mxu0 0.0
    %5070 = vmatpush1.msra.mxu0 0.0
    %5071 = vmatprep.subr.mxu0 0.0
    %5072 = vmatpush1.msra.mxu0 0.0
    %5073 = vmatprep.subr.mxu0 0.0
    %5074 = vmatpush1.msra.mxu0 0.0
    %5075 = vmatprep.subr.mxu0 0.0
    %5076 = vmatpush1.msra.mxu0 0.0
    %5077 = vmatprep.subr.mxu0 0.0
    %5078 = vmatpush1.msra.mxu0 0.0
    %5079 = vmatprep.subr.mxu0 0.0
    %5080 = vmatpush1.msra.mxu0 0.0
    %5081 = vmatprep.subr.mxu0 0.0
    %5082 = vmatpush1.msra.mxu0 0.0
    %5083 = vmatprep.subr.mxu0 0.0
    %5084 = vmatpush1.msra.mxu0 0.0
    %5085 = vmatprep.subr.mxu0 0.0
    %5086 = vmatpush1.msra.mxu0 0.0
    %5087 = vmatprep.subr.mxu0 0.0
    %5088 = vmatpush1.msra.mxu0 0.0
    %5089 = vmatprep.subr.mxu0 0.0
    %5090 = vmatpush1.msra.mxu0 0.0
    %5091 = vmatprep.subr.mxu0 0.0
    %5092 = vmatpush1.msra.mxu0 0.0
    %5093 = vmatprep.subr.mxu0 0.0
    %5094 = vmatpush1.msra.mxu0 0.0
    %5095 = vmatprep.subr.mxu0 0.0
    %5096 = vmatpush1.msra.mxu0 0.0
    %5097 = vmatprep.subr.mxu0 0.0
    %5098 = vmatpush1.msra.mxu0 0.0
    %5099 = vmatprep.subr.mxu0 0.0
    %5100 = vmatpush1.msra.mxu0 0.0
    %5101 = vmatprep.subr.mxu0 0.0
    %5102 = vmatpush1.msra.mxu0 0.0
    %5103 = vmatprep.subr.mxu0 0.0
    %5104 = vmatpush1.msra.mxu0 0.0
    %5105 = vmatprep.subr.mxu0 0.0
    %5106 = vmatpush1.msra.mxu0 0.0
    %5107 = vmatprep.subr.mxu0 0.0
    %5108 = vmatpush1.msra.mxu0 0.0
    %5109 = vmatprep.subr.mxu0 0.0
    %5110 = vmatpush1.msra.mxu0 0.0
    %5111 = vmatprep.subr.mxu0 0.0
    %5112 = vmatpush1.msra.mxu0 0.0
    %5113 = vmatprep.subr.mxu0 0.0
    %5114 = vmatpush1.msra.mxu0 0.0
    %5115 = vmatprep.subr.mxu0 0.0
    %5116 = vmatpush1.msra.mxu0 0.0
    %5117 = vmatprep.subr.mxu0 0.0
    %5118 = vmatpush1.msra.mxu0 0.0
    %5119 = vmatprep.subr.mxu0 0.0
    %5120 = vmatpush1.msra.mxu0 0.0
    %5121 = vmatprep.mubr.f32.mxu0 0.0
    %5122 = vmatmul.mubr.f32.gmra.mrb[0].mxu0 %v4975
    %v5123 = vpop.f32.mrb[0].mxu0
    %v5124 = vadd.f32 0.0, %v5123
    %v5125 = vpop.f32.mrb[0].mxu0
    %5126 = vdwg.mxu0
    %v5127 = vadd.f32 %v5056, %v5124
    %v5128 = vadd.f32 %v5127, %v533
    %v5129 = vxor.u32 %v5128, 2147483648
    %v5130 = vmul.f32 %v5129, 1.442695
    %v5131 = vpow.pop %v5130
    %v5132 = vadd.f32 %v5131, 1.0
    %v5133 = vrcp.pop %v5132
    %v5134 = vmul.f32 1.0, %v5133
    %s5135 = scalar_lea.vmem [#allocation2], 128
    %v5136 = vld [vmem:[%s5135] sm:$0xf]
    %5137 = vmatprep.subr.mxu0 0.0
    %5138 = vmatpush1.msra.mxu0 %v72
    %5139 = vmatprep.subr.mxu0 0.0
    %5140 = vmatpush1.msra.mxu0 %v73
    %5141 = vmatprep.subr.mxu0 0.0
    %5142 = vmatpush1.msra.mxu0 %v74
    %5143 = vmatprep.subr.mxu0 0.0
    %5144 = vmatpush1.msra.mxu0 %v75
    %5145 = vmatprep.subr.mxu0 0.0
    %5146 = vmatpush1.msra.mxu0 0.0
    %5147 = vmatprep.subr.mxu0 0.0
    %5148 = vmatpush1.msra.mxu0 0.0
    %5149 = vmatprep.subr.mxu0 0.0
    %5150 = vmatpush1.msra.mxu0 0.0
    %5151 = vmatprep.subr.mxu0 0.0
    %5152 = vmatpush1.msra.mxu0 0.0
    %5153 = vmatprep.subr.mxu0 0.0
    %5154 = vmatpush1.msra.mxu0 0.0
    %5155 = vmatprep.subr.mxu0 0.0
    %5156 = vmatpush1.msra.mxu0 0.0
    %5157 = vmatprep.subr.mxu0 0.0
    %5158 = vmatpush1.msra.mxu0 0.0
    %5159 = vmatprep.subr.mxu0 0.0
    %5160 = vmatpush1.msra.mxu0 0.0
    %5161 = vmatprep.subr.mxu0 0.0
    %5162 = vmatpush1.msra.mxu0 0.0
    %5163 = vmatprep.subr.mxu0 0.0
    %5164 = vmatpush1.msra.mxu0 0.0
    %5165 = vmatprep.subr.mxu0 0.0
    %5166 = vmatpush1.msra.mxu0 0.0
    %5167 = vmatprep.subr.mxu0 0.0
    %5168 = vmatpush1.msra.mxu0 0.0
    %5169 = vmatprep.subr.mxu0 0.0
    %5170 = vmatpush1.msra.mxu0 0.0
    %5171 = vmatprep.subr.mxu0 0.0
    %5172 = vmatpush1.msra.mxu0 0.0
    %5173 = vmatprep.subr.mxu0 0.0
    %5174 = vmatpush1.msra.mxu0 0.0
    %5175 = vmatprep.subr.mxu0 0.0
    %5176 = vmatpush1.msra.mxu0 0.0
    %5177 = vmatprep.subr.mxu0 0.0
    %5178 = vmatpush1.msra.mxu0 0.0
    %5179 = vmatprep.subr.mxu0 0.0
    %5180 = vmatpush1.msra.mxu0 0.0
    %5181 = vmatprep.subr.mxu0 0.0
    %5182 = vmatpush1.msra.mxu0 0.0
    %5183 = vmatprep.subr.mxu0 0.0
    %5184 = vmatpush1.msra.mxu0 0.0
    %5185 = vmatprep.subr.mxu0 0.0
    %5186 = vmatpush1.msra.mxu0 0.0
    %5187 = vmatprep.subr.mxu0 0.0
    %5188 = vmatpush1.msra.mxu0 0.0
    %5189 = vmatprep.subr.mxu0 0.0
    %5190 = vmatpush1.msra.mxu0 0.0
    %5191 = vmatprep.subr.mxu0 0.0
    %5192 = vmatpush1.msra.mxu0 0.0
    %5193 = vmatprep.subr.mxu0 0.0
    %5194 = vmatpush1.msra.mxu0 0.0
    %5195 = vmatprep.subr.mxu0 0.0
    %5196 = vmatpush1.msra.mxu0 0.0
    %5197 = vmatprep.subr.mxu0 0.0
    %5198 = vmatpush1.msra.mxu0 0.0
    %5199 = vmatprep.subr.mxu0 0.0
    %5200 = vmatpush1.msra.mxu0 0.0
    %5201 = vmatprep.mubr.f32.mxu0 0.0
    %5202 = vmatmul.mubr.f32.gmra.mrb[0].mxu0 %v4975
    %v5203 = vpop.f32.mrb[0].mxu0
    %v5204 = vadd.f32 %v548, %v5203
    %v5205 = vpop.f32.mrb[0].mxu0
    %5206 = vdwg.mxu0
    %v5207 = vmul.f32 %v5054, %v5204
    %v5208 = vadd.f32 %v5136, %v5207
    %v5209 = vtanh.pop %v5208
    %v5210 = vsub.f32 1.0, %v5134
    %v5211 = vmul.f32 %v5210, %v5209
    %v5212 = vmul.f32 %v5134, %v4720
    %v5213 = vadd.f32 %v5211, %v5212
    %v5214 = vmul.f32 %v353, %v5213
    %v5215 = vmul.f32 %v360, %v4720
    %v5216 = vadd.f32 %v5214, %v5215
    %v5217 = vmul.f32 %v353, %v5216
    %s5218 = scalar_lea.vmem [#allocation7], 40
    %5219 = vst.msk [vmem:[%s5218] sm:$0xf] %vm365, %v5217
    // Predicated region
    $region26: #{tpu_custom_call.1} parent=1 // pred_check
      _
    $region27: #{tpu_custom_call.1} parent=1 // pred_check_branch
      %5221 = sbr.rel (0) target = $region29
    $region28: #{tpu_custom_call.1} parent=1 // pred_region
      %s5223 = ssub.s32 1280, 1280
      %5224 = vsyncadd [#allocation4], %s5223
      %s5225 = sshll.u32 [#allocation7], 4
      %s5226 = int_to_ptr.vmem [resolvable:$true] %s5225
      %5231 = dma.vmem_to_hbm [thread:$0]  %s5226, 1280, %s4, [#allocation4], 64, 64, 4
    $region29: #{tpu_custom_call.1} parent=1 // pred_fallthru
      _
    // Predicated region
    $region30: #{tpu_custom_call.1} parent=1 // pred_check
      _
    $region31: #{tpu_custom_call.1} parent=1 // pred_check_branch
      %5233 = sbr.rel (0) target = $region33
    $region32: #{tpu_custom_call.1} parent=1 // pred_region
      %5234 = dma.done [#allocation4], 1280
    $region33: #{tpu_custom_call.1} parent=1 // pred_fallthru
      _
    %5235 = vsyncpa [#allocation3], 1
    %5236 = vsyncpa [#allocation6], 1
    %5237 = vsyncpa [#allocation4], 1

</llo_original>
